<compile_context>
chip_gen: v7x
topology: tpu7x:2x2x1
jax: 0.10.0
libtpu: 0.0.40
codegen_flags: <defaults>
</compile_context>

<pallas_src>
import jax
import jax.numpy as jnp
from jax.scipy.linalg import block_diag
from jax.experimental import pallas as pl
from jax.experimental.pallas import tpu as pltpu

H = 32                  # N_LSTM_nodes
NL = 5                  # N_LSTM_layers
DN = 128                # N_dense_nodes
CI = 4                  # main input channels
CS = 5                  # station channels
NH = 5                  # heads: X, Y, Z, Phi, CEDist
PHI = 3                 # tanh head index

H2, H3, H4, H6, H8 = 2 * H, 3 * H, 4 * H, 6 * H, 8 * H
HD1 = NH * DN           # 640 : concatenated head layer-1 width
HD2 = NH * (DN // 2)    # 320 : concatenated head layer-2 width

# Packed-slab row offsets (all 8-aligned so every static sub-slice is cheap).
_R_WIN, _R_WHH, _R_B, _R_PAD = 0, 128, 192, 200              # w_main (per layer)
_S_WIN, _S_WHH, _S_B, _S_PAD = 0, 128, 160, 168              # w_summ
_T_W1S, _T_W1H, _T_W2, _T_W3 = 0, 8, 40, 168                 # w_trunk
_T_B1, _T_B2, _T_B3, _T_PAD = 296, 304, 312, 320


# ---------------------------------------------------------------------------
# Fused kernel: whole forward pass, weights resident in VMEM
# ---------------------------------------------------------------------------

def fused_model_kernel(x_ref, st_ref, wmain_ref, wsumm_ref, wtrunk_ref,
                       wh1_ref, wh2_ref, wh3_ref, out_ref,
                       seq_sc, gates_sc):
    """x_ref : (T*Bp, 4H)  row block t = [x(t) | 0 | x(T-1-t) | 0]
       st_ref: (Bp, 8)     station features, zero padded
       seq_sc: (T*Bp, 4H)  layer sequence, row t = [seq_nat[t] | seq_rev[t]]
       gates_sc: (T*Bp, 8H) hoisted fused gate pre-activations
    """
    f32 = jnp.float32
    Bp = st_ref.shape[0]
    T = x_ref.shape[0] // Bp

    def dot(a, b):
        return jnp.dot(a, b, preferred_element_type=f32)

    h0 = jnp.zeros((Bp, H2), f32)

    # ---- LSTM_main: 5 bidirectional layers, fwd & bwd fused per step -------
    for l in range(NL):
        w_in = wmain_ref[l, _R_WIN:_R_WIN + 128, :]     # (4H, 8H)
        w_hh = wmain_ref[l, _R_WHH:_R_WHH + H2, :]      # (2H, 8H) block-diag
        bias = wmain_ref[l, _R_B:_R_B + 1, :]           # (1, 8H)

        # Hoisted input projection for the whole sequence (both directions):
        # row block t of gates_sc = gates for [fwd time t | bwd time T-1-t].
        src = x_ref if l == 0 else seq_sc
        gates_sc[...] = dot(src[...], w_in) + bias

        h = h0
        c = h0
        last = (l == NL - 1)
        for s in range(T):
            r = T - 1 - s
            g = gates_sc[s * Bp:(s + 1) * Bp, :] + dot(h, w_hh)
            # i/f/o columns were pre-scaled by 0.5: sigmoid == 0.5*tanh + 0.5.
            t_all = jnp.tanh(g)
            sig = 0.5 * t_all[:, 0:H6] + 0.5
            c = sig[:, H2:H4] * c + sig[:, 0:H2] * t_all[:, H6:H8]
            h = sig[:, H4:H6] * jnp.tanh(c)
            # Scatter into [natural | reversed] layout for the next layer.
            seq_sc[s * Bp:(s + 1) * Bp, 0:H] = h[:, 0:H]       # h_f(s)
            seq_sc[r * Bp:(r + 1) * Bp, H:H2] = h[:, H:H2]     # h_b(T-1-s)
            if not last:                                        # rev half only
                seq_sc[r * Bp:(r + 1) * Bp, H2:H3] = h[:, 0:H]
                seq_sc[s * Bp:(s + 1) * Bp, H3:H4] = h[:, H:H2]

    # ---- LSTM_summ: unidirectional; only the final hidden state is used ----
    ws_in = wsumm_ref[_S_WIN:_S_WIN + 128, :]   # (4H, 4H); rev rows are zero
    ws_hh = wsumm_ref[_S_WHH:_S_WHH + H, :]     # (H, 4H)
    bs = wsumm_ref[_S_B:_S_B + 1, :]            # (1, 4H)
    gsum = dot(seq_sc[...], ws_in) + bs         # hoisted projection (T*Bp, 4H)

    hs = jnp.zeros((Bp, H), f32)
    cs = hs
    for s in range(T):
        g = gsum[s * Bp:(s + 1) * Bp, :] + dot(hs, ws_hh)
        t_all = jnp.tanh(g)
        sig = 0.5 * t_all[:, 0:H3] + 0.5
        cs = sig[:, H:H2] * cs + sig[:, 0:H] * t_all[:, H3:H4]
        hs = sig[:, H2:H3] * jnp.tanh(cs)

    # ---- Dense trunk: Dense1([Station, h_last]) -> ReLU x3 ------------------
    d = (dot(st_ref[...], wtrunk_ref[_T_W1S:_T_W1S + 8, :])
         + dot(hs, wtrunk_ref[_T_W1H:_T_W1H + H, :])
         + wtrunk_ref[_T_B1:_T_B1 + 1, :])
    d = jnp.maximum(d, 0.0)
    d = jnp.maximum(dot(d, wtrunk_ref[_T_W2:_T_W2 + DN, :])
                    + wtrunk_ref[_T_B2:_T_B2 + 1, :], 0.0)
    d = jnp.maximum(dot(d, wtrunk_ref[_T_W3:_T_W3 + DN, :])
                    + wtrunk_ref[_T_B3:_T_B3 + 1, :], 0.0)

    # ---- 5 heads collapsed to 3 block-diagonal matmuls ----------------------
    a = jnp.maximum(dot(d, wh1_ref[0:DN, :]) + wh1_ref[DN:DN + 1, :], 0.0)
    a = jnp.maximum(dot(a, wh2_ref[0:HD1, :]) + wh2_ref[HD1:HD1 + 1, :], 0.0)
    a = dot(a, wh3_ref[0:HD2, :]) + wh3_ref[HD2:HD2 + 1, :]          # (Bp, 5)
    col = jax.lax.broadcasted_iota(jnp.int32, a.shape, 1)
    out_ref[...] = jnp.where(col == PHI, jnp.tanh(a), a)             # Phi tanh


# ---------------------------------------------------------------------------
# Parameter construction (deterministic PyTorch-like uniform init), packed
# into the fused / block-diagonal layouts the kernel expects.
# ---------------------------------------------------------------------------

def init_params(key):
    keys = iter(jax.random.split(key, 128))

    def unif(shape, fan_in):
        s = 1.0 / jnp.sqrt(jnp.float32(fan_in))
        return jax.random.uniform(next(keys), shape, jnp.float32, -s, s)

    def lstm_dir(input_size):
        # PyTorch layout: weight_ih (4H, in), weight_hh (4H, H), biases (4H,)
        wih = unif((H4, input_size), H)
        whh = unif((H4, H), H)
        bih = unif((H4,), H)
        bhh = unif((H4,), H)
        return wih, whh, bih, bhh

    PERM = (0, 1, 3, 2)          # torch gate order [i,f,g,o] -> kernel [i,f,o,g]

    def reorder_cols(wt):        # (K, 4H) torch order -> [i,f,o,g]
        return jnp.concatenate([wt[:, k * H:(k + 1) * H] for k in PERM], axis=1)

    def reorder_bias(b):
        return jnp.concatenate([b[k * H:(k + 1) * H] for k in PERM])

    def pack_bidir(wf_t, wb_t):
        # (Kf,4H),(Kb,4H) torch order -> (Kf+Kb, 8H) block structure:
        # rows 0:Kf multiply the natural input -> fwd gate cols,
        # rows Kf:  multiply the reversed input -> bwd gate cols,
        # fused gate column layout [i_f,i_b | f_f,f_b | o_f,o_b | g_f,g_b].
        Kf, Kb = wf_t.shape[0], wb_t.shape[0]
        blocks = []
        for k in PERM:
            cf = wf_t[:, k * H:(k + 1) * H]
            cb = wb_t[:, k * H:(k + 1) * H]
            top = jnp.concatenate([cf, jnp.zeros((Kf, H), jnp.float32)], axis=1)
            bot = jnp.concatenate([jnp.zeros((Kb, H), jnp.float32), cb], axis=1)
            blocks.append(jnp.concatenate([top, bot], axis=0))
        return jnp.concatenate(blocks, axis=1)

    def pack_bidir_bias(bf, bb):
        parts = []
        for k in PERM:
            parts.append(bf[k * H:(k + 1) * H])
            parts.append(bb[k * H:(k + 1) * H])
        return jnp.concatenate(parts)

    # sigmoid(x) == 0.5*tanh(0.5*x)+0.5: pre-scale i/f/o gate columns by 0.5.
    scale8 = jnp.concatenate([jnp.full((H6,), 0.5, jnp.float32),
                              jnp.ones((H2,), jnp.float32)])
    scale4 = jnp.concatenate([jnp.full((H3,), 0.5, jnp.float32),
                              jnp.ones((H,), jnp.float32)])

    # ---- LSTM_main: one (200, 256) slab per layer ---------------------------
    w_main = jnp.zeros((NL, _R_PAD, H8), jnp.float32)
    for l in range(NL):
        in_size = CI if l == 0 else H2
        wih_f, whh_f, bih_f, bhh_f = lstm_dir(in_size)
        wih_b, whh_b, bih_b, bhh_b = lstm_dir(in_size)
        packed_in = pack_bidir(wih_f.T, wih_b.T) * scale8        # (2*in, 8H)
        if l == 0:
            w_in = jnp.zeros((128, H8), jnp.float32)
            w_in = w_in.at[0:CI].set(packed_in[0:CI])            # natural half
            w_in = w_in.at[H2:H2 + CI].set(packed_in[CI:2 * CI])  # reversed half
        else:
            w_in = packed_in                                     # (128, 8H)
        w_hh = pack_bidir(whh_f.T, whh_b.T) * scale8             # (2H, 8H)
        bias = pack_bidir_bias(bih_f + bhh_f, bih_b + bhh_b) * scale8
        w_main = (w_main.at[l, _R_WIN:_R_WIN + 128].set(w_in)
                        .at[l, _R_WHH:_R_WHH + H2].set(w_hh)
                        .at[l, _R_B].set(bias))

    # ---- LSTM_summ ----------------------------------------------------------
    wih_s, whh_s, bih_s, bhh_s = lstm_dir(H2)
    w_summ = jnp.zeros((_S_PAD, H4), jnp.float32)
    w_summ = w_summ.at[_S_WIN:_S_WIN + H2].set(reorder_cols(wih_s.T) * scale4)
    w_summ = w_summ.at[_S_WHH:_S_WHH + H].set(reorder_cols(whh_s.T) * scale4)
    w_summ = w_summ.at[_S_B].set(reorder_bias(bih_s + bhh_s) * scale4)

    # ---- Dense trunk --------------------------------------------------------
    def linear(in_f, out_f):
        w = unif((out_f, in_f), in_f)    # PyTorch layout (out, in)
        b = unif((out_f,), in_f)
        return w.T, b                    # (in, out), (out,)

    w1, b1 = linear(CS + H, DN)
    w2, b2 = linear(DN, DN)
    w3, b3 = linear(DN, DN)
    w_trunk = jnp.zeros((_T_PAD, DN), jnp.float32)
    w_trunk = (w_trunk.at[_T_W1S:_T_W1S + CS].set(w1[0:CS])       # station rows
                      .at[_T_W1H:_T_W1H + H].set(w1[CS:CS + H])    # hidden rows
                      .at[_T_W2:_T_W2 + DN].set(w2)
                      .at[_T_W3:_T_W3 + DN].set(w3)
                      .at[_T_B1].set(b1).at[_T_B2].set(b2).at[_T_B3].set(b3))

    # ---- Heads: X, Y, Z, Phi, CEDist (block-diagonal fusion, exact) --------
    hw1, hb1, hw2, hb2, hw3, hb3 = [], [], [], [], [], []
    for _ in range(NH):
        w, b = linear(DN, DN); hw1.append(w); hb1.append(b)
        w, b = linear(DN, DN // 2); hw2.append(w); hb2.append(b)
        w, b = linear(DN // 2, 1); hw3.append(w); hb3.append(b)
    w_h1 = jnp.zeros((DN + 8, HD1), jnp.float32)
    w_h1 = w_h1.at[0:DN].set(jnp.concatenate(hw1, axis=1)) \
               .at[DN].set(jnp.concatenate(hb1))
    w_h2 = jnp.zeros((HD1 + 8, HD2), jnp.float32)
    w_h2 = w_h2.at[0:HD1].set(block_diag(*hw2)) \
               .at[HD1].set(jnp.concatenate(hb2))
    w_h3 = jnp.zeros((HD2 + 8, NH), jnp.float32)
    w_h3 = w_h3.at[0:HD2].set(block_diag(*hw3)) \
               .at[HD2].set(jnp.concatenate(hb3))

    return dict(w_main=w_main, w_summ=w_summ, w_trunk=w_trunk,
                w_h1=w_h1, w_h2=w_h2, w_h3=w_h3)


# ---------------------------------------------------------------------------
# Forward pass wrapper (single pallas_call, no grid)
# ---------------------------------------------------------------------------

def model_forward(params, main_seq, station):
    """main_seq: (B, T, 4) float32; station: (B, 5) float32 -> (B, 5)."""
    B, T, C = main_seq.shape
    Bp = ((max(B, 1) + 7) // 8) * 8          # pad batch to f32 sublane multiple

    x = jnp.transpose(main_seq.astype(jnp.float32), (1, 0, 2))    # (T, B, C)
    x = jnp.pad(x, ((0, 0), (0, Bp - B), (0, 0)))                 # (T, Bp, C)
    # Crossed layer-0 input: row block t = [x(t) | zeros | x(T-1-t) | zeros].
    x_in = jnp.zeros((T, Bp, H4), jnp.float32)
    x_in = x_in.at[:, :, 0:C].set(x)
    x_in = x_in.at[:, :, H2:H2 + C].set(x[::-1])
    x_in = x_in.reshape(T * Bp, H4)

    st = jnp.zeros((Bp, 8), jnp.float32).at[0:B, 0:CS].set(
        station.astype(jnp.float32))

    args = (x_in, st, params["w_main"], params["w_summ"], params["w_trunk"],
            params["w_h1"], params["w_h2"], params["w_h3"])

    out = pl.pallas_call(
        fused_model_kernel,
        out_shape=jax.ShapeDtypeStruct((Bp, NH), jnp.float32),
        in_specs=[pl.BlockSpec(memory_space=pltpu.MemorySpace.VMEM)] * len(args),
        out_specs=pl.BlockSpec(memory_space=pltpu.MemorySpace.VMEM),
        scratch_shapes=[
            pltpu.VMEM((T * Bp, H4), jnp.float32),   # [natural | reversed] seq
            pltpu.VMEM((T * Bp, H8), jnp.float32),   # hoisted fused gate pre-acts
        ],
    )(*args)

    out_weights = jnp.ones((NH,), jnp.float32)       # OutWeights = [1,1,1,1,1]
    return out[0:B] * out_weights


# ---------------------------------------------------------------------------
# Main
# ---------------------------------------------------------------------------

if __name__ == "__main__":
    key = jax.random.PRNGKey(0)
    k_params, k_main, k_station = jax.random.split(key, 3)

    B, T = 2, 8
    params = init_params(k_params)
    main_seq = jax.random.normal(k_main, (B, T, CI), jnp.float32)
    station = jax.random.normal(k_station, (B, CS), jnp.float32)

    fwd = jax.jit(model_forward)
    out = jax.block_until_ready(fwd(params, main_seq, station))

    assert out.shape == (B, NH), out.shape
    assert out.dtype == jnp.float32
    assert bool(jnp.all(jnp.isfinite(out)))
    print("KERNEL_OK")
</pallas_src>

<mosaic_0001>
module attributes {stable_mosaic.version = 11 : i64} {
  func.func @fused_model_kernel(%arg0: memref<64x128xf32, #tpu.memory_space<vmem>>, %arg1: memref<8x8xf32, #tpu.memory_space<vmem>>, %arg2: memref<5x200x256xf32, #tpu.memory_space<vmem>>, %arg3: memref<168x128xf32, #tpu.memory_space<vmem>>, %arg4: memref<320x128xf32, #tpu.memory_space<vmem>>, %arg5: memref<136x640xf32, #tpu.memory_space<vmem>>, %arg6: memref<648x320xf32, #tpu.memory_space<vmem>>, %arg7: memref<328x5xf32, #tpu.memory_space<vmem>>, %arg8: memref<8x5xf32, #tpu.memory_space<vmem>>, %arg9: memref<64x128xf32, #tpu.memory_space<vmem>>, %arg10: memref<64x256xf32, #tpu.memory_space<vmem>>) attributes {dimension_semantics = [], scalar_prefetch = 0 : i64, scratch_operands = 2 : i64, tpu.core_type = #tpu.core_type<tc>} {
    %cst = arith.constant 0.000000e+00 : f32
    %0 = vector.broadcast %cst : f32 to vector<8x64xf32>
    %c0 = arith.constant 0 : index
    %c0_0 = arith.constant 0 : index
    %c0_1 = arith.constant 0 : index
    %1 = vector.load %arg2[%c0, %c0_0, %c0_1] : memref<5x200x256xf32, #tpu.memory_space<vmem>>, vector<1x128x256xf32>
    %2 = vector.shape_cast %1 : vector<1x128x256xf32> to vector<128x256xf32>
    %c0_2 = arith.constant 0 : index
    %c128 = arith.constant 128 : index
    %c0_3 = arith.constant 0 : index
    %3 = vector.load %arg2[%c0_2, %c128, %c0_3] : memref<5x200x256xf32, #tpu.memory_space<vmem>>, vector<1x64x256xf32>
    %4 = vector.shape_cast %3 : vector<1x64x256xf32> to vector<64x256xf32>
    %c0_4 = arith.constant 0 : index
    %c192 = arith.constant 192 : index
    %c0_5 = arith.constant 0 : index
    %5 = vector.load %arg2[%c0_4, %c192, %c0_5] : memref<5x200x256xf32, #tpu.memory_space<vmem>>, vector<1x1x256xf32>
    %6 = vector.shape_cast %5 : vector<1x1x256xf32> to vector<1x256xf32>
    %c0_6 = arith.constant 0 : index
    %c0_7 = arith.constant 0 : index
    %7 = vector.load %arg0[%c0_6, %c0_7] : memref<64x128xf32, #tpu.memory_space<vmem>>, vector<64x128xf32>
    %cst_8 = arith.constant dense<0.000000e+00> : vector<64x256xf32>
    %8 = tpu.matmul %7, %2, %cst_8 {dimension_numbers = #tpu.dot_dimension_numbers<[1], [0], [0], [1], [0, 0, 1, 1], [], []>} : vector<64x128xf32>, vector<128x256xf32>, vector<64x256xf32> -> vector<64x256xf32>
    %9 = vector.broadcast %6 : vector<1x256xf32> to vector<64x256xf32>
    %10 = arith.addf %8, %9 : vector<64x256xf32>
    %c0_9 = arith.constant 0 : index
    %c0_10 = arith.constant 0 : index
    %11 = vector.load %arg10[%c0_9, %c0_10] : memref<64x256xf32, #tpu.memory_space<vmem>>, vector<64x256xf32>
    tpu.vector_store %arg10[%c0_9, %c0_10], %10 {strides = array<i32>} : memref<64x256xf32, #tpu.memory_space<vmem>>, vector<64x256xf32>,
    %c0_11 = arith.constant 0 : index
    %c0_12 = arith.constant 0 : index
    %12 = vector.load %arg10[%c0_11, %c0_12] : memref<64x256xf32, #tpu.memory_space<vmem>>, vector<8x256xf32>
    %cst_13 = arith.constant dense<0.000000e+00> : vector<8x256xf32>
    %13 = tpu.matmul %0, %4, %cst_13 {dimension_numbers = #tpu.dot_dimension_numbers<[1], [0], [0], [1], [0, 0, 1, 1], [], []>} : vector<8x64xf32>, vector<64x256xf32>, vector<8x256xf32> -> vector<8x256xf32>
    %14 = arith.addf %12, %13 : vector<8x256xf32>
    %15 = math.tanh %14 : vector<8x256xf32>
    %16 = vector.extract_strided_slice %15 {offsets = [0, 0], sizes = [8, 192], strides = [1, 1]} : vector<8x256xf32> to vector<8x192xf32>
    %cst_14 = arith.constant 5.000000e-01 : f32
    %17 = vector.broadcast %cst_14 : f32 to vector<8x192xf32>
    %18 = arith.mulf %17, %16 : vector<8x192xf32>
    %cst_15 = arith.constant 5.000000e-01 : f32
    %19 = vector.broadcast %cst_15 : f32 to vector<8x192xf32>
    %20 = arith.addf %18, %19 : vector<8x192xf32>
    %21 = vector.extract_strided_slice %20 {offsets = [0, 64], sizes = [8, 64], strides = [1, 1]} : vector<8x192xf32> to vector<8x64xf32>
    %22 = arith.mulf %21, %0 : vector<8x64xf32>
    %23 = vector.extract_strided_slice %20 {offsets = [0, 0], sizes = [8, 64], strides = [1, 1]} : vector<8x192xf32> to vector<8x64xf32>
    %24 = vector.extract_strided_slice %15 {offsets = [0, 192], sizes = [8, 64], strides = [1, 1]} : vector<8x256xf32> to vector<8x64xf32>
    %25 = arith.mulf %23, %24 : vector<8x64xf32>
    %26 = arith.addf %22, %25 : vector<8x64xf32>
    %27 = vector.extract_strided_slice %20 {offsets = [0, 128], sizes = [8, 64], strides = [1, 1]} : vector<8x192xf32> to vector<8x64xf32>
    %28 = math.tanh %26 : vector<8x64xf32>
    %29 = arith.mulf %27, %28 : vector<8x64xf32>
    %30 = vector.extract_strided_slice %29 {offsets = [0, 0], sizes = [8, 32], strides = [1, 1]} : vector<8x64xf32> to vector<8x32xf32>
    %c0_16 = arith.constant 0 : index
    %c0_17 = arith.constant 0 : index
    %31 = vector.load %arg9[%c0_16, %c0_17] : memref<64x128xf32, #tpu.memory_space<vmem>>, vector<8x32xf32>
    tpu.vector_store %arg9[%c0_16, %c0_17], %30 {strides = array<i32>} : memref<64x128xf32, #tpu.memory_space<vmem>>, vector<8x32xf32>,
    %32 = vector.extract_strided_slice %29 {offsets = [0, 32], sizes = [8, 32], strides = [1, 1]} : vector<8x64xf32> to vector<8x32xf32>
    %c56 = arith.constant 56 : index
    %c32 = arith.constant 32 : index
    %33 = vector.load %arg9[%c56, %c32] : memref<64x128xf32, #tpu.memory_space<vmem>>, vector<8x32xf32>
    tpu.vector_store %arg9[%c56, %c32], %32 {strides = array<i32>} : memref<64x128xf32, #tpu.memory_space<vmem>>, vector<8x32xf32>,
    %34 = vector.extract_strided_slice %29 {offsets = [0, 0], sizes = [8, 32], strides = [1, 1]} : vector<8x64xf32> to vector<8x32xf32>
    %c56_18 = arith.constant 56 : index
    %c64 = arith.constant 64 : index
    %35 = vector.load %arg9[%c56_18, %c64] : memref<64x128xf32, #tpu.memory_space<vmem>>, vector<8x32xf32>
    tpu.vector_store %arg9[%c56_18, %c64], %34 {strides = array<i32>} : memref<64x128xf32, #tpu.memory_space<vmem>>, vector<8x32xf32>,
    %36 = vector.extract_strided_slice %29 {offsets = [0, 32], sizes = [8, 32], strides = [1, 1]} : vector<8x64xf32> to vector<8x32xf32>
    %c0_19 = arith.constant 0 : index
    %c96 = arith.constant 96 : index
    %37 = vector.load %arg9[%c0_19, %c96] : memref<64x128xf32, #tpu.memory_space<vmem>>, vector<8x32xf32>
    tpu.vector_store %arg9[%c0_19, %c96], %36 {strides = array<i32>} : memref<64x128xf32, #tpu.memory_space<vmem>>, vector<8x32xf32>,
    %c8 = arith.constant 8 : index
    %c0_20 = arith.constant 0 : index
    %38 = vector.load %arg10[%c8, %c0_20] : memref<64x256xf32, #tpu.memory_space<vmem>>, vector<8x256xf32>
    %cst_21 = arith.constant dense<0.000000e+00> : vector<8x256xf32>
    %39 = tpu.matmul %29, %4, %cst_21 {dimension_numbers = #tpu.dot_dimension_numbers<[1], [0], [0], [1], [0, 0, 1, 1], [], []>} : vector<8x64xf32>, vector<64x256xf32>, vector<8x256xf32> -> vector<8x256xf32>
    %40 = arith.addf %38, %39 : vector<8x256xf32>
    %41 = math.tanh %40 : vector<8x256xf32>
    %42 = vector.extract_strided_slice %41 {offsets = [0, 0], sizes = [8, 192], strides = [1, 1]} : vector<8x256xf32> to vector<8x192xf32>
    %cst_22 = arith.constant 5.000000e-01 : f32
    %43 = vector.broadcast %cst_22 : f32 to vector<8x192xf32>
    %44 = arith.mulf %43, %42 : vector<8x192xf32>
    %cst_23 = arith.constant 5.000000e-01 : f32
    %45 = vector.broadcast %cst_23 : f32 to vector<8x192xf32>
    %46 = arith.addf %44, %45 : vector<8x192xf32>
    %47 = vector.extract_strided_slice %46 {offsets = [0, 64], sizes = [8, 64], strides = [1, 1]} : vector<8x192xf32> to vector<8x64xf32>
    %48 = arith.mulf %47, %26 : vector<8x64xf32>
    %49 = vector.extract_strided_slice %46 {offsets = [0, 0], sizes = [8, 64], strides = [1, 1]} : vector<8x192xf32> to vector<8x64xf32>
    %50 = vector.extract_strided_slice %41 {offsets = [0, 192], sizes = [8, 64], strides = [1, 1]} : vector<8x256xf32> to vector<8x64xf32>
    %51 = arith.mulf %49, %50 : vector<8x64xf32>
    %52 = arith.addf %48, %51 : vector<8x64xf32>
    %53 = vector.extract_strided_slice %46 {offsets = [0, 128], sizes = [8, 64], strides = [1, 1]} : vector<8x192xf32> to vector<8x64xf32>
    %54 = math.tanh %52 : vector<8x64xf32>
    %55 = arith.mulf %53, %54 : vector<8x64xf32>
    %56 = vector.extract_strided_slice %55 {offsets = [0, 0], sizes = [8, 32], strides = [1, 1]} : vector<8x64xf32> to vector<8x32xf32>
    %c8_24 = arith.constant 8 : index
    %c0_25 = arith.constant 0 : index
    %57 = vector.load %arg9[%c8_24, %c0_25] : memref<64x128xf32, #tpu.memory_space<vmem>>, vector<8x32xf32>
    tpu.vector_store %arg9[%c8_24, %c0_25], %56 {strides = array<i32>} : memref<64x128xf32, #tpu.memory_space<vmem>>, vector<8x32xf32>,
    %58 = vector.extract_strided_slice %55 {offsets = [0, 32], sizes = [8, 32], strides = [1, 1]} : vector<8x64xf32> to vector<8x32xf32>
    %c48 = arith.constant 48 : index
    %c32_26 = arith.constant 32 : index
    %59 = vector.load %arg9[%c48, %c32_26] : memref<64x128xf32, #tpu.memory_space<vmem>>, vector<8x32xf32>
    tpu.vector_store %arg9[%c48, %c32_26], %58 {strides = array<i32>} : memref<64x128xf32, #tpu.memory_space<vmem>>, vector<8x32xf32>,
    %60 = vector.extract_strided_slice %55 {offsets = [0, 0], sizes = [8, 32], strides = [1, 1]} : vector<8x64xf32> to vector<8x32xf32>
    %c48_27 = arith.constant 48 : index
    %c64_28 = arith.constant 64 : index
    %61 = vector.load %arg9[%c48_27, %c64_28] : memref<64x128xf32, #tpu.memory_space<vmem>>, vector<8x32xf32>
    tpu.vector_store %arg9[%c48_27, %c64_28], %60 {strides = array<i32>} : memref<64x128xf32, #tpu.memory_space<vmem>>, vector<8x32xf32>,
    %62 = vector.extract_strided_slice %55 {offsets = [0, 32], sizes = [8, 32], strides = [1, 1]} : vector<8x64xf32> to vector<8x32xf32>
    %c8_29 = arith.constant 8 : index
    %c96_30 = arith.constant 96 : index
    %63 = vector.load %arg9[%c8_29, %c96_30] : memref<64x128xf32, #tpu.memory_space<vmem>>, vector<8x32xf32>
    tpu.vector_store %arg9[%c8_29, %c96_30], %62 {strides = array<i32>} : memref<64x128xf32, #tpu.memory_space<vmem>>, vector<8x32xf32>,
    %c16 = arith.constant 16 : index
    %c0_31 = arith.constant 0 : index
    %64 = vector.load %arg10[%c16, %c0_31] : memref<64x256xf32, #tpu.memory_space<vmem>>, vector<8x256xf32>
    %cst_32 = arith.constant dense<0.000000e+00> : vector<8x256xf32>
    %65 = tpu.matmul %55, %4, %cst_32 {dimension_numbers = #tpu.dot_dimension_numbers<[1], [0], [0], [1], [0, 0, 1, 1], [], []>} : vector<8x64xf32>, vector<64x256xf32>, vector<8x256xf32> -> vector<8x256xf32>
    %66 = arith.addf %64, %65 : vector<8x256xf32>
    %67 = math.tanh %66 : vector<8x256xf32>
    %68 = vector.extract_strided_slice %67 {offsets = [0, 0], sizes = [8, 192], strides = [1, 1]} : vector<8x256xf32> to vector<8x192xf32>
    %cst_33 = arith.constant 5.000000e-01 : f32
    %69 = vector.broadcast %cst_33 : f32 to vector<8x192xf32>
    %70 = arith.mulf %69, %68 : vector<8x192xf32>
    %cst_34 = arith.constant 5.000000e-01 : f32
    %71 = vector.broadcast %cst_34 : f32 to vector<8x192xf32>
    %72 = arith.addf %70, %71 : vector<8x192xf32>
    %73 = vector.extract_strided_slice %72 {offsets = [0, 64], sizes = [8, 64], strides = [1, 1]} : vector<8x192xf32> to vector<8x64xf32>
    %74 = arith.mulf %73, %52 : vector<8x64xf32>
    %75 = vector.extract_strided_slice %72 {offsets = [0, 0], sizes = [8, 64], strides = [1, 1]} : vector<8x192xf32> to vector<8x64xf32>
    %76 = vector.extract_strided_slice %67 {offsets = [0, 192], sizes = [8, 64], strides = [1, 1]} : vector<8x256xf32> to vector<8x64xf32>
    %77 = arith.mulf %75, %76 : vector<8x64xf32>
    %78 = arith.addf %74, %77 : vector<8x64xf32>
    %79 = vector.extract_strided_slice %72 {offsets = [0, 128], sizes = [8, 64], strides = [1, 1]} : vector<8x192xf32> to vector<8x64xf32>
    %80 = math.tanh %78 : vector<8x64xf32>
    %81 = arith.mulf %79, %80 : vector<8x64xf32>
    %82 = vector.extract_strided_slice %81 {offsets = [0, 0], sizes = [8, 32], strides = [1, 1]} : vector<8x64xf32> to vector<8x32xf32>
    %c16_35 = arith.constant 16 : index
    %c0_36 = arith.constant 0 : index
    %83 = vector.load %arg9[%c16_35, %c0_36] : memref<64x128xf32, #tpu.memory_space<vmem>>, vector<8x32xf32>
    tpu.vector_store %arg9[%c16_35, %c0_36], %82 {strides = array<i32>} : memref<64x128xf32, #tpu.memory_space<vmem>>, vector<8x32xf32>,
    %84 = vector.extract_strided_slice %81 {offsets = [0, 32], sizes = [8, 32], strides = [1, 1]} : vector<8x64xf32> to vector<8x32xf32>
    %c40 = arith.constant 40 : index
    %c32_37 = arith.constant 32 : index
    %85 = vector.load %arg9[%c40, %c32_37] : memref<64x128xf32, #tpu.memory_space<vmem>>, vector<8x32xf32>
    tpu.vector_store %arg9[%c40, %c32_37], %84 {strides = array<i32>} : memref<64x128xf32, #tpu.memory_space<vmem>>, vector<8x32xf32>,
    %86 = vector.extract_strided_slice %81 {offsets = [0, 0], sizes = [8, 32], strides = [1, 1]} : vector<8x64xf32> to vector<8x32xf32>
    %c40_38 = arith.constant 40 : index
    %c64_39 = arith.constant 64 : index
    %87 = vector.load %arg9[%c40_38, %c64_39] : memref<64x128xf32, #tpu.memory_space<vmem>>, vector<8x32xf32>
    tpu.vector_store %arg9[%c40_38, %c64_39], %86 {strides = array<i32>} : memref<64x128xf32, #tpu.memory_space<vmem>>, vector<8x32xf32>,
    %88 = vector.extract_strided_slice %81 {offsets = [0, 32], sizes = [8, 32], strides = [1, 1]} : vector<8x64xf32> to vector<8x32xf32>
    %c16_40 = arith.constant 16 : index
    %c96_41 = arith.constant 96 : index
    %89 = vector.load %arg9[%c16_40, %c96_41] : memref<64x128xf32, #tpu.memory_space<vmem>>, vector<8x32xf32>
    tpu.vector_store %arg9[%c16_40, %c96_41], %88 {strides = array<i32>} : memref<64x128xf32, #tpu.memory_space<vmem>>, vector<8x32xf32>,
    %c24 = arith.constant 24 : index
    %c0_42 = arith.constant 0 : index
    %90 = vector.load %arg10[%c24, %c0_42] : memref<64x256xf32, #tpu.memory_space<vmem>>, vector<8x256xf32>
    %cst_43 = arith.constant dense<0.000000e+00> : vector<8x256xf32>
    %91 = tpu.matmul %81, %4, %cst_43 {dimension_numbers = #tpu.dot_dimension_numbers<[1], [0], [0], [1], [0, 0, 1, 1], [], []>} : vector<8x64xf32>, vector<64x256xf32>, vector<8x256xf32> -> vector<8x256xf32>
    %92 = arith.addf %90, %91 : vector<8x256xf32>
    %93 = math.tanh %92 : vector<8x256xf32>
    %94 = vector.extract_strided_slice %93 {offsets = [0, 0], sizes = [8, 192], strides = [1, 1]} : vector<8x256xf32> to vector<8x192xf32>
    %cst_44 = arith.constant 5.000000e-01 : f32
    %95 = vector.broadcast %cst_44 : f32 to vector<8x192xf32>
    %96 = arith.mulf %95, %94 : vector<8x192xf32>
    %cst_45 = arith.constant 5.000000e-01 : f32
    %97 = vector.broadcast %cst_45 : f32 to vector<8x192xf32>
    %98 = arith.addf %96, %97 : vector<8x192xf32>
    %99 = vector.extract_strided_slice %98 {offsets = [0, 64], sizes = [8, 64], strides = [1, 1]} : vector<8x192xf32> to vector<8x64xf32>
    %100 = arith.mulf %99, %78 : vector<8x64xf32>
    %101 = vector.extract_strided_slice %98 {offsets = [0, 0], sizes = [8, 64], strides = [1, 1]} : vector<8x192xf32> to vector<8x64xf32>
    %102 = vector.extract_strided_slice %93 {offsets = [0, 192], sizes = [8, 64], strides = [1, 1]} : vector<8x256xf32> to vector<8x64xf32>
    %103 = arith.mulf %101, %102 : vector<8x64xf32>
    %104 = arith.addf %100, %103 : vector<8x64xf32>
    %105 = vector.extract_strided_slice %98 {offsets = [0, 128], sizes = [8, 64], strides = [1, 1]} : vector<8x192xf32> to vector<8x64xf32>
    %106 = math.tanh %104 : vector<8x64xf32>
    %107 = arith.mulf %105, %106 : vector<8x64xf32>
    %108 = vector.extract_strided_slice %107 {offsets = [0, 0], sizes = [8, 32], strides = [1, 1]} : vector<8x64xf32> to vector<8x32xf32>
    %c24_46 = arith.constant 24 : index
    %c0_47 = arith.constant 0 : index
    %109 = vector.load %arg9[%c24_46, %c0_47] : memref<64x128xf32, #tpu.memory_space<vmem>>, vector<8x32xf32>
    tpu.vector_store %arg9[%c24_46, %c0_47], %108 {strides = array<i32>} : memref<64x128xf32, #tpu.memory_space<vmem>>, vector<8x32xf32>,
    %110 = vector.extract_strided_slice %107 {offsets = [0, 32], sizes = [8, 32], strides = [1, 1]} : vector<8x64xf32> to vector<8x32xf32>
    %c32_48 = arith.constant 32 : index
    %c32_49 = arith.constant 32 : index
    %111 = vector.load %arg9[%c32_48, %c32_49] : memref<64x128xf32, #tpu.memory_space<vmem>>, vector<8x32xf32>
    tpu.vector_store %arg9[%c32_48, %c32_49], %110 {strides = array<i32>} : memref<64x128xf32, #tpu.memory_space<vmem>>, vector<8x32xf32>,
    %112 = vector.extract_strided_slice %107 {offsets = [0, 0], sizes = [8, 32], strides = [1, 1]} : vector<8x64xf32> to vector<8x32xf32>
    %c32_50 = arith.constant 32 : index
    %c64_51 = arith.constant 64 : index
    %113 = vector.load %arg9[%c32_50, %c64_51] : memref<64x128xf32, #tpu.memory_space<vmem>>, vector<8x32xf32>
    tpu.vector_store %arg9[%c32_50, %c64_51], %112 {strides = array<i32>} : memref<64x128xf32, #tpu.memory_space<vmem>>, vector<8x32xf32>,
    %114 = vector.extract_strided_slice %107 {offsets = [0, 32], sizes = [8, 32], strides = [1, 1]} : vector<8x64xf32> to vector<8x32xf32>
    %c24_52 = arith.constant 24 : index
    %c96_53 = arith.constant 96 : index
    %115 = vector.load %arg9[%c24_52, %c96_53] : memref<64x128xf32, #tpu.memory_space<vmem>>, vector<8x32xf32>
    tpu.vector_store %arg9[%c24_52, %c96_53], %114 {strides = array<i32>} : memref<64x128xf32, #tpu.memory_space<vmem>>, vector<8x32xf32>,
    %c32_54 = arith.constant 32 : index
    %c0_55 = arith.constant 0 : index
    %116 = vector.load %arg10[%c32_54, %c0_55] : memref<64x256xf32, #tpu.memory_space<vmem>>, vector<8x256xf32>
    %cst_56 = arith.constant dense<0.000000e+00> : vector<8x256xf32>
    %117 = tpu.matmul %107, %4, %cst_56 {dimension_numbers = #tpu.dot_dimension_numbers<[1], [0], [0], [1], [0, 0, 1, 1], [], []>} : vector<8x64xf32>, vector<64x256xf32>, vector<8x256xf32> -> vector<8x256xf32>
    %118 = arith.addf %116, %117 : vector<8x256xf32>
    %119 = math.tanh %118 : vector<8x256xf32>
    %120 = vector.extract_strided_slice %119 {offsets = [0, 0], sizes = [8, 192], strides = [1, 1]} : vector<8x256xf32> to vector<8x192xf32>
    %cst_57 = arith.constant 5.000000e-01 : f32
    %121 = vector.broadcast %cst_57 : f32 to vector<8x192xf32>
    %122 = arith.mulf %121, %120 : vector<8x192xf32>
    %cst_58 = arith.constant 5.000000e-01 : f32
    %123 = vector.broadcast %cst_58 : f32 to vector<8x192xf32>
    %124 = arith.addf %122, %123 : vector<8x192xf32>
    %125 = vector.extract_strided_slice %124 {offsets = [0, 64], sizes = [8, 64], strides = [1, 1]} : vector<8x192xf32> to vector<8x64xf32>
    %126 = arith.mulf %125, %104 : vector<8x64xf32>
    %127 = vector.extract_strided_slice %124 {offsets = [0, 0], sizes = [8, 64], strides = [1, 1]} : vector<8x192xf32> to vector<8x64xf32>
    %128 = vector.extract_strided_slice %119 {offsets = [0, 192], sizes = [8, 64], strides = [1, 1]} : vector<8x256xf32> to vector<8x64xf32>
    %129 = arith.mulf %127, %128 : vector<8x64xf32>
    %130 = arith.addf %126, %129 : vector<8x64xf32>
    %131 = vector.extract_strided_slice %124 {offsets = [0, 128], sizes = [8, 64], strides = [1, 1]} : vector<8x192xf32> to vector<8x64xf32>
    %132 = math.tanh %130 : vector<8x64xf32>
    %133 = arith.mulf %131, %132 : vector<8x64xf32>
    %134 = vector.extract_strided_slice %133 {offsets = [0, 0], sizes = [8, 32], strides = [1, 1]} : vector<8x64xf32> to vector<8x32xf32>
    %c32_59 = arith.constant 32 : index
    %c0_60 = arith.constant 0 : index
    %135 = vector.load %arg9[%c32_59, %c0_60] : memref<64x128xf32, #tpu.memory_space<vmem>>, vector<8x32xf32>
    tpu.vector_store %arg9[%c32_59, %c0_60], %134 {strides = array<i32>} : memref<64x128xf32, #tpu.memory_space<vmem>>, vector<8x32xf32>,
    %136 = vector.extract_strided_slice %133 {offsets = [0, 32], sizes = [8, 32], strides = [1, 1]} : vector<8x64xf32> to vector<8x32xf32>
    %c24_61 = arith.constant 24 : index
    %c32_62 = arith.constant 32 : index
    %137 = vector.load %arg9[%c24_61, %c32_62] : memref<64x128xf32, #tpu.memory_space<vmem>>, vector<8x32xf32>
    tpu.vector_store %arg9[%c24_61, %c32_62], %136 {strides = array<i32>} : memref<64x128xf32, #tpu.memory_space<vmem>>, vector<8x32xf32>,
    %138 = vector.extract_strided_slice %133 {offsets = [0, 0], sizes = [8, 32], strides = [1, 1]} : vector<8x64xf32> to vector<8x32xf32>
    %c24_63 = arith.constant 24 : index
    %c64_64 = arith.constant 64 : index
    %139 = vector.load %arg9[%c24_63, %c64_64] : memref<64x128xf32, #tpu.memory_space<vmem>>, vector<8x32xf32>
    tpu.vector_store %arg9[%c24_63, %c64_64], %138 {strides = array<i32>} : memref<64x128xf32, #tpu.memory_space<vmem>>, vector<8x32xf32>,
    %140 = vector.extract_strided_slice %133 {offsets = [0, 32], sizes = [8, 32], strides = [1, 1]} : vector<8x64xf32> to vector<8x32xf32>
    %c32_65 = arith.constant 32 : index
    %c96_66 = arith.constant 96 : index
    %141 = vector.load %arg9[%c32_65, %c96_66] : memref<64x128xf32, #tpu.memory_space<vmem>>, vector<8x32xf32>
    tpu.vector_store %arg9[%c32_65, %c96_66], %140 {strides = array<i32>} : memref<64x128xf32, #tpu.memory_space<vmem>>, vector<8x32xf32>,
    %c40_67 = arith.constant 40 : index
    %c0_68 = arith.constant 0 : index
    %142 = vector.load %arg10[%c40_67, %c0_68] : memref<64x256xf32, #tpu.memory_space<vmem>>, vector<8x256xf32>
    %cst_69 = arith.constant dense<0.000000e+00> : vector<8x256xf32>
    %143 = tpu.matmul %133, %4, %cst_69 {dimension_numbers = #tpu.dot_dimension_numbers<[1], [0], [0], [1], [0, 0, 1, 1], [], []>} : vector<8x64xf32>, vector<64x256xf32>, vector<8x256xf32> -> vector<8x256xf32>
    %144 = arith.addf %142, %143 : vector<8x256xf32>
    %145 = math.tanh %144 : vector<8x256xf32>
    %146 = vector.extract_strided_slice %145 {offsets = [0, 0], sizes = [8, 192], strides = [1, 1]} : vector<8x256xf32> to vector<8x192xf32>
    %cst_70 = arith.constant 5.000000e-01 : f32
    %147 = vector.broadcast %cst_70 : f32 to vector<8x192xf32>
    %148 = arith.mulf %147, %146 : vector<8x192xf32>
    %cst_71 = arith.constant 5.000000e-01 : f32
    %149 = vector.broadcast %cst_71 : f32 to vector<8x192xf32>
    %150 = arith.addf %148, %149 : vector<8x192xf32>
    %151 = vector.extract_strided_slice %150 {offsets = [0, 64], sizes = [8, 64], strides = [1, 1]} : vector<8x192xf32> to vector<8x64xf32>
    %152 = arith.mulf %151, %130 : vector<8x64xf32>
    %153 = vector.extract_strided_slice %150 {offsets = [0, 0], sizes = [8, 64], strides = [1, 1]} : vector<8x192xf32> to vector<8x64xf32>
    %154 = vector.extract_strided_slice %145 {offsets = [0, 192], sizes = [8, 64], strides = [1, 1]} : vector<8x256xf32> to vector<8x64xf32>
    %155 = arith.mulf %153, %154 : vector<8x64xf32>
    %156 = arith.addf %152, %155 : vector<8x64xf32>
    %157 = vector.extract_strided_slice %150 {offsets = [0, 128], sizes = [8, 64], strides = [1, 1]} : vector<8x192xf32> to vector<8x64xf32>
    %158 = math.tanh %156 : vector<8x64xf32>
    %159 = arith.mulf %157, %158 : vector<8x64xf32>
    %160 = vector.extract_strided_slice %159 {offsets = [0, 0], sizes = [8, 32], strides = [1, 1]} : vector<8x64xf32> to vector<8x32xf32>
    %c40_72 = arith.constant 40 : index
    %c0_73 = arith.constant 0 : index
    %161 = vector.load %arg9[%c40_72, %c0_73] : memref<64x128xf32, #tpu.memory_space<vmem>>, vector<8x32xf32>
    tpu.vector_store %arg9[%c40_72, %c0_73], %160 {strides = array<i32>} : memref<64x128xf32, #tpu.memory_space<vmem>>, vector<8x32xf32>,
    %162 = vector.extract_strided_slice %159 {offsets = [0, 32], sizes = [8, 32], strides = [1, 1]} : vector<8x64xf32> to vector<8x32xf32>
    %c16_74 = arith.constant 16 : index
    %c32_75 = arith.constant 32 : index
    %163 = vector.load %arg9[%c16_74, %c32_75] : memref<64x128xf32, #tpu.memory_space<vmem>>, vector<8x32xf32>
    tpu.vector_store %arg9[%c16_74, %c32_75], %162 {strides = array<i32>} : memref<64x128xf32, #tpu.memory_space<vmem>>, vector<8x32xf32>,
    %164 = vector.extract_strided_slice %159 {offsets = [0, 0], sizes = [8, 32], strides = [1, 1]} : vector<8x64xf32> to vector<8x32xf32>
    %c16_76 = arith.constant 16 : index
    %c64_77 = arith.constant 64 : index
    %165 = vector.load %arg9[%c16_76, %c64_77] : memref<64x128xf32, #tpu.memory_space<vmem>>, vector<8x32xf32>
    tpu.vector_store %arg9[%c16_76, %c64_77], %164 {strides = array<i32>} : memref<64x128xf32, #tpu.memory_space<vmem>>, vector<8x32xf32>,
    %166 = vector.extract_strided_slice %159 {offsets = [0, 32], sizes = [8, 32], strides = [1, 1]} : vector<8x64xf32> to vector<8x32xf32>
    %c40_78 = arith.constant 40 : index
    %c96_79 = arith.constant 96 : index
    %167 = vector.load %arg9[%c40_78, %c96_79] : memref<64x128xf32, #tpu.memory_space<vmem>>, vector<8x32xf32>
    tpu.vector_store %arg9[%c40_78, %c96_79], %166 {strides = array<i32>} : memref<64x128xf32, #tpu.memory_space<vmem>>, vector<8x32xf32>,
    %c48_80 = arith.constant 48 : index
    %c0_81 = arith.constant 0 : index
    %168 = vector.load %arg10[%c48_80, %c0_81] : memref<64x256xf32, #tpu.memory_space<vmem>>, vector<8x256xf32>
    %cst_82 = arith.constant dense<0.000000e+00> : vector<8x256xf32>
    %169 = tpu.matmul %159, %4, %cst_82 {dimension_numbers = #tpu.dot_dimension_numbers<[1], [0], [0], [1], [0, 0, 1, 1], [], []>} : vector<8x64xf32>, vector<64x256xf32>, vector<8x256xf32> -> vector<8x256xf32>
    %170 = arith.addf %168, %169 : vector<8x256xf32>
    %171 = math.tanh %170 : vector<8x256xf32>
    %172 = vector.extract_strided_slice %171 {offsets = [0, 0], sizes = [8, 192], strides = [1, 1]} : vector<8x256xf32> to vector<8x192xf32>
    %cst_83 = arith.constant 5.000000e-01 : f32
    %173 = vector.broadcast %cst_83 : f32 to vector<8x192xf32>
    %174 = arith.mulf %173, %172 : vector<8x192xf32>
    %cst_84 = arith.constant 5.000000e-01 : f32
    %175 = vector.broadcast %cst_84 : f32 to vector<8x192xf32>
    %176 = arith.addf %174, %175 : vector<8x192xf32>
    %177 = vector.extract_strided_slice %176 {offsets = [0, 64], sizes = [8, 64], strides = [1, 1]} : vector<8x192xf32> to vector<8x64xf32>
    %178 = arith.mulf %177, %156 : vector<8x64xf32>
    %179 = vector.extract_strided_slice %176 {offsets = [0, 0], sizes = [8, 64], strides = [1, 1]} : vector<8x192xf32> to vector<8x64xf32>
    %180 = vector.extract_strided_slice %171 {offsets = [0, 192], sizes = [8, 64], strides = [1, 1]} : vector<8x256xf32> to vector<8x64xf32>
    %181 = arith.mulf %179, %180 : vector<8x64xf32>
    %182 = arith.addf %178, %181 : vector<8x64xf32>
    %183 = vector.extract_strided_slice %176 {offsets = [0, 128], sizes = [8, 64], strides = [1, 1]} : vector<8x192xf32> to vector<8x64xf32>
    %184 = math.tanh %182 : vector<8x64xf32>
    %185 = arith.mulf %183, %184 : vector<8x64xf32>
    %186 = vector.extract_strided_slice %185 {offsets = [0, 0], sizes = [8, 32], strides = [1, 1]} : vector<8x64xf32> to vector<8x32xf32>
    %c48_85 = arith.constant 48 : index
    %c0_86 = arith.constant 0 : index
    %187 = vector.load %arg9[%c48_85, %c0_86] : memref<64x128xf32, #tpu.memory_space<vmem>>, vector<8x32xf32>
    tpu.vector_store %arg9[%c48_85, %c0_86], %186 {strides = array<i32>} : memref<64x128xf32, #tpu.memory_space<vmem>>, vector<8x32xf32>,
    %188 = vector.extract_strided_slice %185 {offsets = [0, 32], sizes = [8, 32], strides = [1, 1]} : vector<8x64xf32> to vector<8x32xf32>
    %c8_87 = arith.constant 8 : index
    %c32_88 = arith.constant 32 : index
    %189 = vector.load %arg9[%c8_87, %c32_88] : memref<64x128xf32, #tpu.memory_space<vmem>>, vector<8x32xf32>
    tpu.vector_store %arg9[%c8_87, %c32_88], %188 {strides = array<i32>} : memref<64x128xf32, #tpu.memory_space<vmem>>, vector<8x32xf32>,
    %190 = vector.extract_strided_slice %185 {offsets = [0, 0], sizes = [8, 32], strides = [1, 1]} : vector<8x64xf32> to vector<8x32xf32>
    %c8_89 = arith.constant 8 : index
    %c64_90 = arith.constant 64 : index
    %191 = vector.load %arg9[%c8_89, %c64_90] : memref<64x128xf32, #tpu.memory_space<vmem>>, vector<8x32xf32>
    tpu.vector_store %arg9[%c8_89, %c64_90], %190 {strides = array<i32>} : memref<64x128xf32, #tpu.memory_space<vmem>>, vector<8x32xf32>,
    %192 = vector.extract_strided_slice %185 {offsets = [0, 32], sizes = [8, 32], strides = [1, 1]} : vector<8x64xf32> to vector<8x32xf32>
    %c48_91 = arith.constant 48 : index
    %c96_92 = arith.constant 96 : index
    %193 = vector.load %arg9[%c48_91, %c96_92] : memref<64x128xf32, #tpu.memory_space<vmem>>, vector<8x32xf32>
    tpu.vector_store %arg9[%c48_91, %c96_92], %192 {strides = array<i32>} : memref<64x128xf32, #tpu.memory_space<vmem>>, vector<8x32xf32>,
    %c56_93 = arith.constant 56 : index
    %c0_94 = arith.constant 0 : index
    %194 = vector.load %arg10[%c56_93, %c0_94] : memref<64x256xf32, #tpu.memory_space<vmem>>, vector<8x256xf32>
    %cst_95 = arith.constant dense<0.000000e+00> : vector<8x256xf32>
    %195 = tpu.matmul %185, %4, %cst_95 {dimension_numbers = #tpu.dot_dimension_numbers<[1], [0], [0], [1], [0, 0, 1, 1], [], []>} : vector<8x64xf32>, vector<64x256xf32>, vector<8x256xf32> -> vector<8x256xf32>
    %196 = arith.addf %194, %195 : vector<8x256xf32>
    %197 = math.tanh %196 : vector<8x256xf32>
    %198 = vector.extract_strided_slice %197 {offsets = [0, 0], sizes = [8, 192], strides = [1, 1]} : vector<8x256xf32> to vector<8x192xf32>
    %cst_96 = arith.constant 5.000000e-01 : f32
    %199 = vector.broadcast %cst_96 : f32 to vector<8x192xf32>
    %200 = arith.mulf %199, %198 : vector<8x192xf32>
    %cst_97 = arith.constant 5.000000e-01 : f32
    %201 = vector.broadcast %cst_97 : f32 to vector<8x192xf32>
    %202 = arith.addf %200, %201 : vector<8x192xf32>
    %203 = vector.extract_strided_slice %202 {offsets = [0, 64], sizes = [8, 64], strides = [1, 1]} : vector<8x192xf32> to vector<8x64xf32>
    %204 = arith.mulf %203, %182 : vector<8x64xf32>
    %205 = vector.extract_strided_slice %202 {offsets = [0, 0], sizes = [8, 64], strides = [1, 1]} : vector<8x192xf32> to vector<8x64xf32>
    %206 = vector.extract_strided_slice %197 {offsets = [0, 192], sizes = [8, 64], strides = [1, 1]} : vector<8x256xf32> to vector<8x64xf32>
    %207 = arith.mulf %205, %206 : vector<8x64xf32>
    %208 = arith.addf %204, %207 : vector<8x64xf32>
    %209 = vector.extract_strided_slice %202 {offsets = [0, 128], sizes = [8, 64], strides = [1, 1]} : vector<8x192xf32> to vector<8x64xf32>
    %210 = math.tanh %208 : vector<8x64xf32>
    %211 = arith.mulf %209, %210 : vector<8x64xf32>
    %212 = vector.extract_strided_slice %211 {offsets = [0, 0], sizes = [8, 32], strides = [1, 1]} : vector<8x64xf32> to vector<8x32xf32>
    %c56_98 = arith.constant 56 : index
    %c0_99 = arith.constant 0 : index
    %213 = vector.load %arg9[%c56_98, %c0_99] : memref<64x128xf32, #tpu.memory_space<vmem>>, vector<8x32xf32>
    tpu.vector_store %arg9[%c56_98, %c0_99], %212 {strides = array<i32>} : memref<64x128xf32, #tpu.memory_space<vmem>>, vector<8x32xf32>,
    %214 = vector.extract_strided_slice %211 {offsets = [0, 32], sizes = [8, 32], strides = [1, 1]} : vector<8x64xf32> to vector<8x32xf32>
    %c0_100 = arith.constant 0 : index
    %c32_101 = arith.constant 32 : index
    %215 = vector.load %arg9[%c0_100, %c32_101] : memref<64x128xf32, #tpu.memory_space<vmem>>, vector<8x32xf32>
    tpu.vector_store %arg9[%c0_100, %c32_101], %214 {strides = array<i32>} : memref<64x128xf32, #tpu.memory_space<vmem>>, vector<8x32xf32>,
    %216 = vector.extract_strided_slice %211 {offsets = [0, 0], sizes = [8, 32], strides = [1, 1]} : vector<8x64xf32> to vector<8x32xf32>
    %c0_102 = arith.constant 0 : index
    %c64_103 = arith.constant 64 : index
    %217 = vector.load %arg9[%c0_102, %c64_103] : memref<64x128xf32, #tpu.memory_space<vmem>>, vector<8x32xf32>
    tpu.vector_store %arg9[%c0_102, %c64_103], %216 {strides = array<i32>} : memref<64x128xf32, #tpu.memory_space<vmem>>, vector<8x32xf32>,
    %218 = vector.extract_strided_slice %211 {offsets = [0, 32], sizes = [8, 32], strides = [1, 1]} : vector<8x64xf32> to vector<8x32xf32>
    %c56_104 = arith.constant 56 : index
    %c96_105 = arith.constant 96 : index
    %219 = vector.load %arg9[%c56_104, %c96_105] : memref<64x128xf32, #tpu.memory_space<vmem>>, vector<8x32xf32>
    tpu.vector_store %arg9[%c56_104, %c96_105], %218 {strides = array<i32>} : memref<64x128xf32, #tpu.memory_space<vmem>>, vector<8x32xf32>,
    %c1 = arith.constant 1 : index
    %c0_106 = arith.constant 0 : index
    %c0_107 = arith.constant 0 : index
    %220 = vector.load %arg2[%c1, %c0_106, %c0_107] : memref<5x200x256xf32, #tpu.memory_space<vmem>>, vector<1x128x256xf32>
    %221 = vector.shape_cast %220 : vector<1x128x256xf32> to vector<128x256xf32>
    %c1_108 = arith.constant 1 : index
    %c128_109 = arith.constant 128 : index
    %c0_110 = arith.constant 0 : index
    %222 = vector.load %arg2[%c1_108, %c128_109, %c0_110] : memref<5x200x256xf32, #tpu.memory_space<vmem>>, vector<1x64x256xf32>
    %223 = vector.shape_cast %222 : vector<1x64x256xf32> to vector<64x256xf32>
    %c1_111 = arith.constant 1 : index
    %c192_112 = arith.constant 192 : index
    %c0_113 = arith.constant 0 : index
    %224 = vector.load %arg2[%c1_111, %c192_112, %c0_113] : memref<5x200x256xf32, #tpu.memory_space<vmem>>, vector<1x1x256xf32>
    %225 = vector.shape_cast %224 : vector<1x1x256xf32> to vector<1x256xf32>
    %c0_114 = arith.constant 0 : index
    %c0_115 = arith.constant 0 : index
    %226 = vector.load %arg9[%c0_114, %c0_115] : memref<64x128xf32, #tpu.memory_space<vmem>>, vector<64x128xf32>
    %cst_116 = arith.constant dense<0.000000e+00> : vector<64x256xf32>
    %227 = tpu.matmul %226, %221, %cst_116 {dimension_numbers = #tpu.dot_dimension_numbers<[1], [0], [0], [1], [0, 0, 1, 1], [], []>} : vector<64x128xf32>, vector<128x256xf32>, vector<64x256xf32> -> vector<64x256xf32>
    %228 = vector.broadcast %225 : vector<1x256xf32> to vector<64x256xf32>
    %229 = arith.addf %227, %228 : vector<64x256xf32>
    %c0_117 = arith.constant 0 : index
    %c0_118 = arith.constant 0 : index
    %230 = vector.load %arg10[%c0_117, %c0_118] : memref<64x256xf32, #tpu.memory_space<vmem>>, vector<64x256xf32>
    tpu.vector_store %arg10[%c0_117, %c0_118], %229 {strides = array<i32>} : memref<64x256xf32, #tpu.memory_space<vmem>>, vector<64x256xf32>,
    %c0_119 = arith.constant 0 : index
    %c0_120 = arith.constant 0 : index
    %231 = vector.load %arg10[%c0_119, %c0_120] : memref<64x256xf32, #tpu.memory_space<vmem>>, vector<8x256xf32>
    %cst_121 = arith.constant dense<0.000000e+00> : vector<8x256xf32>
    %232 = tpu.matmul %0, %223, %cst_121 {dimension_numbers = #tpu.dot_dimension_numbers<[1], [0], [0], [1], [0, 0, 1, 1], [], []>} : vector<8x64xf32>, vector<64x256xf32>, vector<8x256xf32> -> vector<8x256xf32>
    %233 = arith.addf %231, %232 : vector<8x256xf32>
    %234 = math.tanh %233 : vector<8x256xf32>
    %235 = vector.extract_strided_slice %234 {offsets = [0, 0], sizes = [8, 192], strides = [1, 1]} : vector<8x256xf32> to vector<8x192xf32>
    %cst_122 = arith.constant 5.000000e-01 : f32
    %236 = vector.broadcast %cst_122 : f32 to vector<8x192xf32>
    %237 = arith.mulf %236, %235 : vector<8x192xf32>
    %cst_123 = arith.constant 5.000000e-01 : f32
    %238 = vector.broadcast %cst_123 : f32 to vector<8x192xf32>
    %239 = arith.addf %237, %238 : vector<8x192xf32>
    %240 = vector.extract_strided_slice %239 {offsets = [0, 64], sizes = [8, 64], strides = [1, 1]} : vector<8x192xf32> to vector<8x64xf32>
    %241 = arith.mulf %240, %0 : vector<8x64xf32>
    %242 = vector.extract_strided_slice %239 {offsets = [0, 0], sizes = [8, 64], strides = [1, 1]} : vector<8x192xf32> to vector<8x64xf32>
    %243 = vector.extract_strided_slice %234 {offsets = [0, 192], sizes = [8, 64], strides = [1, 1]} : vector<8x256xf32> to vector<8x64xf32>
    %244 = arith.mulf %242, %243 : vector<8x64xf32>
    %245 = arith.addf %241, %244 : vector<8x64xf32>
    %246 = vector.extract_strided_slice %239 {offsets = [0, 128], sizes = [8, 64], strides = [1, 1]} : vector<8x192xf32> to vector<8x64xf32>
    %247 = math.tanh %245 : vector<8x64xf32>
    %248 = arith.mulf %246, %247 : vector<8x64xf32>
    %249 = vector.extract_strided_slice %248 {offsets = [0, 0], sizes = [8, 32], strides = [1, 1]} : vector<8x64xf32> to vector<8x32xf32>
    %c0_124 = arith.constant 0 : index
    %c0_125 = arith.constant 0 : index
    %250 = vector.load %arg9[%c0_124, %c0_125] : memref<64x128xf32, #tpu.memory_space<vmem>>, vector<8x32xf32>
    tpu.vector_store %arg9[%c0_124, %c0_125], %249 {strides = array<i32>} : memref<64x128xf32, #tpu.memory_space<vmem>>, vector<8x32xf32>,
    %251 = vector.extract_strided_slice %248 {offsets = [0, 32], sizes = [8, 32], strides = [1, 1]} : vector<8x64xf32> to vector<8x32xf32>
    %c56_126 = arith.constant 56 : index
    %c32_127 = arith.constant 32 : index
    %252 = vector.load %arg9[%c56_126, %c32_127] : memref<64x128xf32, #tpu.memory_space<vmem>>, vector<8x32xf32>
    tpu.vector_store %arg9[%c56_126, %c32_127], %251 {strides = array<i32>} : memref<64x128xf32, #tpu.memory_space<vmem>>, vector<8x32xf32>,
    %253 = vector.extract_strided_slice %248 {offsets = [0, 0], sizes = [8, 32], strides = [1, 1]} : vector<8x64xf32> to vector<8x32xf32>
    %c56_128 = arith.constant 56 : index
    %c64_129 = arith.constant 64 : index
    %254 = vector.load %arg9[%c56_128, %c64_129] : memref<64x128xf32, #tpu.memory_space<vmem>>, vector<8x32xf32>
    tpu.vector_store %arg9[%c56_128, %c64_129], %253 {strides = array<i32>} : memref<64x128xf32, #tpu.memory_space<vmem>>, vector<8x32xf32>,
    %255 = vector.extract_strided_slice %248 {offsets = [0, 32], sizes = [8, 32], strides = [1, 1]} : vector<8x64xf32> to vector<8x32xf32>
    %c0_130 = arith.constant 0 : index
    %c96_131 = arith.constant 96 : index
    %256 = vector.load %arg9[%c0_130, %c96_131] : memref<64x128xf32, #tpu.memory_space<vmem>>, vector<8x32xf32>
    tpu.vector_store %arg9[%c0_130, %c96_131], %255 {strides = array<i32>} : memref<64x128xf32, #tpu.memory_space<vmem>>, vector<8x32xf32>,
    %c8_132 = arith.constant 8 : index
    %c0_133 = arith.constant 0 : index
    %257 = vector.load %arg10[%c8_132, %c0_133] : memref<64x256xf32, #tpu.memory_space<vmem>>, vector<8x256xf32>
    %cst_134 = arith.constant dense<0.000000e+00> : vector<8x256xf32>
    %258 = tpu.matmul %248, %223, %cst_134 {dimension_numbers = #tpu.dot_dimension_numbers<[1], [0], [0], [1], [0, 0, 1, 1], [], []>} : vector<8x64xf32>, vector<64x256xf32>, vector<8x256xf32> -> vector<8x256xf32>
    %259 = arith.addf %257, %258 : vector<8x256xf32>
    %260 = math.tanh %259 : vector<8x256xf32>
    %261 = vector.extract_strided_slice %260 {offsets = [0, 0], sizes = [8, 192], strides = [1, 1]} : vector<8x256xf32> to vector<8x192xf32>
    %cst_135 = arith.constant 5.000000e-01 : f32
    %262 = vector.broadcast %cst_135 : f32 to vector<8x192xf32>
    %263 = arith.mulf %262, %261 : vector<8x192xf32>
    %cst_136 = arith.constant 5.000000e-01 : f32
    %264 = vector.broadcast %cst_136 : f32 to vector<8x192xf32>
    %265 = arith.addf %263, %264 : vector<8x192xf32>
    %266 = vector.extract_strided_slice %265 {offsets = [0, 64], sizes = [8, 64], strides = [1, 1]} : vector<8x192xf32> to vector<8x64xf32>
    %267 = arith.mulf %266, %245 : vector<8x64xf32>
    %268 = vector.extract_strided_slice %265 {offsets = [0, 0], sizes = [8, 64], strides = [1, 1]} : vector<8x192xf32> to vector<8x64xf32>
    %269 = vector.extract_strided_slice %260 {offsets = [0, 192], sizes = [8, 64], strides = [1, 1]} : vector<8x256xf32> to vector<8x64xf32>
    %270 = arith.mulf %268, %269 : vector<8x64xf32>
    %271 = arith.addf %267, %270 : vector<8x64xf32>
    %272 = vector.extract_strided_slice %265 {offsets = [0, 128], sizes = [8, 64], strides = [1, 1]} : vector<8x192xf32> to vector<8x64xf32>
    %273 = math.tanh %271 : vector<8x64xf32>
    %274 = arith.mulf %272, %273 : vector<8x64xf32>
    %275 = vector.extract_strided_slice %274 {offsets = [0, 0], sizes = [8, 32], strides = [1, 1]} : vector<8x64xf32> to vector<8x32xf32>
    %c8_137 = arith.constant 8 : index
    %c0_138 = arith.constant 0 : index
    %276 = vector.load %arg9[%c8_137, %c0_138] : memref<64x128xf32, #tpu.memory_space<vmem>>, vector<8x32xf32>
    tpu.vector_store %arg9[%c8_137, %c0_138], %275 {strides = array<i32>} : memref<64x128xf32, #tpu.memory_space<vmem>>, vector<8x32xf32>,
    %277 = vector.extract_strided_slice %274 {offsets = [0, 32], sizes = [8, 32], strides = [1, 1]} : vector<8x64xf32> to vector<8x32xf32>
    %c48_139 = arith.constant 48 : index
    %c32_140 = arith.constant 32 : index
    %278 = vector.load %arg9[%c48_139, %c32_140] : memref<64x128xf32, #tpu.memory_space<vmem>>, vector<8x32xf32>
    tpu.vector_store %arg9[%c48_139, %c32_140], %277 {strides = array<i32>} : memref<64x128xf32, #tpu.memory_space<vmem>>, vector<8x32xf32>,
    %279 = vector.extract_strided_slice %274 {offsets = [0, 0], sizes = [8, 32], strides = [1, 1]} : vector<8x64xf32> to vector<8x32xf32>
    %c48_141 = arith.constant 48 : index
    %c64_142 = arith.constant 64 : index
    %280 = vector.load %arg9[%c48_141, %c64_142] : memref<64x128xf32, #tpu.memory_space<vmem>>, vector<8x32xf32>
    tpu.vector_store %arg9[%c48_141, %c64_142], %279 {strides = array<i32>} : memref<64x128xf32, #tpu.memory_space<vmem>>, vector<8x32xf32>,
    %281 = vector.extract_strided_slice %274 {offsets = [0, 32], sizes = [8, 32], strides = [1, 1]} : vector<8x64xf32> to vector<8x32xf32>
    %c8_143 = arith.constant 8 : index
    %c96_144 = arith.constant 96 : index
    %282 = vector.load %arg9[%c8_143, %c96_144] : memref<64x128xf32, #tpu.memory_space<vmem>>, vector<8x32xf32>
    tpu.vector_store %arg9[%c8_143, %c96_144], %281 {strides = array<i32>} : memref<64x128xf32, #tpu.memory_space<vmem>>, vector<8x32xf32>,
    %c16_145 = arith.constant 16 : index
    %c0_146 = arith.constant 0 : index
    %283 = vector.load %arg10[%c16_145, %c0_146] : memref<64x256xf32, #tpu.memory_space<vmem>>, vector<8x256xf32>
    %cst_147 = arith.constant dense<0.000000e+00> : vector<8x256xf32>
    %284 = tpu.matmul %274, %223, %cst_147 {dimension_numbers = #tpu.dot_dimension_numbers<[1], [0], [0], [1], [0, 0, 1, 1], [], []>} : vector<8x64xf32>, vector<64x256xf32>, vector<8x256xf32> -> vector<8x256xf32>
    %285 = arith.addf %283, %284 : vector<8x256xf32>
    %286 = math.tanh %285 : vector<8x256xf32>
    %287 = vector.extract_strided_slice %286 {offsets = [0, 0], sizes = [8, 192], strides = [1, 1]} : vector<8x256xf32> to vector<8x192xf32>
    %cst_148 = arith.constant 5.000000e-01 : f32
    %288 = vector.broadcast %cst_148 : f32 to vector<8x192xf32>
    %289 = arith.mulf %288, %287 : vector<8x192xf32>
    %cst_149 = arith.constant 5.000000e-01 : f32
    %290 = vector.broadcast %cst_149 : f32 to vector<8x192xf32>
    %291 = arith.addf %289, %290 : vector<8x192xf32>
    %292 = vector.extract_strided_slice %291 {offsets = [0, 64], sizes = [8, 64], strides = [1, 1]} : vector<8x192xf32> to vector<8x64xf32>
    %293 = arith.mulf %292, %271 : vector<8x64xf32>
    %294 = vector.extract_strided_slice %291 {offsets = [0, 0], sizes = [8, 64], strides = [1, 1]} : vector<8x192xf32> to vector<8x64xf32>
    %295 = vector.extract_strided_slice %286 {offsets = [0, 192], sizes = [8, 64], strides = [1, 1]} : vector<8x256xf32> to vector<8x64xf32>
    %296 = arith.mulf %294, %295 : vector<8x64xf32>
    %297 = arith.addf %293, %296 : vector<8x64xf32>
    %298 = vector.extract_strided_slice %291 {offsets = [0, 128], sizes = [8, 64], strides = [1, 1]} : vector<8x192xf32> to vector<8x64xf32>
    %299 = math.tanh %297 : vector<8x64xf32>
    %300 = arith.mulf %298, %299 : vector<8x64xf32>
    %301 = vector.extract_strided_slice %300 {offsets = [0, 0], sizes = [8, 32], strides = [1, 1]} : vector<8x64xf32> to vector<8x32xf32>
    %c16_150 = arith.constant 16 : index
    %c0_151 = arith.constant 0 : index
    %302 = vector.load %arg9[%c16_150, %c0_151] : memref<64x128xf32, #tpu.memory_space<vmem>>, vector<8x32xf32>
    tpu.vector_store %arg9[%c16_150, %c0_151], %301 {strides = array<i32>} : memref<64x128xf32, #tpu.memory_space<vmem>>, vector<8x32xf32>,
    %303 = vector.extract_strided_slice %300 {offsets = [0, 32], sizes = [8, 32], strides = [1, 1]} : vector<8x64xf32> to vector<8x32xf32>
    %c40_152 = arith.constant 40 : index
    %c32_153 = arith.constant 32 : index
    %304 = vector.load %arg9[%c40_152, %c32_153] : memref<64x128xf32, #tpu.memory_space<vmem>>, vector<8x32xf32>
    tpu.vector_store %arg9[%c40_152, %c32_153], %303 {strides = array<i32>} : memref<64x128xf32, #tpu.memory_space<vmem>>, vector<8x32xf32>,
    %305 = vector.extract_strided_slice %300 {offsets = [0, 0], sizes = [8, 32], strides = [1, 1]} : vector<8x64xf32> to vector<8x32xf32>
    %c40_154 = arith.constant 40 : index
    %c64_155 = arith.constant 64 : index
    %306 = vector.load %arg9[%c40_154, %c64_155] : memref<64x128xf32, #tpu.memory_space<vmem>>, vector<8x32xf32>
    tpu.vector_store %arg9[%c40_154, %c64_155], %305 {strides = array<i32>} : memref<64x128xf32, #tpu.memory_space<vmem>>, vector<8x32xf32>,
    %307 = vector.extract_strided_slice %300 {offsets = [0, 32], sizes = [8, 32], strides = [1, 1]} : vector<8x64xf32> to vector<8x32xf32>
    %c16_156 = arith.constant 16 : index
    %c96_157 = arith.constant 96 : index
    %308 = vector.load %arg9[%c16_156, %c96_157] : memref<64x128xf32, #tpu.memory_space<vmem>>, vector<8x32xf32>
    tpu.vector_store %arg9[%c16_156, %c96_157], %307 {strides = array<i32>} : memref<64x128xf32, #tpu.memory_space<vmem>>, vector<8x32xf32>,
    %c24_158 = arith.constant 24 : index
    %c0_159 = arith.constant 0 : index
    %309 = vector.load %arg10[%c24_158, %c0_159] : memref<64x256xf32, #tpu.memory_space<vmem>>, vector<8x256xf32>
    %cst_160 = arith.constant dense<0.000000e+00> : vector<8x256xf32>
    %310 = tpu.matmul %300, %223, %cst_160 {dimension_numbers = #tpu.dot_dimension_numbers<[1], [0], [0], [1], [0, 0, 1, 1], [], []>} : vector<8x64xf32>, vector<64x256xf32>, vector<8x256xf32> -> vector<8x256xf32>
    %311 = arith.addf %309, %310 : vector<8x256xf32>
    %312 = math.tanh %311 : vector<8x256xf32>
    %313 = vector.extract_strided_slice %312 {offsets = [0, 0], sizes = [8, 192], strides = [1, 1]} : vector<8x256xf32> to vector<8x192xf32>
    %cst_161 = arith.constant 5.000000e-01 : f32
    %314 = vector.broadcast %cst_161 : f32 to vector<8x192xf32>
    %315 = arith.mulf %314, %313 : vector<8x192xf32>
    %cst_162 = arith.constant 5.000000e-01 : f32
    %316 = vector.broadcast %cst_162 : f32 to vector<8x192xf32>
    %317 = arith.addf %315, %316 : vector<8x192xf32>
    %318 = vector.extract_strided_slice %317 {offsets = [0, 64], sizes = [8, 64], strides = [1, 1]} : vector<8x192xf32> to vector<8x64xf32>
    %319 = arith.mulf %318, %297 : vector<8x64xf32>
    %320 = vector.extract_strided_slice %317 {offsets = [0, 0], sizes = [8, 64], strides = [1, 1]} : vector<8x192xf32> to vector<8x64xf32>
    %321 = vector.extract_strided_slice %312 {offsets = [0, 192], sizes = [8, 64], strides = [1, 1]} : vector<8x256xf32> to vector<8x64xf32>
    %322 = arith.mulf %320, %321 : vector<8x64xf32>
    %323 = arith.addf %319, %322 : vector<8x64xf32>
    %324 = vector.extract_strided_slice %317 {offsets = [0, 128], sizes = [8, 64], strides = [1, 1]} : vector<8x192xf32> to vector<8x64xf32>
    %325 = math.tanh %323 : vector<8x64xf32>
    %326 = arith.mulf %324, %325 : vector<8x64xf32>
    %327 = vector.extract_strided_slice %326 {offsets = [0, 0], sizes = [8, 32], strides = [1, 1]} : vector<8x64xf32> to vector<8x32xf32>
    %c24_163 = arith.constant 24 : index
    %c0_164 = arith.constant 0 : index
    %328 = vector.load %arg9[%c24_163, %c0_164] : memref<64x128xf32, #tpu.memory_space<vmem>>, vector<8x32xf32>
    tpu.vector_store %arg9[%c24_163, %c0_164], %327 {strides = array<i32>} : memref<64x128xf32, #tpu.memory_space<vmem>>, vector<8x32xf32>,
    %329 = vector.extract_strided_slice %326 {offsets = [0, 32], sizes = [8, 32], strides = [1, 1]} : vector<8x64xf32> to vector<8x32xf32>
    %c32_165 = arith.constant 32 : index
    %c32_166 = arith.constant 32 : index
    %330 = vector.load %arg9[%c32_165, %c32_166] : memref<64x128xf32, #tpu.memory_space<vmem>>, vector<8x32xf32>
    tpu.vector_store %arg9[%c32_165, %c32_166], %329 {strides = array<i32>} : memref<64x128xf32, #tpu.memory_space<vmem>>, vector<8x32xf32>,
    %331 = vector.extract_strided_slice %326 {offsets = [0, 0], sizes = [8, 32], strides = [1, 1]} : vector<8x64xf32> to vector<8x32xf32>
    %c32_167 = arith.constant 32 : index
    %c64_168 = arith.constant 64 : index
    %332 = vector.load %arg9[%c32_167, %c64_168] : memref<64x128xf32, #tpu.memory_space<vmem>>, vector<8x32xf32>
    tpu.vector_store %arg9[%c32_167, %c64_168], %331 {strides = array<i32>} : memref<64x128xf32, #tpu.memory_space<vmem>>, vector<8x32xf32>,
    %333 = vector.extract_strided_slice %326 {offsets = [0, 32], sizes = [8, 32], strides = [1, 1]} : vector<8x64xf32> to vector<8x32xf32>
    %c24_169 = arith.constant 24 : index
    %c96_170 = arith.constant 96 : index
    %334 = vector.load %arg9[%c24_169, %c96_170] : memref<64x128xf32, #tpu.memory_space<vmem>>, vector<8x32xf32>
    tpu.vector_store %arg9[%c24_169, %c96_170], %333 {strides = array<i32>} : memref<64x128xf32, #tpu.memory_space<vmem>>, vector<8x32xf32>,
    %c32_171 = arith.constant 32 : index
    %c0_172 = arith.constant 0 : index
    %335 = vector.load %arg10[%c32_171, %c0_172] : memref<64x256xf32, #tpu.memory_space<vmem>>, vector<8x256xf32>
    %cst_173 = arith.constant dense<0.000000e+00> : vector<8x256xf32>
    %336 = tpu.matmul %326, %223, %cst_173 {dimension_numbers = #tpu.dot_dimension_numbers<[1], [0], [0], [1], [0, 0, 1, 1], [], []>} : vector<8x64xf32>, vector<64x256xf32>, vector<8x256xf32> -> vector<8x256xf32>
    %337 = arith.addf %335, %336 : vector<8x256xf32>
    %338 = math.tanh %337 : vector<8x256xf32>
    %339 = vector.extract_strided_slice %338 {offsets = [0, 0], sizes = [8, 192], strides = [1, 1]} : vector<8x256xf32> to vector<8x192xf32>
    %cst_174 = arith.constant 5.000000e-01 : f32
    %340 = vector.broadcast %cst_174 : f32 to vector<8x192xf32>
    %341 = arith.mulf %340, %339 : vector<8x192xf32>
    %cst_175 = arith.constant 5.000000e-01 : f32
    %342 = vector.broadcast %cst_175 : f32 to vector<8x192xf32>
    %343 = arith.addf %341, %342 : vector<8x192xf32>
    %344 = vector.extract_strided_slice %343 {offsets = [0, 64], sizes = [8, 64], strides = [1, 1]} : vector<8x192xf32> to vector<8x64xf32>
    %345 = arith.mulf %344, %323 : vector<8x64xf32>
    %346 = vector.extract_strided_slice %343 {offsets = [0, 0], sizes = [8, 64], strides = [1, 1]} : vector<8x192xf32> to vector<8x64xf32>
    %347 = vector.extract_strided_slice %338 {offsets = [0, 192], sizes = [8, 64], strides = [1, 1]} : vector<8x256xf32> to vector<8x64xf32>
    %348 = arith.mulf %346, %347 : vector<8x64xf32>
    %349 = arith.addf %345, %348 : vector<8x64xf32>
    %350 = vector.extract_strided_slice %343 {offsets = [0, 128], sizes = [8, 64], strides = [1, 1]} : vector<8x192xf32> to vector<8x64xf32>
    %351 = math.tanh %349 : vector<8x64xf32>
    %352 = arith.mulf %350, %351 : vector<8x64xf32>
    %353 = vector.extract_strided_slice %352 {offsets = [0, 0], sizes = [8, 32], strides = [1, 1]} : vector<8x64xf32> to vector<8x32xf32>
    %c32_176 = arith.constant 32 : index
    %c0_177 = arith.constant 0 : index
    %354 = vector.load %arg9[%c32_176, %c0_177] : memref<64x128xf32, #tpu.memory_space<vmem>>, vector<8x32xf32>
    tpu.vector_store %arg9[%c32_176, %c0_177], %353 {strides = array<i32>} : memref<64x128xf32, #tpu.memory_space<vmem>>, vector<8x32xf32>,
    %355 = vector.extract_strided_slice %352 {offsets = [0, 32], sizes = [8, 32], strides = [1, 1]} : vector<8x64xf32> to vector<8x32xf32>
    %c24_178 = arith.constant 24 : index
    %c32_179 = arith.constant 32 : index
    %356 = vector.load %arg9[%c24_178, %c32_179] : memref<64x128xf32, #tpu.memory_space<vmem>>, vector<8x32xf32>
    tpu.vector_store %arg9[%c24_178, %c32_179], %355 {strides = array<i32>} : memref<64x128xf32, #tpu.memory_space<vmem>>, vector<8x32xf32>,
    %357 = vector.extract_strided_slice %352 {offsets = [0, 0], sizes = [8, 32], strides = [1, 1]} : vector<8x64xf32> to vector<8x32xf32>
    %c24_180 = arith.constant 24 : index
    %c64_181 = arith.constant 64 : index
    %358 = vector.load %arg9[%c24_180, %c64_181] : memref<64x128xf32, #tpu.memory_space<vmem>>, vector<8x32xf32>
    tpu.vector_store %arg9[%c24_180, %c64_181], %357 {strides = array<i32>} : memref<64x128xf32, #tpu.memory_space<vmem>>, vector<8x32xf32>,
    %359 = vector.extract_strided_slice %352 {offsets = [0, 32], sizes = [8, 32], strides = [1, 1]} : vector<8x64xf32> to vector<8x32xf32>
    %c32_182 = arith.constant 32 : index
    %c96_183 = arith.constant 96 : index
    %360 = vector.load %arg9[%c32_182, %c96_183] : memref<64x128xf32, #tpu.memory_space<vmem>>, vector<8x32xf32>
    tpu.vector_store %arg9[%c32_182, %c96_183], %359 {strides = array<i32>} : memref<64x128xf32, #tpu.memory_space<vmem>>, vector<8x32xf32>,
    %c40_184 = arith.constant 40 : index
    %c0_185 = arith.constant 0 : index
    %361 = vector.load %arg10[%c40_184, %c0_185] : memref<64x256xf32, #tpu.memory_space<vmem>>, vector<8x256xf32>
    %cst_186 = arith.constant dense<0.000000e+00> : vector<8x256xf32>
    %362 = tpu.matmul %352, %223, %cst_186 {dimension_numbers = #tpu.dot_dimension_numbers<[1], [0], [0], [1], [0, 0, 1, 1], [], []>} : vector<8x64xf32>, vector<64x256xf32>, vector<8x256xf32> -> vector<8x256xf32>
    %363 = arith.addf %361, %362 : vector<8x256xf32>
    %364 = math.tanh %363 : vector<8x256xf32>
    %365 = vector.extract_strided_slice %364 {offsets = [0, 0], sizes = [8, 192], strides = [1, 1]} : vector<8x256xf32> to vector<8x192xf32>
    %cst_187 = arith.constant 5.000000e-01 : f32
    %366 = vector.broadcast %cst_187 : f32 to vector<8x192xf32>
    %367 = arith.mulf %366, %365 : vector<8x192xf32>
    %cst_188 = arith.constant 5.000000e-01 : f32
    %368 = vector.broadcast %cst_188 : f32 to vector<8x192xf32>
    %369 = arith.addf %367, %368 : vector<8x192xf32>
    %370 = vector.extract_strided_slice %369 {offsets = [0, 64], sizes = [8, 64], strides = [1, 1]} : vector<8x192xf32> to vector<8x64xf32>
    %371 = arith.mulf %370, %349 : vector<8x64xf32>
    %372 = vector.extract_strided_slice %369 {offsets = [0, 0], sizes = [8, 64], strides = [1, 1]} : vector<8x192xf32> to vector<8x64xf32>
    %373 = vector.extract_strided_slice %364 {offsets = [0, 192], sizes = [8, 64], strides = [1, 1]} : vector<8x256xf32> to vector<8x64xf32>
    %374 = arith.mulf %372, %373 : vector<8x64xf32>
    %375 = arith.addf %371, %374 : vector<8x64xf32>
    %376 = vector.extract_strided_slice %369 {offsets = [0, 128], sizes = [8, 64], strides = [1, 1]} : vector<8x192xf32> to vector<8x64xf32>
    %377 = math.tanh %375 : vector<8x64xf32>
    %378 = arith.mulf %376, %377 : vector<8x64xf32>
    %379 = vector.extract_strided_slice %378 {offsets = [0, 0], sizes = [8, 32], strides = [1, 1]} : vector<8x64xf32> to vector<8x32xf32>
    %c40_189 = arith.constant 40 : index
    %c0_190 = arith.constant 0 : index
    %380 = vector.load %arg9[%c40_189, %c0_190] : memref<64x128xf32, #tpu.memory_space<vmem>>, vector<8x32xf32>
    tpu.vector_store %arg9[%c40_189, %c0_190], %379 {strides = array<i32>} : memref<64x128xf32, #tpu.memory_space<vmem>>, vector<8x32xf32>,
    %381 = vector.extract_strided_slice %378 {offsets = [0, 32], sizes = [8, 32], strides = [1, 1]} : vector<8x64xf32> to vector<8x32xf32>
    %c16_191 = arith.constant 16 : index
    %c32_192 = arith.constant 32 : index
    %382 = vector.load %arg9[%c16_191, %c32_192] : memref<64x128xf32, #tpu.memory_space<vmem>>, vector<8x32xf32>
    tpu.vector_store %arg9[%c16_191, %c32_192], %381 {strides = array<i32>} : memref<64x128xf32, #tpu.memory_space<vmem>>, vector<8x32xf32>,
    %383 = vector.extract_strided_slice %378 {offsets = [0, 0], sizes = [8, 32], strides = [1, 1]} : vector<8x64xf32> to vector<8x32xf32>
    %c16_193 = arith.constant 16 : index
    %c64_194 = arith.constant 64 : index
    %384 = vector.load %arg9[%c16_193, %c64_194] : memref<64x128xf32, #tpu.memory_space<vmem>>, vector<8x32xf32>
    tpu.vector_store %arg9[%c16_193, %c64_194], %383 {strides = array<i32>} : memref<64x128xf32, #tpu.memory_space<vmem>>, vector<8x32xf32>,
    %385 = vector.extract_strided_slice %378 {offsets = [0, 32], sizes = [8, 32], strides = [1, 1]} : vector<8x64xf32> to vector<8x32xf32>
    %c40_195 = arith.constant 40 : index
    %c96_196 = arith.constant 96 : index
    %386 = vector.load %arg9[%c40_195, %c96_196] : memref<64x128xf32, #tpu.memory_space<vmem>>, vector<8x32xf32>
    tpu.vector_store %arg9[%c40_195, %c96_196], %385 {strides = array<i32>} : memref<64x128xf32, #tpu.memory_space<vmem>>, vector<8x32xf32>,
    %c48_197 = arith.constant 48 : index
    %c0_198 = arith.constant 0 : index
    %387 = vector.load %arg10[%c48_197, %c0_198] : memref<64x256xf32, #tpu.memory_space<vmem>>, vector<8x256xf32>
    %cst_199 = arith.constant dense<0.000000e+00> : vector<8x256xf32>
    %388 = tpu.matmul %378, %223, %cst_199 {dimension_numbers = #tpu.dot_dimension_numbers<[1], [0], [0], [1], [0, 0, 1, 1], [], []>} : vector<8x64xf32>, vector<64x256xf32>, vector<8x256xf32> -> vector<8x256xf32>
    %389 = arith.addf %387, %388 : vector<8x256xf32>
    %390 = math.tanh %389 : vector<8x256xf32>
    %391 = vector.extract_strided_slice %390 {offsets = [0, 0], sizes = [8, 192], strides = [1, 1]} : vector<8x256xf32> to vector<8x192xf32>
    %cst_200 = arith.constant 5.000000e-01 : f32
    %392 = vector.broadcast %cst_200 : f32 to vector<8x192xf32>
    %393 = arith.mulf %392, %391 : vector<8x192xf32>
    %cst_201 = arith.constant 5.000000e-01 : f32
    %394 = vector.broadcast %cst_201 : f32 to vector<8x192xf32>
    %395 = arith.addf %393, %394 : vector<8x192xf32>
    %396 = vector.extract_strided_slice %395 {offsets = [0, 64], sizes = [8, 64], strides = [1, 1]} : vector<8x192xf32> to vector<8x64xf32>
    %397 = arith.mulf %396, %375 : vector<8x64xf32>
    %398 = vector.extract_strided_slice %395 {offsets = [0, 0], sizes = [8, 64], strides = [1, 1]} : vector<8x192xf32> to vector<8x64xf32>
    %399 = vector.extract_strided_slice %390 {offsets = [0, 192], sizes = [8, 64], strides = [1, 1]} : vector<8x256xf32> to vector<8x64xf32>
    %400 = arith.mulf %398, %399 : vector<8x64xf32>
    %401 = arith.addf %397, %400 : vector<8x64xf32>
    %402 = vector.extract_strided_slice %395 {offsets = [0, 128], sizes = [8, 64], strides = [1, 1]} : vector<8x192xf32> to vector<8x64xf32>
    %403 = math.tanh %401 : vector<8x64xf32>
    %404 = arith.mulf %402, %403 : vector<8x64xf32>
    %405 = vector.extract_strided_slice %404 {offsets = [0, 0], sizes = [8, 32], strides = [1, 1]} : vector<8x64xf32> to vector<8x32xf32>
    %c48_202 = arith.constant 48 : index
    %c0_203 = arith.constant 0 : index
    %406 = vector.load %arg9[%c48_202, %c0_203] : memref<64x128xf32, #tpu.memory_space<vmem>>, vector<8x32xf32>
    tpu.vector_store %arg9[%c48_202, %c0_203], %405 {strides = array<i32>} : memref<64x128xf32, #tpu.memory_space<vmem>>, vector<8x32xf32>,
    %407 = vector.extract_strided_slice %404 {offsets = [0, 32], sizes = [8, 32], strides = [1, 1]} : vector<8x64xf32> to vector<8x32xf32>
    %c8_204 = arith.constant 8 : index
    %c32_205 = arith.constant 32 : index
    %408 = vector.load %arg9[%c8_204, %c32_205] : memref<64x128xf32, #tpu.memory_space<vmem>>, vector<8x32xf32>
    tpu.vector_store %arg9[%c8_204, %c32_205], %407 {strides = array<i32>} : memref<64x128xf32, #tpu.memory_space<vmem>>, vector<8x32xf32>,
    %409 = vector.extract_strided_slice %404 {offsets = [0, 0], sizes = [8, 32], strides = [1, 1]} : vector<8x64xf32> to vector<8x32xf32>
    %c8_206 = arith.constant 8 : index
    %c64_207 = arith.constant 64 : index
    %410 = vector.load %arg9[%c8_206, %c64_207] : memref<64x128xf32, #tpu.memory_space<vmem>>, vector<8x32xf32>
    tpu.vector_store %arg9[%c8_206, %c64_207], %409 {strides = array<i32>} : memref<64x128xf32, #tpu.memory_space<vmem>>, vector<8x32xf32>,
    %411 = vector.extract_strided_slice %404 {offsets = [0, 32], sizes = [8, 32], strides = [1, 1]} : vector<8x64xf32> to vector<8x32xf32>
    %c48_208 = arith.constant 48 : index
    %c96_209 = arith.constant 96 : index
    %412 = vector.load %arg9[%c48_208, %c96_209] : memref<64x128xf32, #tpu.memory_space<vmem>>, vector<8x32xf32>
    tpu.vector_store %arg9[%c48_208, %c96_209], %411 {strides = array<i32>} : memref<64x128xf32, #tpu.memory_space<vmem>>, vector<8x32xf32>,
    %c56_210 = arith.constant 56 : index
    %c0_211 = arith.constant 0 : index
    %413 = vector.load %arg10[%c56_210, %c0_211] : memref<64x256xf32, #tpu.memory_space<vmem>>, vector<8x256xf32>
    %cst_212 = arith.constant dense<0.000000e+00> : vector<8x256xf32>
    %414 = tpu.matmul %404, %223, %cst_212 {dimension_numbers = #tpu.dot_dimension_numbers<[1], [0], [0], [1], [0, 0, 1, 1], [], []>} : vector<8x64xf32>, vector<64x256xf32>, vector<8x256xf32> -> vector<8x256xf32>
    %415 = arith.addf %413, %414 : vector<8x256xf32>
    %416 = math.tanh %415 : vector<8x256xf32>
    %417 = vector.extract_strided_slice %416 {offsets = [0, 0], sizes = [8, 192], strides = [1, 1]} : vector<8x256xf32> to vector<8x192xf32>
    %cst_213 = arith.constant 5.000000e-01 : f32
    %418 = vector.broadcast %cst_213 : f32 to vector<8x192xf32>
    %419 = arith.mulf %418, %417 : vector<8x192xf32>
    %cst_214 = arith.constant 5.000000e-01 : f32
    %420 = vector.broadcast %cst_214 : f32 to vector<8x192xf32>
    %421 = arith.addf %419, %420 : vector<8x192xf32>
    %422 = vector.extract_strided_slice %421 {offsets = [0, 64], sizes = [8, 64], strides = [1, 1]} : vector<8x192xf32> to vector<8x64xf32>
    %423 = arith.mulf %422, %401 : vector<8x64xf32>
    %424 = vector.extract_strided_slice %421 {offsets = [0, 0], sizes = [8, 64], strides = [1, 1]} : vector<8x192xf32> to vector<8x64xf32>
    %425 = vector.extract_strided_slice %416 {offsets = [0, 192], sizes = [8, 64], strides = [1, 1]} : vector<8x256xf32> to vector<8x64xf32>
    %426 = arith.mulf %424, %425 : vector<8x64xf32>
    %427 = arith.addf %423, %426 : vector<8x64xf32>
    %428 = vector.extract_strided_slice %421 {offsets = [0, 128], sizes = [8, 64], strides = [1, 1]} : vector<8x192xf32> to vector<8x64xf32>
    %429 = math.tanh %427 : vector<8x64xf32>
    %430 = arith.mulf %428, %429 : vector<8x64xf32>
    %431 = vector.extract_strided_slice %430 {offsets = [0, 0], sizes = [8, 32], strides = [1, 1]} : vector<8x64xf32> to vector<8x32xf32>
    %c56_215 = arith.constant 56 : index
    %c0_216 = arith.constant 0 : index
    %432 = vector.load %arg9[%c56_215, %c0_216] : memref<64x128xf32, #tpu.memory_space<vmem>>, vector<8x32xf32>
    tpu.vector_store %arg9[%c56_215, %c0_216], %431 {strides = array<i32>} : memref<64x128xf32, #tpu.memory_space<vmem>>, vector<8x32xf32>,
    %433 = vector.extract_strided_slice %430 {offsets = [0, 32], sizes = [8, 32], strides = [1, 1]} : vector<8x64xf32> to vector<8x32xf32>
    %c0_217 = arith.constant 0 : index
    %c32_218 = arith.constant 32 : index
    %434 = vector.load %arg9[%c0_217, %c32_218] : memref<64x128xf32, #tpu.memory_space<vmem>>, vector<8x32xf32>
    tpu.vector_store %arg9[%c0_217, %c32_218], %433 {strides = array<i32>} : memref<64x128xf32, #tpu.memory_space<vmem>>, vector<8x32xf32>,
    %435 = vector.extract_strided_slice %430 {offsets = [0, 0], sizes = [8, 32], strides = [1, 1]} : vector<8x64xf32> to vector<8x32xf32>
    %c0_219 = arith.constant 0 : index
    %c64_220 = arith.constant 64 : index
    %436 = vector.load %arg9[%c0_219, %c64_220] : memref<64x128xf32, #tpu.memory_space<vmem>>, vector<8x32xf32>
    tpu.vector_store %arg9[%c0_219, %c64_220], %435 {strides = array<i32>} : memref<64x128xf32, #tpu.memory_space<vmem>>, vector<8x32xf32>,
    %437 = vector.extract_strided_slice %430 {offsets = [0, 32], sizes = [8, 32], strides = [1, 1]} : vector<8x64xf32> to vector<8x32xf32>
    %c56_221 = arith.constant 56 : index
    %c96_222 = arith.constant 96 : index
    %438 = vector.load %arg9[%c56_221, %c96_222] : memref<64x128xf32, #tpu.memory_space<vmem>>, vector<8x32xf32>
    tpu.vector_store %arg9[%c56_221, %c96_222], %437 {strides = array<i32>} : memref<64x128xf32, #tpu.memory_space<vmem>>, vector<8x32xf32>,
    %c2 = arith.constant 2 : index
    %c0_223 = arith.constant 0 : index
    %c0_224 = arith.constant 0 : index
    %439 = vector.load %arg2[%c2, %c0_223, %c0_224] : memref<5x200x256xf32, #tpu.memory_space<vmem>>, vector<1x128x256xf32>
    %440 = vector.shape_cast %439 : vector<1x128x256xf32> to vector<128x256xf32>
    %c2_225 = arith.constant 2 : index
    %c128_226 = arith.constant 128 : index
    %c0_227 = arith.constant 0 : index
    %441 = vector.load %arg2[%c2_225, %c128_226, %c0_227] : memref<5x200x256xf32, #tpu.memory_space<vmem>>, vector<1x64x256xf32>
    %442 = vector.shape_cast %441 : vector<1x64x256xf32> to vector<64x256xf32>
    %c2_228 = arith.constant 2 : index
    %c192_229 = arith.constant 192 : index
    %c0_230 = arith.constant 0 : index
    %443 = vector.load %arg2[%c2_228, %c192_229, %c0_230] : memref<5x200x256xf32, #tpu.memory_space<vmem>>, vector<1x1x256xf32>
    %444 = vector.shape_cast %443 : vector<1x1x256xf32> to vector<1x256xf32>
    %c0_231 = arith.constant 0 : index
    %c0_232 = arith.constant 0 : index
    %445 = vector.load %arg9[%c0_231, %c0_232] : memref<64x128xf32, #tpu.memory_space<vmem>>, vector<64x128xf32>
    %cst_233 = arith.constant dense<0.000000e+00> : vector<64x256xf32>
    %446 = tpu.matmul %445, %440, %cst_233 {dimension_numbers = #tpu.dot_dimension_numbers<[1], [0], [0], [1], [0, 0, 1, 1], [], []>} : vector<64x128xf32>, vector<128x256xf32>, vector<64x256xf32> -> vector<64x256xf32>
    %447 = vector.broadcast %444 : vector<1x256xf32> to vector<64x256xf32>
    %448 = arith.addf %446, %447 : vector<64x256xf32>
    %c0_234 = arith.constant 0 : index
    %c0_235 = arith.constant 0 : index
    %449 = vector.load %arg10[%c0_234, %c0_235] : memref<64x256xf32, #tpu.memory_space<vmem>>, vector<64x256xf32>
    tpu.vector_store %arg10[%c0_234, %c0_235], %448 {strides = array<i32>} : memref<64x256xf32, #tpu.memory_space<vmem>>, vector<64x256xf32>,
    %c0_236 = arith.constant 0 : index
    %c0_237 = arith.constant 0 : index
    %450 = vector.load %arg10[%c0_236, %c0_237] : memref<64x256xf32, #tpu.memory_space<vmem>>, vector<8x256xf32>
    %cst_238 = arith.constant dense<0.000000e+00> : vector<8x256xf32>
    %451 = tpu.matmul %0, %442, %cst_238 {dimension_numbers = #tpu.dot_dimension_numbers<[1], [0], [0], [1], [0, 0, 1, 1], [], []>} : vector<8x64xf32>, vector<64x256xf32>, vector<8x256xf32> -> vector<8x256xf32>
    %452 = arith.addf %450, %451 : vector<8x256xf32>
    %453 = math.tanh %452 : vector<8x256xf32>
    %454 = vector.extract_strided_slice %453 {offsets = [0, 0], sizes = [8, 192], strides = [1, 1]} : vector<8x256xf32> to vector<8x192xf32>
    %cst_239 = arith.constant 5.000000e-01 : f32
    %455 = vector.broadcast %cst_239 : f32 to vector<8x192xf32>
    %456 = arith.mulf %455, %454 : vector<8x192xf32>
    %cst_240 = arith.constant 5.000000e-01 : f32
    %457 = vector.broadcast %cst_240 : f32 to vector<8x192xf32>
    %458 = arith.addf %456, %457 : vector<8x192xf32>
    %459 = vector.extract_strided_slice %458 {offsets = [0, 64], sizes = [8, 64], strides = [1, 1]} : vector<8x192xf32> to vector<8x64xf32>
    %460 = arith.mulf %459, %0 : vector<8x64xf32>
    %461 = vector.extract_strided_slice %458 {offsets = [0, 0], sizes = [8, 64], strides = [1, 1]} : vector<8x192xf32> to vector<8x64xf32>
    %462 = vector.extract_strided_slice %453 {offsets = [0, 192], sizes = [8, 64], strides = [1, 1]} : vector<8x256xf32> to vector<8x64xf32>
    %463 = arith.mulf %461, %462 : vector<8x64xf32>
    %464 = arith.addf %460, %463 : vector<8x64xf32>
    %465 = vector.extract_strided_slice %458 {offsets = [0, 128], sizes = [8, 64], strides = [1, 1]} : vector<8x192xf32> to vector<8x64xf32>
    %466 = math.tanh %464 : vector<8x64xf32>
    %467 = arith.mulf %465, %466 : vector<8x64xf32>
    %468 = vector.extract_strided_slice %467 {offsets = [0, 0], sizes = [8, 32], strides = [1, 1]} : vector<8x64xf32> to vector<8x32xf32>
    %c0_241 = arith.constant 0 : index
    %c0_242 = arith.constant 0 : index
    %469 = vector.load %arg9[%c0_241, %c0_242] : memref<64x128xf32, #tpu.memory_space<vmem>>, vector<8x32xf32>
    tpu.vector_store %arg9[%c0_241, %c0_242], %468 {strides = array<i32>} : memref<64x128xf32, #tpu.memory_space<vmem>>, vector<8x32xf32>,
    %470 = vector.extract_strided_slice %467 {offsets = [0, 32], sizes = [8, 32], strides = [1, 1]} : vector<8x64xf32> to vector<8x32xf32>
    %c56_243 = arith.constant 56 : index
    %c32_244 = arith.constant 32 : index
    %471 = vector.load %arg9[%c56_243, %c32_244] : memref<64x128xf32, #tpu.memory_space<vmem>>, vector<8x32xf32>
    tpu.vector_store %arg9[%c56_243, %c32_244], %470 {strides = array<i32>} : memref<64x128xf32, #tpu.memory_space<vmem>>, vector<8x32xf32>,
    %472 = vector.extract_strided_slice %467 {offsets = [0, 0], sizes = [8, 32], strides = [1, 1]} : vector<8x64xf32> to vector<8x32xf32>
    %c56_245 = arith.constant 56 : index
    %c64_246 = arith.constant 64 : index
    %473 = vector.load %arg9[%c56_245, %c64_246] : memref<64x128xf32, #tpu.memory_space<vmem>>, vector<8x32xf32>
    tpu.vector_store %arg9[%c56_245, %c64_246], %472 {strides = array<i32>} : memref<64x128xf32, #tpu.memory_space<vmem>>, vector<8x32xf32>,
    %474 = vector.extract_strided_slice %467 {offsets = [0, 32], sizes = [8, 32], strides = [1, 1]} : vector<8x64xf32> to vector<8x32xf32>
    %c0_247 = arith.constant 0 : index
    %c96_248 = arith.constant 96 : index
    %475 = vector.load %arg9[%c0_247, %c96_248] : memref<64x128xf32, #tpu.memory_space<vmem>>, vector<8x32xf32>
    tpu.vector_store %arg9[%c0_247, %c96_248], %474 {strides = array<i32>} : memref<64x128xf32, #tpu.memory_space<vmem>>, vector<8x32xf32>,
    %c8_249 = arith.constant 8 : index
    %c0_250 = arith.constant 0 : index
    %476 = vector.load %arg10[%c8_249, %c0_250] : memref<64x256xf32, #tpu.memory_space<vmem>>, vector<8x256xf32>
    %cst_251 = arith.constant dense<0.000000e+00> : vector<8x256xf32>
    %477 = tpu.matmul %467, %442, %cst_251 {dimension_numbers = #tpu.dot_dimension_numbers<[1], [0], [0], [1], [0, 0, 1, 1], [], []>} : vector<8x64xf32>, vector<64x256xf32>, vector<8x256xf32> -> vector<8x256xf32>
    %478 = arith.addf %476, %477 : vector<8x256xf32>
    %479 = math.tanh %478 : vector<8x256xf32>
    %480 = vector.extract_strided_slice %479 {offsets = [0, 0], sizes = [8, 192], strides = [1, 1]} : vector<8x256xf32> to vector<8x192xf32>
    %cst_252 = arith.constant 5.000000e-01 : f32
    %481 = vector.broadcast %cst_252 : f32 to vector<8x192xf32>
    %482 = arith.mulf %481, %480 : vector<8x192xf32>
    %cst_253 = arith.constant 5.000000e-01 : f32
    %483 = vector.broadcast %cst_253 : f32 to vector<8x192xf32>
    %484 = arith.addf %482, %483 : vector<8x192xf32>
    %485 = vector.extract_strided_slice %484 {offsets = [0, 64], sizes = [8, 64], strides = [1, 1]} : vector<8x192xf32> to vector<8x64xf32>
    %486 = arith.mulf %485, %464 : vector<8x64xf32>
    %487 = vector.extract_strided_slice %484 {offsets = [0, 0], sizes = [8, 64], strides = [1, 1]} : vector<8x192xf32> to vector<8x64xf32>
    %488 = vector.extract_strided_slice %479 {offsets = [0, 192], sizes = [8, 64], strides = [1, 1]} : vector<8x256xf32> to vector<8x64xf32>
    %489 = arith.mulf %487, %488 : vector<8x64xf32>
    %490 = arith.addf %486, %489 : vector<8x64xf32>
    %491 = vector.extract_strided_slice %484 {offsets = [0, 128], sizes = [8, 64], strides = [1, 1]} : vector<8x192xf32> to vector<8x64xf32>
    %492 = math.tanh %490 : vector<8x64xf32>
    %493 = arith.mulf %491, %492 : vector<8x64xf32>
    %494 = vector.extract_strided_slice %493 {offsets = [0, 0], sizes = [8, 32], strides = [1, 1]} : vector<8x64xf32> to vector<8x32xf32>
    %c8_254 = arith.constant 8 : index
    %c0_255 = arith.constant 0 : index
    %495 = vector.load %arg9[%c8_254, %c0_255] : memref<64x128xf32, #tpu.memory_space<vmem>>, vector<8x32xf32>
    tpu.vector_store %arg9[%c8_254, %c0_255], %494 {strides = array<i32>} : memref<64x128xf32, #tpu.memory_space<vmem>>, vector<8x32xf32>,
    %496 = vector.extract_strided_slice %493 {offsets = [0, 32], sizes = [8, 32], strides = [1, 1]} : vector<8x64xf32> to vector<8x32xf32>
    %c48_256 = arith.constant 48 : index
    %c32_257 = arith.constant 32 : index
    %497 = vector.load %arg9[%c48_256, %c32_257] : memref<64x128xf32, #tpu.memory_space<vmem>>, vector<8x32xf32>
    tpu.vector_store %arg9[%c48_256, %c32_257], %496 {strides = array<i32>} : memref<64x128xf32, #tpu.memory_space<vmem>>, vector<8x32xf32>,
    %498 = vector.extract_strided_slice %493 {offsets = [0, 0], sizes = [8, 32], strides = [1, 1]} : vector<8x64xf32> to vector<8x32xf32>
    %c48_258 = arith.constant 48 : index
    %c64_259 = arith.constant 64 : index
    %499 = vector.load %arg9[%c48_258, %c64_259] : memref<64x128xf32, #tpu.memory_space<vmem>>, vector<8x32xf32>
    tpu.vector_store %arg9[%c48_258, %c64_259], %498 {strides = array<i32>} : memref<64x128xf32, #tpu.memory_space<vmem>>, vector<8x32xf32>,
    %500 = vector.extract_strided_slice %493 {offsets = [0, 32], sizes = [8, 32], strides = [1, 1]} : vector<8x64xf32> to vector<8x32xf32>
    %c8_260 = arith.constant 8 : index
    %c96_261 = arith.constant 96 : index
    %501 = vector.load %arg9[%c8_260, %c96_261] : memref<64x128xf32, #tpu.memory_space<vmem>>, vector<8x32xf32>
    tpu.vector_store %arg9[%c8_260, %c96_261], %500 {strides = array<i32>} : memref<64x128xf32, #tpu.memory_space<vmem>>, vector<8x32xf32>,
    %c16_262 = arith.constant 16 : index
    %c0_263 = arith.constant 0 : index
    %502 = vector.load %arg10[%c16_262, %c0_263] : memref<64x256xf32, #tpu.memory_space<vmem>>, vector<8x256xf32>
    %cst_264 = arith.constant dense<0.000000e+00> : vector<8x256xf32>
    %503 = tpu.matmul %493, %442, %cst_264 {dimension_numbers = #tpu.dot_dimension_numbers<[1], [0], [0], [1], [0, 0, 1, 1], [], []>} : vector<8x64xf32>, vector<64x256xf32>, vector<8x256xf32> -> vector<8x256xf32>
    %504 = arith.addf %502, %503 : vector<8x256xf32>
    %505 = math.tanh %504 : vector<8x256xf32>
    %506 = vector.extract_strided_slice %505 {offsets = [0, 0], sizes = [8, 192], strides = [1, 1]} : vector<8x256xf32> to vector<8x192xf32>
    %cst_265 = arith.constant 5.000000e-01 : f32
    %507 = vector.broadcast %cst_265 : f32 to vector<8x192xf32>
    %508 = arith.mulf %507, %506 : vector<8x192xf32>
    %cst_266 = arith.constant 5.000000e-01 : f32
    %509 = vector.broadcast %cst_266 : f32 to vector<8x192xf32>
    %510 = arith.addf %508, %509 : vector<8x192xf32>
    %511 = vector.extract_strided_slice %510 {offsets = [0, 64], sizes = [8, 64], strides = [1, 1]} : vector<8x192xf32> to vector<8x64xf32>
    %512 = arith.mulf %511, %490 : vector<8x64xf32>
    %513 = vector.extract_strided_slice %510 {offsets = [0, 0], sizes = [8, 64], strides = [1, 1]} : vector<8x192xf32> to vector<8x64xf32>
    %514 = vector.extract_strided_slice %505 {offsets = [0, 192], sizes = [8, 64], strides = [1, 1]} : vector<8x256xf32> to vector<8x64xf32>
    %515 = arith.mulf %513, %514 : vector<8x64xf32>
    %516 = arith.addf %512, %515 : vector<8x64xf32>
    %517 = vector.extract_strided_slice %510 {offsets = [0, 128], sizes = [8, 64], strides = [1, 1]} : vector<8x192xf32> to vector<8x64xf32>
    %518 = math.tanh %516 : vector<8x64xf32>
    %519 = arith.mulf %517, %518 : vector<8x64xf32>
    %520 = vector.extract_strided_slice %519 {offsets = [0, 0], sizes = [8, 32], strides = [1, 1]} : vector<8x64xf32> to vector<8x32xf32>
    %c16_267 = arith.constant 16 : index
    %c0_268 = arith.constant 0 : index
    %521 = vector.load %arg9[%c16_267, %c0_268] : memref<64x128xf32, #tpu.memory_space<vmem>>, vector<8x32xf32>
    tpu.vector_store %arg9[%c16_267, %c0_268], %520 {strides = array<i32>} : memref<64x128xf32, #tpu.memory_space<vmem>>, vector<8x32xf32>,
    %522 = vector.extract_strided_slice %519 {offsets = [0, 32], sizes = [8, 32], strides = [1, 1]} : vector<8x64xf32> to vector<8x32xf32>
    %c40_269 = arith.constant 40 : index
    %c32_270 = arith.constant 32 : index
    %523 = vector.load %arg9[%c40_269, %c32_270] : memref<64x128xf32, #tpu.memory_space<vmem>>, vector<8x32xf32>
    tpu.vector_store %arg9[%c40_269, %c32_270], %522 {strides = array<i32>} : memref<64x128xf32, #tpu.memory_space<vmem>>, vector<8x32xf32>,
    %524 = vector.extract_strided_slice %519 {offsets = [0, 0], sizes = [8, 32], strides = [1, 1]} : vector<8x64xf32> to vector<8x32xf32>
    %c40_271 = arith.constant 40 : index
    %c64_272 = arith.constant 64 : index
    %525 = vector.load %arg9[%c40_271, %c64_272] : memref<64x128xf32, #tpu.memory_space<vmem>>, vector<8x32xf32>
    tpu.vector_store %arg9[%c40_271, %c64_272], %524 {strides = array<i32>} : memref<64x128xf32, #tpu.memory_space<vmem>>, vector<8x32xf32>,
    %526 = vector.extract_strided_slice %519 {offsets = [0, 32], sizes = [8, 32], strides = [1, 1]} : vector<8x64xf32> to vector<8x32xf32>
    %c16_273 = arith.constant 16 : index
    %c96_274 = arith.constant 96 : index
    %527 = vector.load %arg9[%c16_273, %c96_274] : memref<64x128xf32, #tpu.memory_space<vmem>>, vector<8x32xf32>
    tpu.vector_store %arg9[%c16_273, %c96_274], %526 {strides = array<i32>} : memref<64x128xf32, #tpu.memory_space<vmem>>, vector<8x32xf32>,
    %c24_275 = arith.constant 24 : index
    %c0_276 = arith.constant 0 : index
    %528 = vector.load %arg10[%c24_275, %c0_276] : memref<64x256xf32, #tpu.memory_space<vmem>>, vector<8x256xf32>
    %cst_277 = arith.constant dense<0.000000e+00> : vector<8x256xf32>
    %529 = tpu.matmul %519, %442, %cst_277 {dimension_numbers = #tpu.dot_dimension_numbers<[1], [0], [0], [1], [0, 0, 1, 1], [], []>} : vector<8x64xf32>, vector<64x256xf32>, vector<8x256xf32> -> vector<8x256xf32>
    %530 = arith.addf %528, %529 : vector<8x256xf32>
    %531 = math.tanh %530 : vector<8x256xf32>
    %532 = vector.extract_strided_slice %531 {offsets = [0, 0], sizes = [8, 192], strides = [1, 1]} : vector<8x256xf32> to vector<8x192xf32>
    %cst_278 = arith.constant 5.000000e-01 : f32
    %533 = vector.broadcast %cst_278 : f32 to vector<8x192xf32>
    %534 = arith.mulf %533, %532 : vector<8x192xf32>
    %cst_279 = arith.constant 5.000000e-01 : f32
    %535 = vector.broadcast %cst_279 : f32 to vector<8x192xf32>
    %536 = arith.addf %534, %535 : vector<8x192xf32>
    %537 = vector.extract_strided_slice %536 {offsets = [0, 64], sizes = [8, 64], strides = [1, 1]} : vector<8x192xf32> to vector<8x64xf32>
    %538 = arith.mulf %537, %516 : vector<8x64xf32>
    %539 = vector.extract_strided_slice %536 {offsets = [0, 0], sizes = [8, 64], strides = [1, 1]} : vector<8x192xf32> to vector<8x64xf32>
    %540 = vector.extract_strided_slice %531 {offsets = [0, 192], sizes = [8, 64], strides = [1, 1]} : vector<8x256xf32> to vector<8x64xf32>
    %541 = arith.mulf %539, %540 : vector<8x64xf32>
    %542 = arith.addf %538, %541 : vector<8x64xf32>
    %543 = vector.extract_strided_slice %536 {offsets = [0, 128], sizes = [8, 64], strides = [1, 1]} : vector<8x192xf32> to vector<8x64xf32>
    %544 = math.tanh %542 : vector<8x64xf32>
    %545 = arith.mulf %543, %544 : vector<8x64xf32>
    %546 = vector.extract_strided_slice %545 {offsets = [0, 0], sizes = [8, 32], strides = [1, 1]} : vector<8x64xf32> to vector<8x32xf32>
    %c24_280 = arith.constant 24 : index
    %c0_281 = arith.constant 0 : index
    %547 = vector.load %arg9[%c24_280, %c0_281] : memref<64x128xf32, #tpu.memory_space<vmem>>, vector<8x32xf32>
    tpu.vector_store %arg9[%c24_280, %c0_281], %546 {strides = array<i32>} : memref<64x128xf32, #tpu.memory_space<vmem>>, vector<8x32xf32>,
    %548 = vector.extract_strided_slice %545 {offsets = [0, 32], sizes = [8, 32], strides = [1, 1]} : vector<8x64xf32> to vector<8x32xf32>
    %c32_282 = arith.constant 32 : index
    %c32_283 = arith.constant 32 : index
    %549 = vector.load %arg9[%c32_282, %c32_283] : memref<64x128xf32, #tpu.memory_space<vmem>>, vector<8x32xf32>
    tpu.vector_store %arg9[%c32_282, %c32_283], %548 {strides = array<i32>} : memref<64x128xf32, #tpu.memory_space<vmem>>, vector<8x32xf32>,
    %550 = vector.extract_strided_slice %545 {offsets = [0, 0], sizes = [8, 32], strides = [1, 1]} : vector<8x64xf32> to vector<8x32xf32>
    %c32_284 = arith.constant 32 : index
    %c64_285 = arith.constant 64 : index
    %551 = vector.load %arg9[%c32_284, %c64_285] : memref<64x128xf32, #tpu.memory_space<vmem>>, vector<8x32xf32>
    tpu.vector_store %arg9[%c32_284, %c64_285], %550 {strides = array<i32>} : memref<64x128xf32, #tpu.memory_space<vmem>>, vector<8x32xf32>,
    %552 = vector.extract_strided_slice %545 {offsets = [0, 32], sizes = [8, 32], strides = [1, 1]} : vector<8x64xf32> to vector<8x32xf32>
    %c24_286 = arith.constant 24 : index
    %c96_287 = arith.constant 96 : index
    %553 = vector.load %arg9[%c24_286, %c96_287] : memref<64x128xf32, #tpu.memory_space<vmem>>, vector<8x32xf32>
    tpu.vector_store %arg9[%c24_286, %c96_287], %552 {strides = array<i32>} : memref<64x128xf32, #tpu.memory_space<vmem>>, vector<8x32xf32>,
    %c32_288 = arith.constant 32 : index
    %c0_289 = arith.constant 0 : index
    %554 = vector.load %arg10[%c32_288, %c0_289] : memref<64x256xf32, #tpu.memory_space<vmem>>, vector<8x256xf32>
    %cst_290 = arith.constant dense<0.000000e+00> : vector<8x256xf32>
    %555 = tpu.matmul %545, %442, %cst_290 {dimension_numbers = #tpu.dot_dimension_numbers<[1], [0], [0], [1], [0, 0, 1, 1], [], []>} : vector<8x64xf32>, vector<64x256xf32>, vector<8x256xf32> -> vector<8x256xf32>
    %556 = arith.addf %554, %555 : vector<8x256xf32>
    %557 = math.tanh %556 : vector<8x256xf32>
    %558 = vector.extract_strided_slice %557 {offsets = [0, 0], sizes = [8, 192], strides = [1, 1]} : vector<8x256xf32> to vector<8x192xf32>
    %cst_291 = arith.constant 5.000000e-01 : f32
    %559 = vector.broadcast %cst_291 : f32 to vector<8x192xf32>
    %560 = arith.mulf %559, %558 : vector<8x192xf32>
    %cst_292 = arith.constant 5.000000e-01 : f32
    %561 = vector.broadcast %cst_292 : f32 to vector<8x192xf32>
    %562 = arith.addf %560, %561 : vector<8x192xf32>
    %563 = vector.extract_strided_slice %562 {offsets = [0, 64], sizes = [8, 64], strides = [1, 1]} : vector<8x192xf32> to vector<8x64xf32>
    %564 = arith.mulf %563, %542 : vector<8x64xf32>
    %565 = vector.extract_strided_slice %562 {offsets = [0, 0], sizes = [8, 64], strides = [1, 1]} : vector<8x192xf32> to vector<8x64xf32>
    %566 = vector.extract_strided_slice %557 {offsets = [0, 192], sizes = [8, 64], strides = [1, 1]} : vector<8x256xf32> to vector<8x64xf32>
    %567 = arith.mulf %565, %566 : vector<8x64xf32>
    %568 = arith.addf %564, %567 : vector<8x64xf32>
    %569 = vector.extract_strided_slice %562 {offsets = [0, 128], sizes = [8, 64], strides = [1, 1]} : vector<8x192xf32> to vector<8x64xf32>
    %570 = math.tanh %568 : vector<8x64xf32>
    %571 = arith.mulf %569, %570 : vector<8x64xf32>
    %572 = vector.extract_strided_slice %571 {offsets = [0, 0], sizes = [8, 32], strides = [1, 1]} : vector<8x64xf32> to vector<8x32xf32>
    %c32_293 = arith.constant 32 : index
    %c0_294 = arith.constant 0 : index
    %573 = vector.load %arg9[%c32_293, %c0_294] : memref<64x128xf32, #tpu.memory_space<vmem>>, vector<8x32xf32>
    tpu.vector_store %arg9[%c32_293, %c0_294], %572 {strides = array<i32>} : memref<64x128xf32, #tpu.memory_space<vmem>>, vector<8x32xf32>,
    %574 = vector.extract_strided_slice %571 {offsets = [0, 32], sizes = [8, 32], strides = [1, 1]} : vector<8x64xf32> to vector<8x32xf32>
    %c24_295 = arith.constant 24 : index
    %c32_296 = arith.constant 32 : index
    %575 = vector.load %arg9[%c24_295, %c32_296] : memref<64x128xf32, #tpu.memory_space<vmem>>, vector<8x32xf32>
    tpu.vector_store %arg9[%c24_295, %c32_296], %574 {strides = array<i32>} : memref<64x128xf32, #tpu.memory_space<vmem>>, vector<8x32xf32>,
    %576 = vector.extract_strided_slice %571 {offsets = [0, 0], sizes = [8, 32], strides = [1, 1]} : vector<8x64xf32> to vector<8x32xf32>
    %c24_297 = arith.constant 24 : index
    %c64_298 = arith.constant 64 : index
    %577 = vector.load %arg9[%c24_297, %c64_298] : memref<64x128xf32, #tpu.memory_space<vmem>>, vector<8x32xf32>
    tpu.vector_store %arg9[%c24_297, %c64_298], %576 {strides = array<i32>} : memref<64x128xf32, #tpu.memory_space<vmem>>, vector<8x32xf32>,
    %578 = vector.extract_strided_slice %571 {offsets = [0, 32], sizes = [8, 32], strides = [1, 1]} : vector<8x64xf32> to vector<8x32xf32>
    %c32_299 = arith.constant 32 : index
    %c96_300 = arith.constant 96 : index
    %579 = vector.load %arg9[%c32_299, %c96_300] : memref<64x128xf32, #tpu.memory_space<vmem>>, vector<8x32xf32>
    tpu.vector_store %arg9[%c32_299, %c96_300], %578 {strides = array<i32>} : memref<64x128xf32, #tpu.memory_space<vmem>>, vector<8x32xf32>,
    %c40_301 = arith.constant 40 : index
    %c0_302 = arith.constant 0 : index
    %580 = vector.load %arg10[%c40_301, %c0_302] : memref<64x256xf32, #tpu.memory_space<vmem>>, vector<8x256xf32>
    %cst_303 = arith.constant dense<0.000000e+00> : vector<8x256xf32>
    %581 = tpu.matmul %571, %442, %cst_303 {dimension_numbers = #tpu.dot_dimension_numbers<[1], [0], [0], [1], [0, 0, 1, 1], [], []>} : vector<8x64xf32>, vector<64x256xf32>, vector<8x256xf32> -> vector<8x256xf32>
    %582 = arith.addf %580, %581 : vector<8x256xf32>
    %583 = math.tanh %582 : vector<8x256xf32>
    %584 = vector.extract_strided_slice %583 {offsets = [0, 0], sizes = [8, 192], strides = [1, 1]} : vector<8x256xf32> to vector<8x192xf32>
    %cst_304 = arith.constant 5.000000e-01 : f32
    %585 = vector.broadcast %cst_304 : f32 to vector<8x192xf32>
    %586 = arith.mulf %585, %584 : vector<8x192xf32>
    %cst_305 = arith.constant 5.000000e-01 : f32
    %587 = vector.broadcast %cst_305 : f32 to vector<8x192xf32>
    %588 = arith.addf %586, %587 : vector<8x192xf32>
    %589 = vector.extract_strided_slice %588 {offsets = [0, 64], sizes = [8, 64], strides = [1, 1]} : vector<8x192xf32> to vector<8x64xf32>
    %590 = arith.mulf %589, %568 : vector<8x64xf32>
    %591 = vector.extract_strided_slice %588 {offsets = [0, 0], sizes = [8, 64], strides = [1, 1]} : vector<8x192xf32> to vector<8x64xf32>
    %592 = vector.extract_strided_slice %583 {offsets = [0, 192], sizes = [8, 64], strides = [1, 1]} : vector<8x256xf32> to vector<8x64xf32>
    %593 = arith.mulf %591, %592 : vector<8x64xf32>
    %594 = arith.addf %590, %593 : vector<8x64xf32>
    %595 = vector.extract_strided_slice %588 {offsets = [0, 128], sizes = [8, 64], strides = [1, 1]} : vector<8x192xf32> to vector<8x64xf32>
    %596 = math.tanh %594 : vector<8x64xf32>
    %597 = arith.mulf %595, %596 : vector<8x64xf32>
    %598 = vector.extract_strided_slice %597 {offsets = [0, 0], sizes = [8, 32], strides = [1, 1]} : vector<8x64xf32> to vector<8x32xf32>
    %c40_306 = arith.constant 40 : index
    %c0_307 = arith.constant 0 : index
    %599 = vector.load %arg9[%c40_306, %c0_307] : memref<64x128xf32, #tpu.memory_space<vmem>>, vector<8x32xf32>
    tpu.vector_store %arg9[%c40_306, %c0_307], %598 {strides = array<i32>} : memref<64x128xf32, #tpu.memory_space<vmem>>, vector<8x32xf32>,
    %600 = vector.extract_strided_slice %597 {offsets = [0, 32], sizes = [8, 32], strides = [1, 1]} : vector<8x64xf32> to vector<8x32xf32>
    %c16_308 = arith.constant 16 : index
    %c32_309 = arith.constant 32 : index
    %601 = vector.load %arg9[%c16_308, %c32_309] : memref<64x128xf32, #tpu.memory_space<vmem>>, vector<8x32xf32>
    tpu.vector_store %arg9[%c16_308, %c32_309], %600 {strides = array<i32>} : memref<64x128xf32, #tpu.memory_space<vmem>>, vector<8x32xf32>,
    %602 = vector.extract_strided_slice %597 {offsets = [0, 0], sizes = [8, 32], strides = [1, 1]} : vector<8x64xf32> to vector<8x32xf32>
    %c16_310 = arith.constant 16 : index
    %c64_311 = arith.constant 64 : index
    %603 = vector.load %arg9[%c16_310, %c64_311] : memref<64x128xf32, #tpu.memory_space<vmem>>, vector<8x32xf32>
    tpu.vector_store %arg9[%c16_310, %c64_311], %602 {strides = array<i32>} : memref<64x128xf32, #tpu.memory_space<vmem>>, vector<8x32xf32>,
    %604 = vector.extract_strided_slice %597 {offsets = [0, 32], sizes = [8, 32], strides = [1, 1]} : vector<8x64xf32> to vector<8x32xf32>
    %c40_312 = arith.constant 40 : index
    %c96_313 = arith.constant 96 : index
    %605 = vector.load %arg9[%c40_312, %c96_313] : memref<64x128xf32, #tpu.memory_space<vmem>>, vector<8x32xf32>
    tpu.vector_store %arg9[%c40_312, %c96_313], %604 {strides = array<i32>} : memref<64x128xf32, #tpu.memory_space<vmem>>, vector<8x32xf32>,
    %c48_314 = arith.constant 48 : index
    %c0_315 = arith.constant 0 : index
    %606 = vector.load %arg10[%c48_314, %c0_315] : memref<64x256xf32, #tpu.memory_space<vmem>>, vector<8x256xf32>
    %cst_316 = arith.constant dense<0.000000e+00> : vector<8x256xf32>
    %607 = tpu.matmul %597, %442, %cst_316 {dimension_numbers = #tpu.dot_dimension_numbers<[1], [0], [0], [1], [0, 0, 1, 1], [], []>} : vector<8x64xf32>, vector<64x256xf32>, vector<8x256xf32> -> vector<8x256xf32>
    %608 = arith.addf %606, %607 : vector<8x256xf32>
    %609 = math.tanh %608 : vector<8x256xf32>
    %610 = vector.extract_strided_slice %609 {offsets = [0, 0], sizes = [8, 192], strides = [1, 1]} : vector<8x256xf32> to vector<8x192xf32>
    %cst_317 = arith.constant 5.000000e-01 : f32
    %611 = vector.broadcast %cst_317 : f32 to vector<8x192xf32>
    %612 = arith.mulf %611, %610 : vector<8x192xf32>
    %cst_318 = arith.constant 5.000000e-01 : f32
    %613 = vector.broadcast %cst_318 : f32 to vector<8x192xf32>
    %614 = arith.addf %612, %613 : vector<8x192xf32>
    %615 = vector.extract_strided_slice %614 {offsets = [0, 64], sizes = [8, 64], strides = [1, 1]} : vector<8x192xf32> to vector<8x64xf32>
    %616 = arith.mulf %615, %594 : vector<8x64xf32>
    %617 = vector.extract_strided_slice %614 {offsets = [0, 0], sizes = [8, 64], strides = [1, 1]} : vector<8x192xf32> to vector<8x64xf32>
    %618 = vector.extract_strided_slice %609 {offsets = [0, 192], sizes = [8, 64], strides = [1, 1]} : vector<8x256xf32> to vector<8x64xf32>
    %619 = arith.mulf %617, %618 : vector<8x64xf32>
    %620 = arith.addf %616, %619 : vector<8x64xf32>
    %621 = vector.extract_strided_slice %614 {offsets = [0, 128], sizes = [8, 64], strides = [1, 1]} : vector<8x192xf32> to vector<8x64xf32>
    %622 = math.tanh %620 : vector<8x64xf32>
    %623 = arith.mulf %621, %622 : vector<8x64xf32>
    %624 = vector.extract_strided_slice %623 {offsets = [0, 0], sizes = [8, 32], strides = [1, 1]} : vector<8x64xf32> to vector<8x32xf32>
    %c48_319 = arith.constant 48 : index
    %c0_320 = arith.constant 0 : index
    %625 = vector.load %arg9[%c48_319, %c0_320] : memref<64x128xf32, #tpu.memory_space<vmem>>, vector<8x32xf32>
    tpu.vector_store %arg9[%c48_319, %c0_320], %624 {strides = array<i32>} : memref<64x128xf32, #tpu.memory_space<vmem>>, vector<8x32xf32>,
    %626 = vector.extract_strided_slice %623 {offsets = [0, 32], sizes = [8, 32], strides = [1, 1]} : vector<8x64xf32> to vector<8x32xf32>
    %c8_321 = arith.constant 8 : index
    %c32_322 = arith.constant 32 : index
    %627 = vector.load %arg9[%c8_321, %c32_322] : memref<64x128xf32, #tpu.memory_space<vmem>>, vector<8x32xf32>
    tpu.vector_store %arg9[%c8_321, %c32_322], %626 {strides = array<i32>} : memref<64x128xf32, #tpu.memory_space<vmem>>, vector<8x32xf32>,
    %628 = vector.extract_strided_slice %623 {offsets = [0, 0], sizes = [8, 32], strides = [1, 1]} : vector<8x64xf32> to vector<8x32xf32>
    %c8_323 = arith.constant 8 : index
    %c64_324 = arith.constant 64 : index
    %629 = vector.load %arg9[%c8_323, %c64_324] : memref<64x128xf32, #tpu.memory_space<vmem>>, vector<8x32xf32>
    tpu.vector_store %arg9[%c8_323, %c64_324], %628 {strides = array<i32>} : memref<64x128xf32, #tpu.memory_space<vmem>>, vector<8x32xf32>,
    %630 = vector.extract_strided_slice %623 {offsets = [0, 32], sizes = [8, 32], strides = [1, 1]} : vector<8x64xf32> to vector<8x32xf32>
    %c48_325 = arith.constant 48 : index
    %c96_326 = arith.constant 96 : index
    %631 = vector.load %arg9[%c48_325, %c96_326] : memref<64x128xf32, #tpu.memory_space<vmem>>, vector<8x32xf32>
    tpu.vector_store %arg9[%c48_325, %c96_326], %630 {strides = array<i32>} : memref<64x128xf32, #tpu.memory_space<vmem>>, vector<8x32xf32>,
    %c56_327 = arith.constant 56 : index
    %c0_328 = arith.constant 0 : index
    %632 = vector.load %arg10[%c56_327, %c0_328] : memref<64x256xf32, #tpu.memory_space<vmem>>, vector<8x256xf32>
    %cst_329 = arith.constant dense<0.000000e+00> : vector<8x256xf32>
    %633 = tpu.matmul %623, %442, %cst_329 {dimension_numbers = #tpu.dot_dimension_numbers<[1], [0], [0], [1], [0, 0, 1, 1], [], []>} : vector<8x64xf32>, vector<64x256xf32>, vector<8x256xf32> -> vector<8x256xf32>
    %634 = arith.addf %632, %633 : vector<8x256xf32>
    %635 = math.tanh %634 : vector<8x256xf32>
    %636 = vector.extract_strided_slice %635 {offsets = [0, 0], sizes = [8, 192], strides = [1, 1]} : vector<8x256xf32> to vector<8x192xf32>
    %cst_330 = arith.constant 5.000000e-01 : f32
    %637 = vector.broadcast %cst_330 : f32 to vector<8x192xf32>
    %638 = arith.mulf %637, %636 : vector<8x192xf32>
    %cst_331 = arith.constant 5.000000e-01 : f32
    %639 = vector.broadcast %cst_331 : f32 to vector<8x192xf32>
    %640 = arith.addf %638, %639 : vector<8x192xf32>
    %641 = vector.extract_strided_slice %640 {offsets = [0, 64], sizes = [8, 64], strides = [1, 1]} : vector<8x192xf32> to vector<8x64xf32>
    %642 = arith.mulf %641, %620 : vector<8x64xf32>
    %643 = vector.extract_strided_slice %640 {offsets = [0, 0], sizes = [8, 64], strides = [1, 1]} : vector<8x192xf32> to vector<8x64xf32>
    %644 = vector.extract_strided_slice %635 {offsets = [0, 192], sizes = [8, 64], strides = [1, 1]} : vector<8x256xf32> to vector<8x64xf32>
    %645 = arith.mulf %643, %644 : vector<8x64xf32>
    %646 = arith.addf %642, %645 : vector<8x64xf32>
    %647 = vector.extract_strided_slice %640 {offsets = [0, 128], sizes = [8, 64], strides = [1, 1]} : vector<8x192xf32> to vector<8x64xf32>
    %648 = math.tanh %646 : vector<8x64xf32>
    %649 = arith.mulf %647, %648 : vector<8x64xf32>
    %650 = vector.extract_strided_slice %649 {offsets = [0, 0], sizes = [8, 32], strides = [1, 1]} : vector<8x64xf32> to vector<8x32xf32>
    %c56_332 = arith.constant 56 : index
    %c0_333 = arith.constant 0 : index
    %651 = vector.load %arg9[%c56_332, %c0_333] : memref<64x128xf32, #tpu.memory_space<vmem>>, vector<8x32xf32>
    tpu.vector_store %arg9[%c56_332, %c0_333], %650 {strides = array<i32>} : memref<64x128xf32, #tpu.memory_space<vmem>>, vector<8x32xf32>,
    %652 = vector.extract_strided_slice %649 {offsets = [0, 32], sizes = [8, 32], strides = [1, 1]} : vector<8x64xf32> to vector<8x32xf32>
    %c0_334 = arith.constant 0 : index
    %c32_335 = arith.constant 32 : index
    %653 = vector.load %arg9[%c0_334, %c32_335] : memref<64x128xf32, #tpu.memory_space<vmem>>, vector<8x32xf32>
    tpu.vector_store %arg9[%c0_334, %c32_335], %652 {strides = array<i32>} : memref<64x128xf32, #tpu.memory_space<vmem>>, vector<8x32xf32>,
    %654 = vector.extract_strided_slice %649 {offsets = [0, 0], sizes = [8, 32], strides = [1, 1]} : vector<8x64xf32> to vector<8x32xf32>
    %c0_336 = arith.constant 0 : index
    %c64_337 = arith.constant 64 : index
    %655 = vector.load %arg9[%c0_336, %c64_337] : memref<64x128xf32, #tpu.memory_space<vmem>>, vector<8x32xf32>
    tpu.vector_store %arg9[%c0_336, %c64_337], %654 {strides = array<i32>} : memref<64x128xf32, #tpu.memory_space<vmem>>, vector<8x32xf32>,
    %656 = vector.extract_strided_slice %649 {offsets = [0, 32], sizes = [8, 32], strides = [1, 1]} : vector<8x64xf32> to vector<8x32xf32>
    %c56_338 = arith.constant 56 : index
    %c96_339 = arith.constant 96 : index
    %657 = vector.load %arg9[%c56_338, %c96_339] : memref<64x128xf32, #tpu.memory_space<vmem>>, vector<8x32xf32>
    tpu.vector_store %arg9[%c56_338, %c96_339], %656 {strides = array<i32>} : memref<64x128xf32, #tpu.memory_space<vmem>>, vector<8x32xf32>,
    %c3 = arith.constant 3 : index
    %c0_340 = arith.constant 0 : index
    %c0_341 = arith.constant 0 : index
    %658 = vector.load %arg2[%c3, %c0_340, %c0_341] : memref<5x200x256xf32, #tpu.memory_space<vmem>>, vector<1x128x256xf32>
    %659 = vector.shape_cast %658 : vector<1x128x256xf32> to vector<128x256xf32>
    %c3_342 = arith.constant 3 : index
    %c128_343 = arith.constant 128 : index
    %c0_344 = arith.constant 0 : index
    %660 = vector.load %arg2[%c3_342, %c128_343, %c0_344] : memref<5x200x256xf32, #tpu.memory_space<vmem>>, vector<1x64x256xf32>
    %661 = vector.shape_cast %660 : vector<1x64x256xf32> to vector<64x256xf32>
    %c3_345 = arith.constant 3 : index
    %c192_346 = arith.constant 192 : index
    %c0_347 = arith.constant 0 : index
    %662 = vector.load %arg2[%c3_345, %c192_346, %c0_347] : memref<5x200x256xf32, #tpu.memory_space<vmem>>, vector<1x1x256xf32>
    %663 = vector.shape_cast %662 : vector<1x1x256xf32> to vector<1x256xf32>
    %c0_348 = arith.constant 0 : index
    %c0_349 = arith.constant 0 : index
    %664 = vector.load %arg9[%c0_348, %c0_349] : memref<64x128xf32, #tpu.memory_space<vmem>>, vector<64x128xf32>
    %cst_350 = arith.constant dense<0.000000e+00> : vector<64x256xf32>
    %665 = tpu.matmul %664, %659, %cst_350 {dimension_numbers = #tpu.dot_dimension_numbers<[1], [0], [0], [1], [0, 0, 1, 1], [], []>} : vector<64x128xf32>, vector<128x256xf32>, vector<64x256xf32> -> vector<64x256xf32>
    %666 = vector.broadcast %663 : vector<1x256xf32> to vector<64x256xf32>
    %667 = arith.addf %665, %666 : vector<64x256xf32>
    %c0_351 = arith.constant 0 : index
    %c0_352 = arith.constant 0 : index
    %668 = vector.load %arg10[%c0_351, %c0_352] : memref<64x256xf32, #tpu.memory_space<vmem>>, vector<64x256xf32>
    tpu.vector_store %arg10[%c0_351, %c0_352], %667 {strides = array<i32>} : memref<64x256xf32, #tpu.memory_space<vmem>>, vector<64x256xf32>,
    %c0_353 = arith.constant 0 : index
    %c0_354 = arith.constant 0 : index
    %669 = vector.load %arg10[%c0_353, %c0_354] : memref<64x256xf32, #tpu.memory_space<vmem>>, vector<8x256xf32>
    %cst_355 = arith.constant dense<0.000000e+00> : vector<8x256xf32>
    %670 = tpu.matmul %0, %661, %cst_355 {dimension_numbers = #tpu.dot_dimension_numbers<[1], [0], [0], [1], [0, 0, 1, 1], [], []>} : vector<8x64xf32>, vector<64x256xf32>, vector<8x256xf32> -> vector<8x256xf32>
    %671 = arith.addf %669, %670 : vector<8x256xf32>
    %672 = math.tanh %671 : vector<8x256xf32>
    %673 = vector.extract_strided_slice %672 {offsets = [0, 0], sizes = [8, 192], strides = [1, 1]} : vector<8x256xf32> to vector<8x192xf32>
    %cst_356 = arith.constant 5.000000e-01 : f32
    %674 = vector.broadcast %cst_356 : f32 to vector<8x192xf32>
    %675 = arith.mulf %674, %673 : vector<8x192xf32>
    %cst_357 = arith.constant 5.000000e-01 : f32
    %676 = vector.broadcast %cst_357 : f32 to vector<8x192xf32>
    %677 = arith.addf %675, %676 : vector<8x192xf32>
    %678 = vector.extract_strided_slice %677 {offsets = [0, 64], sizes = [8, 64], strides = [1, 1]} : vector<8x192xf32> to vector<8x64xf32>
    %679 = arith.mulf %678, %0 : vector<8x64xf32>
    %680 = vector.extract_strided_slice %677 {offsets = [0, 0], sizes = [8, 64], strides = [1, 1]} : vector<8x192xf32> to vector<8x64xf32>
    %681 = vector.extract_strided_slice %672 {offsets = [0, 192], sizes = [8, 64], strides = [1, 1]} : vector<8x256xf32> to vector<8x64xf32>
    %682 = arith.mulf %680, %681 : vector<8x64xf32>
    %683 = arith.addf %679, %682 : vector<8x64xf32>
    %684 = vector.extract_strided_slice %677 {offsets = [0, 128], sizes = [8, 64], strides = [1, 1]} : vector<8x192xf32> to vector<8x64xf32>
    %685 = math.tanh %683 : vector<8x64xf32>
    %686 = arith.mulf %684, %685 : vector<8x64xf32>
    %687 = vector.extract_strided_slice %686 {offsets = [0, 0], sizes = [8, 32], strides = [1, 1]} : vector<8x64xf32> to vector<8x32xf32>
    %c0_358 = arith.constant 0 : index
    %c0_359 = arith.constant 0 : index
    %688 = vector.load %arg9[%c0_358, %c0_359] : memref<64x128xf32, #tpu.memory_space<vmem>>, vector<8x32xf32>
    tpu.vector_store %arg9[%c0_358, %c0_359], %687 {strides = array<i32>} : memref<64x128xf32, #tpu.memory_space<vmem>>, vector<8x32xf32>,
    %689 = vector.extract_strided_slice %686 {offsets = [0, 32], sizes = [8, 32], strides = [1, 1]} : vector<8x64xf32> to vector<8x32xf32>
    %c56_360 = arith.constant 56 : index
    %c32_361 = arith.constant 32 : index
    %690 = vector.load %arg9[%c56_360, %c32_361] : memref<64x128xf32, #tpu.memory_space<vmem>>, vector<8x32xf32>
    tpu.vector_store %arg9[%c56_360, %c32_361], %689 {strides = array<i32>} : memref<64x128xf32, #tpu.memory_space<vmem>>, vector<8x32xf32>,
    %691 = vector.extract_strided_slice %686 {offsets = [0, 0], sizes = [8, 32], strides = [1, 1]} : vector<8x64xf32> to vector<8x32xf32>
    %c56_362 = arith.constant 56 : index
    %c64_363 = arith.constant 64 : index
    %692 = vector.load %arg9[%c56_362, %c64_363] : memref<64x128xf32, #tpu.memory_space<vmem>>, vector<8x32xf32>
    tpu.vector_store %arg9[%c56_362, %c64_363], %691 {strides = array<i32>} : memref<64x128xf32, #tpu.memory_space<vmem>>, vector<8x32xf32>,
    %693 = vector.extract_strided_slice %686 {offsets = [0, 32], sizes = [8, 32], strides = [1, 1]} : vector<8x64xf32> to vector<8x32xf32>
    %c0_364 = arith.constant 0 : index
    %c96_365 = arith.constant 96 : index
    %694 = vector.load %arg9[%c0_364, %c96_365] : memref<64x128xf32, #tpu.memory_space<vmem>>, vector<8x32xf32>
    tpu.vector_store %arg9[%c0_364, %c96_365], %693 {strides = array<i32>} : memref<64x128xf32, #tpu.memory_space<vmem>>, vector<8x32xf32>,
    %c8_366 = arith.constant 8 : index
    %c0_367 = arith.constant 0 : index
    %695 = vector.load %arg10[%c8_366, %c0_367] : memref<64x256xf32, #tpu.memory_space<vmem>>, vector<8x256xf32>
    %cst_368 = arith.constant dense<0.000000e+00> : vector<8x256xf32>
    %696 = tpu.matmul %686, %661, %cst_368 {dimension_numbers = #tpu.dot_dimension_numbers<[1], [0], [0], [1], [0, 0, 1, 1], [], []>} : vector<8x64xf32>, vector<64x256xf32>, vector<8x256xf32> -> vector<8x256xf32>
    %697 = arith.addf %695, %696 : vector<8x256xf32>
    %698 = math.tanh %697 : vector<8x256xf32>
    %699 = vector.extract_strided_slice %698 {offsets = [0, 0], sizes = [8, 192], strides = [1, 1]} : vector<8x256xf32> to vector<8x192xf32>
    %cst_369 = arith.constant 5.000000e-01 : f32
    %700 = vector.broadcast %cst_369 : f32 to vector<8x192xf32>
    %701 = arith.mulf %700, %699 : vector<8x192xf32>
    %cst_370 = arith.constant 5.000000e-01 : f32
    %702 = vector.broadcast %cst_370 : f32 to vector<8x192xf32>
    %703 = arith.addf %701, %702 : vector<8x192xf32>
    %704 = vector.extract_strided_slice %703 {offsets = [0, 64], sizes = [8, 64], strides = [1, 1]} : vector<8x192xf32> to vector<8x64xf32>
    %705 = arith.mulf %704, %683 : vector<8x64xf32>
    %706 = vector.extract_strided_slice %703 {offsets = [0, 0], sizes = [8, 64], strides = [1, 1]} : vector<8x192xf32> to vector<8x64xf32>
    %707 = vector.extract_strided_slice %698 {offsets = [0, 192], sizes = [8, 64], strides = [1, 1]} : vector<8x256xf32> to vector<8x64xf32>
    %708 = arith.mulf %706, %707 : vector<8x64xf32>
    %709 = arith.addf %705, %708 : vector<8x64xf32>
    %710 = vector.extract_strided_slice %703 {offsets = [0, 128], sizes = [8, 64], strides = [1, 1]} : vector<8x192xf32> to vector<8x64xf32>
    %711 = math.tanh %709 : vector<8x64xf32>
    %712 = arith.mulf %710, %711 : vector<8x64xf32>
    %713 = vector.extract_strided_slice %712 {offsets = [0, 0], sizes = [8, 32], strides = [1, 1]} : vector<8x64xf32> to vector<8x32xf32>
    %c8_371 = arith.constant 8 : index
    %c0_372 = arith.constant 0 : index
    %714 = vector.load %arg9[%c8_371, %c0_372] : memref<64x128xf32, #tpu.memory_space<vmem>>, vector<8x32xf32>
    tpu.vector_store %arg9[%c8_371, %c0_372], %713 {strides = array<i32>} : memref<64x128xf32, #tpu.memory_space<vmem>>, vector<8x32xf32>,
    %715 = vector.extract_strided_slice %712 {offsets = [0, 32], sizes = [8, 32], strides = [1, 1]} : vector<8x64xf32> to vector<8x32xf32>
    %c48_373 = arith.constant 48 : index
    %c32_374 = arith.constant 32 : index
    %716 = vector.load %arg9[%c48_373, %c32_374] : memref<64x128xf32, #tpu.memory_space<vmem>>, vector<8x32xf32>
    tpu.vector_store %arg9[%c48_373, %c32_374], %715 {strides = array<i32>} : memref<64x128xf32, #tpu.memory_space<vmem>>, vector<8x32xf32>,
    %717 = vector.extract_strided_slice %712 {offsets = [0, 0], sizes = [8, 32], strides = [1, 1]} : vector<8x64xf32> to vector<8x32xf32>
    %c48_375 = arith.constant 48 : index
    %c64_376 = arith.constant 64 : index
    %718 = vector.load %arg9[%c48_375, %c64_376] : memref<64x128xf32, #tpu.memory_space<vmem>>, vector<8x32xf32>
    tpu.vector_store %arg9[%c48_375, %c64_376], %717 {strides = array<i32>} : memref<64x128xf32, #tpu.memory_space<vmem>>, vector<8x32xf32>,
    %719 = vector.extract_strided_slice %712 {offsets = [0, 32], sizes = [8, 32], strides = [1, 1]} : vector<8x64xf32> to vector<8x32xf32>
    %c8_377 = arith.constant 8 : index
    %c96_378 = arith.constant 96 : index
    %720 = vector.load %arg9[%c8_377, %c96_378] : memref<64x128xf32, #tpu.memory_space<vmem>>, vector<8x32xf32>
    tpu.vector_store %arg9[%c8_377, %c96_378], %719 {strides = array<i32>} : memref<64x128xf32, #tpu.memory_space<vmem>>, vector<8x32xf32>,
    %c16_379 = arith.constant 16 : index
    %c0_380 = arith.constant 0 : index
    %721 = vector.load %arg10[%c16_379, %c0_380] : memref<64x256xf32, #tpu.memory_space<vmem>>, vector<8x256xf32>
    %cst_381 = arith.constant dense<0.000000e+00> : vector<8x256xf32>
    %722 = tpu.matmul %712, %661, %cst_381 {dimension_numbers = #tpu.dot_dimension_numbers<[1], [0], [0], [1], [0, 0, 1, 1], [], []>} : vector<8x64xf32>, vector<64x256xf32>, vector<8x256xf32> -> vector<8x256xf32>
    %723 = arith.addf %721, %722 : vector<8x256xf32>
    %724 = math.tanh %723 : vector<8x256xf32>
    %725 = vector.extract_strided_slice %724 {offsets = [0, 0], sizes = [8, 192], strides = [1, 1]} : vector<8x256xf32> to vector<8x192xf32>
    %cst_382 = arith.constant 5.000000e-01 : f32
    %726 = vector.broadcast %cst_382 : f32 to vector<8x192xf32>
    %727 = arith.mulf %726, %725 : vector<8x192xf32>
    %cst_383 = arith.constant 5.000000e-01 : f32
    %728 = vector.broadcast %cst_383 : f32 to vector<8x192xf32>
    %729 = arith.addf %727, %728 : vector<8x192xf32>
    %730 = vector.extract_strided_slice %729 {offsets = [0, 64], sizes = [8, 64], strides = [1, 1]} : vector<8x192xf32> to vector<8x64xf32>
    %731 = arith.mulf %730, %709 : vector<8x64xf32>
    %732 = vector.extract_strided_slice %729 {offsets = [0, 0], sizes = [8, 64], strides = [1, 1]} : vector<8x192xf32> to vector<8x64xf32>
    %733 = vector.extract_strided_slice %724 {offsets = [0, 192], sizes = [8, 64], strides = [1, 1]} : vector<8x256xf32> to vector<8x64xf32>
    %734 = arith.mulf %732, %733 : vector<8x64xf32>
    %735 = arith.addf %731, %734 : vector<8x64xf32>
    %736 = vector.extract_strided_slice %729 {offsets = [0, 128], sizes = [8, 64], strides = [1, 1]} : vector<8x192xf32> to vector<8x64xf32>
    %737 = math.tanh %735 : vector<8x64xf32>
    %738 = arith.mulf %736, %737 : vector<8x64xf32>
    %739 = vector.extract_strided_slice %738 {offsets = [0, 0], sizes = [8, 32], strides = [1, 1]} : vector<8x64xf32> to vector<8x32xf32>
    %c16_384 = arith.constant 16 : index
    %c0_385 = arith.constant 0 : index
    %740 = vector.load %arg9[%c16_384, %c0_385] : memref<64x128xf32, #tpu.memory_space<vmem>>, vector<8x32xf32>
    tpu.vector_store %arg9[%c16_384, %c0_385], %739 {strides = array<i32>} : memref<64x128xf32, #tpu.memory_space<vmem>>, vector<8x32xf32>,
    %741 = vector.extract_strided_slice %738 {offsets = [0, 32], sizes = [8, 32], strides = [1, 1]} : vector<8x64xf32> to vector<8x32xf32>
    %c40_386 = arith.constant 40 : index
    %c32_387 = arith.constant 32 : index
    %742 = vector.load %arg9[%c40_386, %c32_387] : memref<64x128xf32, #tpu.memory_space<vmem>>, vector<8x32xf32>
    tpu.vector_store %arg9[%c40_386, %c32_387], %741 {strides = array<i32>} : memref<64x128xf32, #tpu.memory_space<vmem>>, vector<8x32xf32>,
    %743 = vector.extract_strided_slice %738 {offsets = [0, 0], sizes = [8, 32], strides = [1, 1]} : vector<8x64xf32> to vector<8x32xf32>
    %c40_388 = arith.constant 40 : index
    %c64_389 = arith.constant 64 : index
    %744 = vector.load %arg9[%c40_388, %c64_389] : memref<64x128xf32, #tpu.memory_space<vmem>>, vector<8x32xf32>
    tpu.vector_store %arg9[%c40_388, %c64_389], %743 {strides = array<i32>} : memref<64x128xf32, #tpu.memory_space<vmem>>, vector<8x32xf32>,
    %745 = vector.extract_strided_slice %738 {offsets = [0, 32], sizes = [8, 32], strides = [1, 1]} : vector<8x64xf32> to vector<8x32xf32>
    %c16_390 = arith.constant 16 : index
    %c96_391 = arith.constant 96 : index
    %746 = vector.load %arg9[%c16_390, %c96_391] : memref<64x128xf32, #tpu.memory_space<vmem>>, vector<8x32xf32>
    tpu.vector_store %arg9[%c16_390, %c96_391], %745 {strides = array<i32>} : memref<64x128xf32, #tpu.memory_space<vmem>>, vector<8x32xf32>,
    %c24_392 = arith.constant 24 : index
    %c0_393 = arith.constant 0 : index
    %747 = vector.load %arg10[%c24_392, %c0_393] : memref<64x256xf32, #tpu.memory_space<vmem>>, vector<8x256xf32>
    %cst_394 = arith.constant dense<0.000000e+00> : vector<8x256xf32>
    %748 = tpu.matmul %738, %661, %cst_394 {dimension_numbers = #tpu.dot_dimension_numbers<[1], [0], [0], [1], [0, 0, 1, 1], [], []>} : vector<8x64xf32>, vector<64x256xf32>, vector<8x256xf32> -> vector<8x256xf32>
    %749 = arith.addf %747, %748 : vector<8x256xf32>
    %750 = math.tanh %749 : vector<8x256xf32>
    %751 = vector.extract_strided_slice %750 {offsets = [0, 0], sizes = [8, 192], strides = [1, 1]} : vector<8x256xf32> to vector<8x192xf32>
    %cst_395 = arith.constant 5.000000e-01 : f32
    %752 = vector.broadcast %cst_395 : f32 to vector<8x192xf32>
    %753 = arith.mulf %752, %751 : vector<8x192xf32>
    %cst_396 = arith.constant 5.000000e-01 : f32
    %754 = vector.broadcast %cst_396 : f32 to vector<8x192xf32>
    %755 = arith.addf %753, %754 : vector<8x192xf32>
    %756 = vector.extract_strided_slice %755 {offsets = [0, 64], sizes = [8, 64], strides = [1, 1]} : vector<8x192xf32> to vector<8x64xf32>
    %757 = arith.mulf %756, %735 : vector<8x64xf32>
    %758 = vector.extract_strided_slice %755 {offsets = [0, 0], sizes = [8, 64], strides = [1, 1]} : vector<8x192xf32> to vector<8x64xf32>
    %759 = vector.extract_strided_slice %750 {offsets = [0, 192], sizes = [8, 64], strides = [1, 1]} : vector<8x256xf32> to vector<8x64xf32>
    %760 = arith.mulf %758, %759 : vector<8x64xf32>
    %761 = arith.addf %757, %760 : vector<8x64xf32>
    %762 = vector.extract_strided_slice %755 {offsets = [0, 128], sizes = [8, 64], strides = [1, 1]} : vector<8x192xf32> to vector<8x64xf32>
    %763 = math.tanh %761 : vector<8x64xf32>
    %764 = arith.mulf %762, %763 : vector<8x64xf32>
    %765 = vector.extract_strided_slice %764 {offsets = [0, 0], sizes = [8, 32], strides = [1, 1]} : vector<8x64xf32> to vector<8x32xf32>
    %c24_397 = arith.constant 24 : index
    %c0_398 = arith.constant 0 : index
    %766 = vector.load %arg9[%c24_397, %c0_398] : memref<64x128xf32, #tpu.memory_space<vmem>>, vector<8x32xf32>
    tpu.vector_store %arg9[%c24_397, %c0_398], %765 {strides = array<i32>} : memref<64x128xf32, #tpu.memory_space<vmem>>, vector<8x32xf32>,
    %767 = vector.extract_strided_slice %764 {offsets = [0, 32], sizes = [8, 32], strides = [1, 1]} : vector<8x64xf32> to vector<8x32xf32>
    %c32_399 = arith.constant 32 : index
    %c32_400 = arith.constant 32 : index
    %768 = vector.load %arg9[%c32_399, %c32_400] : memref<64x128xf32, #tpu.memory_space<vmem>>, vector<8x32xf32>
    tpu.vector_store %arg9[%c32_399, %c32_400], %767 {strides = array<i32>} : memref<64x128xf32, #tpu.memory_space<vmem>>, vector<8x32xf32>,
    %769 = vector.extract_strided_slice %764 {offsets = [0, 0], sizes = [8, 32], strides = [1, 1]} : vector<8x64xf32> to vector<8x32xf32>
    %c32_401 = arith.constant 32 : index
    %c64_402 = arith.constant 64 : index
    %770 = vector.load %arg9[%c32_401, %c64_402] : memref<64x128xf32, #tpu.memory_space<vmem>>, vector<8x32xf32>
    tpu.vector_store %arg9[%c32_401, %c64_402], %769 {strides = array<i32>} : memref<64x128xf32, #tpu.memory_space<vmem>>, vector<8x32xf32>,
    %771 = vector.extract_strided_slice %764 {offsets = [0, 32], sizes = [8, 32], strides = [1, 1]} : vector<8x64xf32> to vector<8x32xf32>
    %c24_403 = arith.constant 24 : index
    %c96_404 = arith.constant 96 : index
    %772 = vector.load %arg9[%c24_403, %c96_404] : memref<64x128xf32, #tpu.memory_space<vmem>>, vector<8x32xf32>
    tpu.vector_store %arg9[%c24_403, %c96_404], %771 {strides = array<i32>} : memref<64x128xf32, #tpu.memory_space<vmem>>, vector<8x32xf32>,
    %c32_405 = arith.constant 32 : index
    %c0_406 = arith.constant 0 : index
    %773 = vector.load %arg10[%c32_405, %c0_406] : memref<64x256xf32, #tpu.memory_space<vmem>>, vector<8x256xf32>
    %cst_407 = arith.constant dense<0.000000e+00> : vector<8x256xf32>
    %774 = tpu.matmul %764, %661, %cst_407 {dimension_numbers = #tpu.dot_dimension_numbers<[1], [0], [0], [1], [0, 0, 1, 1], [], []>} : vector<8x64xf32>, vector<64x256xf32>, vector<8x256xf32> -> vector<8x256xf32>
    %775 = arith.addf %773, %774 : vector<8x256xf32>
    %776 = math.tanh %775 : vector<8x256xf32>
    %777 = vector.extract_strided_slice %776 {offsets = [0, 0], sizes = [8, 192], strides = [1, 1]} : vector<8x256xf32> to vector<8x192xf32>
    %cst_408 = arith.constant 5.000000e-01 : f32
    %778 = vector.broadcast %cst_408 : f32 to vector<8x192xf32>
    %779 = arith.mulf %778, %777 : vector<8x192xf32>
    %cst_409 = arith.constant 5.000000e-01 : f32
    %780 = vector.broadcast %cst_409 : f32 to vector<8x192xf32>
    %781 = arith.addf %779, %780 : vector<8x192xf32>
    %782 = vector.extract_strided_slice %781 {offsets = [0, 64], sizes = [8, 64], strides = [1, 1]} : vector<8x192xf32> to vector<8x64xf32>
    %783 = arith.mulf %782, %761 : vector<8x64xf32>
    %784 = vector.extract_strided_slice %781 {offsets = [0, 0], sizes = [8, 64], strides = [1, 1]} : vector<8x192xf32> to vector<8x64xf32>
    %785 = vector.extract_strided_slice %776 {offsets = [0, 192], sizes = [8, 64], strides = [1, 1]} : vector<8x256xf32> to vector<8x64xf32>
    %786 = arith.mulf %784, %785 : vector<8x64xf32>
    %787 = arith.addf %783, %786 : vector<8x64xf32>
    %788 = vector.extract_strided_slice %781 {offsets = [0, 128], sizes = [8, 64], strides = [1, 1]} : vector<8x192xf32> to vector<8x64xf32>
    %789 = math.tanh %787 : vector<8x64xf32>
    %790 = arith.mulf %788, %789 : vector<8x64xf32>
    %791 = vector.extract_strided_slice %790 {offsets = [0, 0], sizes = [8, 32], strides = [1, 1]} : vector<8x64xf32> to vector<8x32xf32>
    %c32_410 = arith.constant 32 : index
    %c0_411 = arith.constant 0 : index
    %792 = vector.load %arg9[%c32_410, %c0_411] : memref<64x128xf32, #tpu.memory_space<vmem>>, vector<8x32xf32>
    tpu.vector_store %arg9[%c32_410, %c0_411], %791 {strides = array<i32>} : memref<64x128xf32, #tpu.memory_space<vmem>>, vector<8x32xf32>,
    %793 = vector.extract_strided_slice %790 {offsets = [0, 32], sizes = [8, 32], strides = [1, 1]} : vector<8x64xf32> to vector<8x32xf32>
    %c24_412 = arith.constant 24 : index
    %c32_413 = arith.constant 32 : index
    %794 = vector.load %arg9[%c24_412, %c32_413] : memref<64x128xf32, #tpu.memory_space<vmem>>, vector<8x32xf32>
    tpu.vector_store %arg9[%c24_412, %c32_413], %793 {strides = array<i32>} : memref<64x128xf32, #tpu.memory_space<vmem>>, vector<8x32xf32>,
    %795 = vector.extract_strided_slice %790 {offsets = [0, 0], sizes = [8, 32], strides = [1, 1]} : vector<8x64xf32> to vector<8x32xf32>
    %c24_414 = arith.constant 24 : index
    %c64_415 = arith.constant 64 : index
    %796 = vector.load %arg9[%c24_414, %c64_415] : memref<64x128xf32, #tpu.memory_space<vmem>>, vector<8x32xf32>
    tpu.vector_store %arg9[%c24_414, %c64_415], %795 {strides = array<i32>} : memref<64x128xf32, #tpu.memory_space<vmem>>, vector<8x32xf32>,
    %797 = vector.extract_strided_slice %790 {offsets = [0, 32], sizes = [8, 32], strides = [1, 1]} : vector<8x64xf32> to vector<8x32xf32>
    %c32_416 = arith.constant 32 : index
    %c96_417 = arith.constant 96 : index
    %798 = vector.load %arg9[%c32_416, %c96_417] : memref<64x128xf32, #tpu.memory_space<vmem>>, vector<8x32xf32>
    tpu.vector_store %arg9[%c32_416, %c96_417], %797 {strides = array<i32>} : memref<64x128xf32, #tpu.memory_space<vmem>>, vector<8x32xf32>,
    %c40_418 = arith.constant 40 : index
    %c0_419 = arith.constant 0 : index
    %799 = vector.load %arg10[%c40_418, %c0_419] : memref<64x256xf32, #tpu.memory_space<vmem>>, vector<8x256xf32>
    %cst_420 = arith.constant dense<0.000000e+00> : vector<8x256xf32>
    %800 = tpu.matmul %790, %661, %cst_420 {dimension_numbers = #tpu.dot_dimension_numbers<[1], [0], [0], [1], [0, 0, 1, 1], [], []>} : vector<8x64xf32>, vector<64x256xf32>, vector<8x256xf32> -> vector<8x256xf32>
    %801 = arith.addf %799, %800 : vector<8x256xf32>
    %802 = math.tanh %801 : vector<8x256xf32>
    %803 = vector.extract_strided_slice %802 {offsets = [0, 0], sizes = [8, 192], strides = [1, 1]} : vector<8x256xf32> to vector<8x192xf32>
    %cst_421 = arith.constant 5.000000e-01 : f32
    %804 = vector.broadcast %cst_421 : f32 to vector<8x192xf32>
    %805 = arith.mulf %804, %803 : vector<8x192xf32>
    %cst_422 = arith.constant 5.000000e-01 : f32
    %806 = vector.broadcast %cst_422 : f32 to vector<8x192xf32>
    %807 = arith.addf %805, %806 : vector<8x192xf32>
    %808 = vector.extract_strided_slice %807 {offsets = [0, 64], sizes = [8, 64], strides = [1, 1]} : vector<8x192xf32> to vector<8x64xf32>
    %809 = arith.mulf %808, %787 : vector<8x64xf32>
    %810 = vector.extract_strided_slice %807 {offsets = [0, 0], sizes = [8, 64], strides = [1, 1]} : vector<8x192xf32> to vector<8x64xf32>
    %811 = vector.extract_strided_slice %802 {offsets = [0, 192], sizes = [8, 64], strides = [1, 1]} : vector<8x256xf32> to vector<8x64xf32>
    %812 = arith.mulf %810, %811 : vector<8x64xf32>
    %813 = arith.addf %809, %812 : vector<8x64xf32>
    %814 = vector.extract_strided_slice %807 {offsets = [0, 128], sizes = [8, 64], strides = [1, 1]} : vector<8x192xf32> to vector<8x64xf32>
    %815 = math.tanh %813 : vector<8x64xf32>
    %816 = arith.mulf %814, %815 : vector<8x64xf32>
    %817 = vector.extract_strided_slice %816 {offsets = [0, 0], sizes = [8, 32], strides = [1, 1]} : vector<8x64xf32> to vector<8x32xf32>
    %c40_423 = arith.constant 40 : index
    %c0_424 = arith.constant 0 : index
    %818 = vector.load %arg9[%c40_423, %c0_424] : memref<64x128xf32, #tpu.memory_space<vmem>>, vector<8x32xf32>
    tpu.vector_store %arg9[%c40_423, %c0_424], %817 {strides = array<i32>} : memref<64x128xf32, #tpu.memory_space<vmem>>, vector<8x32xf32>,
    %819 = vector.extract_strided_slice %816 {offsets = [0, 32], sizes = [8, 32], strides = [1, 1]} : vector<8x64xf32> to vector<8x32xf32>
    %c16_425 = arith.constant 16 : index
    %c32_426 = arith.constant 32 : index
    %820 = vector.load %arg9[%c16_425, %c32_426] : memref<64x128xf32, #tpu.memory_space<vmem>>, vector<8x32xf32>
    tpu.vector_store %arg9[%c16_425, %c32_426], %819 {strides = array<i32>} : memref<64x128xf32, #tpu.memory_space<vmem>>, vector<8x32xf32>,
    %821 = vector.extract_strided_slice %816 {offsets = [0, 0], sizes = [8, 32], strides = [1, 1]} : vector<8x64xf32> to vector<8x32xf32>
    %c16_427 = arith.constant 16 : index
    %c64_428 = arith.constant 64 : index
    %822 = vector.load %arg9[%c16_427, %c64_428] : memref<64x128xf32, #tpu.memory_space<vmem>>, vector<8x32xf32>
    tpu.vector_store %arg9[%c16_427, %c64_428], %821 {strides = array<i32>} : memref<64x128xf32, #tpu.memory_space<vmem>>, vector<8x32xf32>,
    %823 = vector.extract_strided_slice %816 {offsets = [0, 32], sizes = [8, 32], strides = [1, 1]} : vector<8x64xf32> to vector<8x32xf32>
    %c40_429 = arith.constant 40 : index
    %c96_430 = arith.constant 96 : index
    %824 = vector.load %arg9[%c40_429, %c96_430] : memref<64x128xf32, #tpu.memory_space<vmem>>, vector<8x32xf32>
    tpu.vector_store %arg9[%c40_429, %c96_430], %823 {strides = array<i32>} : memref<64x128xf32, #tpu.memory_space<vmem>>, vector<8x32xf32>,
    %c48_431 = arith.constant 48 : index
    %c0_432 = arith.constant 0 : index
    %825 = vector.load %arg10[%c48_431, %c0_432] : memref<64x256xf32, #tpu.memory_space<vmem>>, vector<8x256xf32>
    %cst_433 = arith.constant dense<0.000000e+00> : vector<8x256xf32>
    %826 = tpu.matmul %816, %661, %cst_433 {dimension_numbers = #tpu.dot_dimension_numbers<[1], [0], [0], [1], [0, 0, 1, 1], [], []>} : vector<8x64xf32>, vector<64x256xf32>, vector<8x256xf32> -> vector<8x256xf32>
    %827 = arith.addf %825, %826 : vector<8x256xf32>
    %828 = math.tanh %827 : vector<8x256xf32>
    %829 = vector.extract_strided_slice %828 {offsets = [0, 0], sizes = [8, 192], strides = [1, 1]} : vector<8x256xf32> to vector<8x192xf32>
    %cst_434 = arith.constant 5.000000e-01 : f32
    %830 = vector.broadcast %cst_434 : f32 to vector<8x192xf32>
    %831 = arith.mulf %830, %829 : vector<8x192xf32>
    %cst_435 = arith.constant 5.000000e-01 : f32
    %832 = vector.broadcast %cst_435 : f32 to vector<8x192xf32>
    %833 = arith.addf %831, %832 : vector<8x192xf32>
    %834 = vector.extract_strided_slice %833 {offsets = [0, 64], sizes = [8, 64], strides = [1, 1]} : vector<8x192xf32> to vector<8x64xf32>
    %835 = arith.mulf %834, %813 : vector<8x64xf32>
    %836 = vector.extract_strided_slice %833 {offsets = [0, 0], sizes = [8, 64], strides = [1, 1]} : vector<8x192xf32> to vector<8x64xf32>
    %837 = vector.extract_strided_slice %828 {offsets = [0, 192], sizes = [8, 64], strides = [1, 1]} : vector<8x256xf32> to vector<8x64xf32>
    %838 = arith.mulf %836, %837 : vector<8x64xf32>
    %839 = arith.addf %835, %838 : vector<8x64xf32>
    %840 = vector.extract_strided_slice %833 {offsets = [0, 128], sizes = [8, 64], strides = [1, 1]} : vector<8x192xf32> to vector<8x64xf32>
    %841 = math.tanh %839 : vector<8x64xf32>
    %842 = arith.mulf %840, %841 : vector<8x64xf32>
    %843 = vector.extract_strided_slice %842 {offsets = [0, 0], sizes = [8, 32], strides = [1, 1]} : vector<8x64xf32> to vector<8x32xf32>
    %c48_436 = arith.constant 48 : index
    %c0_437 = arith.constant 0 : index
    %844 = vector.load %arg9[%c48_436, %c0_437] : memref<64x128xf32, #tpu.memory_space<vmem>>, vector<8x32xf32>
    tpu.vector_store %arg9[%c48_436, %c0_437], %843 {strides = array<i32>} : memref<64x128xf32, #tpu.memory_space<vmem>>, vector<8x32xf32>,
    %845 = vector.extract_strided_slice %842 {offsets = [0, 32], sizes = [8, 32], strides = [1, 1]} : vector<8x64xf32> to vector<8x32xf32>
    %c8_438 = arith.constant 8 : index
    %c32_439 = arith.constant 32 : index
    %846 = vector.load %arg9[%c8_438, %c32_439] : memref<64x128xf32, #tpu.memory_space<vmem>>, vector<8x32xf32>
    tpu.vector_store %arg9[%c8_438, %c32_439], %845 {strides = array<i32>} : memref<64x128xf32, #tpu.memory_space<vmem>>, vector<8x32xf32>,
    %847 = vector.extract_strided_slice %842 {offsets = [0, 0], sizes = [8, 32], strides = [1, 1]} : vector<8x64xf32> to vector<8x32xf32>
    %c8_440 = arith.constant 8 : index
    %c64_441 = arith.constant 64 : index
    %848 = vector.load %arg9[%c8_440, %c64_441] : memref<64x128xf32, #tpu.memory_space<vmem>>, vector<8x32xf32>
    tpu.vector_store %arg9[%c8_440, %c64_441], %847 {strides = array<i32>} : memref<64x128xf32, #tpu.memory_space<vmem>>, vector<8x32xf32>,
    %849 = vector.extract_strided_slice %842 {offsets = [0, 32], sizes = [8, 32], strides = [1, 1]} : vector<8x64xf32> to vector<8x32xf32>
    %c48_442 = arith.constant 48 : index
    %c96_443 = arith.constant 96 : index
    %850 = vector.load %arg9[%c48_442, %c96_443] : memref<64x128xf32, #tpu.memory_space<vmem>>, vector<8x32xf32>
    tpu.vector_store %arg9[%c48_442, %c96_443], %849 {strides = array<i32>} : memref<64x128xf32, #tpu.memory_space<vmem>>, vector<8x32xf32>,
    %c56_444 = arith.constant 56 : index
    %c0_445 = arith.constant 0 : index
    %851 = vector.load %arg10[%c56_444, %c0_445] : memref<64x256xf32, #tpu.memory_space<vmem>>, vector<8x256xf32>
    %cst_446 = arith.constant dense<0.000000e+00> : vector<8x256xf32>
    %852 = tpu.matmul %842, %661, %cst_446 {dimension_numbers = #tpu.dot_dimension_numbers<[1], [0], [0], [1], [0, 0, 1, 1], [], []>} : vector<8x64xf32>, vector<64x256xf32>, vector<8x256xf32> -> vector<8x256xf32>
    %853 = arith.addf %851, %852 : vector<8x256xf32>
    %854 = math.tanh %853 : vector<8x256xf32>
    %855 = vector.extract_strided_slice %854 {offsets = [0, 0], sizes = [8, 192], strides = [1, 1]} : vector<8x256xf32> to vector<8x192xf32>
    %cst_447 = arith.constant 5.000000e-01 : f32
    %856 = vector.broadcast %cst_447 : f32 to vector<8x192xf32>
    %857 = arith.mulf %856, %855 : vector<8x192xf32>
    %cst_448 = arith.constant 5.000000e-01 : f32
    %858 = vector.broadcast %cst_448 : f32 to vector<8x192xf32>
    %859 = arith.addf %857, %858 : vector<8x192xf32>
    %860 = vector.extract_strided_slice %859 {offsets = [0, 64], sizes = [8, 64], strides = [1, 1]} : vector<8x192xf32> to vector<8x64xf32>
    %861 = arith.mulf %860, %839 : vector<8x64xf32>
    %862 = vector.extract_strided_slice %859 {offsets = [0, 0], sizes = [8, 64], strides = [1, 1]} : vector<8x192xf32> to vector<8x64xf32>
    %863 = vector.extract_strided_slice %854 {offsets = [0, 192], sizes = [8, 64], strides = [1, 1]} : vector<8x256xf32> to vector<8x64xf32>
    %864 = arith.mulf %862, %863 : vector<8x64xf32>
    %865 = arith.addf %861, %864 : vector<8x64xf32>
    %866 = vector.extract_strided_slice %859 {offsets = [0, 128], sizes = [8, 64], strides = [1, 1]} : vector<8x192xf32> to vector<8x64xf32>
    %867 = math.tanh %865 : vector<8x64xf32>
    %868 = arith.mulf %866, %867 : vector<8x64xf32>
    %869 = vector.extract_strided_slice %868 {offsets = [0, 0], sizes = [8, 32], strides = [1, 1]} : vector<8x64xf32> to vector<8x32xf32>
    %c56_449 = arith.constant 56 : index
    %c0_450 = arith.constant 0 : index
    %870 = vector.load %arg9[%c56_449, %c0_450] : memref<64x128xf32, #tpu.memory_space<vmem>>, vector<8x32xf32>
    tpu.vector_store %arg9[%c56_449, %c0_450], %869 {strides = array<i32>} : memref<64x128xf32, #tpu.memory_space<vmem>>, vector<8x32xf32>,
    %871 = vector.extract_strided_slice %868 {offsets = [0, 32], sizes = [8, 32], strides = [1, 1]} : vector<8x64xf32> to vector<8x32xf32>
    %c0_451 = arith.constant 0 : index
    %c32_452 = arith.constant 32 : index
    %872 = vector.load %arg9[%c0_451, %c32_452] : memref<64x128xf32, #tpu.memory_space<vmem>>, vector<8x32xf32>
    tpu.vector_store %arg9[%c0_451, %c32_452], %871 {strides = array<i32>} : memref<64x128xf32, #tpu.memory_space<vmem>>, vector<8x32xf32>,
    %873 = vector.extract_strided_slice %868 {offsets = [0, 0], sizes = [8, 32], strides = [1, 1]} : vector<8x64xf32> to vector<8x32xf32>
    %c0_453 = arith.constant 0 : index
    %c64_454 = arith.constant 64 : index
    %874 = vector.load %arg9[%c0_453, %c64_454] : memref<64x128xf32, #tpu.memory_space<vmem>>, vector<8x32xf32>
    tpu.vector_store %arg9[%c0_453, %c64_454], %873 {strides = array<i32>} : memref<64x128xf32, #tpu.memory_space<vmem>>, vector<8x32xf32>,
    %875 = vector.extract_strided_slice %868 {offsets = [0, 32], sizes = [8, 32], strides = [1, 1]} : vector<8x64xf32> to vector<8x32xf32>
    %c56_455 = arith.constant 56 : index
    %c96_456 = arith.constant 96 : index
    %876 = vector.load %arg9[%c56_455, %c96_456] : memref<64x128xf32, #tpu.memory_space<vmem>>, vector<8x32xf32>
    tpu.vector_store %arg9[%c56_455, %c96_456], %875 {strides = array<i32>} : memref<64x128xf32, #tpu.memory_space<vmem>>, vector<8x32xf32>,
    %c4 = arith.constant 4 : index
    %c0_457 = arith.constant 0 : index
    %c0_458 = arith.constant 0 : index
    %877 = vector.load %arg2[%c4, %c0_457, %c0_458] : memref<5x200x256xf32, #tpu.memory_space<vmem>>, vector<1x128x256xf32>
    %878 = vector.shape_cast %877 : vector<1x128x256xf32> to vector<128x256xf32>
    %c4_459 = arith.constant 4 : index
    %c128_460 = arith.constant 128 : index
    %c0_461 = arith.constant 0 : index
    %879 = vector.load %arg2[%c4_459, %c128_460, %c0_461] : memref<5x200x256xf32, #tpu.memory_space<vmem>>, vector<1x64x256xf32>
    %880 = vector.shape_cast %879 : vector<1x64x256xf32> to vector<64x256xf32>
    %c4_462 = arith.constant 4 : index
    %c192_463 = arith.constant 192 : index
    %c0_464 = arith.constant 0 : index
    %881 = vector.load %arg2[%c4_462, %c192_463, %c0_464] : memref<5x200x256xf32, #tpu.memory_space<vmem>>, vector<1x1x256xf32>
    %882 = vector.shape_cast %881 : vector<1x1x256xf32> to vector<1x256xf32>
    %c0_465 = arith.constant 0 : index
    %c0_466 = arith.constant 0 : index
    %883 = vector.load %arg9[%c0_465, %c0_466] : memref<64x128xf32, #tpu.memory_space<vmem>>, vector<64x128xf32>
    %cst_467 = arith.constant dense<0.000000e+00> : vector<64x256xf32>
    %884 = tpu.matmul %883, %878, %cst_467 {dimension_numbers = #tpu.dot_dimension_numbers<[1], [0], [0], [1], [0, 0, 1, 1], [], []>} : vector<64x128xf32>, vector<128x256xf32>, vector<64x256xf32> -> vector<64x256xf32>
    %885 = vector.broadcast %882 : vector<1x256xf32> to vector<64x256xf32>
    %886 = arith.addf %884, %885 : vector<64x256xf32>
    %c0_468 = arith.constant 0 : index
    %c0_469 = arith.constant 0 : index
    %887 = vector.load %arg10[%c0_468, %c0_469] : memref<64x256xf32, #tpu.memory_space<vmem>>, vector<64x256xf32>
    tpu.vector_store %arg10[%c0_468, %c0_469], %886 {strides = array<i32>} : memref<64x256xf32, #tpu.memory_space<vmem>>, vector<64x256xf32>,
    %c0_470 = arith.constant 0 : index
    %c0_471 = arith.constant 0 : index
    %888 = vector.load %arg10[%c0_470, %c0_471] : memref<64x256xf32, #tpu.memory_space<vmem>>, vector<8x256xf32>
    %cst_472 = arith.constant dense<0.000000e+00> : vector<8x256xf32>
    %889 = tpu.matmul %0, %880, %cst_472 {dimension_numbers = #tpu.dot_dimension_numbers<[1], [0], [0], [1], [0, 0, 1, 1], [], []>} : vector<8x64xf32>, vector<64x256xf32>, vector<8x256xf32> -> vector<8x256xf32>
    %890 = arith.addf %888, %889 : vector<8x256xf32>
    %891 = math.tanh %890 : vector<8x256xf32>
    %892 = vector.extract_strided_slice %891 {offsets = [0, 0], sizes = [8, 192], strides = [1, 1]} : vector<8x256xf32> to vector<8x192xf32>
    %cst_473 = arith.constant 5.000000e-01 : f32
    %893 = vector.broadcast %cst_473 : f32 to vector<8x192xf32>
    %894 = arith.mulf %893, %892 : vector<8x192xf32>
    %cst_474 = arith.constant 5.000000e-01 : f32
    %895 = vector.broadcast %cst_474 : f32 to vector<8x192xf32>
    %896 = arith.addf %894, %895 : vector<8x192xf32>
    %897 = vector.extract_strided_slice %896 {offsets = [0, 64], sizes = [8, 64], strides = [1, 1]} : vector<8x192xf32> to vector<8x64xf32>
    %898 = arith.mulf %897, %0 : vector<8x64xf32>
    %899 = vector.extract_strided_slice %896 {offsets = [0, 0], sizes = [8, 64], strides = [1, 1]} : vector<8x192xf32> to vector<8x64xf32>
    %900 = vector.extract_strided_slice %891 {offsets = [0, 192], sizes = [8, 64], strides = [1, 1]} : vector<8x256xf32> to vector<8x64xf32>
    %901 = arith.mulf %899, %900 : vector<8x64xf32>
    %902 = arith.addf %898, %901 : vector<8x64xf32>
    %903 = vector.extract_strided_slice %896 {offsets = [0, 128], sizes = [8, 64], strides = [1, 1]} : vector<8x192xf32> to vector<8x64xf32>
    %904 = math.tanh %902 : vector<8x64xf32>
    %905 = arith.mulf %903, %904 : vector<8x64xf32>
    %906 = vector.extract_strided_slice %905 {offsets = [0, 0], sizes = [8, 32], strides = [1, 1]} : vector<8x64xf32> to vector<8x32xf32>
    %c0_475 = arith.constant 0 : index
    %c0_476 = arith.constant 0 : index
    %907 = vector.load %arg9[%c0_475, %c0_476] : memref<64x128xf32, #tpu.memory_space<vmem>>, vector<8x32xf32>
    tpu.vector_store %arg9[%c0_475, %c0_476], %906 {strides = array<i32>} : memref<64x128xf32, #tpu.memory_space<vmem>>, vector<8x32xf32>,
    %908 = vector.extract_strided_slice %905 {offsets = [0, 32], sizes = [8, 32], strides = [1, 1]} : vector<8x64xf32> to vector<8x32xf32>
    %c56_477 = arith.constant 56 : index
    %c32_478 = arith.constant 32 : index
    %909 = vector.load %arg9[%c56_477, %c32_478] : memref<64x128xf32, #tpu.memory_space<vmem>>, vector<8x32xf32>
    tpu.vector_store %arg9[%c56_477, %c32_478], %908 {strides = array<i32>} : memref<64x128xf32, #tpu.memory_space<vmem>>, vector<8x32xf32>,
    %c8_479 = arith.constant 8 : index
    %c0_480 = arith.constant 0 : index
    %910 = vector.load %arg10[%c8_479, %c0_480] : memref<64x256xf32, #tpu.memory_space<vmem>>, vector<8x256xf32>
    %cst_481 = arith.constant dense<0.000000e+00> : vector<8x256xf32>
    %911 = tpu.matmul %905, %880, %cst_481 {dimension_numbers = #tpu.dot_dimension_numbers<[1], [0], [0], [1], [0, 0, 1, 1], [], []>} : vector<8x64xf32>, vector<64x256xf32>, vector<8x256xf32> -> vector<8x256xf32>
    %912 = arith.addf %910, %911 : vector<8x256xf32>
    %913 = math.tanh %912 : vector<8x256xf32>
    %914 = vector.extract_strided_slice %913 {offsets = [0, 0], sizes = [8, 192], strides = [1, 1]} : vector<8x256xf32> to vector<8x192xf32>
    %cst_482 = arith.constant 5.000000e-01 : f32
    %915 = vector.broadcast %cst_482 : f32 to vector<8x192xf32>
    %916 = arith.mulf %915, %914 : vector<8x192xf32>
    %cst_483 = arith.constant 5.000000e-01 : f32
    %917 = vector.broadcast %cst_483 : f32 to vector<8x192xf32>
    %918 = arith.addf %916, %917 : vector<8x192xf32>
    %919 = vector.extract_strided_slice %918 {offsets = [0, 64], sizes = [8, 64], strides = [1, 1]} : vector<8x192xf32> to vector<8x64xf32>
    %920 = arith.mulf %919, %902 : vector<8x64xf32>
    %921 = vector.extract_strided_slice %918 {offsets = [0, 0], sizes = [8, 64], strides = [1, 1]} : vector<8x192xf32> to vector<8x64xf32>
    %922 = vector.extract_strided_slice %913 {offsets = [0, 192], sizes = [8, 64], strides = [1, 1]} : vector<8x256xf32> to vector<8x64xf32>
    %923 = arith.mulf %921, %922 : vector<8x64xf32>
    %924 = arith.addf %920, %923 : vector<8x64xf32>
    %925 = vector.extract_strided_slice %918 {offsets = [0, 128], sizes = [8, 64], strides = [1, 1]} : vector<8x192xf32> to vector<8x64xf32>
    %926 = math.tanh %924 : vector<8x64xf32>
    %927 = arith.mulf %925, %926 : vector<8x64xf32>
    %928 = vector.extract_strided_slice %927 {offsets = [0, 0], sizes = [8, 32], strides = [1, 1]} : vector<8x64xf32> to vector<8x32xf32>
    %c8_484 = arith.constant 8 : index
    %c0_485 = arith.constant 0 : index
    %929 = vector.load %arg9[%c8_484, %c0_485] : memref<64x128xf32, #tpu.memory_space<vmem>>, vector<8x32xf32>
    tpu.vector_store %arg9[%c8_484, %c0_485], %928 {strides = array<i32>} : memref<64x128xf32, #tpu.memory_space<vmem>>, vector<8x32xf32>,
    %930 = vector.extract_strided_slice %927 {offsets = [0, 32], sizes = [8, 32], strides = [1, 1]} : vector<8x64xf32> to vector<8x32xf32>
    %c48_486 = arith.constant 48 : index
    %c32_487 = arith.constant 32 : index
    %931 = vector.load %arg9[%c48_486, %c32_487] : memref<64x128xf32, #tpu.memory_space<vmem>>, vector<8x32xf32>
    tpu.vector_store %arg9[%c48_486, %c32_487], %930 {strides = array<i32>} : memref<64x128xf32, #tpu.memory_space<vmem>>, vector<8x32xf32>,
    %c16_488 = arith.constant 16 : index
    %c0_489 = arith.constant 0 : index
    %932 = vector.load %arg10[%c16_488, %c0_489] : memref<64x256xf32, #tpu.memory_space<vmem>>, vector<8x256xf32>
    %cst_490 = arith.constant dense<0.000000e+00> : vector<8x256xf32>
    %933 = tpu.matmul %927, %880, %cst_490 {dimension_numbers = #tpu.dot_dimension_numbers<[1], [0], [0], [1], [0, 0, 1, 1], [], []>} : vector<8x64xf32>, vector<64x256xf32>, vector<8x256xf32> -> vector<8x256xf32>
    %934 = arith.addf %932, %933 : vector<8x256xf32>
    %935 = math.tanh %934 : vector<8x256xf32>
    %936 = vector.extract_strided_slice %935 {offsets = [0, 0], sizes = [8, 192], strides = [1, 1]} : vector<8x256xf32> to vector<8x192xf32>
    %cst_491 = arith.constant 5.000000e-01 : f32
    %937 = vector.broadcast %cst_491 : f32 to vector<8x192xf32>
    %938 = arith.mulf %937, %936 : vector<8x192xf32>
    %cst_492 = arith.constant 5.000000e-01 : f32
    %939 = vector.broadcast %cst_492 : f32 to vector<8x192xf32>
    %940 = arith.addf %938, %939 : vector<8x192xf32>
    %941 = vector.extract_strided_slice %940 {offsets = [0, 64], sizes = [8, 64], strides = [1, 1]} : vector<8x192xf32> to vector<8x64xf32>
    %942 = arith.mulf %941, %924 : vector<8x64xf32>
    %943 = vector.extract_strided_slice %940 {offsets = [0, 0], sizes = [8, 64], strides = [1, 1]} : vector<8x192xf32> to vector<8x64xf32>
    %944 = vector.extract_strided_slice %935 {offsets = [0, 192], sizes = [8, 64], strides = [1, 1]} : vector<8x256xf32> to vector<8x64xf32>
    %945 = arith.mulf %943, %944 : vector<8x64xf32>
    %946 = arith.addf %942, %945 : vector<8x64xf32>
    %947 = vector.extract_strided_slice %940 {offsets = [0, 128], sizes = [8, 64], strides = [1, 1]} : vector<8x192xf32> to vector<8x64xf32>
    %948 = math.tanh %946 : vector<8x64xf32>
    %949 = arith.mulf %947, %948 : vector<8x64xf32>
    %950 = vector.extract_strided_slice %949 {offsets = [0, 0], sizes = [8, 32], strides = [1, 1]} : vector<8x64xf32> to vector<8x32xf32>
    %c16_493 = arith.constant 16 : index
    %c0_494 = arith.constant 0 : index
    %951 = vector.load %arg9[%c16_493, %c0_494] : memref<64x128xf32, #tpu.memory_space<vmem>>, vector<8x32xf32>
    tpu.vector_store %arg9[%c16_493, %c0_494], %950 {strides = array<i32>} : memref<64x128xf32, #tpu.memory_space<vmem>>, vector<8x32xf32>,
    %952 = vector.extract_strided_slice %949 {offsets = [0, 32], sizes = [8, 32], strides = [1, 1]} : vector<8x64xf32> to vector<8x32xf32>
    %c40_495 = arith.constant 40 : index
    %c32_496 = arith.constant 32 : index
    %953 = vector.load %arg9[%c40_495, %c32_496] : memref<64x128xf32, #tpu.memory_space<vmem>>, vector<8x32xf32>
    tpu.vector_store %arg9[%c40_495, %c32_496], %952 {strides = array<i32>} : memref<64x128xf32, #tpu.memory_space<vmem>>, vector<8x32xf32>,
    %c24_497 = arith.constant 24 : index
    %c0_498 = arith.constant 0 : index
    %954 = vector.load %arg10[%c24_497, %c0_498] : memref<64x256xf32, #tpu.memory_space<vmem>>, vector<8x256xf32>
    %cst_499 = arith.constant dense<0.000000e+00> : vector<8x256xf32>
    %955 = tpu.matmul %949, %880, %cst_499 {dimension_numbers = #tpu.dot_dimension_numbers<[1], [0], [0], [1], [0, 0, 1, 1], [], []>} : vector<8x64xf32>, vector<64x256xf32>, vector<8x256xf32> -> vector<8x256xf32>
    %956 = arith.addf %954, %955 : vector<8x256xf32>
    %957 = math.tanh %956 : vector<8x256xf32>
    %958 = vector.extract_strided_slice %957 {offsets = [0, 0], sizes = [8, 192], strides = [1, 1]} : vector<8x256xf32> to vector<8x192xf32>
    %cst_500 = arith.constant 5.000000e-01 : f32
    %959 = vector.broadcast %cst_500 : f32 to vector<8x192xf32>
    %960 = arith.mulf %959, %958 : vector<8x192xf32>
    %cst_501 = arith.constant 5.000000e-01 : f32
    %961 = vector.broadcast %cst_501 : f32 to vector<8x192xf32>
    %962 = arith.addf %960, %961 : vector<8x192xf32>
    %963 = vector.extract_strided_slice %962 {offsets = [0, 64], sizes = [8, 64], strides = [1, 1]} : vector<8x192xf32> to vector<8x64xf32>
    %964 = arith.mulf %963, %946 : vector<8x64xf32>
    %965 = vector.extract_strided_slice %962 {offsets = [0, 0], sizes = [8, 64], strides = [1, 1]} : vector<8x192xf32> to vector<8x64xf32>
    %966 = vector.extract_strided_slice %957 {offsets = [0, 192], sizes = [8, 64], strides = [1, 1]} : vector<8x256xf32> to vector<8x64xf32>
    %967 = arith.mulf %965, %966 : vector<8x64xf32>
    %968 = arith.addf %964, %967 : vector<8x64xf32>
    %969 = vector.extract_strided_slice %962 {offsets = [0, 128], sizes = [8, 64], strides = [1, 1]} : vector<8x192xf32> to vector<8x64xf32>
    %970 = math.tanh %968 : vector<8x64xf32>
    %971 = arith.mulf %969, %970 : vector<8x64xf32>
    %972 = vector.extract_strided_slice %971 {offsets = [0, 0], sizes = [8, 32], strides = [1, 1]} : vector<8x64xf32> to vector<8x32xf32>
    %c24_502 = arith.constant 24 : index
    %c0_503 = arith.constant 0 : index
    %973 = vector.load %arg9[%c24_502, %c0_503] : memref<64x128xf32, #tpu.memory_space<vmem>>, vector<8x32xf32>
    tpu.vector_store %arg9[%c24_502, %c0_503], %972 {strides = array<i32>} : memref<64x128xf32, #tpu.memory_space<vmem>>, vector<8x32xf32>,
    %974 = vector.extract_strided_slice %971 {offsets = [0, 32], sizes = [8, 32], strides = [1, 1]} : vector<8x64xf32> to vector<8x32xf32>
    %c32_504 = arith.constant 32 : index
    %c32_505 = arith.constant 32 : index
    %975 = vector.load %arg9[%c32_504, %c32_505] : memref<64x128xf32, #tpu.memory_space<vmem>>, vector<8x32xf32>
    tpu.vector_store %arg9[%c32_504, %c32_505], %974 {strides = array<i32>} : memref<64x128xf32, #tpu.memory_space<vmem>>, vector<8x32xf32>,
    %c32_506 = arith.constant 32 : index
    %c0_507 = arith.constant 0 : index
    %976 = vector.load %arg10[%c32_506, %c0_507] : memref<64x256xf32, #tpu.memory_space<vmem>>, vector<8x256xf32>
    %cst_508 = arith.constant dense<0.000000e+00> : vector<8x256xf32>
    %977 = tpu.matmul %971, %880, %cst_508 {dimension_numbers = #tpu.dot_dimension_numbers<[1], [0], [0], [1], [0, 0, 1, 1], [], []>} : vector<8x64xf32>, vector<64x256xf32>, vector<8x256xf32> -> vector<8x256xf32>
    %978 = arith.addf %976, %977 : vector<8x256xf32>
    %979 = math.tanh %978 : vector<8x256xf32>
    %980 = vector.extract_strided_slice %979 {offsets = [0, 0], sizes = [8, 192], strides = [1, 1]} : vector<8x256xf32> to vector<8x192xf32>
    %cst_509 = arith.constant 5.000000e-01 : f32
    %981 = vector.broadcast %cst_509 : f32 to vector<8x192xf32>
    %982 = arith.mulf %981, %980 : vector<8x192xf32>
    %cst_510 = arith.constant 5.000000e-01 : f32
    %983 = vector.broadcast %cst_510 : f32 to vector<8x192xf32>
    %984 = arith.addf %982, %983 : vector<8x192xf32>
    %985 = vector.extract_strided_slice %984 {offsets = [0, 64], sizes = [8, 64], strides = [1, 1]} : vector<8x192xf32> to vector<8x64xf32>
    %986 = arith.mulf %985, %968 : vector<8x64xf32>
    %987 = vector.extract_strided_slice %984 {offsets = [0, 0], sizes = [8, 64], strides = [1, 1]} : vector<8x192xf32> to vector<8x64xf32>
    %988 = vector.extract_strided_slice %979 {offsets = [0, 192], sizes = [8, 64], strides = [1, 1]} : vector<8x256xf32> to vector<8x64xf32>
    %989 = arith.mulf %987, %988 : vector<8x64xf32>
    %990 = arith.addf %986, %989 : vector<8x64xf32>
    %991 = vector.extract_strided_slice %984 {offsets = [0, 128], sizes = [8, 64], strides = [1, 1]} : vector<8x192xf32> to vector<8x64xf32>
    %992 = math.tanh %990 : vector<8x64xf32>
    %993 = arith.mulf %991, %992 : vector<8x64xf32>
    %994 = vector.extract_strided_slice %993 {offsets = [0, 0], sizes = [8, 32], strides = [1, 1]} : vector<8x64xf32> to vector<8x32xf32>
    %c32_511 = arith.constant 32 : index
    %c0_512 = arith.constant 0 : index
    %995 = vector.load %arg9[%c32_511, %c0_512] : memref<64x128xf32, #tpu.memory_space<vmem>>, vector<8x32xf32>
    tpu.vector_store %arg9[%c32_511, %c0_512], %994 {strides = array<i32>} : memref<64x128xf32, #tpu.memory_space<vmem>>, vector<8x32xf32>,
    %996 = vector.extract_strided_slice %993 {offsets = [0, 32], sizes = [8, 32], strides = [1, 1]} : vector<8x64xf32> to vector<8x32xf32>
    %c24_513 = arith.constant 24 : index
    %c32_514 = arith.constant 32 : index
    %997 = vector.load %arg9[%c24_513, %c32_514] : memref<64x128xf32, #tpu.memory_space<vmem>>, vector<8x32xf32>
    tpu.vector_store %arg9[%c24_513, %c32_514], %996 {strides = array<i32>} : memref<64x128xf32, #tpu.memory_space<vmem>>, vector<8x32xf32>,
    %c40_515 = arith.constant 40 : index
    %c0_516 = arith.constant 0 : index
    %998 = vector.load %arg10[%c40_515, %c0_516] : memref<64x256xf32, #tpu.memory_space<vmem>>, vector<8x256xf32>
    %cst_517 = arith.constant dense<0.000000e+00> : vector<8x256xf32>
    %999 = tpu.matmul %993, %880, %cst_517 {dimension_numbers = #tpu.dot_dimension_numbers<[1], [0], [0], [1], [0, 0, 1, 1], [], []>} : vector<8x64xf32>, vector<64x256xf32>, vector<8x256xf32> -> vector<8x256xf32>
    %1000 = arith.addf %998, %999 : vector<8x256xf32>
    %1001 = math.tanh %1000 : vector<8x256xf32>
    %1002 = vector.extract_strided_slice %1001 {offsets = [0, 0], sizes = [8, 192], strides = [1, 1]} : vector<8x256xf32> to vector<8x192xf32>
    %cst_518 = arith.constant 5.000000e-01 : f32
    %1003 = vector.broadcast %cst_518 : f32 to vector<8x192xf32>
    %1004 = arith.mulf %1003, %1002 : vector<8x192xf32>
    %cst_519 = arith.constant 5.000000e-01 : f32
    %1005 = vector.broadcast %cst_519 : f32 to vector<8x192xf32>
    %1006 = arith.addf %1004, %1005 : vector<8x192xf32>
    %1007 = vector.extract_strided_slice %1006 {offsets = [0, 64], sizes = [8, 64], strides = [1, 1]} : vector<8x192xf32> to vector<8x64xf32>
    %1008 = arith.mulf %1007, %990 : vector<8x64xf32>
    %1009 = vector.extract_strided_slice %1006 {offsets = [0, 0], sizes = [8, 64], strides = [1, 1]} : vector<8x192xf32> to vector<8x64xf32>
    %1010 = vector.extract_strided_slice %1001 {offsets = [0, 192], sizes = [8, 64], strides = [1, 1]} : vector<8x256xf32> to vector<8x64xf32>
    %1011 = arith.mulf %1009, %1010 : vector<8x64xf32>
    %1012 = arith.addf %1008, %1011 : vector<8x64xf32>
    %1013 = vector.extract_strided_slice %1006 {offsets = [0, 128], sizes = [8, 64], strides = [1, 1]} : vector<8x192xf32> to vector<8x64xf32>
    %1014 = math.tanh %1012 : vector<8x64xf32>
    %1015 = arith.mulf %1013, %1014 : vector<8x64xf32>
    %1016 = vector.extract_strided_slice %1015 {offsets = [0, 0], sizes = [8, 32], strides = [1, 1]} : vector<8x64xf32> to vector<8x32xf32>
    %c40_520 = arith.constant 40 : index
    %c0_521 = arith.constant 0 : index
    %1017 = vector.load %arg9[%c40_520, %c0_521] : memref<64x128xf32, #tpu.memory_space<vmem>>, vector<8x32xf32>
    tpu.vector_store %arg9[%c40_520, %c0_521], %1016 {strides = array<i32>} : memref<64x128xf32, #tpu.memory_space<vmem>>, vector<8x32xf32>,
    %1018 = vector.extract_strided_slice %1015 {offsets = [0, 32], sizes = [8, 32], strides = [1, 1]} : vector<8x64xf32> to vector<8x32xf32>
    %c16_522 = arith.constant 16 : index
    %c32_523 = arith.constant 32 : index
    %1019 = vector.load %arg9[%c16_522, %c32_523] : memref<64x128xf32, #tpu.memory_space<vmem>>, vector<8x32xf32>
    tpu.vector_store %arg9[%c16_522, %c32_523], %1018 {strides = array<i32>} : memref<64x128xf32, #tpu.memory_space<vmem>>, vector<8x32xf32>,
    %c48_524 = arith.constant 48 : index
    %c0_525 = arith.constant 0 : index
    %1020 = vector.load %arg10[%c48_524, %c0_525] : memref<64x256xf32, #tpu.memory_space<vmem>>, vector<8x256xf32>
    %cst_526 = arith.constant dense<0.000000e+00> : vector<8x256xf32>
    %1021 = tpu.matmul %1015, %880, %cst_526 {dimension_numbers = #tpu.dot_dimension_numbers<[1], [0], [0], [1], [0, 0, 1, 1], [], []>} : vector<8x64xf32>, vector<64x256xf32>, vector<8x256xf32> -> vector<8x256xf32>
    %1022 = arith.addf %1020, %1021 : vector<8x256xf32>
    %1023 = math.tanh %1022 : vector<8x256xf32>
    %1024 = vector.extract_strided_slice %1023 {offsets = [0, 0], sizes = [8, 192], strides = [1, 1]} : vector<8x256xf32> to vector<8x192xf32>
    %cst_527 = arith.constant 5.000000e-01 : f32
    %1025 = vector.broadcast %cst_527 : f32 to vector<8x192xf32>
    %1026 = arith.mulf %1025, %1024 : vector<8x192xf32>
    %cst_528 = arith.constant 5.000000e-01 : f32
    %1027 = vector.broadcast %cst_528 : f32 to vector<8x192xf32>
    %1028 = arith.addf %1026, %1027 : vector<8x192xf32>
    %1029 = vector.extract_strided_slice %1028 {offsets = [0, 64], sizes = [8, 64], strides = [1, 1]} : vector<8x192xf32> to vector<8x64xf32>
    %1030 = arith.mulf %1029, %1012 : vector<8x64xf32>
    %1031 = vector.extract_strided_slice %1028 {offsets = [0, 0], sizes = [8, 64], strides = [1, 1]} : vector<8x192xf32> to vector<8x64xf32>
    %1032 = vector.extract_strided_slice %1023 {offsets = [0, 192], sizes = [8, 64], strides = [1, 1]} : vector<8x256xf32> to vector<8x64xf32>
    %1033 = arith.mulf %1031, %1032 : vector<8x64xf32>
    %1034 = arith.addf %1030, %1033 : vector<8x64xf32>
    %1035 = vector.extract_strided_slice %1028 {offsets = [0, 128], sizes = [8, 64], strides = [1, 1]} : vector<8x192xf32> to vector<8x64xf32>
    %1036 = math.tanh %1034 : vector<8x64xf32>
    %1037 = arith.mulf %1035, %1036 : vector<8x64xf32>
    %1038 = vector.extract_strided_slice %1037 {offsets = [0, 0], sizes = [8, 32], strides = [1, 1]} : vector<8x64xf32> to vector<8x32xf32>
    %c48_529 = arith.constant 48 : index
    %c0_530 = arith.constant 0 : index
    %1039 = vector.load %arg9[%c48_529, %c0_530] : memref<64x128xf32, #tpu.memory_space<vmem>>, vector<8x32xf32>
    tpu.vector_store %arg9[%c48_529, %c0_530], %1038 {strides = array<i32>} : memref<64x128xf32, #tpu.memory_space<vmem>>, vector<8x32xf32>,
    %1040 = vector.extract_strided_slice %1037 {offsets = [0, 32], sizes = [8, 32], strides = [1, 1]} : vector<8x64xf32> to vector<8x32xf32>
    %c8_531 = arith.constant 8 : index
    %c32_532 = arith.constant 32 : index
    %1041 = vector.load %arg9[%c8_531, %c32_532] : memref<64x128xf32, #tpu.memory_space<vmem>>, vector<8x32xf32>
    tpu.vector_store %arg9[%c8_531, %c32_532], %1040 {strides = array<i32>} : memref<64x128xf32, #tpu.memory_space<vmem>>, vector<8x32xf32>,
    %c56_533 = arith.constant 56 : index
    %c0_534 = arith.constant 0 : index
    %1042 = vector.load %arg10[%c56_533, %c0_534] : memref<64x256xf32, #tpu.memory_space<vmem>>, vector<8x256xf32>
    %cst_535 = arith.constant dense<0.000000e+00> : vector<8x256xf32>
    %1043 = tpu.matmul %1037, %880, %cst_535 {dimension_numbers = #tpu.dot_dimension_numbers<[1], [0], [0], [1], [0, 0, 1, 1], [], []>} : vector<8x64xf32>, vector<64x256xf32>, vector<8x256xf32> -> vector<8x256xf32>
    %1044 = arith.addf %1042, %1043 : vector<8x256xf32>
    %1045 = math.tanh %1044 : vector<8x256xf32>
    %1046 = vector.extract_strided_slice %1045 {offsets = [0, 0], sizes = [8, 192], strides = [1, 1]} : vector<8x256xf32> to vector<8x192xf32>
    %cst_536 = arith.constant 5.000000e-01 : f32
    %1047 = vector.broadcast %cst_536 : f32 to vector<8x192xf32>
    %1048 = arith.mulf %1047, %1046 : vector<8x192xf32>
    %cst_537 = arith.constant 5.000000e-01 : f32
    %1049 = vector.broadcast %cst_537 : f32 to vector<8x192xf32>
    %1050 = arith.addf %1048, %1049 : vector<8x192xf32>
    %1051 = vector.extract_strided_slice %1050 {offsets = [0, 64], sizes = [8, 64], strides = [1, 1]} : vector<8x192xf32> to vector<8x64xf32>
    %1052 = arith.mulf %1051, %1034 : vector<8x64xf32>
    %1053 = vector.extract_strided_slice %1050 {offsets = [0, 0], sizes = [8, 64], strides = [1, 1]} : vector<8x192xf32> to vector<8x64xf32>
    %1054 = vector.extract_strided_slice %1045 {offsets = [0, 192], sizes = [8, 64], strides = [1, 1]} : vector<8x256xf32> to vector<8x64xf32>
    %1055 = arith.mulf %1053, %1054 : vector<8x64xf32>
    %1056 = arith.addf %1052, %1055 : vector<8x64xf32>
    %1057 = vector.extract_strided_slice %1050 {offsets = [0, 128], sizes = [8, 64], strides = [1, 1]} : vector<8x192xf32> to vector<8x64xf32>
    %1058 = math.tanh %1056 : vector<8x64xf32>
    %1059 = arith.mulf %1057, %1058 : vector<8x64xf32>
    %1060 = vector.extract_strided_slice %1059 {offsets = [0, 0], sizes = [8, 32], strides = [1, 1]} : vector<8x64xf32> to vector<8x32xf32>
    %c56_538 = arith.constant 56 : index
    %c0_539 = arith.constant 0 : index
    %1061 = vector.load %arg9[%c56_538, %c0_539] : memref<64x128xf32, #tpu.memory_space<vmem>>, vector<8x32xf32>
    tpu.vector_store %arg9[%c56_538, %c0_539], %1060 {strides = array<i32>} : memref<64x128xf32, #tpu.memory_space<vmem>>, vector<8x32xf32>,
    %1062 = vector.extract_strided_slice %1059 {offsets = [0, 32], sizes = [8, 32], strides = [1, 1]} : vector<8x64xf32> to vector<8x32xf32>
    %c0_540 = arith.constant 0 : index
    %c32_541 = arith.constant 32 : index
    %1063 = vector.load %arg9[%c0_540, %c32_541] : memref<64x128xf32, #tpu.memory_space<vmem>>, vector<8x32xf32>
    tpu.vector_store %arg9[%c0_540, %c32_541], %1062 {strides = array<i32>} : memref<64x128xf32, #tpu.memory_space<vmem>>, vector<8x32xf32>,
    %c0_542 = arith.constant 0 : index
    %c0_543 = arith.constant 0 : index
    %1064 = vector.load %arg3[%c0_542, %c0_543] : memref<168x128xf32, #tpu.memory_space<vmem>>, vector<128x128xf32>
    %c128_544 = arith.constant 128 : index
    %c0_545 = arith.constant 0 : index
    %1065 = vector.load %arg3[%c128_544, %c0_545] : memref<168x128xf32, #tpu.memory_space<vmem>>, vector<32x128xf32>
    %c160 = arith.constant 160 : index
    %c0_546 = arith.constant 0 : index
    %1066 = vector.load %arg3[%c160, %c0_546] : memref<168x128xf32, #tpu.memory_space<vmem>>, vector<1x128xf32>
    %c0_547 = arith.constant 0 : index
    %c0_548 = arith.constant 0 : index
    %1067 = vector.load %arg9[%c0_547, %c0_548] : memref<64x128xf32, #tpu.memory_space<vmem>>, vector<64x128xf32>
    %cst_549 = arith.constant dense<0.000000e+00> : vector<64x128xf32>
    %1068 = tpu.matmul %1067, %1064, %cst_549 {dimension_numbers = #tpu.dot_dimension_numbers<[1], [0], [0], [1], [0, 0, 1, 1], [], []>} : vector<64x128xf32>, vector<128x128xf32>, vector<64x128xf32> -> vector<64x128xf32>
    %1069 = vector.broadcast %1066 : vector<1x128xf32> to vector<64x128xf32>
    %1070 = arith.addf %1068, %1069 : vector<64x128xf32>
    %cst_550 = arith.constant 0.000000e+00 : f32
    %1071 = vector.broadcast %cst_550 : f32 to vector<8x32xf32>
    %1072 = vector.extract_strided_slice %1070 {offsets = [0, 0], sizes = [8, 128], strides = [1, 1]} : vector<64x128xf32> to vector<8x128xf32>
    %cst_551 = arith.constant dense<0.000000e+00> : vector<8x128xf32>
    %1073 = tpu.matmul %1071, %1065, %cst_551 {dimension_numbers = #tpu.dot_dimension_numbers<[1], [0], [0], [1], [0, 0, 1, 1], [], []>} : vector<8x32xf32>, vector<32x128xf32>, vector<8x128xf32> -> vector<8x128xf32>
    %1074 = arith.addf %1072, %1073 : vector<8x128xf32>
    %1075 = math.tanh %1074 : vector<8x128xf32>
    %1076 = vector.extract_strided_slice %1075 {offsets = [0, 0], sizes = [8, 96], strides = [1, 1]} : vector<8x128xf32> to vector<8x96xf32>
    %cst_552 = arith.constant 5.000000e-01 : f32
    %1077 = vector.broadcast %cst_552 : f32 to vector<8x96xf32>
    %1078 = arith.mulf %1077, %1076 : vector<8x96xf32>
    %cst_553 = arith.constant 5.000000e-01 : f32
    %1079 = vector.broadcast %cst_553 : f32 to vector<8x96xf32>
    %1080 = arith.addf %1078, %1079 : vector<8x96xf32>
    %1081 = vector.extract_strided_slice %1080 {offsets = [0, 32], sizes = [8, 32], strides = [1, 1]} : vector<8x96xf32> to vector<8x32xf32>
    %1082 = arith.mulf %1081, %1071 : vector<8x32xf32>
    %1083 = vector.extract_strided_slice %1080 {offsets = [0, 0], sizes = [8, 32], strides = [1, 1]} : vector<8x96xf32> to vector<8x32xf32>
    %1084 = vector.extract_strided_slice %1075 {offsets = [0, 96], sizes = [8, 32], strides = [1, 1]} : vector<8x128xf32> to vector<8x32xf32>
    %1085 = arith.mulf %1083, %1084 : vector<8x32xf32>
    %1086 = arith.addf %1082, %1085 : vector<8x32xf32>
    %1087 = vector.extract_strided_slice %1080 {offsets = [0, 64], sizes = [8, 32], strides = [1, 1]} : vector<8x96xf32> to vector<8x32xf32>
    %1088 = math.tanh %1086 : vector<8x32xf32>
    %1089 = arith.mulf %1087, %1088 : vector<8x32xf32>
    %1090 = vector.extract_strided_slice %1070 {offsets = [8, 0], sizes = [8, 128], strides = [1, 1]} : vector<64x128xf32> to vector<8x128xf32>
    %cst_554 = arith.constant dense<0.000000e+00> : vector<8x128xf32>
    %1091 = tpu.matmul %1089, %1065, %cst_554 {dimension_numbers = #tpu.dot_dimension_numbers<[1], [0], [0], [1], [0, 0, 1, 1], [], []>} : vector<8x32xf32>, vector<32x128xf32>, vector<8x128xf32> -> vector<8x128xf32>
    %1092 = arith.addf %1090, %1091 : vector<8x128xf32>
    %1093 = math.tanh %1092 : vector<8x128xf32>
    %1094 = vector.extract_strided_slice %1093 {offsets = [0, 0], sizes = [8, 96], strides = [1, 1]} : vector<8x128xf32> to vector<8x96xf32>
    %cst_555 = arith.constant 5.000000e-01 : f32
    %1095 = vector.broadcast %cst_555 : f32 to vector<8x96xf32>
    %1096 = arith.mulf %1095, %1094 : vector<8x96xf32>
    %cst_556 = arith.constant 5.000000e-01 : f32
    %1097 = vector.broadcast %cst_556 : f32 to vector<8x96xf32>
    %1098 = arith.addf %1096, %1097 : vector<8x96xf32>
    %1099 = vector.extract_strided_slice %1098 {offsets = [0, 32], sizes = [8, 32], strides = [1, 1]} : vector<8x96xf32> to vector<8x32xf32>
    %1100 = arith.mulf %1099, %1086 : vector<8x32xf32>
    %1101 = vector.extract_strided_slice %1098 {offsets = [0, 0], sizes = [8, 32], strides = [1, 1]} : vector<8x96xf32> to vector<8x32xf32>
    %1102 = vector.extract_strided_slice %1093 {offsets = [0, 96], sizes = [8, 32], strides = [1, 1]} : vector<8x128xf32> to vector<8x32xf32>
    %1103 = arith.mulf %1101, %1102 : vector<8x32xf32>
    %1104 = arith.addf %1100, %1103 : vector<8x32xf32>
    %1105 = vector.extract_strided_slice %1098 {offsets = [0, 64], sizes = [8, 32], strides = [1, 1]} : vector<8x96xf32> to vector<8x32xf32>
    %1106 = math.tanh %1104 : vector<8x32xf32>
    %1107 = arith.mulf %1105, %1106 : vector<8x32xf32>
    %1108 = vector.extract_strided_slice %1070 {offsets = [16, 0], sizes = [8, 128], strides = [1, 1]} : vector<64x128xf32> to vector<8x128xf32>
    %cst_557 = arith.constant dense<0.000000e+00> : vector<8x128xf32>
    %1109 = tpu.matmul %1107, %1065, %cst_557 {dimension_numbers = #tpu.dot_dimension_numbers<[1], [0], [0], [1], [0, 0, 1, 1], [], []>} : vector<8x32xf32>, vector<32x128xf32>, vector<8x128xf32> -> vector<8x128xf32>
    %1110 = arith.addf %1108, %1109 : vector<8x128xf32>
    %1111 = math.tanh %1110 : vector<8x128xf32>
    %1112 = vector.extract_strided_slice %1111 {offsets = [0, 0], sizes = [8, 96], strides = [1, 1]} : vector<8x128xf32> to vector<8x96xf32>
    %cst_558 = arith.constant 5.000000e-01 : f32
    %1113 = vector.broadcast %cst_558 : f32 to vector<8x96xf32>
    %1114 = arith.mulf %1113, %1112 : vector<8x96xf32>
    %cst_559 = arith.constant 5.000000e-01 : f32
    %1115 = vector.broadcast %cst_559 : f32 to vector<8x96xf32>
    %1116 = arith.addf %1114, %1115 : vector<8x96xf32>
    %1117 = vector.extract_strided_slice %1116 {offsets = [0, 32], sizes = [8, 32], strides = [1, 1]} : vector<8x96xf32> to vector<8x32xf32>
    %1118 = arith.mulf %1117, %1104 : vector<8x32xf32>
    %1119 = vector.extract_strided_slice %1116 {offsets = [0, 0], sizes = [8, 32], strides = [1, 1]} : vector<8x96xf32> to vector<8x32xf32>
    %1120 = vector.extract_strided_slice %1111 {offsets = [0, 96], sizes = [8, 32], strides = [1, 1]} : vector<8x128xf32> to vector<8x32xf32>
    %1121 = arith.mulf %1119, %1120 : vector<8x32xf32>
    %1122 = arith.addf %1118, %1121 : vector<8x32xf32>
    %1123 = vector.extract_strided_slice %1116 {offsets = [0, 64], sizes = [8, 32], strides = [1, 1]} : vector<8x96xf32> to vector<8x32xf32>
    %1124 = math.tanh %1122 : vector<8x32xf32>
    %1125 = arith.mulf %1123, %1124 : vector<8x32xf32>
    %1126 = vector.extract_strided_slice %1070 {offsets = [24, 0], sizes = [8, 128], strides = [1, 1]} : vector<64x128xf32> to vector<8x128xf32>
    %cst_560 = arith.constant dense<0.000000e+00> : vector<8x128xf32>
    %1127 = tpu.matmul %1125, %1065, %cst_560 {dimension_numbers = #tpu.dot_dimension_numbers<[1], [0], [0], [1], [0, 0, 1, 1], [], []>} : vector<8x32xf32>, vector<32x128xf32>, vector<8x128xf32> -> vector<8x128xf32>
    %1128 = arith.addf %1126, %1127 : vector<8x128xf32>
    %1129 = math.tanh %1128 : vector<8x128xf32>
    %1130 = vector.extract_strided_slice %1129 {offsets = [0, 0], sizes = [8, 96], strides = [1, 1]} : vector<8x128xf32> to vector<8x96xf32>
    %cst_561 = arith.constant 5.000000e-01 : f32
    %1131 = vector.broadcast %cst_561 : f32 to vector<8x96xf32>
    %1132 = arith.mulf %1131, %1130 : vector<8x96xf32>
    %cst_562 = arith.constant 5.000000e-01 : f32
    %1133 = vector.broadcast %cst_562 : f32 to vector<8x96xf32>
    %1134 = arith.addf %1132, %1133 : vector<8x96xf32>
    %1135 = vector.extract_strided_slice %1134 {offsets = [0, 32], sizes = [8, 32], strides = [1, 1]} : vector<8x96xf32> to vector<8x32xf32>
    %1136 = arith.mulf %1135, %1122 : vector<8x32xf32>
    %1137 = vector.extract_strided_slice %1134 {offsets = [0, 0], sizes = [8, 32], strides = [1, 1]} : vector<8x96xf32> to vector<8x32xf32>
    %1138 = vector.extract_strided_slice %1129 {offsets = [0, 96], sizes = [8, 32], strides = [1, 1]} : vector<8x128xf32> to vector<8x32xf32>
    %1139 = arith.mulf %1137, %1138 : vector<8x32xf32>
    %1140 = arith.addf %1136, %1139 : vector<8x32xf32>
    %1141 = vector.extract_strided_slice %1134 {offsets = [0, 64], sizes = [8, 32], strides = [1, 1]} : vector<8x96xf32> to vector<8x32xf32>
    %1142 = math.tanh %1140 : vector<8x32xf32>
    %1143 = arith.mulf %1141, %1142 : vector<8x32xf32>
    %1144 = vector.extract_strided_slice %1070 {offsets = [32, 0], sizes = [8, 128], strides = [1, 1]} : vector<64x128xf32> to vector<8x128xf32>
    %cst_563 = arith.constant dense<0.000000e+00> : vector<8x128xf32>
    %1145 = tpu.matmul %1143, %1065, %cst_563 {dimension_numbers = #tpu.dot_dimension_numbers<[1], [0], [0], [1], [0, 0, 1, 1], [], []>} : vector<8x32xf32>, vector<32x128xf32>, vector<8x128xf32> -> vector<8x128xf32>
    %1146 = arith.addf %1144, %1145 : vector<8x128xf32>
    %1147 = math.tanh %1146 : vector<8x128xf32>
    %1148 = vector.extract_strided_slice %1147 {offsets = [0, 0], sizes = [8, 96], strides = [1, 1]} : vector<8x128xf32> to vector<8x96xf32>
    %cst_564 = arith.constant 5.000000e-01 : f32
    %1149 = vector.broadcast %cst_564 : f32 to vector<8x96xf32>
    %1150 = arith.mulf %1149, %1148 : vector<8x96xf32>
    %cst_565 = arith.constant 5.000000e-01 : f32
    %1151 = vector.broadcast %cst_565 : f32 to vector<8x96xf32>
    %1152 = arith.addf %1150, %1151 : vector<8x96xf32>
    %1153 = vector.extract_strided_slice %1152 {offsets = [0, 32], sizes = [8, 32], strides = [1, 1]} : vector<8x96xf32> to vector<8x32xf32>
    %1154 = arith.mulf %1153, %1140 : vector<8x32xf32>
    %1155 = vector.extract_strided_slice %1152 {offsets = [0, 0], sizes = [8, 32], strides = [1, 1]} : vector<8x96xf32> to vector<8x32xf32>
    %1156 = vector.extract_strided_slice %1147 {offsets = [0, 96], sizes = [8, 32], strides = [1, 1]} : vector<8x128xf32> to vector<8x32xf32>
    %1157 = arith.mulf %1155, %1156 : vector<8x32xf32>
    %1158 = arith.addf %1154, %1157 : vector<8x32xf32>
    %1159 = vector.extract_strided_slice %1152 {offsets = [0, 64], sizes = [8, 32], strides = [1, 1]} : vector<8x96xf32> to vector<8x32xf32>
    %1160 = math.tanh %1158 : vector<8x32xf32>
    %1161 = arith.mulf %1159, %1160 : vector<8x32xf32>
    %1162 = vector.extract_strided_slice %1070 {offsets = [40, 0], sizes = [8, 128], strides = [1, 1]} : vector<64x128xf32> to vector<8x128xf32>
    %cst_566 = arith.constant dense<0.000000e+00> : vector<8x128xf32>
    %1163 = tpu.matmul %1161, %1065, %cst_566 {dimension_numbers = #tpu.dot_dimension_numbers<[1], [0], [0], [1], [0, 0, 1, 1], [], []>} : vector<8x32xf32>, vector<32x128xf32>, vector<8x128xf32> -> vector<8x128xf32>
    %1164 = arith.addf %1162, %1163 : vector<8x128xf32>
    %1165 = math.tanh %1164 : vector<8x128xf32>
    %1166 = vector.extract_strided_slice %1165 {offsets = [0, 0], sizes = [8, 96], strides = [1, 1]} : vector<8x128xf32> to vector<8x96xf32>
    %cst_567 = arith.constant 5.000000e-01 : f32
    %1167 = vector.broadcast %cst_567 : f32 to vector<8x96xf32>
    %1168 = arith.mulf %1167, %1166 : vector<8x96xf32>
    %cst_568 = arith.constant 5.000000e-01 : f32
    %1169 = vector.broadcast %cst_568 : f32 to vector<8x96xf32>
    %1170 = arith.addf %1168, %1169 : vector<8x96xf32>
    %1171 = vector.extract_strided_slice %1170 {offsets = [0, 32], sizes = [8, 32], strides = [1, 1]} : vector<8x96xf32> to vector<8x32xf32>
    %1172 = arith.mulf %1171, %1158 : vector<8x32xf32>
    %1173 = vector.extract_strided_slice %1170 {offsets = [0, 0], sizes = [8, 32], strides = [1, 1]} : vector<8x96xf32> to vector<8x32xf32>
    %1174 = vector.extract_strided_slice %1165 {offsets = [0, 96], sizes = [8, 32], strides = [1, 1]} : vector<8x128xf32> to vector<8x32xf32>
    %1175 = arith.mulf %1173, %1174 : vector<8x32xf32>
    %1176 = arith.addf %1172, %1175 : vector<8x32xf32>
    %1177 = vector.extract_strided_slice %1170 {offsets = [0, 64], sizes = [8, 32], strides = [1, 1]} : vector<8x96xf32> to vector<8x32xf32>
    %1178 = math.tanh %1176 : vector<8x32xf32>
    %1179 = arith.mulf %1177, %1178 : vector<8x32xf32>
    %1180 = vector.extract_strided_slice %1070 {offsets = [48, 0], sizes = [8, 128], strides = [1, 1]} : vector<64x128xf32> to vector<8x128xf32>
    %cst_569 = arith.constant dense<0.000000e+00> : vector<8x128xf32>
    %1181 = tpu.matmul %1179, %1065, %cst_569 {dimension_numbers = #tpu.dot_dimension_numbers<[1], [0], [0], [1], [0, 0, 1, 1], [], []>} : vector<8x32xf32>, vector<32x128xf32>, vector<8x128xf32> -> vector<8x128xf32>
    %1182 = arith.addf %1180, %1181 : vector<8x128xf32>
    %1183 = math.tanh %1182 : vector<8x128xf32>
    %1184 = vector.extract_strided_slice %1183 {offsets = [0, 0], sizes = [8, 96], strides = [1, 1]} : vector<8x128xf32> to vector<8x96xf32>
    %cst_570 = arith.constant 5.000000e-01 : f32
    %1185 = vector.broadcast %cst_570 : f32 to vector<8x96xf32>
    %1186 = arith.mulf %1185, %1184 : vector<8x96xf32>
    %cst_571 = arith.constant 5.000000e-01 : f32
    %1187 = vector.broadcast %cst_571 : f32 to vector<8x96xf32>
    %1188 = arith.addf %1186, %1187 : vector<8x96xf32>
    %1189 = vector.extract_strided_slice %1188 {offsets = [0, 32], sizes = [8, 32], strides = [1, 1]} : vector<8x96xf32> to vector<8x32xf32>
    %1190 = arith.mulf %1189, %1176 : vector<8x32xf32>
    %1191 = vector.extract_strided_slice %1188 {offsets = [0, 0], sizes = [8, 32], strides = [1, 1]} : vector<8x96xf32> to vector<8x32xf32>
    %1192 = vector.extract_strided_slice %1183 {offsets = [0, 96], sizes = [8, 32], strides = [1, 1]} : vector<8x128xf32> to vector<8x32xf32>
    %1193 = arith.mulf %1191, %1192 : vector<8x32xf32>
    %1194 = arith.addf %1190, %1193 : vector<8x32xf32>
    %1195 = vector.extract_strided_slice %1188 {offsets = [0, 64], sizes = [8, 32], strides = [1, 1]} : vector<8x96xf32> to vector<8x32xf32>
    %1196 = math.tanh %1194 : vector<8x32xf32>
    %1197 = arith.mulf %1195, %1196 : vector<8x32xf32>
    %1198 = vector.extract_strided_slice %1070 {offsets = [56, 0], sizes = [8, 128], strides = [1, 1]} : vector<64x128xf32> to vector<8x128xf32>
    %cst_572 = arith.constant dense<0.000000e+00> : vector<8x128xf32>
    %1199 = tpu.matmul %1197, %1065, %cst_572 {dimension_numbers = #tpu.dot_dimension_numbers<[1], [0], [0], [1], [0, 0, 1, 1], [], []>} : vector<8x32xf32>, vector<32x128xf32>, vector<8x128xf32> -> vector<8x128xf32>
    %1200 = arith.addf %1198, %1199 : vector<8x128xf32>
    %1201 = math.tanh %1200 : vector<8x128xf32>
    %1202 = vector.extract_strided_slice %1201 {offsets = [0, 0], sizes = [8, 96], strides = [1, 1]} : vector<8x128xf32> to vector<8x96xf32>
    %cst_573 = arith.constant 5.000000e-01 : f32
    %1203 = vector.broadcast %cst_573 : f32 to vector<8x96xf32>
    %1204 = arith.mulf %1203, %1202 : vector<8x96xf32>
    %cst_574 = arith.constant 5.000000e-01 : f32
    %1205 = vector.broadcast %cst_574 : f32 to vector<8x96xf32>
    %1206 = arith.addf %1204, %1205 : vector<8x96xf32>
    %1207 = vector.extract_strided_slice %1206 {offsets = [0, 32], sizes = [8, 32], strides = [1, 1]} : vector<8x96xf32> to vector<8x32xf32>
    %1208 = arith.mulf %1207, %1194 : vector<8x32xf32>
    %1209 = vector.extract_strided_slice %1206 {offsets = [0, 0], sizes = [8, 32], strides = [1, 1]} : vector<8x96xf32> to vector<8x32xf32>
    %1210 = vector.extract_strided_slice %1201 {offsets = [0, 96], sizes = [8, 32], strides = [1, 1]} : vector<8x128xf32> to vector<8x32xf32>
    %1211 = arith.mulf %1209, %1210 : vector<8x32xf32>
    %1212 = arith.addf %1208, %1211 : vector<8x32xf32>
    %1213 = vector.extract_strided_slice %1206 {offsets = [0, 64], sizes = [8, 32], strides = [1, 1]} : vector<8x96xf32> to vector<8x32xf32>
    %1214 = math.tanh %1212 : vector<8x32xf32>
    %1215 = arith.mulf %1213, %1214 : vector<8x32xf32>
    %c0_575 = arith.constant 0 : index
    %c0_576 = arith.constant 0 : index
    %1216 = vector.load %arg1[%c0_575, %c0_576] : memref<8x8xf32, #tpu.memory_space<vmem>>, vector<8x8xf32>
    %c0_577 = arith.constant 0 : index
    %c0_578 = arith.constant 0 : index
    %1217 = vector.load %arg4[%c0_577, %c0_578] : memref<320x128xf32, #tpu.memory_space<vmem>>, vector<8x128xf32>
    %cst_579 = arith.constant dense<0.000000e+00> : vector<8x128xf32>
    %1218 = tpu.matmul %1216, %1217, %cst_579 {dimension_numbers = #tpu.dot_dimension_numbers<[1], [0], [0], [1], [0, 0, 1, 1], [], []>} : vector<8x8xf32>, vector<8x128xf32>, vector<8x128xf32> -> vector<8x128xf32>
    %c8_580 = arith.constant 8 : index
    %c0_581 = arith.constant 0 : index
    %1219 = vector.load %arg4[%c8_580, %c0_581] : memref<320x128xf32, #tpu.memory_space<vmem>>, vector<32x128xf32>
    %cst_582 = arith.constant dense<0.000000e+00> : vector<8x128xf32>
    %1220 = tpu.matmul %1215, %1219, %cst_582 {dimension_numbers = #tpu.dot_dimension_numbers<[1], [0], [0], [1], [0, 0, 1, 1], [], []>} : vector<8x32xf32>, vector<32x128xf32>, vector<8x128xf32> -> vector<8x128xf32>
    %1221 = arith.addf %1218, %1220 : vector<8x128xf32>
    %c296 = arith.constant 296 : index
    %c0_583 = arith.constant 0 : index
    %1222 = vector.load %arg4[%c296, %c0_583] : memref<320x128xf32, #tpu.memory_space<vmem>>, vector<1x128xf32>
    %1223 = vector.broadcast %1222 : vector<1x128xf32> to vector<8x128xf32>
    %1224 = arith.addf %1221, %1223 : vector<8x128xf32>
    %cst_584 = arith.constant 0.000000e+00 : f32
    %1225 = vector.broadcast %cst_584 : f32 to vector<8x128xf32>
    %1226 = arith.maximumf %1224, %1225 : vector<8x128xf32>
    %c40_585 = arith.constant 40 : index
    %c0_586 = arith.constant 0 : index
    %1227 = vector.load %arg4[%c40_585, %c0_586] : memref<320x128xf32, #tpu.memory_space<vmem>>, vector<128x128xf32>
    %cst_587 = arith.constant dense<0.000000e+00> : vector<8x128xf32>
    %1228 = tpu.matmul %1226, %1227, %cst_587 {dimension_numbers = #tpu.dot_dimension_numbers<[1], [0], [0], [1], [0, 0, 1, 1], [], []>} : vector<8x128xf32>, vector<128x128xf32>, vector<8x128xf32> -> vector<8x128xf32>
    %c304 = arith.constant 304 : index
    %c0_588 = arith.constant 0 : index
    %1229 = vector.load %arg4[%c304, %c0_588] : memref<320x128xf32, #tpu.memory_space<vmem>>, vector<1x128xf32>
    %1230 = vector.broadcast %1229 : vector<1x128xf32> to vector<8x128xf32>
    %1231 = arith.addf %1228, %1230 : vector<8x128xf32>
    %cst_589 = arith.constant 0.000000e+00 : f32
    %1232 = vector.broadcast %cst_589 : f32 to vector<8x128xf32>
    %1233 = arith.maximumf %1231, %1232 : vector<8x128xf32>
    %c168 = arith.constant 168 : index
    %c0_590 = arith.constant 0 : index
    %1234 = vector.load %arg4[%c168, %c0_590] : memref<320x128xf32, #tpu.memory_space<vmem>>, vector<128x128xf32>
    %cst_591 = arith.constant dense<0.000000e+00> : vector<8x128xf32>
    %1235 = tpu.matmul %1233, %1234, %cst_591 {dimension_numbers = #tpu.dot_dimension_numbers<[1], [0], [0], [1], [0, 0, 1, 1], [], []>} : vector<8x128xf32>, vector<128x128xf32>, vector<8x128xf32> -> vector<8x128xf32>
    %c312 = arith.constant 312 : index
    %c0_592 = arith.constant 0 : index
    %1236 = vector.load %arg4[%c312, %c0_592] : memref<320x128xf32, #tpu.memory_space<vmem>>, vector<1x128xf32>
    %1237 = vector.broadcast %1236 : vector<1x128xf32> to vector<8x128xf32>
    %1238 = arith.addf %1235, %1237 : vector<8x128xf32>
    %cst_593 = arith.constant 0.000000e+00 : f32
    %1239 = vector.broadcast %cst_593 : f32 to vector<8x128xf32>
    %1240 = arith.maximumf %1238, %1239 : vector<8x128xf32>
    %c0_594 = arith.constant 0 : index
    %c0_595 = arith.constant 0 : index
    %1241 = vector.load %arg5[%c0_594, %c0_595] : memref<136x640xf32, #tpu.memory_space<vmem>>, vector<128x640xf32>
    %cst_596 = arith.constant dense<0.000000e+00> : vector<8x640xf32>
    %1242 = tpu.matmul %1240, %1241, %cst_596 {dimension_numbers = #tpu.dot_dimension_numbers<[1], [0], [0], [1], [0, 0, 1, 1], [], []>} : vector<8x128xf32>, vector<128x640xf32>, vector<8x640xf32> -> vector<8x640xf32>
    %c128_597 = arith.constant 128 : index
    %c0_598 = arith.constant 0 : index
    %1243 = vector.load %arg5[%c128_597, %c0_598] : memref<136x640xf32, #tpu.memory_space<vmem>>, vector<1x640xf32>
    %1244 = vector.broadcast %1243 : vector<1x640xf32> to vector<8x640xf32>
    %1245 = arith.addf %1242, %1244 : vector<8x640xf32>
    %cst_599 = arith.constant 0.000000e+00 : f32
    %1246 = vector.broadcast %cst_599 : f32 to vector<8x640xf32>
    %1247 = arith.maximumf %1245, %1246 : vector<8x640xf32>
    %c0_600 = arith.constant 0 : index
    %c0_601 = arith.constant 0 : index
    %1248 = vector.load %arg6[%c0_600, %c0_601] : memref<648x320xf32, #tpu.memory_space<vmem>>, vector<640x320xf32>
    %cst_602 = arith.constant dense<0.000000e+00> : vector<8x320xf32>
    %1249 = tpu.matmul %1247, %1248, %cst_602 {dimension_numbers = #tpu.dot_dimension_numbers<[1], [0], [0], [1], [0, 0, 1, 1], [], []>} : vector<8x640xf32>, vector<640x320xf32>, vector<8x320xf32> -> vector<8x320xf32>
    %c640 = arith.constant 640 : index
    %c0_603 = arith.constant 0 : index
    %1250 = vector.load %arg6[%c640, %c0_603] : memref<648x320xf32, #tpu.memory_space<vmem>>, vector<1x320xf32>
    %1251 = vector.broadcast %1250 : vector<1x320xf32> to vector<8x320xf32>
    %1252 = arith.addf %1249, %1251 : vector<8x320xf32>
    %cst_604 = arith.constant 0.000000e+00 : f32
    %1253 = vector.broadcast %cst_604 : f32 to vector<8x320xf32>
    %1254 = arith.maximumf %1252, %1253 : vector<8x320xf32>
    %c0_605 = arith.constant 0 : index
    %c0_606 = arith.constant 0 : index
    %1255 = vector.load %arg7[%c0_605, %c0_606] : memref<328x5xf32, #tpu.memory_space<vmem>>, vector<320x5xf32>
    %cst_607 = arith.constant dense<0.000000e+00> : vector<8x5xf32>
    %1256 = tpu.matmul %1254, %1255, %cst_607 {dimension_numbers = #tpu.dot_dimension_numbers<[1], [0], [0], [1], [0, 0, 1, 1], [], []>} : vector<8x320xf32>, vector<320x5xf32>, vector<8x5xf32> -> vector<8x5xf32>
    %c320 = arith.constant 320 : index
    %c0_608 = arith.constant 0 : index
    %1257 = vector.load %arg7[%c320, %c0_608] : memref<328x5xf32, #tpu.memory_space<vmem>>, vector<1x5xf32>
    %1258 = vector.broadcast %1257 : vector<1x5xf32> to vector<8x5xf32>
    %1259 = arith.addf %1256, %1258 : vector<8x5xf32>
    %1260 = tpu.iota {dimensions = array<i32: 1>} : vector<8x5xi32>
    %c3_i32 = arith.constant 3 : i32
    %1261 = vector.broadcast %c3_i32 : i32 to vector<8x5xi32>
    %1262 = arith.cmpi eq, %1260, %1261 : vector<8x5xi32>
    %1263 = math.tanh %1259 : vector<8x5xf32>
    %1264 = arith.select %1262, %1263, %1259 : vector<8x5xi1>, vector<8x5xf32>
    %c0_609 = arith.constant 0 : index
    %c0_610 = arith.constant 0 : index
    %1265 = vector.load %arg8[%c0_609, %c0_610] : memref<8x5xf32, #tpu.memory_space<vmem>>, vector<8x5xf32>
    tpu.vector_store %arg8[%c0_609, %c0_610], %1264 {strides = array<i32>} : memref<8x5xf32, #tpu.memory_space<vmem>>, vector<8x5xf32>,
    return
  }
}

</mosaic_0001>

<llo_original>
// kernel: model_forward.1
$region0: #{model_forward.1}
  #allocation0 [shape = 'u32[]', space=smem, size = 0x4, offset = 0x4, fixed_abs, tag = 'smem constant byte address 0x4 - core index']
  #allocation1 [shape = 'u32[144,128]{1,0:T(1,128)}', space=vmem, size = 0x12000, scoped, tag = 'internal scratch']
  #allocation2 [shape = 'f32[64,128]{1,0:T(8,128)}', space=vmem, size = 0x8000, scoped, tag = 'scratch operand']
  #allocation3 [shape = 'f32[64,256]{1,0:T(8,128)}', space=vmem, size = 0x10000, scoped, tag = 'scratch operand']
  %s0 = inlined_call_operand.vmem [shape: f32[64,128], index: 0, kind: input, shape index: {}]
  %s1 = inlined_call_operand.vmem [shape: f32[8,8], index: 1, kind: input, shape index: {}]
  %s2 = inlined_call_operand.vmem [shape: f32[5,200,256], index: 2, kind: input, shape index: {}]
  %s3 = inlined_call_operand.vmem [shape: f32[168,128], index: 3, kind: input, shape index: {}]
  %s4 = inlined_call_operand.vmem [shape: f32[320,128], index: 4, kind: input, shape index: {}]
  %s5 = inlined_call_operand.vmem [shape: f32[136,640], index: 5, kind: input, shape index: {}]
  %s6 = inlined_call_operand.vmem [shape: f32[648,320], index: 6, kind: input, shape index: {}]
  %s7 = inlined_call_operand.vmem [shape: f32[328,5], index: 7, kind: input, shape index: {}]
  %s8 = inlined_call_operand.vmem [shape: f32[8,5], index: 8, kind: output, shape index: {}]
  %s9 = sld [smem:[#allocation0]]
  $region42: #{model_forward.1} parent=0
    _
  %s11 = ssub.s32 1, %s9
  %s12 = scalar_select 0, %s11, %s9
  // Predicated region
  $region2: #{model_forward.1} parent=0 // pred_check
    _
  $region3: #{model_forward.1} parent=0 // pred_check_branch
    %14 = sbr.rel (0) target = $region5
  $region4: #{model_forward.1} parent=0 // pred_region
    _
  $region5: #{model_forward.1} parent=0 // pred_fallthru
    _
  // Predicated region
  $region6: #{model_forward.1} parent=0 // pred_check
    _
  $region7: #{model_forward.1} parent=0 // pred_check_branch
    %16 = sbr.rel (0) target = $region9
  $region8: #{model_forward.1} parent=0 // pred_region
    _
  $region9: #{model_forward.1} parent=0 // pred_fallthru
    _
  // Predicated region
  $region10: #{model_forward.1} parent=0 // pred_check
    _
  $region11: #{model_forward.1} parent=0 // pred_check_branch
    %18 = sbr.rel (0) target = $region13
  $region12: #{model_forward.1} parent=0 // pred_region
    _
  $region13: #{model_forward.1} parent=0 // pred_fallthru
    _
  // Predicated region
  $region14: #{model_forward.1} parent=0 // pred_check
    _
  $region15: #{model_forward.1} parent=0 // pred_check_branch
    %20 = sbr.rel (0) target = $region17
  $region16: #{model_forward.1} parent=0 // pred_region
    _
  $region17: #{model_forward.1} parent=0 // pred_fallthru
    _
  // Predicated region
  $region18: #{model_forward.1} parent=0 // pred_check
    _
  $region19: #{model_forward.1} parent=0 // pred_check_branch
    %22 = sbr.rel (0) target = $region21
  $region20: #{model_forward.1} parent=0 // pred_region
    _
  $region21: #{model_forward.1} parent=0 // pred_fallthru
    _
  // Predicated region
  $region22: #{model_forward.1} parent=0 // pred_check
    _
  $region23: #{model_forward.1} parent=0 // pred_check_branch
    %24 = sbr.rel (0) target = $region25
  $region24: #{model_forward.1} parent=0 // pred_region
    _
  $region25: #{model_forward.1} parent=0 // pred_fallthru
    _
  // Predicated region
  $region26: #{model_forward.1} parent=0 // pred_check
    _
  $region27: #{model_forward.1} parent=0 // pred_check_branch
    %26 = sbr.rel (0) target = $region29
  $region28: #{model_forward.1} parent=0 // pred_region
    _
  $region29: #{model_forward.1} parent=0 // pred_fallthru
    _
  // Predicated region
  $region30: #{model_forward.1} parent=0 // pred_check
    _
  $region31: #{model_forward.1} parent=0 // pred_check_branch
    %28 = sbr.rel (0) target = $region33
  $region32: #{model_forward.1} parent=0 // pred_region
    _
  $region33: #{model_forward.1} parent=0 // pred_fallthru
    _
  %v29 = vld [vmem:[%s2] sm:$0xff]
  %v30 = vld [vmem:[%s2 + $0x8] sm:$0xff]
  %v31 = vld [vmem:[%s2 + $0x10] sm:$0xff]
  %v32 = vld [vmem:[%s2 + $0x18] sm:$0xff]
  %v33 = vld [vmem:[%s2 + $0x20] sm:$0xff]
  %v34 = vld [vmem:[%s2 + $0x28] sm:$0xff]
  %v35 = vld [vmem:[%s2 + $0x30] sm:$0xff]
  %v36 = vld [vmem:[%s2 + $0x38] sm:$0xff]
  %v37 = vld [vmem:[%s2 + $0x40] sm:$0xff]
  %v38 = vld [vmem:[%s2 + $0x48] sm:$0xff]
  %v39 = vld [vmem:[%s2 + $0x50] sm:$0xff]
  %v40 = vld [vmem:[%s2 + $0x58] sm:$0xff]
  %v41 = vld [vmem:[%s2 + $0x60] sm:$0xff]
  %v42 = vld [vmem:[%s2 + $0x68] sm:$0xff]
  %v43 = vld [vmem:[%s2 + $0x70] sm:$0xff]
  %v44 = vld [vmem:[%s2 + $0x78] sm:$0xff]
  %v45 = vld [vmem:[%s2 + $0x80] sm:$0xff]
  %v46 = vld [vmem:[%s2 + $0x88] sm:$0xff]
  %v47 = vld [vmem:[%s2 + $0x90] sm:$0xff]
  %v48 = vld [vmem:[%s2 + $0x98] sm:$0xff]
  %v49 = vld [vmem:[%s2 + $0xa0] sm:$0xff]
  %v50 = vld [vmem:[%s2 + $0xa8] sm:$0xff]
  %v51 = vld [vmem:[%s2 + $0xb0] sm:$0xff]
  %v52 = vld [vmem:[%s2 + $0xb8] sm:$0xff]
  %v53 = vld [vmem:[%s2 + $0xc0] sm:$0xff]
  %v54 = vld [vmem:[%s2 + $0xc8] sm:$0xff]
  %v55 = vld [vmem:[%s2 + $0xd0] sm:$0xff]
  %v56 = vld [vmem:[%s2 + $0xd8] sm:$0xff]
  %v57 = vld [vmem:[%s2 + $0xe0] sm:$0xff]
  %v58 = vld [vmem:[%s2 + $0xe8] sm:$0xff]
  %v59 = vld [vmem:[%s2 + $0xf0] sm:$0xff]
  %v60 = vld [vmem:[%s2 + $0xf8] sm:$0xff]
  %v61 = vld [vmem:[%s2 + $0x100] sm:$0xff]
  %v62 = vld [vmem:[%s2 + $0x108] sm:$0xff]
  %v63 = vld [vmem:[%s2 + $0x110] sm:$0xff]
  %v64 = vld [vmem:[%s2 + $0x118] sm:$0xff]
  %v65 = vld [vmem:[%s2 + $0x120] sm:$0xff]
  %v66 = vld [vmem:[%s2 + $0x128] sm:$0xff]
  %v67 = vld [vmem:[%s2 + $0x130] sm:$0xff]
  %v68 = vld [vmem:[%s2 + $0x138] sm:$0xff]
  %v69 = vld [vmem:[%s2 + $0x140] sm:$0xff]
  %v70 = vld [vmem:[%s2 + $0x148] sm:$0xff]
  %v71 = vld [vmem:[%s2 + $0x150] sm:$0xff]
  %v72 = vld [vmem:[%s2 + $0x158] sm:$0xff]
  %v73 = vld [vmem:[%s2 + $0x160] sm:$0xff]
  %v74 = vld [vmem:[%s2 + $0x168] sm:$0xff]
  %v75 = vld [vmem:[%s2 + $0x170] sm:$0xff]
  %v76 = vld [vmem:[%s2 + $0x178] sm:$0xff]
  %s77 = scalar_lea.vmem %s2, 384
  %v78 = vld [vmem:[%s77] ss:$8 sm:$0x3]
  %v79 = vld [vmem:[%s0] sm:$0xff]
  %v80 = vld [vmem:[%s0 + $0x8] sm:$0xff]
  %v81 = vld [vmem:[%s0 + $0x10] sm:$0xff]
  %v82 = vld [vmem:[%s0 + $0x18] sm:$0xff]
  %v83 = vld [vmem:[%s0 + $0x20] sm:$0xff]
  %v84 = vld [vmem:[%s0 + $0x28] sm:$0xff]
  %v85 = vld [vmem:[%s0 + $0x30] sm:$0xff]
  %v86 = vld [vmem:[%s0 + $0x38] sm:$0xff]
  %v88 = vlaneseq
  %v89 = vshrl.u32 %v88, 7
  %v90 = vsub.s32 0, %v89
  %v91 = vrot.slane %v78, %v90
  %v92 = vlaneseq
  %v93 = vshrl.u32 %v92, 7
  %v94 = vsub.s32 1, %v93
  %v95 = vrot.slane %v78, %v94
  %98 = vmatprep.subr.mxu0 %v30
  %99 = vmatpush1.msra.mxu0 %v29
  %100 = vmatprep.subr.mxu0 %v32
  %101 = vmatpush1.msra.mxu0 %v31
  %102 = vmatprep.subr.mxu0 %v34
  %103 = vmatpush1.msra.mxu0 %v33
  %104 = vmatprep.subr.mxu0 %v36
  %105 = vmatpush1.msra.mxu0 %v35
  %106 = vmatprep.subr.mxu0 %v38
  %107 = vmatpush1.msra.mxu0 %v37
  %108 = vmatprep.subr.mxu0 %v40
  %109 = vmatpush1.msra.mxu0 %v39
  %110 = vmatprep.subr.mxu0 %v42
  %111 = vmatpush1.msra.mxu0 %v41
  %112 = vmatprep.subr.mxu0 %v44
  %113 = vmatpush1.msra.mxu0 %v43
  %114 = vmatprep.subr.mxu0 %v46
  %115 = vmatpush1.msra.mxu0 %v45
  %116 = vmatprep.subr.mxu0 %v48
  %117 = vmatpush1.msra.mxu0 %v47
  %118 = vmatprep.subr.mxu0 %v50
  %119 = vmatpush1.msra.mxu0 %v49
  %120 = vmatprep.subr.mxu0 %v52
  %121 = vmatpush1.msra.mxu0 %v51
  %122 = vmatprep.subr.mxu0 %v54
  %123 = vmatpush1.msra.mxu0 %v53
  %124 = vmatprep.subr.mxu0 %v56
  %125 = vmatpush1.msra.mxu0 %v55
  %126 = vmatprep.subr.mxu0 %v58
  %127 = vmatpush1.msra.mxu0 %v57
  %128 = vmatprep.subr.mxu0 %v60
  %129 = vmatpush1.msra.mxu0 %v59
  %130 = vmatprep.subr.mxu0 0.0
  %131 = vmatpush1.msra.mxu0 0.0
  %132 = vmatprep.subr.mxu0 0.0
  %133 = vmatpush1.msra.mxu0 0.0
  %134 = vmatprep.subr.mxu0 0.0
  %135 = vmatpush1.msra.mxu0 0.0
  %136 = vmatprep.subr.mxu0 0.0
  %137 = vmatpush1.msra.mxu0 0.0
  %138 = vmatprep.subr.mxu0 0.0
  %139 = vmatpush1.msra.mxu0 0.0
  %140 = vmatprep.subr.mxu0 0.0
  %141 = vmatpush1.msra.mxu0 0.0
  %142 = vmatprep.subr.mxu0 0.0
  %143 = vmatpush1.msra.mxu0 0.0
  %144 = vmatprep.subr.mxu0 0.0
  %145 = vmatpush1.msra.mxu0 0.0
  %146 = vmatprep.subr.mxu0 0.0
  %147 = vmatpush1.msra.mxu0 0.0
  %148 = vmatprep.subr.mxu0 0.0
  %149 = vmatpush1.msra.mxu0 0.0
  %150 = vmatprep.subr.mxu0 0.0
  %151 = vmatpush1.msra.mxu0 0.0
  %152 = vmatprep.subr.mxu0 0.0
  %153 = vmatpush1.msra.mxu0 0.0
  %154 = vmatprep.subr.mxu0 0.0
  %155 = vmatpush1.msra.mxu0 0.0
  %156 = vmatprep.subr.mxu0 0.0
  %157 = vmatpush1.msra.mxu0 0.0
  %158 = vmatprep.subr.mxu0 0.0
  %159 = vmatpush1.msra.mxu0 0.0
  %160 = vmatprep.subr.mxu0 0.0
  %161 = vmatpush1.msra.mxu0 0.0
  %162 = vmatprep.mubr.f32.mxu0 0.0
  %163 = vmatmul.mubr.f32.gmra.mrb[0].mxu0 %v79
  %v164 = vpop.f32.mrb[0].mxu0
  %v165 = vadd.f32 %v91, %v164
  %v166 = vpop.f32.mrb[0].mxu0
  %v167 = vadd.f32 %v95, %v166
  %168 = vmatprep.mubr.f32.mxu0 0.0
  %169 = vmatmul.mubr.f32.gmra.mrb[0].mxu0 %v80
  %v170 = vpop.f32.mrb[0].mxu0
  %v171 = vadd.f32 %v91, %v170
  %v172 = vpop.f32.mrb[0].mxu0
  %v173 = vadd.f32 %v95, %v172
  %174 = vmatprep.mubr.f32.mxu0 0.0
  %175 = vmatmul.mubr.f32.gmra.mrb[0].mxu0 %v81
  %v176 = vpop.f32.mrb[0].mxu0
  %v177 = vadd.f32 %v91, %v176
  %v178 = vpop.f32.mrb[0].mxu0
  %v179 = vadd.f32 %v95, %v178
  %180 = vmatprep.mubr.f32.mxu0 0.0
  %181 = vmatmul.mubr.f32.gmra.mrb[0].mxu0 %v82
  %v182 = vpop.f32.mrb[0].mxu0
  %v183 = vadd.f32 %v91, %v182
  %v184 = vpop.f32.mrb[0].mxu0
  %v185 = vadd.f32 %v95, %v184
  %186 = vmatprep.mubr.f32.mxu0 0.0
  %187 = vmatmul.mubr.f32.gmra.mrb[0].mxu0 %v83
  %v188 = vpop.f32.mrb[0].mxu0
  %v189 = vadd.f32 %v91, %v188
  %v190 = vpop.f32.mrb[0].mxu0
  %v191 = vadd.f32 %v95, %v190
  %192 = vmatprep.mubr.f32.mxu0 0.0
  %193 = vmatmul.mubr.f32.gmra.mrb[0].mxu0 %v84
  %v194 = vpop.f32.mrb[0].mxu0
  %v195 = vadd.f32 %v91, %v194
  %v196 = vpop.f32.mrb[0].mxu0
  %v197 = vadd.f32 %v95, %v196
  %198 = vmatprep.mubr.f32.mxu0 0.0
  %199 = vmatmul.mubr.f32.gmra.mrb[0].mxu0 %v85
  %v200 = vpop.f32.mrb[0].mxu0
  %v201 = vadd.f32 %v91, %v200
  %v202 = vpop.f32.mrb[0].mxu0
  %v203 = vadd.f32 %v95, %v202
  %204 = vmatprep.mubr.f32.mxu0 0.0
  %205 = vmatmul.mubr.f32.gmra.mrb[0].mxu0 %v86
  %v206 = vpop.f32.mrb[0].mxu0
  %v207 = vadd.f32 %v91, %v206
  %v208 = vpop.f32.mrb[0].mxu0
  %v209 = vadd.f32 %v95, %v208
  %210 = vdwg.mxu0
  %211 = vst [vmem:[#allocation3] sm:$0xff] %v165
  %212 = vst [vmem:[#allocation3 + $0x8] sm:$0xff] %v167
  %213 = vst [vmem:[#allocation3 + $0x10] sm:$0xff] %v171
  %214 = vst [vmem:[#allocation3 + $0x18] sm:$0xff] %v173
  %215 = vst [vmem:[#allocation3 + $0x20] sm:$0xff] %v177
  %216 = vst [vmem:[#allocation3 + $0x28] sm:$0xff] %v179
  %217 = vst [vmem:[#allocation3 + $0x30] sm:$0xff] %v183
  %218 = vst [vmem:[#allocation3 + $0x38] sm:$0xff] %v185
  %219 = vst [vmem:[#allocation3 + $0x40] sm:$0xff] %v189
  %220 = vst [vmem:[#allocation3 + $0x48] sm:$0xff] %v191
  %221 = vst [vmem:[#allocation3 + $0x50] sm:$0xff] %v195
  %222 = vst [vmem:[#allocation3 + $0x58] sm:$0xff] %v197
  %223 = vst [vmem:[#allocation3 + $0x60] sm:$0xff] %v201
  %224 = vst [vmem:[#allocation3 + $0x68] sm:$0xff] %v203
  %225 = vst [vmem:[#allocation3 + $0x70] sm:$0xff] %v207
  %226 = vst [vmem:[#allocation3 + $0x78] sm:$0xff] %v209
  %v227 = vld [vmem:[#allocation3] sm:$0xff]
  %v228 = vld [vmem:[#allocation3 + $0x8] sm:$0xff]
  %vm229 = vcmask 523264
  %v231 = vsel %vm229, 0.0, 0
  %233 = vmatprep.subr.mxu0 %v62
  %234 = vmatpush1.msra.mxu0 %v61
  %235 = vmatprep.subr.mxu0 %v64
  %236 = vmatpush1.msra.mxu0 %v63
  %237 = vmatprep.subr.mxu0 %v66
  %238 = vmatpush1.msra.mxu0 %v65
  %239 = vmatprep.subr.mxu0 %v68
  %240 = vmatpush1.msra.mxu0 %v67
  %241 = vmatprep.subr.mxu0 %v70
  %242 = vmatpush1.msra.mxu0 %v69
  %243 = vmatprep.subr.mxu0 %v72
  %244 = vmatpush1.msra.mxu0 %v71
  %245 = vmatprep.subr.mxu0 %v74
  %246 = vmatpush1.msra.mxu0 %v73
  %247 = vmatprep.subr.mxu0 %v76
  %248 = vmatpush1.msra.mxu0 %v75
  %249 = vmatprep.subr.mxu0 0.0
  %250 = vmatpush1.msra.mxu0 0.0
  %251 = vmatprep.subr.mxu0 0.0
  %252 = vmatpush1.msra.mxu0 0.0
  %253 = vmatprep.subr.mxu0 0.0
  %254 = vmatpush1.msra.mxu0 0.0
  %255 = vmatprep.subr.mxu0 0.0
  %256 = vmatpush1.msra.mxu0 0.0
  %257 = vmatprep.subr.mxu0 0.0
  %258 = vmatpush1.msra.mxu0 0.0
  %259 = vmatprep.subr.mxu0 0.0
  %260 = vmatpush1.msra.mxu0 0.0
  %261 = vmatprep.subr.mxu0 0.0
  %262 = vmatpush1.msra.mxu0 0.0
  %263 = vmatprep.subr.mxu0 0.0
  %264 = vmatpush1.msra.mxu0 0.0
  %265 = vmatprep.subr.mxu0 0.0
  %266 = vmatpush1.msra.mxu0 0.0
  %267 = vmatprep.subr.mxu0 0.0
  %268 = vmatpush1.msra.mxu0 0.0
  %269 = vmatprep.subr.mxu0 0.0
  %270 = vmatpush1.msra.mxu0 0.0
  %271 = vmatprep.subr.mxu0 0.0
  %272 = vmatpush1.msra.mxu0 0.0
  %273 = vmatprep.subr.mxu0 0.0
  %274 = vmatpush1.msra.mxu0 0.0
  %275 = vmatprep.subr.mxu0 0.0
  %276 = vmatpush1.msra.mxu0 0.0
  %277 = vmatprep.subr.mxu0 0.0
  %278 = vmatpush1.msra.mxu0 0.0
  %279 = vmatprep.subr.mxu0 0.0
  %280 = vmatpush1.msra.mxu0 0.0
  %281 = vmatprep.subr.mxu0 0.0
  %282 = vmatpush1.msra.mxu0 0.0
  %283 = vmatprep.subr.mxu0 0.0
  %284 = vmatpush1.msra.mxu0 0.0
  %285 = vmatprep.subr.mxu0 0.0
  %286 = vmatpush1.msra.mxu0 0.0
  %287 = vmatprep.subr.mxu0 0.0
  %288 = vmatpush1.msra.mxu0 0.0
  %289 = vmatprep.subr.mxu0 0.0
  %290 = vmatpush1.msra.mxu0 0.0
  %291 = vmatprep.subr.mxu0 0.0
  %292 = vmatpush1.msra.mxu0 0.0
  %293 = vmatprep.subr.mxu0 0.0
  %294 = vmatpush1.msra.mxu0 0.0
  %295 = vmatprep.subr.mxu0 0.0
  %296 = vmatpush1.msra.mxu0 0.0
  %297 = vmatprep.mubr.f32.mxu0 0.0
  %298 = vmatmul.mubr.f32.gmra.mrb[0].mxu0 %v231
  %v299 = vpop.f32.mrb[0].mxu0
  %v300 = vadd.f32 0.0, %v299
  %v301 = vpop.f32.mrb[0].mxu0
  %v302 = vadd.f32 0.0, %v301
  %303 = vdwg.mxu0
  %v304 = vadd.f32 %v227, %v300
  %v305 = vadd.f32 %v228, %v302
  %v306 = vtanh.pop %v304
  %v307 = vtanh.pop %v305
  %v308 = vmul.f32 %v306, 0.5
  %v309 = vmul.f32 %v307, 0.5
  %v310 = vadd.f32 %v308, 0.5
  %v311 = vadd.f32 %v309, 0.5
  %v312 = vmul.f32 %v310, 0.0
  %314 = vrot.lane.b32.xlu0 %v307, 64
  %v315 = vpop.permute.xlu0 %314
  %v317 = vmul.f32 %v310, %v315
  %319 = vrot.lane.b32.xlu0 %v317, 64
  %v320 = vpop.permute.xlu0 %319
  %v322 = vadd.f32 %v312, %v320
  %v323 = vtanh.pop %v322
  %325 = vrot.lane.b32.xlu0 %v323, 64
  %v326 = vpop.permute.xlu0 %325
  %v328 = vmul.f32 %v311, %v326
  %vm329 = vcmask 261120
  %330 = vst.msk [vmem:[#allocation2] sm:$0xff] %vm329, %v328
  %vm331 = vcmask 523520
  %332 = vst.msk [vmem:[#allocation2 + $0x38] sm:$0xff] %vm331, %v328
  %334 = vrot.lane.b32.xlu0 %v328, 64
  %v335 = vpop.permute.xlu0 %334
  %vm337 = vcmask 785920
  %338 = vst.msk [vmem:[#allocation2 + $0x38] sm:$0xff] %vm337, %v335
  %vm339 = vcmask 1048320
  %340 = vst.msk [vmem:[#allocation2] sm:$0xff] %vm339, %v335
  %v341 = vld [vmem:[#allocation3 + $0x10] sm:$0xff]
  %v342 = vld [vmem:[#allocation3 + $0x18] sm:$0xff]
  %v343 = vsel %vm229, %v328, 0
  %345 = vmatprep.subr.mxu0 %v62
  %346 = vmatpush1.msra.mxu0 %v61
  %347 = vmatprep.subr.mxu0 %v64
  %348 = vmatpush1.msra.mxu0 %v63
  %349 = vmatprep.subr.mxu0 %v66
  %350 = vmatpush1.msra.mxu0 %v65
  %351 = vmatprep.subr.mxu0 %v68
  %352 = vmatpush1.msra.mxu0 %v67
  %353 = vmatprep.subr.mxu0 %v70
  %354 = vmatpush1.msra.mxu0 %v69
  %355 = vmatprep.subr.mxu0 %v72
  %356 = vmatpush1.msra.mxu0 %v71
  %357 = vmatprep.subr.mxu0 %v74
  %358 = vmatpush1.msra.mxu0 %v73
  %359 = vmatprep.subr.mxu0 %v76
  %360 = vmatpush1.msra.mxu0 %v75
  %361 = vmatprep.subr.mxu0 0.0
  %362 = vmatpush1.msra.mxu0 0.0
  %363 = vmatprep.subr.mxu0 0.0
  %364 = vmatpush1.msra.mxu0 0.0
  %365 = vmatprep.subr.mxu0 0.0
  %366 = vmatpush1.msra.mxu0 0.0
  %367 = vmatprep.subr.mxu0 0.0
  %368 = vmatpush1.msra.mxu0 0.0
  %369 = vmatprep.subr.mxu0 0.0
  %370 = vmatpush1.msra.mxu0 0.0
  %371 = vmatprep.subr.mxu0 0.0
  %372 = vmatpush1.msra.mxu0 0.0
  %373 = vmatprep.subr.mxu0 0.0
  %374 = vmatpush1.msra.mxu0 0.0
  %375 = vmatprep.subr.mxu0 0.0
  %376 = vmatpush1.msra.mxu0 0.0
  %377 = vmatprep.subr.mxu0 0.0
  %378 = vmatpush1.msra.mxu0 0.0
  %379 = vmatprep.subr.mxu0 0.0
  %380 = vmatpush1.msra.mxu0 0.0
  %381 = vmatprep.subr.mxu0 0.0
  %382 = vmatpush1.msra.mxu0 0.0
  %383 = vmatprep.subr.mxu0 0.0
  %384 = vmatpush1.msra.mxu0 0.0
  %385 = vmatprep.subr.mxu0 0.0
  %386 = vmatpush1.msra.mxu0 0.0
  %387 = vmatprep.subr.mxu0 0.0
  %388 = vmatpush1.msra.mxu0 0.0
  %389 = vmatprep.subr.mxu0 0.0
  %390 = vmatpush1.msra.mxu0 0.0
  %391 = vmatprep.subr.mxu0 0.0
  %392 = vmatpush1.msra.mxu0 0.0
  %393 = vmatprep.subr.mxu0 0.0
  %394 = vmatpush1.msra.mxu0 0.0
  %395 = vmatprep.subr.mxu0 0.0
  %396 = vmatpush1.msra.mxu0 0.0
  %397 = vmatprep.subr.mxu0 0.0
  %398 = vmatpush1.msra.mxu0 0.0
  %399 = vmatprep.subr.mxu0 0.0
  %400 = vmatpush1.msra.mxu0 0.0
  %401 = vmatprep.subr.mxu0 0.0
  %402 = vmatpush1.msra.mxu0 0.0
  %403 = vmatprep.subr.mxu0 0.0
  %404 = vmatpush1.msra.mxu0 0.0
  %405 = vmatprep.subr.mxu0 0.0
  %406 = vmatpush1.msra.mxu0 0.0
  %407 = vmatprep.subr.mxu0 0.0
  %408 = vmatpush1.msra.mxu0 0.0
  %409 = vmatprep.mubr.f32.mxu0 0.0
  %410 = vmatmul.mubr.f32.gmra.mrb[0].mxu0 %v343
  %v411 = vpop.f32.mrb[0].mxu0
  %v412 = vadd.f32 0.0, %v411
  %v413 = vpop.f32.mrb[0].mxu0
  %v414 = vadd.f32 0.0, %v413
  %415 = vdwg.mxu0
  %v416 = vadd.f32 %v341, %v412
  %v417 = vadd.f32 %v342, %v414
  %v418 = vtanh.pop %v416
  %v419 = vtanh.pop %v417
  %v420 = vmul.f32 %v418, 0.5
  %v421 = vmul.f32 %v419, 0.5
  %v422 = vadd.f32 %v420, 0.5
  %v423 = vadd.f32 %v421, 0.5
  %v424 = vmul.f32 %v422, %v322
  %426 = vrot.lane.b32.xlu0 %v419, 64
  %v427 = vpop.permute.xlu0 %426
  %v429 = vmul.f32 %v422, %v427
  %431 = vrot.lane.b32.xlu0 %v429, 64
  %v432 = vpop.permute.xlu0 %431
  %v434 = vadd.f32 %v424, %v432
  %v435 = vtanh.pop %v434
  %437 = vrot.lane.b32.xlu0 %v435, 64
  %v438 = vpop.permute.xlu0 %437
  %v440 = vmul.f32 %v423, %v438
  %441 = vst.msk [vmem:[#allocation2 + $0x8] sm:$0xff] %vm329, %v440
  %442 = vst.msk [vmem:[#allocation2 + $0x30] sm:$0xff] %vm331, %v440
  %444 = vrot.lane.b32.xlu0 %v440, 64
  %v445 = vpop.permute.xlu0 %444
  %447 = vst.msk [vmem:[#allocation2 + $0x30] sm:$0xff] %vm337, %v445
  %448 = vst.msk [vmem:[#allocation2 + $0x8] sm:$0xff] %vm339, %v445
  %v449 = vld [vmem:[#allocation3 + $0x20] sm:$0xff]
  %v450 = vld [vmem:[#allocation3 + $0x28] sm:$0xff]
  %v451 = vsel %vm229, %v440, 0
  %453 = vmatprep.subr.mxu0 %v62
  %454 = vmatpush1.msra.mxu0 %v61
  %455 = vmatprep.subr.mxu0 %v64
  %456 = vmatpush1.msra.mxu0 %v63
  %457 = vmatprep.subr.mxu0 %v66
  %458 = vmatpush1.msra.mxu0 %v65
  %459 = vmatprep.subr.mxu0 %v68
  %460 = vmatpush1.msra.mxu0 %v67
  %461 = vmatprep.subr.mxu0 %v70
  %462 = vmatpush1.msra.mxu0 %v69
  %463 = vmatprep.subr.mxu0 %v72
  %464 = vmatpush1.msra.mxu0 %v71
  %465 = vmatprep.subr.mxu0 %v74
  %466 = vmatpush1.msra.mxu0 %v73
  %467 = vmatprep.subr.mxu0 %v76
  %468 = vmatpush1.msra.mxu0 %v75
  %469 = vmatprep.subr.mxu0 0.0
  %470 = vmatpush1.msra.mxu0 0.0
  %471 = vmatprep.subr.mxu0 0.0
  %472 = vmatpush1.msra.mxu0 0.0
  %473 = vmatprep.subr.mxu0 0.0
  %474 = vmatpush1.msra.mxu0 0.0
  %475 = vmatprep.subr.mxu0 0.0
  %476 = vmatpush1.msra.mxu0 0.0
  %477 = vmatprep.subr.mxu0 0.0
  %478 = vmatpush1.msra.mxu0 0.0
  %479 = vmatprep.subr.mxu0 0.0
  %480 = vmatpush1.msra.mxu0 0.0
  %481 = vmatprep.subr.mxu0 0.0
  %482 = vmatpush1.msra.mxu0 0.0
  %483 = vmatprep.subr.mxu0 0.0
  %484 = vmatpush1.msra.mxu0 0.0
  %485 = vmatprep.subr.mxu0 0.0
  %486 = vmatpush1.msra.mxu0 0.0
  %487 = vmatprep.subr.mxu0 0.0
  %488 = vmatpush1.msra.mxu0 0.0
  %489 = vmatprep.subr.mxu0 0.0
  %490 = vmatpush1.msra.mxu0 0.0
  %491 = vmatprep.subr.mxu0 0.0
  %492 = vmatpush1.msra.mxu0 0.0
  %493 = vmatprep.subr.mxu0 0.0
  %494 = vmatpush1.msra.mxu0 0.0
  %495 = vmatprep.subr.mxu0 0.0
  %496 = vmatpush1.msra.mxu0 0.0
  %497 = vmatprep.subr.mxu0 0.0
  %498 = vmatpush1.msra.mxu0 0.0
  %499 = vmatprep.subr.mxu0 0.0
  %500 = vmatpush1.msra.mxu0 0.0
  %501 = vmatprep.subr.mxu0 0.0
  %502 = vmatpush1.msra.mxu0 0.0
  %503 = vmatprep.subr.mxu0 0.0
  %504 = vmatpush1.msra.mxu0 0.0
  %505 = vmatprep.subr.mxu0 0.0
  %506 = vmatpush1.msra.mxu0 0.0
  %507 = vmatprep.subr.mxu0 0.0
  %508 = vmatpush1.msra.mxu0 0.0
  %509 = vmatprep.subr.mxu0 0.0
  %510 = vmatpush1.msra.mxu0 0.0
  %511 = vmatprep.subr.mxu0 0.0
  %512 = vmatpush1.msra.mxu0 0.0
  %513 = vmatprep.subr.mxu0 0.0
  %514 = vmatpush1.msra.mxu0 0.0
  %515 = vmatprep.subr.mxu0 0.0
  %516 = vmatpush1.msra.mxu0 0.0
  %517 = vmatprep.mubr.f32.mxu0 0.0
  %518 = vmatmul.mubr.f32.gmra.mrb[0].mxu0 %v451
  %v519 = vpop.f32.mrb[0].mxu0
  %v520 = vadd.f32 0.0, %v519
  %v521 = vpop.f32.mrb[0].mxu0
  %v522 = vadd.f32 0.0, %v521
  %523 = vdwg.mxu0
  %v524 = vadd.f32 %v449, %v520
  %v525 = vadd.f32 %v450, %v522
  %v526 = vtanh.pop %v524
  %v527 = vtanh.pop %v525
  %v528 = vmul.f32 %v526, 0.5
  %v529 = vmul.f32 %v527, 0.5
  %v530 = vadd.f32 %v528, 0.5
  %v531 = vadd.f32 %v529, 0.5
  %v532 = vmul.f32 %v530, %v434
  %534 = vrot.lane.b32.xlu0 %v527, 64
  %v535 = vpop.permute.xlu0 %534
  %v537 = vmul.f32 %v530, %v535
  %539 = vrot.lane.b32.xlu0 %v537, 64
  %v540 = vpop.permute.xlu0 %539
  %v542 = vadd.f32 %v532, %v540
  %v543 = vtanh.pop %v542
  %545 = vrot.lane.b32.xlu0 %v543, 64
  %v546 = vpop.permute.xlu0 %545
  %v548 = vmul.f32 %v531, %v546
  %549 = vst.msk [vmem:[#allocation2 + $0x10] sm:$0xff] %vm329, %v548
  %550 = vst.msk [vmem:[#allocation2 + $0x28] sm:$0xff] %vm331, %v548
  %552 = vrot.lane.b32.xlu0 %v548, 64
  %v553 = vpop.permute.xlu0 %552
  %555 = vst.msk [vmem:[#allocation2 + $0x28] sm:$0xff] %vm337, %v553
  %556 = vst.msk [vmem:[#allocation2 + $0x10] sm:$0xff] %vm339, %v553
  %v557 = vld [vmem:[#allocation3 + $0x30] sm:$0xff]
  %v558 = vld [vmem:[#allocation3 + $0x38] sm:$0xff]
  %v559 = vsel %vm229, %v548, 0
  %561 = vmatprep.subr.mxu0 %v62
  %562 = vmatpush1.msra.mxu0 %v61
  %563 = vmatprep.subr.mxu0 %v64
  %564 = vmatpush1.msra.mxu0 %v63
  %565 = vmatprep.subr.mxu0 %v66
  %566 = vmatpush1.msra.mxu0 %v65
  %567 = vmatprep.subr.mxu0 %v68
  %568 = vmatpush1.msra.mxu0 %v67
  %569 = vmatprep.subr.mxu0 %v70
  %570 = vmatpush1.msra.mxu0 %v69
  %571 = vmatprep.subr.mxu0 %v72
  %572 = vmatpush1.msra.mxu0 %v71
  %573 = vmatprep.subr.mxu0 %v74
  %574 = vmatpush1.msra.mxu0 %v73
  %575 = vmatprep.subr.mxu0 %v76
  %576 = vmatpush1.msra.mxu0 %v75
  %577 = vmatprep.subr.mxu0 0.0
  %578 = vmatpush1.msra.mxu0 0.0
  %579 = vmatprep.subr.mxu0 0.0
  %580 = vmatpush1.msra.mxu0 0.0
  %581 = vmatprep.subr.mxu0 0.0
  %582 = vmatpush1.msra.mxu0 0.0
  %583 = vmatprep.subr.mxu0 0.0
  %584 = vmatpush1.msra.mxu0 0.0
  %585 = vmatprep.subr.mxu0 0.0
  %586 = vmatpush1.msra.mxu0 0.0
  %587 = vmatprep.subr.mxu0 0.0
  %588 = vmatpush1.msra.mxu0 0.0
  %589 = vmatprep.subr.mxu0 0.0
  %590 = vmatpush1.msra.mxu0 0.0
  %591 = vmatprep.subr.mxu0 0.0
  %592 = vmatpush1.msra.mxu0 0.0
  %593 = vmatprep.subr.mxu0 0.0
  %594 = vmatpush1.msra.mxu0 0.0
  %595 = vmatprep.subr.mxu0 0.0
  %596 = vmatpush1.msra.mxu0 0.0
  %597 = vmatprep.subr.mxu0 0.0
  %598 = vmatpush1.msra.mxu0 0.0
  %599 = vmatprep.subr.mxu0 0.0
  %600 = vmatpush1.msra.mxu0 0.0
  %601 = vmatprep.subr.mxu0 0.0
  %602 = vmatpush1.msra.mxu0 0.0
  %603 = vmatprep.subr.mxu0 0.0
  %604 = vmatpush1.msra.mxu0 0.0
  %605 = vmatprep.subr.mxu0 0.0
  %606 = vmatpush1.msra.mxu0 0.0
  %607 = vmatprep.subr.mxu0 0.0
  %608 = vmatpush1.msra.mxu0 0.0
  %609 = vmatprep.subr.mxu0 0.0
  %610 = vmatpush1.msra.mxu0 0.0
  %611 = vmatprep.subr.mxu0 0.0
  %612 = vmatpush1.msra.mxu0 0.0
  %613 = vmatprep.subr.mxu0 0.0
  %614 = vmatpush1.msra.mxu0 0.0
  %615 = vmatprep.subr.mxu0 0.0
  %616 = vmatpush1.msra.mxu0 0.0
  %617 = vmatprep.subr.mxu0 0.0
  %618 = vmatpush1.msra.mxu0 0.0
  %619 = vmatprep.subr.mxu0 0.0
  %620 = vmatpush1.msra.mxu0 0.0
  %621 = vmatprep.subr.mxu0 0.0
  %622 = vmatpush1.msra.mxu0 0.0
  %623 = vmatprep.subr.mxu0 0.0
  %624 = vmatpush1.msra.mxu0 0.0
  %625 = vmatprep.mubr.f32.mxu0 0.0
  %626 = vmatmul.mubr.f32.gmra.mrb[0].mxu0 %v559
  %v627 = vpop.f32.mrb[0].mxu0
  %v628 = vadd.f32 0.0, %v627
  %v629 = vpop.f32.mrb[0].mxu0
  %v630 = vadd.f32 0.0, %v629
  %631 = vdwg.mxu0
  %v632 = vadd.f32 %v557, %v628
  %v633 = vadd.f32 %v558, %v630
  %v634 = vtanh.pop %v632
  %v635 = vtanh.pop %v633
  %v636 = vmul.f32 %v634, 0.5
  %v637 = vmul.f32 %v635, 0.5
  %v638 = vadd.f32 %v636, 0.5
  %v639 = vadd.f32 %v637, 0.5
  %v640 = vmul.f32 %v638, %v542
  %642 = vrot.lane.b32.xlu0 %v635, 64
  %v643 = vpop.permute.xlu0 %642
  %v645 = vmul.f32 %v638, %v643
  %647 = vrot.lane.b32.xlu0 %v645, 64
  %v648 = vpop.permute.xlu0 %647
  %v650 = vadd.f32 %v640, %v648
  %v651 = vtanh.pop %v650
  %653 = vrot.lane.b32.xlu0 %v651, 64
  %v654 = vpop.permute.xlu0 %653
  %v656 = vmul.f32 %v639, %v654
  %657 = vst.msk [vmem:[#allocation2 + $0x18] sm:$0xff] %vm329, %v656
  %658 = vst.msk [vmem:[#allocation2 + $0x20] sm:$0xff] %vm331, %v656
  %660 = vrot.lane.b32.xlu0 %v656, 64
  %v661 = vpop.permute.xlu0 %660
  %663 = vst.msk [vmem:[#allocation2 + $0x20] sm:$0xff] %vm337, %v661
  %664 = vst.msk [vmem:[#allocation2 + $0x18] sm:$0xff] %vm339, %v661
  %v665 = vld [vmem:[#allocation3 + $0x40] sm:$0xff]
  %v666 = vld [vmem:[#allocation3 + $0x48] sm:$0xff]
  %v667 = vsel %vm229, %v656, 0
  %669 = vmatprep.subr.mxu0 %v62
  %670 = vmatpush1.msra.mxu0 %v61
  %671 = vmatprep.subr.mxu0 %v64
  %672 = vmatpush1.msra.mxu0 %v63
  %673 = vmatprep.subr.mxu0 %v66
  %674 = vmatpush1.msra.mxu0 %v65
  %675 = vmatprep.subr.mxu0 %v68
  %676 = vmatpush1.msra.mxu0 %v67
  %677 = vmatprep.subr.mxu0 %v70
  %678 = vmatpush1.msra.mxu0 %v69
  %679 = vmatprep.subr.mxu0 %v72
  %680 = vmatpush1.msra.mxu0 %v71
  %681 = vmatprep.subr.mxu0 %v74
  %682 = vmatpush1.msra.mxu0 %v73
  %683 = vmatprep.subr.mxu0 %v76
  %684 = vmatpush1.msra.mxu0 %v75
  %685 = vmatprep.subr.mxu0 0.0
  %686 = vmatpush1.msra.mxu0 0.0
  %687 = vmatprep.subr.mxu0 0.0
  %688 = vmatpush1.msra.mxu0 0.0
  %689 = vmatprep.subr.mxu0 0.0
  %690 = vmatpush1.msra.mxu0 0.0
  %691 = vmatprep.subr.mxu0 0.0
  %692 = vmatpush1.msra.mxu0 0.0
  %693 = vmatprep.subr.mxu0 0.0
  %694 = vmatpush1.msra.mxu0 0.0
  %695 = vmatprep.subr.mxu0 0.0
  %696 = vmatpush1.msra.mxu0 0.0
  %697 = vmatprep.subr.mxu0 0.0
  %698 = vmatpush1.msra.mxu0 0.0
  %699 = vmatprep.subr.mxu0 0.0
  %700 = vmatpush1.msra.mxu0 0.0
  %701 = vmatprep.subr.mxu0 0.0
  %702 = vmatpush1.msra.mxu0 0.0
  %703 = vmatprep.subr.mxu0 0.0
  %704 = vmatpush1.msra.mxu0 0.0
  %705 = vmatprep.subr.mxu0 0.0
  %706 = vmatpush1.msra.mxu0 0.0
  %707 = vmatprep.subr.mxu0 0.0
  %708 = vmatpush1.msra.mxu0 0.0
  %709 = vmatprep.subr.mxu0 0.0
  %710 = vmatpush1.msra.mxu0 0.0
  %711 = vmatprep.subr.mxu0 0.0
  %712 = vmatpush1.msra.mxu0 0.0
  %713 = vmatprep.subr.mxu0 0.0
  %714 = vmatpush1.msra.mxu0 0.0
  %715 = vmatprep.subr.mxu0 0.0
  %716 = vmatpush1.msra.mxu0 0.0
  %717 = vmatprep.subr.mxu0 0.0
  %718 = vmatpush1.msra.mxu0 0.0
  %719 = vmatprep.subr.mxu0 0.0
  %720 = vmatpush1.msra.mxu0 0.0
  %721 = vmatprep.subr.mxu0 0.0
  %722 = vmatpush1.msra.mxu0 0.0
  %723 = vmatprep.subr.mxu0 0.0
  %724 = vmatpush1.msra.mxu0 0.0
  %725 = vmatprep.subr.mxu0 0.0
  %726 = vmatpush1.msra.mxu0 0.0
  %727 = vmatprep.subr.mxu0 0.0
  %728 = vmatpush1.msra.mxu0 0.0
  %729 = vmatprep.subr.mxu0 0.0
  %730 = vmatpush1.msra.mxu0 0.0
  %731 = vmatprep.subr.mxu0 0.0
  %732 = vmatpush1.msra.mxu0 0.0
  %733 = vmatprep.mubr.f32.mxu0 0.0
  %734 = vmatmul.mubr.f32.gmra.mrb[0].mxu0 %v667
  %v735 = vpop.f32.mrb[0].mxu0
  %v736 = vadd.f32 0.0, %v735
  %v737 = vpop.f32.mrb[0].mxu0
  %v738 = vadd.f32 0.0, %v737
  %739 = vdwg.mxu0
  %v740 = vadd.f32 %v665, %v736
  %v741 = vadd.f32 %v666, %v738
  %v742 = vtanh.pop %v740
  %v743 = vtanh.pop %v741
  %v744 = vmul.f32 %v742, 0.5
  %v745 = vmul.f32 %v743, 0.5
  %v746 = vadd.f32 %v744, 0.5
  %v747 = vadd.f32 %v745, 0.5
  %v748 = vmul.f32 %v746, %v650
  %750 = vrot.lane.b32.xlu0 %v743, 64
  %v751 = vpop.permute.xlu0 %750
  %v753 = vmul.f32 %v746, %v751
  %755 = vrot.lane.b32.xlu0 %v753, 64
  %v756 = vpop.permute.xlu0 %755
  %v758 = vadd.f32 %v748, %v756
  %v759 = vtanh.pop %v758
  %761 = vrot.lane.b32.xlu0 %v759, 64
  %v762 = vpop.permute.xlu0 %761
  %v764 = vmul.f32 %v747, %v762
  %765 = vst.msk [vmem:[#allocation2 + $0x20] sm:$0xff] %vm329, %v764
  %766 = vst.msk [vmem:[#allocation2 + $0x18] sm:$0xff] %vm331, %v764
  %768 = vrot.lane.b32.xlu0 %v764, 64
  %v769 = vpop.permute.xlu0 %768
  %771 = vst.msk [vmem:[#allocation2 + $0x18] sm:$0xff] %vm337, %v769
  %772 = vst.msk [vmem:[#allocation2 + $0x20] sm:$0xff] %vm339, %v769
  %v773 = vld [vmem:[#allocation3 + $0x50] sm:$0xff]
  %v774 = vld [vmem:[#allocation3 + $0x58] sm:$0xff]
  %v775 = vsel %vm229, %v764, 0
  %777 = vmatprep.subr.mxu0 %v62
  %778 = vmatpush1.msra.mxu0 %v61
  %779 = vmatprep.subr.mxu0 %v64
  %780 = vmatpush1.msra.mxu0 %v63
  %781 = vmatprep.subr.mxu0 %v66
  %782 = vmatpush1.msra.mxu0 %v65
  %783 = vmatprep.subr.mxu0 %v68
  %784 = vmatpush1.msra.mxu0 %v67
  %785 = vmatprep.subr.mxu0 %v70
  %786 = vmatpush1.msra.mxu0 %v69
  %787 = vmatprep.subr.mxu0 %v72
  %788 = vmatpush1.msra.mxu0 %v71
  %789 = vmatprep.subr.mxu0 %v74
  %790 = vmatpush1.msra.mxu0 %v73
  %791 = vmatprep.subr.mxu0 %v76
  %792 = vmatpush1.msra.mxu0 %v75
  %793 = vmatprep.subr.mxu0 0.0
  %794 = vmatpush1.msra.mxu0 0.0
  %795 = vmatprep.subr.mxu0 0.0
  %796 = vmatpush1.msra.mxu0 0.0
  %797 = vmatprep.subr.mxu0 0.0
  %798 = vmatpush1.msra.mxu0 0.0
  %799 = vmatprep.subr.mxu0 0.0
  %800 = vmatpush1.msra.mxu0 0.0
  %801 = vmatprep.subr.mxu0 0.0
  %802 = vmatpush1.msra.mxu0 0.0
  %803 = vmatprep.subr.mxu0 0.0
  %804 = vmatpush1.msra.mxu0 0.0
  %805 = vmatprep.subr.mxu0 0.0
  %806 = vmatpush1.msra.mxu0 0.0
  %807 = vmatprep.subr.mxu0 0.0
  %808 = vmatpush1.msra.mxu0 0.0
  %809 = vmatprep.subr.mxu0 0.0
  %810 = vmatpush1.msra.mxu0 0.0
  %811 = vmatprep.subr.mxu0 0.0
  %812 = vmatpush1.msra.mxu0 0.0
  %813 = vmatprep.subr.mxu0 0.0
  %814 = vmatpush1.msra.mxu0 0.0
  %815 = vmatprep.subr.mxu0 0.0
  %816 = vmatpush1.msra.mxu0 0.0
  %817 = vmatprep.subr.mxu0 0.0
  %818 = vmatpush1.msra.mxu0 0.0
  %819 = vmatprep.subr.mxu0 0.0
  %820 = vmatpush1.msra.mxu0 0.0
  %821 = vmatprep.subr.mxu0 0.0
  %822 = vmatpush1.msra.mxu0 0.0
  %823 = vmatprep.subr.mxu0 0.0
  %824 = vmatpush1.msra.mxu0 0.0
  %825 = vmatprep.subr.mxu0 0.0
  %826 = vmatpush1.msra.mxu0 0.0
  %827 = vmatprep.subr.mxu0 0.0
  %828 = vmatpush1.msra.mxu0 0.0
  %829 = vmatprep.subr.mxu0 0.0
  %830 = vmatpush1.msra.mxu0 0.0
  %831 = vmatprep.subr.mxu0 0.0
  %832 = vmatpush1.msra.mxu0 0.0
  %833 = vmatprep.subr.mxu0 0.0
  %834 = vmatpush1.msra.mxu0 0.0
  %835 = vmatprep.subr.mxu0 0.0
  %836 = vmatpush1.msra.mxu0 0.0
  %837 = vmatprep.subr.mxu0 0.0
  %838 = vmatpush1.msra.mxu0 0.0
  %839 = vmatprep.subr.mxu0 0.0
  %840 = vmatpush1.msra.mxu0 0.0
  %841 = vmatprep.mubr.f32.mxu0 0.0
  %842 = vmatmul.mubr.f32.gmra.mrb[0].mxu0 %v775
  %v843 = vpop.f32.mrb[0].mxu0
  %v844 = vadd.f32 0.0, %v843
  %v845 = vpop.f32.mrb[0].mxu0
  %v846 = vadd.f32 0.0, %v845
  %847 = vdwg.mxu0
  %v848 = vadd.f32 %v773, %v844
  %v849 = vadd.f32 %v774, %v846
  %v850 = vtanh.pop %v848
  %v851 = vtanh.pop %v849
  %v852 = vmul.f32 %v850, 0.5
  %v853 = vmul.f32 %v851, 0.5
  %v854 = vadd.f32 %v852, 0.5
  %v855 = vadd.f32 %v853, 0.5
  %v856 = vmul.f32 %v854, %v758
  %858 = vrot.lane.b32.xlu0 %v851, 64
  %v859 = vpop.permute.xlu0 %858
  %v861 = vmul.f32 %v854, %v859
  %863 = vrot.lane.b32.xlu0 %v861, 64
  %v864 = vpop.permute.xlu0 %863
  %v866 = vadd.f32 %v856, %v864
  %v867 = vtanh.pop %v866
  %869 = vrot.lane.b32.xlu0 %v867, 64
  %v870 = vpop.permute.xlu0 %869
  %v872 = vmul.f32 %v855, %v870
  %873 = vst.msk [vmem:[#allocation2 + $0x28] sm:$0xff] %vm329, %v872
  %874 = vst.msk [vmem:[#allocation2 + $0x10] sm:$0xff] %vm331, %v872
  %876 = vrot.lane.b32.xlu0 %v872, 64
  %v877 = vpop.permute.xlu0 %876
  %879 = vst.msk [vmem:[#allocation2 + $0x10] sm:$0xff] %vm337, %v877
  %880 = vst.msk [vmem:[#allocation2 + $0x28] sm:$0xff] %vm339, %v877
  %v881 = vld [vmem:[#allocation3 + $0x60] sm:$0xff]
  %v882 = vld [vmem:[#allocation3 + $0x68] sm:$0xff]
  %v883 = vsel %vm229, %v872, 0
  %885 = vmatprep.subr.mxu0 %v62
  %886 = vmatpush1.msra.mxu0 %v61
  %887 = vmatprep.subr.mxu0 %v64
  %888 = vmatpush1.msra.mxu0 %v63
  %889 = vmatprep.subr.mxu0 %v66
  %890 = vmatpush1.msra.mxu0 %v65
  %891 = vmatprep.subr.mxu0 %v68
  %892 = vmatpush1.msra.mxu0 %v67
  %893 = vmatprep.subr.mxu0 %v70
  %894 = vmatpush1.msra.mxu0 %v69
  %895 = vmatprep.subr.mxu0 %v72
  %896 = vmatpush1.msra.mxu0 %v71
  %897 = vmatprep.subr.mxu0 %v74
  %898 = vmatpush1.msra.mxu0 %v73
  %899 = vmatprep.subr.mxu0 %v76
  %900 = vmatpush1.msra.mxu0 %v75
  %901 = vmatprep.subr.mxu0 0.0
  %902 = vmatpush1.msra.mxu0 0.0
  %903 = vmatprep.subr.mxu0 0.0
  %904 = vmatpush1.msra.mxu0 0.0
  %905 = vmatprep.subr.mxu0 0.0
  %906 = vmatpush1.msra.mxu0 0.0
  %907 = vmatprep.subr.mxu0 0.0
  %908 = vmatpush1.msra.mxu0 0.0
  %909 = vmatprep.subr.mxu0 0.0
  %910 = vmatpush1.msra.mxu0 0.0
  %911 = vmatprep.subr.mxu0 0.0
  %912 = vmatpush1.msra.mxu0 0.0
  %913 = vmatprep.subr.mxu0 0.0
  %914 = vmatpush1.msra.mxu0 0.0
  %915 = vmatprep.subr.mxu0 0.0
  %916 = vmatpush1.msra.mxu0 0.0
  %917 = vmatprep.subr.mxu0 0.0
  %918 = vmatpush1.msra.mxu0 0.0
  %919 = vmatprep.subr.mxu0 0.0
  %920 = vmatpush1.msra.mxu0 0.0
  %921 = vmatprep.subr.mxu0 0.0
  %922 = vmatpush1.msra.mxu0 0.0
  %923 = vmatprep.subr.mxu0 0.0
  %924 = vmatpush1.msra.mxu0 0.0
  %925 = vmatprep.subr.mxu0 0.0
  %926 = vmatpush1.msra.mxu0 0.0
  %927 = vmatprep.subr.mxu0 0.0
  %928 = vmatpush1.msra.mxu0 0.0
  %929 = vmatprep.subr.mxu0 0.0
  %930 = vmatpush1.msra.mxu0 0.0
  %931 = vmatprep.subr.mxu0 0.0
  %932 = vmatpush1.msra.mxu0 0.0
  %933 = vmatprep.subr.mxu0 0.0
  %934 = vmatpush1.msra.mxu0 0.0
  %935 = vmatprep.subr.mxu0 0.0
  %936 = vmatpush1.msra.mxu0 0.0
  %937 = vmatprep.subr.mxu0 0.0
  %938 = vmatpush1.msra.mxu0 0.0
  %939 = vmatprep.subr.mxu0 0.0
  %940 = vmatpush1.msra.mxu0 0.0
  %941 = vmatprep.subr.mxu0 0.0
  %942 = vmatpush1.msra.mxu0 0.0
  %943 = vmatprep.subr.mxu0 0.0
  %944 = vmatpush1.msra.mxu0 0.0
  %945 = vmatprep.subr.mxu0 0.0
  %946 = vmatpush1.msra.mxu0 0.0
  %947 = vmatprep.subr.mxu0 0.0
  %948 = vmatpush1.msra.mxu0 0.0
  %949 = vmatprep.mubr.f32.mxu0 0.0
  %950 = vmatmul.mubr.f32.gmra.mrb[0].mxu0 %v883
  %v951 = vpop.f32.mrb[0].mxu0
  %v952 = vadd.f32 0.0, %v951
  %v953 = vpop.f32.mrb[0].mxu0
  %v954 = vadd.f32 0.0, %v953
  %955 = vdwg.mxu0
  %v956 = vadd.f32 %v881, %v952
  %v957 = vadd.f32 %v882, %v954
  %v958 = vtanh.pop %v956
  %v959 = vtanh.pop %v957
  %v960 = vmul.f32 %v958, 0.5
  %v961 = vmul.f32 %v959, 0.5
  %v962 = vadd.f32 %v960, 0.5
  %v963 = vadd.f32 %v961, 0.5
  %v964 = vmul.f32 %v962, %v866
  %966 = vrot.lane.b32.xlu0 %v959, 64
  %v967 = vpop.permute.xlu0 %966
  %v969 = vmul.f32 %v962, %v967
  %971 = vrot.lane.b32.xlu0 %v969, 64
  %v972 = vpop.permute.xlu0 %971
  %v974 = vadd.f32 %v964, %v972
  %v975 = vtanh.pop %v974
  %977 = vrot.lane.b32.xlu0 %v975, 64
  %v978 = vpop.permute.xlu0 %977
  %v980 = vmul.f32 %v963, %v978
  %981 = vst.msk [vmem:[#allocation2 + $0x30] sm:$0xff] %vm329, %v980
  %982 = vst.msk [vmem:[#allocation2 + $0x8] sm:$0xff] %vm331, %v980
  %984 = vrot.lane.b32.xlu0 %v980, 64
  %v985 = vpop.permute.xlu0 %984
  %987 = vst.msk [vmem:[#allocation2 + $0x8] sm:$0xff] %vm337, %v985
  %988 = vst.msk [vmem:[#allocation2 + $0x30] sm:$0xff] %vm339, %v985
  %v989 = vld [vmem:[#allocation3 + $0x70] sm:$0xff]
  %v990 = vld [vmem:[#allocation3 + $0x78] sm:$0xff]
  %v991 = vsel %vm229, %v980, 0
  %993 = vmatprep.subr.mxu0 %v62
  %994 = vmatpush1.msra.mxu0 %v61
  %995 = vmatprep.subr.mxu0 %v64
  %996 = vmatpush1.msra.mxu0 %v63
  %997 = vmatprep.subr.mxu0 %v66
  %998 = vmatpush1.msra.mxu0 %v65
  %999 = vmatprep.subr.mxu0 %v68
  %1000 = vmatpush1.msra.mxu0 %v67
  %1001 = vmatprep.subr.mxu0 %v70
  %1002 = vmatpush1.msra.mxu0 %v69
  %1003 = vmatprep.subr.mxu0 %v72
  %1004 = vmatpush1.msra.mxu0 %v71
  %1005 = vmatprep.subr.mxu0 %v74
  %1006 = vmatpush1.msra.mxu0 %v73
  %1007 = vmatprep.subr.mxu0 %v76
  %1008 = vmatpush1.msra.mxu0 %v75
  %1009 = vmatprep.subr.mxu0 0.0
  %1010 = vmatpush1.msra.mxu0 0.0
  %1011 = vmatprep.subr.mxu0 0.0
  %1012 = vmatpush1.msra.mxu0 0.0
  %1013 = vmatprep.subr.mxu0 0.0
  %1014 = vmatpush1.msra.mxu0 0.0
  %1015 = vmatprep.subr.mxu0 0.0
  %1016 = vmatpush1.msra.mxu0 0.0
  %1017 = vmatprep.subr.mxu0 0.0
  %1018 = vmatpush1.msra.mxu0 0.0
  %1019 = vmatprep.subr.mxu0 0.0
  %1020 = vmatpush1.msra.mxu0 0.0
  %1021 = vmatprep.subr.mxu0 0.0
  %1022 = vmatpush1.msra.mxu0 0.0
  %1023 = vmatprep.subr.mxu0 0.0
  %1024 = vmatpush1.msra.mxu0 0.0
  %1025 = vmatprep.subr.mxu0 0.0
  %1026 = vmatpush1.msra.mxu0 0.0
  %1027 = vmatprep.subr.mxu0 0.0
  %1028 = vmatpush1.msra.mxu0 0.0
  %1029 = vmatprep.subr.mxu0 0.0
  %1030 = vmatpush1.msra.mxu0 0.0
  %1031 = vmatprep.subr.mxu0 0.0
  %1032 = vmatpush1.msra.mxu0 0.0
  %1033 = vmatprep.subr.mxu0 0.0
  %1034 = vmatpush1.msra.mxu0 0.0
  %1035 = vmatprep.subr.mxu0 0.0
  %1036 = vmatpush1.msra.mxu0 0.0
  %1037 = vmatprep.subr.mxu0 0.0
  %1038 = vmatpush1.msra.mxu0 0.0
  %1039 = vmatprep.subr.mxu0 0.0
  %1040 = vmatpush1.msra.mxu0 0.0
  %1041 = vmatprep.subr.mxu0 0.0
  %1042 = vmatpush1.msra.mxu0 0.0
  %1043 = vmatprep.subr.mxu0 0.0
  %1044 = vmatpush1.msra.mxu0 0.0
  %1045 = vmatprep.subr.mxu0 0.0
  %1046 = vmatpush1.msra.mxu0 0.0
  %1047 = vmatprep.subr.mxu0 0.0
  %1048 = vmatpush1.msra.mxu0 0.0
  %1049 = vmatprep.subr.mxu0 0.0
  %1050 = vmatpush1.msra.mxu0 0.0
  %1051 = vmatprep.subr.mxu0 0.0
  %1052 = vmatpush1.msra.mxu0 0.0
  %1053 = vmatprep.subr.mxu0 0.0
  %1054 = vmatpush1.msra.mxu0 0.0
  %1055 = vmatprep.subr.mxu0 0.0
  %1056 = vmatpush1.msra.mxu0 0.0
  %1057 = vmatprep.mubr.f32.mxu0 0.0
  %1058 = vmatmul.mubr.f32.gmra.mrb[0].mxu0 %v991
  %v1059 = vpop.f32.mrb[0].mxu0
  %v1060 = vadd.f32 0.0, %v1059
  %v1061 = vpop.f32.mrb[0].mxu0
  %v1062 = vadd.f32 0.0, %v1061
  %1063 = vdwg.mxu0
  %v1064 = vadd.f32 %v989, %v1060
  %v1065 = vadd.f32 %v990, %v1062
  %v1066 = vtanh.pop %v1064
  %v1067 = vtanh.pop %v1065
  %v1068 = vmul.f32 %v1066, 0.5
  %v1069 = vmul.f32 %v1067, 0.5
  %v1070 = vadd.f32 %v1068, 0.5
  %v1071 = vadd.f32 %v1069, 0.5
  %v1072 = vmul.f32 %v1070, %v974
  %1074 = vrot.lane.b32.xlu0 %v1067, 64
  %v1075 = vpop.permute.xlu0 %1074
  %v1077 = vmul.f32 %v1070, %v1075
  %1079 = vrot.lane.b32.xlu0 %v1077, 64
  %v1080 = vpop.permute.xlu0 %1079
  %v1082 = vadd.f32 %v1072, %v1080
  %v1083 = vtanh.pop %v1082
  %1085 = vrot.lane.b32.xlu0 %v1083, 64
  %v1086 = vpop.permute.xlu0 %1085
  %v1088 = vmul.f32 %v1071, %v1086
  %1089 = vst.msk [vmem:[#allocation2 + $0x38] sm:$0xff] %vm329, %v1088
  %1090 = vst.msk [vmem:[#allocation2] sm:$0xff] %vm331, %v1088
  %1092 = vrot.lane.b32.xlu0 %v1088, 64
  %v1093 = vpop.permute.xlu0 %1092
  %1095 = vst.msk [vmem:[#allocation2] sm:$0xff] %vm337, %v1093
  %1096 = vst.msk [vmem:[#allocation2 + $0x38] sm:$0xff] %vm339, %v1093
  %s1097 = scalar_lea.vmem %s2, 400
  %v1098 = vld [vmem:[%s1097] sm:$0xff]
  %v1099 = vld [vmem:[%s1097 + $0x8] sm:$0xff]
  %v1100 = vld [vmem:[%s1097 + $0x10] sm:$0xff]
  %v1101 = vld [vmem:[%s1097 + $0x18] sm:$0xff]
  %v1102 = vld [vmem:[%s1097 + $0x20] sm:$0xff]
  %v1103 = vld [vmem:[%s1097 + $0x28] sm:$0xff]
  %v1104 = vld [vmem:[%s1097 + $0x30] sm:$0xff]
  %v1105 = vld [vmem:[%s1097 + $0x38] sm:$0xff]
  %v1106 = vld [vmem:[%s1097 + $0x40] sm:$0xff]
  %v1107 = vld [vmem:[%s1097 + $0x48] sm:$0xff]
  %v1108 = vld [vmem:[%s1097 + $0x50] sm:$0xff]
  %v1109 = vld [vmem:[%s1097 + $0x58] sm:$0xff]
  %v1110 = vld [vmem:[%s1097 + $0x60] sm:$0xff]
  %v1111 = vld [vmem:[%s1097 + $0x68] sm:$0xff]
  %v1112 = vld [vmem:[%s1097 + $0x70] sm:$0xff]
  %v1113 = vld [vmem:[%s1097 + $0x78] sm:$0xff]
  %v1114 = vld [vmem:[%s1097 + $0x80] sm:$0xff]
  %v1115 = vld [vmem:[%s1097 + $0x88] sm:$0xff]
  %v1116 = vld [vmem:[%s1097 + $0x90] sm:$0xff]
  %v1117 = vld [vmem:[%s1097 + $0x98] sm:$0xff]
  %v1118 = vld [vmem:[%s1097 + $0xa0] sm:$0xff]
  %v1119 = vld [vmem:[%s1097 + $0xa8] sm:$0xff]
  %v1120 = vld [vmem:[%s1097 + $0xb0] sm:$0xff]
  %v1121 = vld [vmem:[%s1097 + $0xb8] sm:$0xff]
  %v1122 = vld [vmem:[%s1097 + $0xc0] sm:$0xff]
  %v1123 = vld [vmem:[%s1097 + $0xc8] sm:$0xff]
  %v1124 = vld [vmem:[%s1097 + $0xd0] sm:$0xff]
  %v1125 = vld [vmem:[%s1097 + $0xd8] sm:$0xff]
  %v1126 = vld [vmem:[%s1097 + $0xe0] sm:$0xff]
  %v1127 = vld [vmem:[%s1097 + $0xe8] sm:$0xff]
  %v1128 = vld [vmem:[%s1097 + $0xf0] sm:$0xff]
  %v1129 = vld [vmem:[%s1097 + $0xf8] sm:$0xff]
  %v1130 = vld [vmem:[%s1097 + $0x100] sm:$0xff]
  %v1131 = vld [vmem:[%s1097 + $0x108] sm:$0xff]
  %v1132 = vld [vmem:[%s1097 + $0x110] sm:$0xff]
  %v1133 = vld [vmem:[%s1097 + $0x118] sm:$0xff]
  %v1134 = vld [vmem:[%s1097 + $0x120] sm:$0xff]
  %v1135 = vld [vmem:[%s1097 + $0x128] sm:$0xff]
  %v1136 = vld [vmem:[%s1097 + $0x130] sm:$0xff]
  %v1137 = vld [vmem:[%s1097 + $0x138] sm:$0xff]
  %v1138 = vld [vmem:[%s1097 + $0x140] sm:$0xff]
  %v1139 = vld [vmem:[%s1097 + $0x148] sm:$0xff]
  %v1140 = vld [vmem:[%s1097 + $0x150] sm:$0xff]
  %v1141 = vld [vmem:[%s1097 + $0x158] sm:$0xff]
  %v1142 = vld [vmem:[%s1097 + $0x160] sm:$0xff]
  %v1143 = vld [vmem:[%s1097 + $0x168] sm:$0xff]
  %v1144 = vld [vmem:[%s1097 + $0x170] sm:$0xff]
  %v1145 = vld [vmem:[%s1097 + $0x178] sm:$0xff]
  %s1146 = scalar_lea.vmem %s1097, 384
  %v1147 = vld [vmem:[%s1146] ss:$8 sm:$0x3]
  %v1148 = vld [vmem:[#allocation2] sm:$0xff]
  %v1149 = vld [vmem:[#allocation2 + $0x8] sm:$0xff]
  %v1150 = vld [vmem:[#allocation2 + $0x10] sm:$0xff]
  %v1151 = vld [vmem:[#allocation2 + $0x18] sm:$0xff]
  %v1152 = vld [vmem:[#allocation2 + $0x20] sm:$0xff]
  %v1153 = vld [vmem:[#allocation2 + $0x28] sm:$0xff]
  %v1154 = vld [vmem:[#allocation2 + $0x30] sm:$0xff]
  %v1155 = vld [vmem:[#allocation2 + $0x38] sm:$0xff]
  %v1157 = vlaneseq
  %v1158 = vshrl.u32 %v1157, 7
  %v1159 = vsub.s32 0, %v1158
  %v1160 = vrot.slane %v1147, %v1159
  %v1161 = vlaneseq
  %v1162 = vshrl.u32 %v1161, 7
  %v1163 = vsub.s32 1, %v1162
  %v1164 = vrot.slane %v1147, %v1163
  %1167 = vmatprep.subr.mxu0 %v1099
  %1168 = vmatpush1.msra.mxu0 %v1098
  %1169 = vmatprep.subr.mxu0 %v1101
  %1170 = vmatpush1.msra.mxu0 %v1100
  %1171 = vmatprep.subr.mxu0 %v1103
  %1172 = vmatpush1.msra.mxu0 %v1102
  %1173 = vmatprep.subr.mxu0 %v1105
  %1174 = vmatpush1.msra.mxu0 %v1104
  %1175 = vmatprep.subr.mxu0 %v1107
  %1176 = vmatpush1.msra.mxu0 %v1106
  %1177 = vmatprep.subr.mxu0 %v1109
  %1178 = vmatpush1.msra.mxu0 %v1108
  %1179 = vmatprep.subr.mxu0 %v1111
  %1180 = vmatpush1.msra.mxu0 %v1110
  %1181 = vmatprep.subr.mxu0 %v1113
  %1182 = vmatpush1.msra.mxu0 %v1112
  %1183 = vmatprep.subr.mxu0 %v1115
  %1184 = vmatpush1.msra.mxu0 %v1114
  %1185 = vmatprep.subr.mxu0 %v1117
  %1186 = vmatpush1.msra.mxu0 %v1116
  %1187 = vmatprep.subr.mxu0 %v1119
  %1188 = vmatpush1.msra.mxu0 %v1118
  %1189 = vmatprep.subr.mxu0 %v1121
  %1190 = vmatpush1.msra.mxu0 %v1120
  %1191 = vmatprep.subr.mxu0 %v1123
  %1192 = vmatpush1.msra.mxu0 %v1122
  %1193 = vmatprep.subr.mxu0 %v1125
  %1194 = vmatpush1.msra.mxu0 %v1124
  %1195 = vmatprep.subr.mxu0 %v1127
  %1196 = vmatpush1.msra.mxu0 %v1126
  %1197 = vmatprep.subr.mxu0 %v1129
  %1198 = vmatpush1.msra.mxu0 %v1128
  %1199 = vmatprep.subr.mxu0 0.0
  %1200 = vmatpush1.msra.mxu0 0.0
  %1201 = vmatprep.subr.mxu0 0.0
  %1202 = vmatpush1.msra.mxu0 0.0
  %1203 = vmatprep.subr.mxu0 0.0
  %1204 = vmatpush1.msra.mxu0 0.0
  %1205 = vmatprep.subr.mxu0 0.0
  %1206 = vmatpush1.msra.mxu0 0.0
  %1207 = vmatprep.subr.mxu0 0.0
  %1208 = vmatpush1.msra.mxu0 0.0
  %1209 = vmatprep.subr.mxu0 0.0
  %1210 = vmatpush1.msra.mxu0 0.0
  %1211 = vmatprep.subr.mxu0 0.0
  %1212 = vmatpush1.msra.mxu0 0.0
  %1213 = vmatprep.subr.mxu0 0.0
  %1214 = vmatpush1.msra.mxu0 0.0
  %1215 = vmatprep.subr.mxu0 0.0
  %1216 = vmatpush1.msra.mxu0 0.0
  %1217 = vmatprep.subr.mxu0 0.0
  %1218 = vmatpush1.msra.mxu0 0.0
  %1219 = vmatprep.subr.mxu0 0.0
  %1220 = vmatpush1.msra.mxu0 0.0
  %1221 = vmatprep.subr.mxu0 0.0
  %1222 = vmatpush1.msra.mxu0 0.0
  %1223 = vmatprep.subr.mxu0 0.0
  %1224 = vmatpush1.msra.mxu0 0.0
  %1225 = vmatprep.subr.mxu0 0.0
  %1226 = vmatpush1.msra.mxu0 0.0
  %1227 = vmatprep.subr.mxu0 0.0
  %1228 = vmatpush1.msra.mxu0 0.0
  %1229 = vmatprep.subr.mxu0 0.0
  %1230 = vmatpush1.msra.mxu0 0.0
  %1231 = vmatprep.mubr.f32.mxu0 0.0
  %1232 = vmatmul.mubr.f32.gmra.mrb[0].mxu0 %v1148
  %v1233 = vpop.f32.mrb[0].mxu0
  %v1234 = vadd.f32 %v1160, %v1233
  %v1235 = vpop.f32.mrb[0].mxu0
  %v1236 = vadd.f32 %v1164, %v1235
  %1237 = vmatprep.mubr.f32.mxu0 0.0
  %1238 = vmatmul.mubr.f32.gmra.mrb[0].mxu0 %v1149
  %v1239 = vpop.f32.mrb[0].mxu0
  %v1240 = vadd.f32 %v1160, %v1239
  %v1241 = vpop.f32.mrb[0].mxu0
  %v1242 = vadd.f32 %v1164, %v1241
  %1243 = vmatprep.mubr.f32.mxu0 0.0
  %1244 = vmatmul.mubr.f32.gmra.mrb[0].mxu0 %v1150
  %v1245 = vpop.f32.mrb[0].mxu0
  %v1246 = vadd.f32 %v1160, %v1245
  %v1247 = vpop.f32.mrb[0].mxu0
  %v1248 = vadd.f32 %v1164, %v1247
  %1249 = vmatprep.mubr.f32.mxu0 0.0
  %1250 = vmatmul.mubr.f32.gmra.mrb[0].mxu0 %v1151
  %v1251 = vpop.f32.mrb[0].mxu0
  %v1252 = vadd.f32 %v1160, %v1251
  %v1253 = vpop.f32.mrb[0].mxu0
  %v1254 = vadd.f32 %v1164, %v1253
  %1255 = vmatprep.mubr.f32.mxu0 0.0
  %1256 = vmatmul.mubr.f32.gmra.mrb[0].mxu0 %v1152
  %v1257 = vpop.f32.mrb[0].mxu0
  %v1258 = vadd.f32 %v1160, %v1257
  %v1259 = vpop.f32.mrb[0].mxu0
  %v1260 = vadd.f32 %v1164, %v1259
  %1261 = vmatprep.mubr.f32.mxu0 0.0
  %1262 = vmatmul.mubr.f32.gmra.mrb[0].mxu0 %v1153
  %v1263 = vpop.f32.mrb[0].mxu0
  %v1264 = vadd.f32 %v1160, %v1263
  %v1265 = vpop.f32.mrb[0].mxu0
  %v1266 = vadd.f32 %v1164, %v1265
  %1267 = vmatprep.mubr.f32.mxu0 0.0
  %1268 = vmatmul.mubr.f32.gmra.mrb[0].mxu0 %v1154
  %v1269 = vpop.f32.mrb[0].mxu0
  %v1270 = vadd.f32 %v1160, %v1269
  %v1271 = vpop.f32.mrb[0].mxu0
  %v1272 = vadd.f32 %v1164, %v1271
  %1273 = vmatprep.mubr.f32.mxu0 0.0
  %1274 = vmatmul.mubr.f32.gmra.mrb[0].mxu0 %v1155
  %v1275 = vpop.f32.mrb[0].mxu0
  %v1276 = vadd.f32 %v1160, %v1275
  %v1277 = vpop.f32.mrb[0].mxu0
  %v1278 = vadd.f32 %v1164, %v1277
  %1279 = vdwg.mxu0
  %1280 = vst [vmem:[#allocation3] sm:$0xff] %v1234
  %1281 = vst [vmem:[#allocation3 + $0x8] sm:$0xff] %v1236
  %1282 = vst [vmem:[#allocation3 + $0x10] sm:$0xff] %v1240
  %1283 = vst [vmem:[#allocation3 + $0x18] sm:$0xff] %v1242
  %1284 = vst [vmem:[#allocation3 + $0x20] sm:$0xff] %v1246
  %1285 = vst [vmem:[#allocation3 + $0x28] sm:$0xff] %v1248
  %1286 = vst [vmem:[#allocation3 + $0x30] sm:$0xff] %v1252
  %1287 = vst [vmem:[#allocation3 + $0x38] sm:$0xff] %v1254
  %1288 = vst [vmem:[#allocation3 + $0x40] sm:$0xff] %v1258
  %1289 = vst [vmem:[#allocation3 + $0x48] sm:$0xff] %v1260
  %1290 = vst [vmem:[#allocation3 + $0x50] sm:$0xff] %v1264
  %1291 = vst [vmem:[#allocation3 + $0x58] sm:$0xff] %v1266
  %1292 = vst [vmem:[#allocation3 + $0x60] sm:$0xff] %v1270
  %1293 = vst [vmem:[#allocation3 + $0x68] sm:$0xff] %v1272
  %1294 = vst [vmem:[#allocation3 + $0x70] sm:$0xff] %v1276
  %1295 = vst [vmem:[#allocation3 + $0x78] sm:$0xff] %v1278
  %v1296 = vld [vmem:[#allocation3] sm:$0xff]
  %v1297 = vld [vmem:[#allocation3 + $0x8] sm:$0xff]
  %1298 = vmatprep.subr.mxu0 %v1131
  %1299 = vmatpush1.msra.mxu0 %v1130
  %1300 = vmatprep.subr.mxu0 %v1133
  %1301 = vmatpush1.msra.mxu0 %v1132
  %1302 = vmatprep.subr.mxu0 %v1135
  %1303 = vmatpush1.msra.mxu0 %v1134
  %1304 = vmatprep.subr.mxu0 %v1137
  %1305 = vmatpush1.msra.mxu0 %v1136
  %1306 = vmatprep.subr.mxu0 %v1139
  %1307 = vmatpush1.msra.mxu0 %v1138
  %1308 = vmatprep.subr.mxu0 %v1141
  %1309 = vmatpush1.msra.mxu0 %v1140
  %1310 = vmatprep.subr.mxu0 %v1143
  %1311 = vmatpush1.msra.mxu0 %v1142
  %1312 = vmatprep.subr.mxu0 %v1145
  %1313 = vmatpush1.msra.mxu0 %v1144
  %1314 = vmatprep.subr.mxu0 0.0
  %1315 = vmatpush1.msra.mxu0 0.0
  %1316 = vmatprep.subr.mxu0 0.0
  %1317 = vmatpush1.msra.mxu0 0.0
  %1318 = vmatprep.subr.mxu0 0.0
  %1319 = vmatpush1.msra.mxu0 0.0
  %1320 = vmatprep.subr.mxu0 0.0
  %1321 = vmatpush1.msra.mxu0 0.0
  %1322 = vmatprep.subr.mxu0 0.0
  %1323 = vmatpush1.msra.mxu0 0.0
  %1324 = vmatprep.subr.mxu0 0.0
  %1325 = vmatpush1.msra.mxu0 0.0
  %1326 = vmatprep.subr.mxu0 0.0
  %1327 = vmatpush1.msra.mxu0 0.0
  %1328 = vmatprep.subr.mxu0 0.0
  %1329 = vmatpush1.msra.mxu0 0.0
  %1330 = vmatprep.subr.mxu0 0.0
  %1331 = vmatpush1.msra.mxu0 0.0
  %1332 = vmatprep.subr.mxu0 0.0
  %1333 = vmatpush1.msra.mxu0 0.0
  %1334 = vmatprep.subr.mxu0 0.0
  %1335 = vmatpush1.msra.mxu0 0.0
  %1336 = vmatprep.subr.mxu0 0.0
  %1337 = vmatpush1.msra.mxu0 0.0
  %1338 = vmatprep.subr.mxu0 0.0
  %1339 = vmatpush1.msra.mxu0 0.0
  %1340 = vmatprep.subr.mxu0 0.0
  %1341 = vmatpush1.msra.mxu0 0.0
  %1342 = vmatprep.subr.mxu0 0.0
  %1343 = vmatpush1.msra.mxu0 0.0
  %1344 = vmatprep.subr.mxu0 0.0
  %1345 = vmatpush1.msra.mxu0 0.0
  %1346 = vmatprep.subr.mxu0 0.0
  %1347 = vmatpush1.msra.mxu0 0.0
  %1348 = vmatprep.subr.mxu0 0.0
  %1349 = vmatpush1.msra.mxu0 0.0
  %1350 = vmatprep.subr.mxu0 0.0
  %1351 = vmatpush1.msra.mxu0 0.0
  %1352 = vmatprep.subr.mxu0 0.0
  %1353 = vmatpush1.msra.mxu0 0.0
  %1354 = vmatprep.subr.mxu0 0.0
  %1355 = vmatpush1.msra.mxu0 0.0
  %1356 = vmatprep.subr.mxu0 0.0
  %1357 = vmatpush1.msra.mxu0 0.0
  %1358 = vmatprep.subr.mxu0 0.0
  %1359 = vmatpush1.msra.mxu0 0.0
  %1360 = vmatprep.subr.mxu0 0.0
  %1361 = vmatpush1.msra.mxu0 0.0
  %1362 = vmatprep.mubr.f32.mxu0 0.0
  %1363 = vmatmul.mubr.f32.gmra.mrb[0].mxu0 %v231
  %v1364 = vpop.f32.mrb[0].mxu0
  %v1365 = vadd.f32 0.0, %v1364
  %v1366 = vpop.f32.mrb[0].mxu0
  %v1367 = vadd.f32 0.0, %v1366
  %1368 = vdwg.mxu0
  %v1369 = vadd.f32 %v1296, %v1365
  %v1370 = vadd.f32 %v1297, %v1367
  %v1371 = vtanh.pop %v1369
  %v1372 = vtanh.pop %v1370
  %v1373 = vmul.f32 %v1371, 0.5
  %v1374 = vmul.f32 %v1372, 0.5
  %v1375 = vadd.f32 %v1373, 0.5
  %v1376 = vadd.f32 %v1374, 0.5
  %v1377 = vmul.f32 %v1375, 0.0
  %1379 = vrot.lane.b32.xlu0 %v1372, 64
  %v1380 = vpop.permute.xlu0 %1379
  %v1382 = vmul.f32 %v1375, %v1380
  %1384 = vrot.lane.b32.xlu0 %v1382, 64
  %v1385 = vpop.permute.xlu0 %1384
  %v1387 = vadd.f32 %v1377, %v1385
  %v1388 = vtanh.pop %v1387
  %1390 = vrot.lane.b32.xlu0 %v1388, 64
  %v1391 = vpop.permute.xlu0 %1390
  %v1393 = vmul.f32 %v1376, %v1391
  %1394 = vst.msk [vmem:[#allocation2] sm:$0xff] %vm329, %v1393
  %1395 = vst.msk [vmem:[#allocation2 + $0x38] sm:$0xff] %vm331, %v1393
  %1397 = vrot.lane.b32.xlu0 %v1393, 64
  %v1398 = vpop.permute.xlu0 %1397
  %1400 = vst.msk [vmem:[#allocation2 + $0x38] sm:$0xff] %vm337, %v1398
  %1401 = vst.msk [vmem:[#allocation2] sm:$0xff] %vm339, %v1398
  %v1402 = vld [vmem:[#allocation3 + $0x10] sm:$0xff]
  %v1403 = vld [vmem:[#allocation3 + $0x18] sm:$0xff]
  %v1404 = vsel %vm229, %v1393, 0
  %1406 = vmatprep.subr.mxu0 %v1131
  %1407 = vmatpush1.msra.mxu0 %v1130
  %1408 = vmatprep.subr.mxu0 %v1133
  %1409 = vmatpush1.msra.mxu0 %v1132
  %1410 = vmatprep.subr.mxu0 %v1135
  %1411 = vmatpush1.msra.mxu0 %v1134
  %1412 = vmatprep.subr.mxu0 %v1137
  %1413 = vmatpush1.msra.mxu0 %v1136
  %1414 = vmatprep.subr.mxu0 %v1139
  %1415 = vmatpush1.msra.mxu0 %v1138
  %1416 = vmatprep.subr.mxu0 %v1141
  %1417 = vmatpush1.msra.mxu0 %v1140
  %1418 = vmatprep.subr.mxu0 %v1143
  %1419 = vmatpush1.msra.mxu0 %v1142
  %1420 = vmatprep.subr.mxu0 %v1145
  %1421 = vmatpush1.msra.mxu0 %v1144
  %1422 = vmatprep.subr.mxu0 0.0
  %1423 = vmatpush1.msra.mxu0 0.0
  %1424 = vmatprep.subr.mxu0 0.0
  %1425 = vmatpush1.msra.mxu0 0.0
  %1426 = vmatprep.subr.mxu0 0.0
  %1427 = vmatpush1.msra.mxu0 0.0
  %1428 = vmatprep.subr.mxu0 0.0
  %1429 = vmatpush1.msra.mxu0 0.0
  %1430 = vmatprep.subr.mxu0 0.0
  %1431 = vmatpush1.msra.mxu0 0.0
  %1432 = vmatprep.subr.mxu0 0.0
  %1433 = vmatpush1.msra.mxu0 0.0
  %1434 = vmatprep.subr.mxu0 0.0
  %1435 = vmatpush1.msra.mxu0 0.0
  %1436 = vmatprep.subr.mxu0 0.0
  %1437 = vmatpush1.msra.mxu0 0.0
  %1438 = vmatprep.subr.mxu0 0.0
  %1439 = vmatpush1.msra.mxu0 0.0
  %1440 = vmatprep.subr.mxu0 0.0
  %1441 = vmatpush1.msra.mxu0 0.0
  %1442 = vmatprep.subr.mxu0 0.0
  %1443 = vmatpush1.msra.mxu0 0.0
  %1444 = vmatprep.subr.mxu0 0.0
  %1445 = vmatpush1.msra.mxu0 0.0
  %1446 = vmatprep.subr.mxu0 0.0
  %1447 = vmatpush1.msra.mxu0 0.0
  %1448 = vmatprep.subr.mxu0 0.0
  %1449 = vmatpush1.msra.mxu0 0.0
  %1450 = vmatprep.subr.mxu0 0.0
  %1451 = vmatpush1.msra.mxu0 0.0
  %1452 = vmatprep.subr.mxu0 0.0
  %1453 = vmatpush1.msra.mxu0 0.0
  %1454 = vmatprep.subr.mxu0 0.0
  %1455 = vmatpush1.msra.mxu0 0.0
  %1456 = vmatprep.subr.mxu0 0.0
  %1457 = vmatpush1.msra.mxu0 0.0
  %1458 = vmatprep.subr.mxu0 0.0
  %1459 = vmatpush1.msra.mxu0 0.0
  %1460 = vmatprep.subr.mxu0 0.0
  %1461 = vmatpush1.msra.mxu0 0.0
  %1462 = vmatprep.subr.mxu0 0.0
  %1463 = vmatpush1.msra.mxu0 0.0
  %1464 = vmatprep.subr.mxu0 0.0
  %1465 = vmatpush1.msra.mxu0 0.0
  %1466 = vmatprep.subr.mxu0 0.0
  %1467 = vmatpush1.msra.mxu0 0.0
  %1468 = vmatprep.subr.mxu0 0.0
  %1469 = vmatpush1.msra.mxu0 0.0
  %1470 = vmatprep.mubr.f32.mxu0 0.0
  %1471 = vmatmul.mubr.f32.gmra.mrb[0].mxu0 %v1404
  %v1472 = vpop.f32.mrb[0].mxu0
  %v1473 = vadd.f32 0.0, %v1472
  %v1474 = vpop.f32.mrb[0].mxu0
  %v1475 = vadd.f32 0.0, %v1474
  %1476 = vdwg.mxu0
  %v1477 = vadd.f32 %v1402, %v1473
  %v1478 = vadd.f32 %v1403, %v1475
  %v1479 = vtanh.pop %v1477
  %v1480 = vtanh.pop %v1478
  %v1481 = vmul.f32 %v1479, 0.5
  %v1482 = vmul.f32 %v1480, 0.5
  %v1483 = vadd.f32 %v1481, 0.5
  %v1484 = vadd.f32 %v1482, 0.5
  %v1485 = vmul.f32 %v1483, %v1387
  %1487 = vrot.lane.b32.xlu0 %v1480, 64
  %v1488 = vpop.permute.xlu0 %1487
  %v1490 = vmul.f32 %v1483, %v1488
  %1492 = vrot.lane.b32.xlu0 %v1490, 64
  %v1493 = vpop.permute.xlu0 %1492
  %v1495 = vadd.f32 %v1485, %v1493
  %v1496 = vtanh.pop %v1495
  %1498 = vrot.lane.b32.xlu0 %v1496, 64
  %v1499 = vpop.permute.xlu0 %1498
  %v1501 = vmul.f32 %v1484, %v1499
  %1502 = vst.msk [vmem:[#allocation2 + $0x8] sm:$0xff] %vm329, %v1501
  %1503 = vst.msk [vmem:[#allocation2 + $0x30] sm:$0xff] %vm331, %v1501
  %1505 = vrot.lane.b32.xlu0 %v1501, 64
  %v1506 = vpop.permute.xlu0 %1505
  %1508 = vst.msk [vmem:[#allocation2 + $0x30] sm:$0xff] %vm337, %v1506
  %1509 = vst.msk [vmem:[#allocation2 + $0x8] sm:$0xff] %vm339, %v1506
  %v1510 = vld [vmem:[#allocation3 + $0x20] sm:$0xff]
  %v1511 = vld [vmem:[#allocation3 + $0x28] sm:$0xff]
  %v1512 = vsel %vm229, %v1501, 0
  %1514 = vmatprep.subr.mxu0 %v1131
  %1515 = vmatpush1.msra.mxu0 %v1130
  %1516 = vmatprep.subr.mxu0 %v1133
  %1517 = vmatpush1.msra.mxu0 %v1132
  %1518 = vmatprep.subr.mxu0 %v1135
  %1519 = vmatpush1.msra.mxu0 %v1134
  %1520 = vmatprep.subr.mxu0 %v1137
  %1521 = vmatpush1.msra.mxu0 %v1136
  %1522 = vmatprep.subr.mxu0 %v1139
  %1523 = vmatpush1.msra.mxu0 %v1138
  %1524 = vmatprep.subr.mxu0 %v1141
  %1525 = vmatpush1.msra.mxu0 %v1140
  %1526 = vmatprep.subr.mxu0 %v1143
  %1527 = vmatpush1.msra.mxu0 %v1142
  %1528 = vmatprep.subr.mxu0 %v1145
  %1529 = vmatpush1.msra.mxu0 %v1144
  %1530 = vmatprep.subr.mxu0 0.0
  %1531 = vmatpush1.msra.mxu0 0.0
  %1532 = vmatprep.subr.mxu0 0.0
  %1533 = vmatpush1.msra.mxu0 0.0
  %1534 = vmatprep.subr.mxu0 0.0
  %1535 = vmatpush1.msra.mxu0 0.0
  %1536 = vmatprep.subr.mxu0 0.0
  %1537 = vmatpush1.msra.mxu0 0.0
  %1538 = vmatprep.subr.mxu0 0.0
  %1539 = vmatpush1.msra.mxu0 0.0
  %1540 = vmatprep.subr.mxu0 0.0
  %1541 = vmatpush1.msra.mxu0 0.0
  %1542 = vmatprep.subr.mxu0 0.0
  %1543 = vmatpush1.msra.mxu0 0.0
  %1544 = vmatprep.subr.mxu0 0.0
  %1545 = vmatpush1.msra.mxu0 0.0
  %1546 = vmatprep.subr.mxu0 0.0
  %1547 = vmatpush1.msra.mxu0 0.0
  %1548 = vmatprep.subr.mxu0 0.0
  %1549 = vmatpush1.msra.mxu0 0.0
  %1550 = vmatprep.subr.mxu0 0.0
  %1551 = vmatpush1.msra.mxu0 0.0
  %1552 = vmatprep.subr.mxu0 0.0
  %1553 = vmatpush1.msra.mxu0 0.0
  %1554 = vmatprep.subr.mxu0 0.0
  %1555 = vmatpush1.msra.mxu0 0.0
  %1556 = vmatprep.subr.mxu0 0.0
  %1557 = vmatpush1.msra.mxu0 0.0
  %1558 = vmatprep.subr.mxu0 0.0
  %1559 = vmatpush1.msra.mxu0 0.0
  %1560 = vmatprep.subr.mxu0 0.0
  %1561 = vmatpush1.msra.mxu0 0.0
  %1562 = vmatprep.subr.mxu0 0.0
  %1563 = vmatpush1.msra.mxu0 0.0
  %1564 = vmatprep.subr.mxu0 0.0
  %1565 = vmatpush1.msra.mxu0 0.0
  %1566 = vmatprep.subr.mxu0 0.0
  %1567 = vmatpush1.msra.mxu0 0.0
  %1568 = vmatprep.subr.mxu0 0.0
  %1569 = vmatpush1.msra.mxu0 0.0
  %1570 = vmatprep.subr.mxu0 0.0
  %1571 = vmatpush1.msra.mxu0 0.0
  %1572 = vmatprep.subr.mxu0 0.0
  %1573 = vmatpush1.msra.mxu0 0.0
  %1574 = vmatprep.subr.mxu0 0.0
  %1575 = vmatpush1.msra.mxu0 0.0
  %1576 = vmatprep.subr.mxu0 0.0
  %1577 = vmatpush1.msra.mxu0 0.0
  %1578 = vmatprep.mubr.f32.mxu0 0.0
  %1579 = vmatmul.mubr.f32.gmra.mrb[0].mxu0 %v1512
  %v1580 = vpop.f32.mrb[0].mxu0
  %v1581 = vadd.f32 0.0, %v1580
  %v1582 = vpop.f32.mrb[0].mxu0
  %v1583 = vadd.f32 0.0, %v1582
  %1584 = vdwg.mxu0
  %v1585 = vadd.f32 %v1510, %v1581
  %v1586 = vadd.f32 %v1511, %v1583
  %v1587 = vtanh.pop %v1585
  %v1588 = vtanh.pop %v1586
  %v1589 = vmul.f32 %v1587, 0.5
  %v1590 = vmul.f32 %v1588, 0.5
  %v1591 = vadd.f32 %v1589, 0.5
  %v1592 = vadd.f32 %v1590, 0.5
  %v1593 = vmul.f32 %v1591, %v1495
  %1595 = vrot.lane.b32.xlu0 %v1588, 64
  %v1596 = vpop.permute.xlu0 %1595
  %v1598 = vmul.f32 %v1591, %v1596
  %1600 = vrot.lane.b32.xlu0 %v1598, 64
  %v1601 = vpop.permute.xlu0 %1600
  %v1603 = vadd.f32 %v1593, %v1601
  %v1604 = vtanh.pop %v1603
  %1606 = vrot.lane.b32.xlu0 %v1604, 64
  %v1607 = vpop.permute.xlu0 %1606
  %v1609 = vmul.f32 %v1592, %v1607
  %1610 = vst.msk [vmem:[#allocation2 + $0x10] sm:$0xff] %vm329, %v1609
  %1611 = vst.msk [vmem:[#allocation2 + $0x28] sm:$0xff] %vm331, %v1609
  %1613 = vrot.lane.b32.xlu0 %v1609, 64
  %v1614 = vpop.permute.xlu0 %1613
  %1616 = vst.msk [vmem:[#allocation2 + $0x28] sm:$0xff] %vm337, %v1614
  %1617 = vst.msk [vmem:[#allocation2 + $0x10] sm:$0xff] %vm339, %v1614
  %v1618 = vld [vmem:[#allocation3 + $0x30] sm:$0xff]
  %v1619 = vld [vmem:[#allocation3 + $0x38] sm:$0xff]
  %v1620 = vsel %vm229, %v1609, 0
  %1622 = vmatprep.subr.mxu0 %v1131
  %1623 = vmatpush1.msra.mxu0 %v1130
  %1624 = vmatprep.subr.mxu0 %v1133
  %1625 = vmatpush1.msra.mxu0 %v1132
  %1626 = vmatprep.subr.mxu0 %v1135
  %1627 = vmatpush1.msra.mxu0 %v1134
  %1628 = vmatprep.subr.mxu0 %v1137
  %1629 = vmatpush1.msra.mxu0 %v1136
  %1630 = vmatprep.subr.mxu0 %v1139
  %1631 = vmatpush1.msra.mxu0 %v1138
  %1632 = vmatprep.subr.mxu0 %v1141
  %1633 = vmatpush1.msra.mxu0 %v1140
  %1634 = vmatprep.subr.mxu0 %v1143
  %1635 = vmatpush1.msra.mxu0 %v1142
  %1636 = vmatprep.subr.mxu0 %v1145
  %1637 = vmatpush1.msra.mxu0 %v1144
  %1638 = vmatprep.subr.mxu0 0.0
  %1639 = vmatpush1.msra.mxu0 0.0
  %1640 = vmatprep.subr.mxu0 0.0
  %1641 = vmatpush1.msra.mxu0 0.0
  %1642 = vmatprep.subr.mxu0 0.0
  %1643 = vmatpush1.msra.mxu0 0.0
  %1644 = vmatprep.subr.mxu0 0.0
  %1645 = vmatpush1.msra.mxu0 0.0
  %1646 = vmatprep.subr.mxu0 0.0
  %1647 = vmatpush1.msra.mxu0 0.0
  %1648 = vmatprep.subr.mxu0 0.0
  %1649 = vmatpush1.msra.mxu0 0.0
  %1650 = vmatprep.subr.mxu0 0.0
  %1651 = vmatpush1.msra.mxu0 0.0
  %1652 = vmatprep.subr.mxu0 0.0
  %1653 = vmatpush1.msra.mxu0 0.0
  %1654 = vmatprep.subr.mxu0 0.0
  %1655 = vmatpush1.msra.mxu0 0.0
  %1656 = vmatprep.subr.mxu0 0.0
  %1657 = vmatpush1.msra.mxu0 0.0
  %1658 = vmatprep.subr.mxu0 0.0
  %1659 = vmatpush1.msra.mxu0 0.0
  %1660 = vmatprep.subr.mxu0 0.0
  %1661 = vmatpush1.msra.mxu0 0.0
  %1662 = vmatprep.subr.mxu0 0.0
  %1663 = vmatpush1.msra.mxu0 0.0
  %1664 = vmatprep.subr.mxu0 0.0
  %1665 = vmatpush1.msra.mxu0 0.0
  %1666 = vmatprep.subr.mxu0 0.0
  %1667 = vmatpush1.msra.mxu0 0.0
  %1668 = vmatprep.subr.mxu0 0.0
  %1669 = vmatpush1.msra.mxu0 0.0
  %1670 = vmatprep.subr.mxu0 0.0
  %1671 = vmatpush1.msra.mxu0 0.0
  %1672 = vmatprep.subr.mxu0 0.0
  %1673 = vmatpush1.msra.mxu0 0.0
  %1674 = vmatprep.subr.mxu0 0.0
  %1675 = vmatpush1.msra.mxu0 0.0
  %1676 = vmatprep.subr.mxu0 0.0
  %1677 = vmatpush1.msra.mxu0 0.0
  %1678 = vmatprep.subr.mxu0 0.0
  %1679 = vmatpush1.msra.mxu0 0.0
  %1680 = vmatprep.subr.mxu0 0.0
  %1681 = vmatpush1.msra.mxu0 0.0
  %1682 = vmatprep.subr.mxu0 0.0
  %1683 = vmatpush1.msra.mxu0 0.0
  %1684 = vmatprep.subr.mxu0 0.0
  %1685 = vmatpush1.msra.mxu0 0.0
  %1686 = vmatprep.mubr.f32.mxu0 0.0
  %1687 = vmatmul.mubr.f32.gmra.mrb[0].mxu0 %v1620
  %v1688 = vpop.f32.mrb[0].mxu0
  %v1689 = vadd.f32 0.0, %v1688
  %v1690 = vpop.f32.mrb[0].mxu0
  %v1691 = vadd.f32 0.0, %v1690
  %1692 = vdwg.mxu0
  %v1693 = vadd.f32 %v1618, %v1689
  %v1694 = vadd.f32 %v1619, %v1691
  %v1695 = vtanh.pop %v1693
  %v1696 = vtanh.pop %v1694
  %v1697 = vmul.f32 %v1695, 0.5
  %v1698 = vmul.f32 %v1696, 0.5
  %v1699 = vadd.f32 %v1697, 0.5
  %v1700 = vadd.f32 %v1698, 0.5
  %v1701 = vmul.f32 %v1699, %v1603
  %1703 = vrot.lane.b32.xlu0 %v1696, 64
  %v1704 = vpop.permute.xlu0 %1703
  %v1706 = vmul.f32 %v1699, %v1704
  %1708 = vrot.lane.b32.xlu0 %v1706, 64
  %v1709 = vpop.permute.xlu0 %1708
  %v1711 = vadd.f32 %v1701, %v1709
  %v1712 = vtanh.pop %v1711
  %1714 = vrot.lane.b32.xlu0 %v1712, 64
  %v1715 = vpop.permute.xlu0 %1714
  %v1717 = vmul.f32 %v1700, %v1715
  %1718 = vst.msk [vmem:[#allocation2 + $0x18] sm:$0xff] %vm329, %v1717
  %1719 = vst.msk [vmem:[#allocation2 + $0x20] sm:$0xff] %vm331, %v1717
  %1721 = vrot.lane.b32.xlu0 %v1717, 64
  %v1722 = vpop.permute.xlu0 %1721
  %1724 = vst.msk [vmem:[#allocation2 + $0x20] sm:$0xff] %vm337, %v1722
  %1725 = vst.msk [vmem:[#allocation2 + $0x18] sm:$0xff] %vm339, %v1722
  %v1726 = vld [vmem:[#allocation3 + $0x40] sm:$0xff]
  %v1727 = vld [vmem:[#allocation3 + $0x48] sm:$0xff]
  %v1728 = vsel %vm229, %v1717, 0
  %1730 = vmatprep.subr.mxu0 %v1131
  %1731 = vmatpush1.msra.mxu0 %v1130
  %1732 = vmatprep.subr.mxu0 %v1133
  %1733 = vmatpush1.msra.mxu0 %v1132
  %1734 = vmatprep.subr.mxu0 %v1135
  %1735 = vmatpush1.msra.mxu0 %v1134
  %1736 = vmatprep.subr.mxu0 %v1137
  %1737 = vmatpush1.msra.mxu0 %v1136
  %1738 = vmatprep.subr.mxu0 %v1139
  %1739 = vmatpush1.msra.mxu0 %v1138
  %1740 = vmatprep.subr.mxu0 %v1141
  %1741 = vmatpush1.msra.mxu0 %v1140
  %1742 = vmatprep.subr.mxu0 %v1143
  %1743 = vmatpush1.msra.mxu0 %v1142
  %1744 = vmatprep.subr.mxu0 %v1145
  %1745 = vmatpush1.msra.mxu0 %v1144
  %1746 = vmatprep.subr.mxu0 0.0
  %1747 = vmatpush1.msra.mxu0 0.0
  %1748 = vmatprep.subr.mxu0 0.0
  %1749 = vmatpush1.msra.mxu0 0.0
  %1750 = vmatprep.subr.mxu0 0.0
  %1751 = vmatpush1.msra.mxu0 0.0
  %1752 = vmatprep.subr.mxu0 0.0
  %1753 = vmatpush1.msra.mxu0 0.0
  %1754 = vmatprep.subr.mxu0 0.0
  %1755 = vmatpush1.msra.mxu0 0.0
  %1756 = vmatprep.subr.mxu0 0.0
  %1757 = vmatpush1.msra.mxu0 0.0
  %1758 = vmatprep.subr.mxu0 0.0
  %1759 = vmatpush1.msra.mxu0 0.0
  %1760 = vmatprep.subr.mxu0 0.0
  %1761 = vmatpush1.msra.mxu0 0.0
  %1762 = vmatprep.subr.mxu0 0.0
  %1763 = vmatpush1.msra.mxu0 0.0
  %1764 = vmatprep.subr.mxu0 0.0
  %1765 = vmatpush1.msra.mxu0 0.0
  %1766 = vmatprep.subr.mxu0 0.0
  %1767 = vmatpush1.msra.mxu0 0.0
  %1768 = vmatprep.subr.mxu0 0.0
  %1769 = vmatpush1.msra.mxu0 0.0
  %1770 = vmatprep.subr.mxu0 0.0
  %1771 = vmatpush1.msra.mxu0 0.0
  %1772 = vmatprep.subr.mxu0 0.0
  %1773 = vmatpush1.msra.mxu0 0.0
  %1774 = vmatprep.subr.mxu0 0.0
  %1775 = vmatpush1.msra.mxu0 0.0
  %1776 = vmatprep.subr.mxu0 0.0
  %1777 = vmatpush1.msra.mxu0 0.0
  %1778 = vmatprep.subr.mxu0 0.0
  %1779 = vmatpush1.msra.mxu0 0.0
  %1780 = vmatprep.subr.mxu0 0.0
  %1781 = vmatpush1.msra.mxu0 0.0
  %1782 = vmatprep.subr.mxu0 0.0
  %1783 = vmatpush1.msra.mxu0 0.0
  %1784 = vmatprep.subr.mxu0 0.0
  %1785 = vmatpush1.msra.mxu0 0.0
  %1786 = vmatprep.subr.mxu0 0.0
  %1787 = vmatpush1.msra.mxu0 0.0
  %1788 = vmatprep.subr.mxu0 0.0
  %1789 = vmatpush1.msra.mxu0 0.0
  %1790 = vmatprep.subr.mxu0 0.0
  %1791 = vmatpush1.msra.mxu0 0.0
  %1792 = vmatprep.subr.mxu0 0.0
  %1793 = vmatpush1.msra.mxu0 0.0
  %1794 = vmatprep.mubr.f32.mxu0 0.0
  %1795 = vmatmul.mubr.f32.gmra.mrb[0].mxu0 %v1728
  %v1796 = vpop.f32.mrb[0].mxu0
  %v1797 = vadd.f32 0.0, %v1796
  %v1798 = vpop.f32.mrb[0].mxu0
  %v1799 = vadd.f32 0.0, %v1798
  %1800 = vdwg.mxu0
  %v1801 = vadd.f32 %v1726, %v1797
  %v1802 = vadd.f32 %v1727, %v1799
  %v1803 = vtanh.pop %v1801
  %v1804 = vtanh.pop %v1802
  %v1805 = vmul.f32 %v1803, 0.5
  %v1806 = vmul.f32 %v1804, 0.5
  %v1807 = vadd.f32 %v1805, 0.5
  %v1808 = vadd.f32 %v1806, 0.5
  %v1809 = vmul.f32 %v1807, %v1711
  %1811 = vrot.lane.b32.xlu0 %v1804, 64
  %v1812 = vpop.permute.xlu0 %1811
  %v1814 = vmul.f32 %v1807, %v1812
  %1816 = vrot.lane.b32.xlu0 %v1814, 64
  %v1817 = vpop.permute.xlu0 %1816
  %v1819 = vadd.f32 %v1809, %v1817
  %v1820 = vtanh.pop %v1819
  %1822 = vrot.lane.b32.xlu0 %v1820, 64
  %v1823 = vpop.permute.xlu0 %1822
  %v1825 = vmul.f32 %v1808, %v1823
  %1826 = vst.msk [vmem:[#allocation2 + $0x20] sm:$0xff] %vm329, %v1825
  %1827 = vst.msk [vmem:[#allocation2 + $0x18] sm:$0xff] %vm331, %v1825
  %1829 = vrot.lane.b32.xlu0 %v1825, 64
  %v1830 = vpop.permute.xlu0 %1829
  %1832 = vst.msk [vmem:[#allocation2 + $0x18] sm:$0xff] %vm337, %v1830
  %1833 = vst.msk [vmem:[#allocation2 + $0x20] sm:$0xff] %vm339, %v1830
  %v1834 = vld [vmem:[#allocation3 + $0x50] sm:$0xff]
  %v1835 = vld [vmem:[#allocation3 + $0x58] sm:$0xff]
  %v1836 = vsel %vm229, %v1825, 0
  %1838 = vmatprep.subr.mxu0 %v1131
  %1839 = vmatpush1.msra.mxu0 %v1130
  %1840 = vmatprep.subr.mxu0 %v1133
  %1841 = vmatpush1.msra.mxu0 %v1132
  %1842 = vmatprep.subr.mxu0 %v1135
  %1843 = vmatpush1.msra.mxu0 %v1134
  %1844 = vmatprep.subr.mxu0 %v1137
  %1845 = vmatpush1.msra.mxu0 %v1136
  %1846 = vmatprep.subr.mxu0 %v1139
  %1847 = vmatpush1.msra.mxu0 %v1138
  %1848 = vmatprep.subr.mxu0 %v1141
  %1849 = vmatpush1.msra.mxu0 %v1140
  %1850 = vmatprep.subr.mxu0 %v1143
  %1851 = vmatpush1.msra.mxu0 %v1142
  %1852 = vmatprep.subr.mxu0 %v1145
  %1853 = vmatpush1.msra.mxu0 %v1144
  %1854 = vmatprep.subr.mxu0 0.0
  %1855 = vmatpush1.msra.mxu0 0.0
  %1856 = vmatprep.subr.mxu0 0.0
  %1857 = vmatpush1.msra.mxu0 0.0
  %1858 = vmatprep.subr.mxu0 0.0
  %1859 = vmatpush1.msra.mxu0 0.0
  %1860 = vmatprep.subr.mxu0 0.0
  %1861 = vmatpush1.msra.mxu0 0.0
  %1862 = vmatprep.subr.mxu0 0.0
  %1863 = vmatpush1.msra.mxu0 0.0
  %1864 = vmatprep.subr.mxu0 0.0
  %1865 = vmatpush1.msra.mxu0 0.0
  %1866 = vmatprep.subr.mxu0 0.0
  %1867 = vmatpush1.msra.mxu0 0.0
  %1868 = vmatprep.subr.mxu0 0.0
  %1869 = vmatpush1.msra.mxu0 0.0
  %1870 = vmatprep.subr.mxu0 0.0
  %1871 = vmatpush1.msra.mxu0 0.0
  %1872 = vmatprep.subr.mxu0 0.0
  %1873 = vmatpush1.msra.mxu0 0.0
  %1874 = vmatprep.subr.mxu0 0.0
  %1875 = vmatpush1.msra.mxu0 0.0
  %1876 = vmatprep.subr.mxu0 0.0
  %1877 = vmatpush1.msra.mxu0 0.0
  %1878 = vmatprep.subr.mxu0 0.0
  %1879 = vmatpush1.msra.mxu0 0.0
  %1880 = vmatprep.subr.mxu0 0.0
  %1881 = vmatpush1.msra.mxu0 0.0
  %1882 = vmatprep.subr.mxu0 0.0
  %1883 = vmatpush1.msra.mxu0 0.0
  %1884 = vmatprep.subr.mxu0 0.0
  %1885 = vmatpush1.msra.mxu0 0.0
  %1886 = vmatprep.subr.mxu0 0.0
  %1887 = vmatpush1.msra.mxu0 0.0
  %1888 = vmatprep.subr.mxu0 0.0
  %1889 = vmatpush1.msra.mxu0 0.0
  %1890 = vmatprep.subr.mxu0 0.0
  %1891 = vmatpush1.msra.mxu0 0.0
  %1892 = vmatprep.subr.mxu0 0.0
  %1893 = vmatpush1.msra.mxu0 0.0
  %1894 = vmatprep.subr.mxu0 0.0
  %1895 = vmatpush1.msra.mxu0 0.0
  %1896 = vmatprep.subr.mxu0 0.0
  %1897 = vmatpush1.msra.mxu0 0.0
  %1898 = vmatprep.subr.mxu0 0.0
  %1899 = vmatpush1.msra.mxu0 0.0
  %1900 = vmatprep.subr.mxu0 0.0
  %1901 = vmatpush1.msra.mxu0 0.0
  %1902 = vmatprep.mubr.f32.mxu0 0.0
  %1903 = vmatmul.mubr.f32.gmra.mrb[0].mxu0 %v1836
  %v1904 = vpop.f32.mrb[0].mxu0
  %v1905 = vadd.f32 0.0, %v1904
  %v1906 = vpop.f32.mrb[0].mxu0
  %v1907 = vadd.f32 0.0, %v1906
  %1908 = vdwg.mxu0
  %v1909 = vadd.f32 %v1834, %v1905
  %v1910 = vadd.f32 %v1835, %v1907
  %v1911 = vtanh.pop %v1909
  %v1912 = vtanh.pop %v1910
  %v1913 = vmul.f32 %v1911, 0.5
  %v1914 = vmul.f32 %v1912, 0.5
  %v1915 = vadd.f32 %v1913, 0.5
  %v1916 = vadd.f32 %v1914, 0.5
  %v1917 = vmul.f32 %v1915, %v1819
  %1919 = vrot.lane.b32.xlu0 %v1912, 64
  %v1920 = vpop.permute.xlu0 %1919
  %v1922 = vmul.f32 %v1915, %v1920
  %1924 = vrot.lane.b32.xlu0 %v1922, 64
  %v1925 = vpop.permute.xlu0 %1924
  %v1927 = vadd.f32 %v1917, %v1925
  %v1928 = vtanh.pop %v1927
  %1930 = vrot.lane.b32.xlu0 %v1928, 64
  %v1931 = vpop.permute.xlu0 %1930
  %v1933 = vmul.f32 %v1916, %v1931
  %1934 = vst.msk [vmem:[#allocation2 + $0x28] sm:$0xff] %vm329, %v1933
  %1935 = vst.msk [vmem:[#allocation2 + $0x10] sm:$0xff] %vm331, %v1933
  %1937 = vrot.lane.b32.xlu0 %v1933, 64
  %v1938 = vpop.permute.xlu0 %1937
  %1940 = vst.msk [vmem:[#allocation2 + $0x10] sm:$0xff] %vm337, %v1938
  %1941 = vst.msk [vmem:[#allocation2 + $0x28] sm:$0xff] %vm339, %v1938
  %v1942 = vld [vmem:[#allocation3 + $0x60] sm:$0xff]
  %v1943 = vld [vmem:[#allocation3 + $0x68] sm:$0xff]
  %v1944 = vsel %vm229, %v1933, 0
  %1946 = vmatprep.subr.mxu0 %v1131
  %1947 = vmatpush1.msra.mxu0 %v1130
  %1948 = vmatprep.subr.mxu0 %v1133
  %1949 = vmatpush1.msra.mxu0 %v1132
  %1950 = vmatprep.subr.mxu0 %v1135
  %1951 = vmatpush1.msra.mxu0 %v1134
  %1952 = vmatprep.subr.mxu0 %v1137
  %1953 = vmatpush1.msra.mxu0 %v1136
  %1954 = vmatprep.subr.mxu0 %v1139
  %1955 = vmatpush1.msra.mxu0 %v1138
  %1956 = vmatprep.subr.mxu0 %v1141
  %1957 = vmatpush1.msra.mxu0 %v1140
  %1958 = vmatprep.subr.mxu0 %v1143
  %1959 = vmatpush1.msra.mxu0 %v1142
  %1960 = vmatprep.subr.mxu0 %v1145
  %1961 = vmatpush1.msra.mxu0 %v1144
  %1962 = vmatprep.subr.mxu0 0.0
  %1963 = vmatpush1.msra.mxu0 0.0
  %1964 = vmatprep.subr.mxu0 0.0
  %1965 = vmatpush1.msra.mxu0 0.0
  %1966 = vmatprep.subr.mxu0 0.0
  %1967 = vmatpush1.msra.mxu0 0.0
  %1968 = vmatprep.subr.mxu0 0.0
  %1969 = vmatpush1.msra.mxu0 0.0
  %1970 = vmatprep.subr.mxu0 0.0
  %1971 = vmatpush1.msra.mxu0 0.0
  %1972 = vmatprep.subr.mxu0 0.0
  %1973 = vmatpush1.msra.mxu0 0.0
  %1974 = vmatprep.subr.mxu0 0.0
  %1975 = vmatpush1.msra.mxu0 0.0
  %1976 = vmatprep.subr.mxu0 0.0
  %1977 = vmatpush1.msra.mxu0 0.0
  %1978 = vmatprep.subr.mxu0 0.0
  %1979 = vmatpush1.msra.mxu0 0.0
  %1980 = vmatprep.subr.mxu0 0.0
  %1981 = vmatpush1.msra.mxu0 0.0
  %1982 = vmatprep.subr.mxu0 0.0
  %1983 = vmatpush1.msra.mxu0 0.0
  %1984 = vmatprep.subr.mxu0 0.0
  %1985 = vmatpush1.msra.mxu0 0.0
  %1986 = vmatprep.subr.mxu0 0.0
  %1987 = vmatpush1.msra.mxu0 0.0
  %1988 = vmatprep.subr.mxu0 0.0
  %1989 = vmatpush1.msra.mxu0 0.0
  %1990 = vmatprep.subr.mxu0 0.0
  %1991 = vmatpush1.msra.mxu0 0.0
  %1992 = vmatprep.subr.mxu0 0.0
  %1993 = vmatpush1.msra.mxu0 0.0
  %1994 = vmatprep.subr.mxu0 0.0
  %1995 = vmatpush1.msra.mxu0 0.0
  %1996 = vmatprep.subr.mxu0 0.0
  %1997 = vmatpush1.msra.mxu0 0.0
  %1998 = vmatprep.subr.mxu0 0.0
  %1999 = vmatpush1.msra.mxu0 0.0
  %2000 = vmatprep.subr.mxu0 0.0
  %2001 = vmatpush1.msra.mxu0 0.0
  %2002 = vmatprep.subr.mxu0 0.0
  %2003 = vmatpush1.msra.mxu0 0.0
  %2004 = vmatprep.subr.mxu0 0.0
  %2005 = vmatpush1.msra.mxu0 0.0
  %2006 = vmatprep.subr.mxu0 0.0
  %2007 = vmatpush1.msra.mxu0 0.0
  %2008 = vmatprep.subr.mxu0 0.0
  %2009 = vmatpush1.msra.mxu0 0.0
  %2010 = vmatprep.mubr.f32.mxu0 0.0
  %2011 = vmatmul.mubr.f32.gmra.mrb[0].mxu0 %v1944
  %v2012 = vpop.f32.mrb[0].mxu0
  %v2013 = vadd.f32 0.0, %v2012
  %v2014 = vpop.f32.mrb[0].mxu0
  %v2015 = vadd.f32 0.0, %v2014
  %2016 = vdwg.mxu0
  %v2017 = vadd.f32 %v1942, %v2013
  %v2018 = vadd.f32 %v1943, %v2015
  %v2019 = vtanh.pop %v2017
  %v2020 = vtanh.pop %v2018
  %v2021 = vmul.f32 %v2019, 0.5
  %v2022 = vmul.f32 %v2020, 0.5
  %v2023 = vadd.f32 %v2021, 0.5
  %v2024 = vadd.f32 %v2022, 0.5
  %v2025 = vmul.f32 %v2023, %v1927
  %2027 = vrot.lane.b32.xlu0 %v2020, 64
  %v2028 = vpop.permute.xlu0 %2027
  %v2030 = vmul.f32 %v2023, %v2028
  %2032 = vrot.lane.b32.xlu0 %v2030, 64
  %v2033 = vpop.permute.xlu0 %2032
  %v2035 = vadd.f32 %v2025, %v2033
  %v2036 = vtanh.pop %v2035
  %2038 = vrot.lane.b32.xlu0 %v2036, 64
  %v2039 = vpop.permute.xlu0 %2038
  %v2041 = vmul.f32 %v2024, %v2039
  %2042 = vst.msk [vmem:[#allocation2 + $0x30] sm:$0xff] %vm329, %v2041
  %2043 = vst.msk [vmem:[#allocation2 + $0x8] sm:$0xff] %vm331, %v2041
  %2045 = vrot.lane.b32.xlu0 %v2041, 64
  %v2046 = vpop.permute.xlu0 %2045
  %2048 = vst.msk [vmem:[#allocation2 + $0x8] sm:$0xff] %vm337, %v2046
  %2049 = vst.msk [vmem:[#allocation2 + $0x30] sm:$0xff] %vm339, %v2046
  %v2050 = vld [vmem:[#allocation3 + $0x70] sm:$0xff]
  %v2051 = vld [vmem:[#allocation3 + $0x78] sm:$0xff]
  %v2052 = vsel %vm229, %v2041, 0
  %2054 = vmatprep.subr.mxu0 %v1131
  %2055 = vmatpush1.msra.mxu0 %v1130
  %2056 = vmatprep.subr.mxu0 %v1133
  %2057 = vmatpush1.msra.mxu0 %v1132
  %2058 = vmatprep.subr.mxu0 %v1135
  %2059 = vmatpush1.msra.mxu0 %v1134
  %2060 = vmatprep.subr.mxu0 %v1137
  %2061 = vmatpush1.msra.mxu0 %v1136
  %2062 = vmatprep.subr.mxu0 %v1139
  %2063 = vmatpush1.msra.mxu0 %v1138
  %2064 = vmatprep.subr.mxu0 %v1141
  %2065 = vmatpush1.msra.mxu0 %v1140
  %2066 = vmatprep.subr.mxu0 %v1143
  %2067 = vmatpush1.msra.mxu0 %v1142
  %2068 = vmatprep.subr.mxu0 %v1145
  %2069 = vmatpush1.msra.mxu0 %v1144
  %2070 = vmatprep.subr.mxu0 0.0
  %2071 = vmatpush1.msra.mxu0 0.0
  %2072 = vmatprep.subr.mxu0 0.0
  %2073 = vmatpush1.msra.mxu0 0.0
  %2074 = vmatprep.subr.mxu0 0.0
  %2075 = vmatpush1.msra.mxu0 0.0
  %2076 = vmatprep.subr.mxu0 0.0
  %2077 = vmatpush1.msra.mxu0 0.0
  %2078 = vmatprep.subr.mxu0 0.0
  %2079 = vmatpush1.msra.mxu0 0.0
  %2080 = vmatprep.subr.mxu0 0.0
  %2081 = vmatpush1.msra.mxu0 0.0
  %2082 = vmatprep.subr.mxu0 0.0
  %2083 = vmatpush1.msra.mxu0 0.0
  %2084 = vmatprep.subr.mxu0 0.0
  %2085 = vmatpush1.msra.mxu0 0.0
  %2086 = vmatprep.subr.mxu0 0.0
  %2087 = vmatpush1.msra.mxu0 0.0
  %2088 = vmatprep.subr.mxu0 0.0
  %2089 = vmatpush1.msra.mxu0 0.0
  %2090 = vmatprep.subr.mxu0 0.0
  %2091 = vmatpush1.msra.mxu0 0.0
  %2092 = vmatprep.subr.mxu0 0.0
  %2093 = vmatpush1.msra.mxu0 0.0
  %2094 = vmatprep.subr.mxu0 0.0
  %2095 = vmatpush1.msra.mxu0 0.0
  %2096 = vmatprep.subr.mxu0 0.0
  %2097 = vmatpush1.msra.mxu0 0.0
  %2098 = vmatprep.subr.mxu0 0.0
  %2099 = vmatpush1.msra.mxu0 0.0
  %2100 = vmatprep.subr.mxu0 0.0
  %2101 = vmatpush1.msra.mxu0 0.0
  %2102 = vmatprep.subr.mxu0 0.0
  %2103 = vmatpush1.msra.mxu0 0.0
  %2104 = vmatprep.subr.mxu0 0.0
  %2105 = vmatpush1.msra.mxu0 0.0
  %2106 = vmatprep.subr.mxu0 0.0
  %2107 = vmatpush1.msra.mxu0 0.0
  %2108 = vmatprep.subr.mxu0 0.0
  %2109 = vmatpush1.msra.mxu0 0.0
  %2110 = vmatprep.subr.mxu0 0.0
  %2111 = vmatpush1.msra.mxu0 0.0
  %2112 = vmatprep.subr.mxu0 0.0
  %2113 = vmatpush1.msra.mxu0 0.0
  %2114 = vmatprep.subr.mxu0 0.0
  %2115 = vmatpush1.msra.mxu0 0.0
  %2116 = vmatprep.subr.mxu0 0.0
  %2117 = vmatpush1.msra.mxu0 0.0
  %2118 = vmatprep.mubr.f32.mxu0 0.0
  %2119 = vmatmul.mubr.f32.gmra.mrb[0].mxu0 %v2052
  %v2120 = vpop.f32.mrb[0].mxu0
  %v2121 = vadd.f32 0.0, %v2120
  %v2122 = vpop.f32.mrb[0].mxu0
  %v2123 = vadd.f32 0.0, %v2122
  %2124 = vdwg.mxu0
  %v2125 = vadd.f32 %v2050, %v2121
  %v2126 = vadd.f32 %v2051, %v2123
  %v2127 = vtanh.pop %v2125
  %v2128 = vtanh.pop %v2126
  %v2129 = vmul.f32 %v2127, 0.5
  %v2130 = vmul.f32 %v2128, 0.5
  %v2131 = vadd.f32 %v2129, 0.5
  %v2132 = vadd.f32 %v2130, 0.5
  %v2133 = vmul.f32 %v2131, %v2035
  %2135 = vrot.lane.b32.xlu0 %v2128, 64
  %v2136 = vpop.permute.xlu0 %2135
  %v2138 = vmul.f32 %v2131, %v2136
  %2140 = vrot.lane.b32.xlu0 %v2138, 64
  %v2141 = vpop.permute.xlu0 %2140
  %v2143 = vadd.f32 %v2133, %v2141
  %v2144 = vtanh.pop %v2143
  %2146 = vrot.lane.b32.xlu0 %v2144, 64
  %v2147 = vpop.permute.xlu0 %2146
  %v2149 = vmul.f32 %v2132, %v2147
  %2150 = vst.msk [vmem:[#allocation2 + $0x38] sm:$0xff] %vm329, %v2149
  %2151 = vst.msk [vmem:[#allocation2] sm:$0xff] %vm331, %v2149
  %2153 = vrot.lane.b32.xlu0 %v2149, 64
  %v2154 = vpop.permute.xlu0 %2153
  %2156 = vst.msk [vmem:[#allocation2] sm:$0xff] %vm337, %v2154
  %2157 = vst.msk [vmem:[#allocation2 + $0x38] sm:$0xff] %vm339, %v2154
  %s2158 = scalar_lea.vmem %s2, 800
  %v2159 = vld [vmem:[%s2158] sm:$0xff]
  %v2160 = vld [vmem:[%s2158 + $0x8] sm:$0xff]
  %v2161 = vld [vmem:[%s2158 + $0x10] sm:$0xff]
  %v2162 = vld [vmem:[%s2158 + $0x18] sm:$0xff]
  %v2163 = vld [vmem:[%s2158 + $0x20] sm:$0xff]
  %v2164 = vld [vmem:[%s2158 + $0x28] sm:$0xff]
  %v2165 = vld [vmem:[%s2158 + $0x30] sm:$0xff]
  %v2166 = vld [vmem:[%s2158 + $0x38] sm:$0xff]
  %v2167 = vld [vmem:[%s2158 + $0x40] sm:$0xff]
  %v2168 = vld [vmem:[%s2158 + $0x48] sm:$0xff]
  %v2169 = vld [vmem:[%s2158 + $0x50] sm:$0xff]
  %v2170 = vld [vmem:[%s2158 + $0x58] sm:$0xff]
  %v2171 = vld [vmem:[%s2158 + $0x60] sm:$0xff]
  %v2172 = vld [vmem:[%s2158 + $0x68] sm:$0xff]
  %v2173 = vld [vmem:[%s2158 + $0x70] sm:$0xff]
  %v2174 = vld [vmem:[%s2158 + $0x78] sm:$0xff]
  %v2175 = vld [vmem:[%s2158 + $0x80] sm:$0xff]
  %v2176 = vld [vmem:[%s2158 + $0x88] sm:$0xff]
  %v2177 = vld [vmem:[%s2158 + $0x90] sm:$0xff]
  %v2178 = vld [vmem:[%s2158 + $0x98] sm:$0xff]
  %v2179 = vld [vmem:[%s2158 + $0xa0] sm:$0xff]
  %v2180 = vld [vmem:[%s2158 + $0xa8] sm:$0xff]
  %v2181 = vld [vmem:[%s2158 + $0xb0] sm:$0xff]
  %v2182 = vld [vmem:[%s2158 + $0xb8] sm:$0xff]
  %v2183 = vld [vmem:[%s2158 + $0xc0] sm:$0xff]
  %v2184 = vld [vmem:[%s2158 + $0xc8] sm:$0xff]
  %v2185 = vld [vmem:[%s2158 + $0xd0] sm:$0xff]
  %v2186 = vld [vmem:[%s2158 + $0xd8] sm:$0xff]
  %v2187 = vld [vmem:[%s2158 + $0xe0] sm:$0xff]
  %v2188 = vld [vmem:[%s2158 + $0xe8] sm:$0xff]
  %v2189 = vld [vmem:[%s2158 + $0xf0] sm:$0xff]
  %v2190 = vld [vmem:[%s2158 + $0xf8] sm:$0xff]
  %v2191 = vld [vmem:[%s2158 + $0x100] sm:$0xff]
  %v2192 = vld [vmem:[%s2158 + $0x108] sm:$0xff]
  %v2193 = vld [vmem:[%s2158 + $0x110] sm:$0xff]
  %v2194 = vld [vmem:[%s2158 + $0x118] sm:$0xff]
  %v2195 = vld [vmem:[%s2158 + $0x120] sm:$0xff]
  %v2196 = vld [vmem:[%s2158 + $0x128] sm:$0xff]
  %v2197 = vld [vmem:[%s2158 + $0x130] sm:$0xff]
  %v2198 = vld [vmem:[%s2158 + $0x138] sm:$0xff]
  %v2199 = vld [vmem:[%s2158 + $0x140] sm:$0xff]
  %v2200 = vld [vmem:[%s2158 + $0x148] sm:$0xff]
  %v2201 = vld [vmem:[%s2158 + $0x150] sm:$0xff]
  %v2202 = vld [vmem:[%s2158 + $0x158] sm:$0xff]
  %v2203 = vld [vmem:[%s2158 + $0x160] sm:$0xff]
  %v2204 = vld [vmem:[%s2158 + $0x168] sm:$0xff]
  %v2205 = vld [vmem:[%s2158 + $0x170] sm:$0xff]
  %v2206 = vld [vmem:[%s2158 + $0x178] sm:$0xff]
  %s2207 = scalar_lea.vmem %s2158, 384
  %v2208 = vld [vmem:[%s2207] ss:$8 sm:$0x3]
  %v2209 = vld [vmem:[#allocation2] sm:$0xff]
  %v2210 = vld [vmem:[#allocation2 + $0x8] sm:$0xff]
  %v2211 = vld [vmem:[#allocation2 + $0x10] sm:$0xff]
  %v2212 = vld [vmem:[#allocation2 + $0x18] sm:$0xff]
  %v2213 = vld [vmem:[#allocation2 + $0x20] sm:$0xff]
  %v2214 = vld [vmem:[#allocation2 + $0x28] sm:$0xff]
  %v2215 = vld [vmem:[#allocation2 + $0x30] sm:$0xff]
  %v2216 = vld [vmem:[#allocation2 + $0x38] sm:$0xff]
  %v2218 = vlaneseq
  %v2219 = vshrl.u32 %v2218, 7
  %v2220 = vsub.s32 0, %v2219
  %v2221 = vrot.slane %v2208, %v2220
  %v2222 = vlaneseq
  %v2223 = vshrl.u32 %v2222, 7
  %v2224 = vsub.s32 1, %v2223
  %v2225 = vrot.slane %v2208, %v2224
  %2228 = vmatprep.subr.mxu0 %v2160
  %2229 = vmatpush1.msra.mxu0 %v2159
  %2230 = vmatprep.subr.mxu0 %v2162
  %2231 = vmatpush1.msra.mxu0 %v2161
  %2232 = vmatprep.subr.mxu0 %v2164
  %2233 = vmatpush1.msra.mxu0 %v2163
  %2234 = vmatprep.subr.mxu0 %v2166
  %2235 = vmatpush1.msra.mxu0 %v2165
  %2236 = vmatprep.subr.mxu0 %v2168
  %2237 = vmatpush1.msra.mxu0 %v2167
  %2238 = vmatprep.subr.mxu0 %v2170
  %2239 = vmatpush1.msra.mxu0 %v2169
  %2240 = vmatprep.subr.mxu0 %v2172
  %2241 = vmatpush1.msra.mxu0 %v2171
  %2242 = vmatprep.subr.mxu0 %v2174
  %2243 = vmatpush1.msra.mxu0 %v2173
  %2244 = vmatprep.subr.mxu0 %v2176
  %2245 = vmatpush1.msra.mxu0 %v2175
  %2246 = vmatprep.subr.mxu0 %v2178
  %2247 = vmatpush1.msra.mxu0 %v2177
  %2248 = vmatprep.subr.mxu0 %v2180
  %2249 = vmatpush1.msra.mxu0 %v2179
  %2250 = vmatprep.subr.mxu0 %v2182
  %2251 = vmatpush1.msra.mxu0 %v2181
  %2252 = vmatprep.subr.mxu0 %v2184
  %2253 = vmatpush1.msra.mxu0 %v2183
  %2254 = vmatprep.subr.mxu0 %v2186
  %2255 = vmatpush1.msra.mxu0 %v2185
  %2256 = vmatprep.subr.mxu0 %v2188
  %2257 = vmatpush1.msra.mxu0 %v2187
  %2258 = vmatprep.subr.mxu0 %v2190
  %2259 = vmatpush1.msra.mxu0 %v2189
  %2260 = vmatprep.subr.mxu0 0.0
  %2261 = vmatpush1.msra.mxu0 0.0
  %2262 = vmatprep.subr.mxu0 0.0
  %2263 = vmatpush1.msra.mxu0 0.0
  %2264 = vmatprep.subr.mxu0 0.0
  %2265 = vmatpush1.msra.mxu0 0.0
  %2266 = vmatprep.subr.mxu0 0.0
  %2267 = vmatpush1.msra.mxu0 0.0
  %2268 = vmatprep.subr.mxu0 0.0
  %2269 = vmatpush1.msra.mxu0 0.0
  %2270 = vmatprep.subr.mxu0 0.0
  %2271 = vmatpush1.msra.mxu0 0.0
  %2272 = vmatprep.subr.mxu0 0.0
  %2273 = vmatpush1.msra.mxu0 0.0
  %2274 = vmatprep.subr.mxu0 0.0
  %2275 = vmatpush1.msra.mxu0 0.0
  %2276 = vmatprep.subr.mxu0 0.0
  %2277 = vmatpush1.msra.mxu0 0.0
  %2278 = vmatprep.subr.mxu0 0.0
  %2279 = vmatpush1.msra.mxu0 0.0
  %2280 = vmatprep.subr.mxu0 0.0
  %2281 = vmatpush1.msra.mxu0 0.0
  %2282 = vmatprep.subr.mxu0 0.0
  %2283 = vmatpush1.msra.mxu0 0.0
  %2284 = vmatprep.subr.mxu0 0.0
  %2285 = vmatpush1.msra.mxu0 0.0
  %2286 = vmatprep.subr.mxu0 0.0
  %2287 = vmatpush1.msra.mxu0 0.0
  %2288 = vmatprep.subr.mxu0 0.0
  %2289 = vmatpush1.msra.mxu0 0.0
  %2290 = vmatprep.subr.mxu0 0.0
  %2291 = vmatpush1.msra.mxu0 0.0
  %2292 = vmatprep.mubr.f32.mxu0 0.0
  %2293 = vmatmul.mubr.f32.gmra.mrb[0].mxu0 %v2209
  %v2294 = vpop.f32.mrb[0].mxu0
  %v2295 = vadd.f32 %v2221, %v2294
  %v2296 = vpop.f32.mrb[0].mxu0
  %v2297 = vadd.f32 %v2225, %v2296
  %2298 = vmatprep.mubr.f32.mxu0 0.0
  %2299 = vmatmul.mubr.f32.gmra.mrb[0].mxu0 %v2210
  %v2300 = vpop.f32.mrb[0].mxu0
  %v2301 = vadd.f32 %v2221, %v2300
  %v2302 = vpop.f32.mrb[0].mxu0
  %v2303 = vadd.f32 %v2225, %v2302
  %2304 = vmatprep.mubr.f32.mxu0 0.0
  %2305 = vmatmul.mubr.f32.gmra.mrb[0].mxu0 %v2211
  %v2306 = vpop.f32.mrb[0].mxu0
  %v2307 = vadd.f32 %v2221, %v2306
  %v2308 = vpop.f32.mrb[0].mxu0
  %v2309 = vadd.f32 %v2225, %v2308
  %2310 = vmatprep.mubr.f32.mxu0 0.0
  %2311 = vmatmul.mubr.f32.gmra.mrb[0].mxu0 %v2212
  %v2312 = vpop.f32.mrb[0].mxu0
  %v2313 = vadd.f32 %v2221, %v2312
  %v2314 = vpop.f32.mrb[0].mxu0
  %v2315 = vadd.f32 %v2225, %v2314
  %2316 = vmatprep.mubr.f32.mxu0 0.0
  %2317 = vmatmul.mubr.f32.gmra.mrb[0].mxu0 %v2213
  %v2318 = vpop.f32.mrb[0].mxu0
  %v2319 = vadd.f32 %v2221, %v2318
  %v2320 = vpop.f32.mrb[0].mxu0
  %v2321 = vadd.f32 %v2225, %v2320
  %2322 = vmatprep.mubr.f32.mxu0 0.0
  %2323 = vmatmul.mubr.f32.gmra.mrb[0].mxu0 %v2214
  %v2324 = vpop.f32.mrb[0].mxu0
  %v2325 = vadd.f32 %v2221, %v2324
  %v2326 = vpop.f32.mrb[0].mxu0
  %v2327 = vadd.f32 %v2225, %v2326
  %2328 = vmatprep.mubr.f32.mxu0 0.0
  %2329 = vmatmul.mubr.f32.gmra.mrb[0].mxu0 %v2215
  %v2330 = vpop.f32.mrb[0].mxu0
  %v2331 = vadd.f32 %v2221, %v2330
  %v2332 = vpop.f32.mrb[0].mxu0
  %v2333 = vadd.f32 %v2225, %v2332
  %2334 = vmatprep.mubr.f32.mxu0 0.0
  %2335 = vmatmul.mubr.f32.gmra.mrb[0].mxu0 %v2216
  %v2336 = vpop.f32.mrb[0].mxu0
  %v2337 = vadd.f32 %v2221, %v2336
  %v2338 = vpop.f32.mrb[0].mxu0
  %v2339 = vadd.f32 %v2225, %v2338
  %2340 = vdwg.mxu0
  %2341 = vst [vmem:[#allocation3] sm:$0xff] %v2295
  %2342 = vst [vmem:[#allocation3 + $0x8] sm:$0xff] %v2297
  %2343 = vst [vmem:[#allocation3 + $0x10] sm:$0xff] %v2301
  %2344 = vst [vmem:[#allocation3 + $0x18] sm:$0xff] %v2303
  %2345 = vst [vmem:[#allocation3 + $0x20] sm:$0xff] %v2307
  %2346 = vst [vmem:[#allocation3 + $0x28] sm:$0xff] %v2309
  %2347 = vst [vmem:[#allocation3 + $0x30] sm:$0xff] %v2313
  %2348 = vst [vmem:[#allocation3 + $0x38] sm:$0xff] %v2315
  %2349 = vst [vmem:[#allocation3 + $0x40] sm:$0xff] %v2319
  %2350 = vst [vmem:[#allocation3 + $0x48] sm:$0xff] %v2321
  %2351 = vst [vmem:[#allocation3 + $0x50] sm:$0xff] %v2325
  %2352 = vst [vmem:[#allocation3 + $0x58] sm:$0xff] %v2327
  %2353 = vst [vmem:[#allocation3 + $0x60] sm:$0xff] %v2331
  %2354 = vst [vmem:[#allocation3 + $0x68] sm:$0xff] %v2333
  %2355 = vst [vmem:[#allocation3 + $0x70] sm:$0xff] %v2337
  %2356 = vst [vmem:[#allocation3 + $0x78] sm:$0xff] %v2339
  %v2357 = vld [vmem:[#allocation3] sm:$0xff]
  %v2358 = vld [vmem:[#allocation3 + $0x8] sm:$0xff]
  %2359 = vmatprep.subr.mxu0 %v2192
  %2360 = vmatpush1.msra.mxu0 %v2191
  %2361 = vmatprep.subr.mxu0 %v2194
  %2362 = vmatpush1.msra.mxu0 %v2193
  %2363 = vmatprep.subr.mxu0 %v2196
  %2364 = vmatpush1.msra.mxu0 %v2195
  %2365 = vmatprep.subr.mxu0 %v2198
  %2366 = vmatpush1.msra.mxu0 %v2197
  %2367 = vmatprep.subr.mxu0 %v2200
  %2368 = vmatpush1.msra.mxu0 %v2199
  %2369 = vmatprep.subr.mxu0 %v2202
  %2370 = vmatpush1.msra.mxu0 %v2201
  %2371 = vmatprep.subr.mxu0 %v2204
  %2372 = vmatpush1.msra.mxu0 %v2203
  %2373 = vmatprep.subr.mxu0 %v2206
  %2374 = vmatpush1.msra.mxu0 %v2205
  %2375 = vmatprep.subr.mxu0 0.0
  %2376 = vmatpush1.msra.mxu0 0.0
  %2377 = vmatprep.subr.mxu0 0.0
  %2378 = vmatpush1.msra.mxu0 0.0
  %2379 = vmatprep.subr.mxu0 0.0
  %2380 = vmatpush1.msra.mxu0 0.0
  %2381 = vmatprep.subr.mxu0 0.0
  %2382 = vmatpush1.msra.mxu0 0.0
  %2383 = vmatprep.subr.mxu0 0.0
  %2384 = vmatpush1.msra.mxu0 0.0
  %2385 = vmatprep.subr.mxu0 0.0
  %2386 = vmatpush1.msra.mxu0 0.0
  %2387 = vmatprep.subr.mxu0 0.0
  %2388 = vmatpush1.msra.mxu0 0.0
  %2389 = vmatprep.subr.mxu0 0.0
  %2390 = vmatpush1.msra.mxu0 0.0
  %2391 = vmatprep.subr.mxu0 0.0
  %2392 = vmatpush1.msra.mxu0 0.0
  %2393 = vmatprep.subr.mxu0 0.0
  %2394 = vmatpush1.msra.mxu0 0.0
  %2395 = vmatprep.subr.mxu0 0.0
  %2396 = vmatpush1.msra.mxu0 0.0
  %2397 = vmatprep.subr.mxu0 0.0
  %2398 = vmatpush1.msra.mxu0 0.0
  %2399 = vmatprep.subr.mxu0 0.0
  %2400 = vmatpush1.msra.mxu0 0.0
  %2401 = vmatprep.subr.mxu0 0.0
  %2402 = vmatpush1.msra.mxu0 0.0
  %2403 = vmatprep.subr.mxu0 0.0
  %2404 = vmatpush1.msra.mxu0 0.0
  %2405 = vmatprep.subr.mxu0 0.0
  %2406 = vmatpush1.msra.mxu0 0.0
  %2407 = vmatprep.subr.mxu0 0.0
  %2408 = vmatpush1.msra.mxu0 0.0
  %2409 = vmatprep.subr.mxu0 0.0
  %2410 = vmatpush1.msra.mxu0 0.0
  %2411 = vmatprep.subr.mxu0 0.0
  %2412 = vmatpush1.msra.mxu0 0.0
  %2413 = vmatprep.subr.mxu0 0.0
  %2414 = vmatpush1.msra.mxu0 0.0
  %2415 = vmatprep.subr.mxu0 0.0
  %2416 = vmatpush1.msra.mxu0 0.0
  %2417 = vmatprep.subr.mxu0 0.0
  %2418 = vmatpush1.msra.mxu0 0.0
  %2419 = vmatprep.subr.mxu0 0.0
  %2420 = vmatpush1.msra.mxu0 0.0
  %2421 = vmatprep.subr.mxu0 0.0
  %2422 = vmatpush1.msra.mxu0 0.0
  %2423 = vmatprep.mubr.f32.mxu0 0.0
  %2424 = vmatmul.mubr.f32.gmra.mrb[0].mxu0 %v231
  %v2425 = vpop.f32.mrb[0].mxu0
  %v2426 = vadd.f32 0.0, %v2425
  %v2427 = vpop.f32.mrb[0].mxu0
  %v2428 = vadd.f32 0.0, %v2427
  %2429 = vdwg.mxu0
  %v2430 = vadd.f32 %v2357, %v2426
  %v2431 = vadd.f32 %v2358, %v2428
  %v2432 = vtanh.pop %v2430
  %v2433 = vtanh.pop %v2431
  %v2434 = vmul.f32 %v2432, 0.5
  %v2435 = vmul.f32 %v2433, 0.5
  %v2436 = vadd.f32 %v2434, 0.5
  %v2437 = vadd.f32 %v2435, 0.5
  %v2438 = vmul.f32 %v2436, 0.0
  %2440 = vrot.lane.b32.xlu0 %v2433, 64
  %v2441 = vpop.permute.xlu0 %2440
  %v2443 = vmul.f32 %v2436, %v2441
  %2445 = vrot.lane.b32.xlu0 %v2443, 64
  %v2446 = vpop.permute.xlu0 %2445
  %v2448 = vadd.f32 %v2438, %v2446
  %v2449 = vtanh.pop %v2448
  %2451 = vrot.lane.b32.xlu0 %v2449, 64
  %v2452 = vpop.permute.xlu0 %2451
  %v2454 = vmul.f32 %v2437, %v2452
  %2455 = vst.msk [vmem:[#allocation2] sm:$0xff] %vm329, %v2454
  %2456 = vst.msk [vmem:[#allocation2 + $0x38] sm:$0xff] %vm331, %v2454
  %2458 = vrot.lane.b32.xlu0 %v2454, 64
  %v2459 = vpop.permute.xlu0 %2458
  %2461 = vst.msk [vmem:[#allocation2 + $0x38] sm:$0xff] %vm337, %v2459
  %2462 = vst.msk [vmem:[#allocation2] sm:$0xff] %vm339, %v2459
  %v2463 = vld [vmem:[#allocation3 + $0x10] sm:$0xff]
  %v2464 = vld [vmem:[#allocation3 + $0x18] sm:$0xff]
  %v2465 = vsel %vm229, %v2454, 0
  %2467 = vmatprep.subr.mxu0 %v2192
  %2468 = vmatpush1.msra.mxu0 %v2191
  %2469 = vmatprep.subr.mxu0 %v2194
  %2470 = vmatpush1.msra.mxu0 %v2193
  %2471 = vmatprep.subr.mxu0 %v2196
  %2472 = vmatpush1.msra.mxu0 %v2195
  %2473 = vmatprep.subr.mxu0 %v2198
  %2474 = vmatpush1.msra.mxu0 %v2197
  %2475 = vmatprep.subr.mxu0 %v2200
  %2476 = vmatpush1.msra.mxu0 %v2199
  %2477 = vmatprep.subr.mxu0 %v2202
  %2478 = vmatpush1.msra.mxu0 %v2201
  %2479 = vmatprep.subr.mxu0 %v2204
  %2480 = vmatpush1.msra.mxu0 %v2203
  %2481 = vmatprep.subr.mxu0 %v2206
  %2482 = vmatpush1.msra.mxu0 %v2205
  %2483 = vmatprep.subr.mxu0 0.0
  %2484 = vmatpush1.msra.mxu0 0.0
  %2485 = vmatprep.subr.mxu0 0.0
  %2486 = vmatpush1.msra.mxu0 0.0
  %2487 = vmatprep.subr.mxu0 0.0
  %2488 = vmatpush1.msra.mxu0 0.0
  %2489 = vmatprep.subr.mxu0 0.0
  %2490 = vmatpush1.msra.mxu0 0.0
  %2491 = vmatprep.subr.mxu0 0.0
  %2492 = vmatpush1.msra.mxu0 0.0
  %2493 = vmatprep.subr.mxu0 0.0
  %2494 = vmatpush1.msra.mxu0 0.0
  %2495 = vmatprep.subr.mxu0 0.0
  %2496 = vmatpush1.msra.mxu0 0.0
  %2497 = vmatprep.subr.mxu0 0.0
  %2498 = vmatpush1.msra.mxu0 0.0
  %2499 = vmatprep.subr.mxu0 0.0
  %2500 = vmatpush1.msra.mxu0 0.0
  %2501 = vmatprep.subr.mxu0 0.0
  %2502 = vmatpush1.msra.mxu0 0.0
  %2503 = vmatprep.subr.mxu0 0.0
  %2504 = vmatpush1.msra.mxu0 0.0
  %2505 = vmatprep.subr.mxu0 0.0
  %2506 = vmatpush1.msra.mxu0 0.0
  %2507 = vmatprep.subr.mxu0 0.0
  %2508 = vmatpush1.msra.mxu0 0.0
  %2509 = vmatprep.subr.mxu0 0.0
  %2510 = vmatpush1.msra.mxu0 0.0
  %2511 = vmatprep.subr.mxu0 0.0
  %2512 = vmatpush1.msra.mxu0 0.0
  %2513 = vmatprep.subr.mxu0 0.0
  %2514 = vmatpush1.msra.mxu0 0.0
  %2515 = vmatprep.subr.mxu0 0.0
  %2516 = vmatpush1.msra.mxu0 0.0
  %2517 = vmatprep.subr.mxu0 0.0
  %2518 = vmatpush1.msra.mxu0 0.0
  %2519 = vmatprep.subr.mxu0 0.0
  %2520 = vmatpush1.msra.mxu0 0.0
  %2521 = vmatprep.subr.mxu0 0.0
  %2522 = vmatpush1.msra.mxu0 0.0
  %2523 = vmatprep.subr.mxu0 0.0
  %2524 = vmatpush1.msra.mxu0 0.0
  %2525 = vmatprep.subr.mxu0 0.0
  %2526 = vmatpush1.msra.mxu0 0.0
  %2527 = vmatprep.subr.mxu0 0.0
  %2528 = vmatpush1.msra.mxu0 0.0
  %2529 = vmatprep.subr.mxu0 0.0
  %2530 = vmatpush1.msra.mxu0 0.0
  %2531 = vmatprep.mubr.f32.mxu0 0.0
  %2532 = vmatmul.mubr.f32.gmra.mrb[0].mxu0 %v2465
  %v2533 = vpop.f32.mrb[0].mxu0
  %v2534 = vadd.f32 0.0, %v2533
  %v2535 = vpop.f32.mrb[0].mxu0
  %v2536 = vadd.f32 0.0, %v2535
  %2537 = vdwg.mxu0
  %v2538 = vadd.f32 %v2463, %v2534
  %v2539 = vadd.f32 %v2464, %v2536
  %v2540 = vtanh.pop %v2538
  %v2541 = vtanh.pop %v2539
  %v2542 = vmul.f32 %v2540, 0.5
  %v2543 = vmul.f32 %v2541, 0.5
  %v2544 = vadd.f32 %v2542, 0.5
  %v2545 = vadd.f32 %v2543, 0.5
  %v2546 = vmul.f32 %v2544, %v2448
  %2548 = vrot.lane.b32.xlu0 %v2541, 64
  %v2549 = vpop.permute.xlu0 %2548
  %v2551 = vmul.f32 %v2544, %v2549
  %2553 = vrot.lane.b32.xlu0 %v2551, 64
  %v2554 = vpop.permute.xlu0 %2553
  %v2556 = vadd.f32 %v2546, %v2554
  %v2557 = vtanh.pop %v2556
  %2559 = vrot.lane.b32.xlu0 %v2557, 64
  %v2560 = vpop.permute.xlu0 %2559
  %v2562 = vmul.f32 %v2545, %v2560
  %2563 = vst.msk [vmem:[#allocation2 + $0x8] sm:$0xff] %vm329, %v2562
  %2564 = vst.msk [vmem:[#allocation2 + $0x30] sm:$0xff] %vm331, %v2562
  %2566 = vrot.lane.b32.xlu0 %v2562, 64
  %v2567 = vpop.permute.xlu0 %2566
  %2569 = vst.msk [vmem:[#allocation2 + $0x30] sm:$0xff] %vm337, %v2567
  %2570 = vst.msk [vmem:[#allocation2 + $0x8] sm:$0xff] %vm339, %v2567
  %v2571 = vld [vmem:[#allocation3 + $0x20] sm:$0xff]
  %v2572 = vld [vmem:[#allocation3 + $0x28] sm:$0xff]
  %v2573 = vsel %vm229, %v2562, 0
  %2575 = vmatprep.subr.mxu0 %v2192
  %2576 = vmatpush1.msra.mxu0 %v2191
  %2577 = vmatprep.subr.mxu0 %v2194
  %2578 = vmatpush1.msra.mxu0 %v2193
  %2579 = vmatprep.subr.mxu0 %v2196
  %2580 = vmatpush1.msra.mxu0 %v2195
  %2581 = vmatprep.subr.mxu0 %v2198
  %2582 = vmatpush1.msra.mxu0 %v2197
  %2583 = vmatprep.subr.mxu0 %v2200
  %2584 = vmatpush1.msra.mxu0 %v2199
  %2585 = vmatprep.subr.mxu0 %v2202
  %2586 = vmatpush1.msra.mxu0 %v2201
  %2587 = vmatprep.subr.mxu0 %v2204
  %2588 = vmatpush1.msra.mxu0 %v2203
  %2589 = vmatprep.subr.mxu0 %v2206
  %2590 = vmatpush1.msra.mxu0 %v2205
  %2591 = vmatprep.subr.mxu0 0.0
  %2592 = vmatpush1.msra.mxu0 0.0
  %2593 = vmatprep.subr.mxu0 0.0
  %2594 = vmatpush1.msra.mxu0 0.0
  %2595 = vmatprep.subr.mxu0 0.0
  %2596 = vmatpush1.msra.mxu0 0.0
  %2597 = vmatprep.subr.mxu0 0.0
  %2598 = vmatpush1.msra.mxu0 0.0
  %2599 = vmatprep.subr.mxu0 0.0
  %2600 = vmatpush1.msra.mxu0 0.0
  %2601 = vmatprep.subr.mxu0 0.0
  %2602 = vmatpush1.msra.mxu0 0.0
  %2603 = vmatprep.subr.mxu0 0.0
  %2604 = vmatpush1.msra.mxu0 0.0
  %2605 = vmatprep.subr.mxu0 0.0
  %2606 = vmatpush1.msra.mxu0 0.0
  %2607 = vmatprep.subr.mxu0 0.0
  %2608 = vmatpush1.msra.mxu0 0.0
  %2609 = vmatprep.subr.mxu0 0.0
  %2610 = vmatpush1.msra.mxu0 0.0
  %2611 = vmatprep.subr.mxu0 0.0
  %2612 = vmatpush1.msra.mxu0 0.0
  %2613 = vmatprep.subr.mxu0 0.0
  %2614 = vmatpush1.msra.mxu0 0.0
  %2615 = vmatprep.subr.mxu0 0.0
  %2616 = vmatpush1.msra.mxu0 0.0
  %2617 = vmatprep.subr.mxu0 0.0
  %2618 = vmatpush1.msra.mxu0 0.0
  %2619 = vmatprep.subr.mxu0 0.0
  %2620 = vmatpush1.msra.mxu0 0.0
  %2621 = vmatprep.subr.mxu0 0.0
  %2622 = vmatpush1.msra.mxu0 0.0
  %2623 = vmatprep.subr.mxu0 0.0
  %2624 = vmatpush1.msra.mxu0 0.0
  %2625 = vmatprep.subr.mxu0 0.0
  %2626 = vmatpush1.msra.mxu0 0.0
  %2627 = vmatprep.subr.mxu0 0.0
  %2628 = vmatpush1.msra.mxu0 0.0
  %2629 = vmatprep.subr.mxu0 0.0
  %2630 = vmatpush1.msra.mxu0 0.0
  %2631 = vmatprep.subr.mxu0 0.0
  %2632 = vmatpush1.msra.mxu0 0.0
  %2633 = vmatprep.subr.mxu0 0.0
  %2634 = vmatpush1.msra.mxu0 0.0
  %2635 = vmatprep.subr.mxu0 0.0
  %2636 = vmatpush1.msra.mxu0 0.0
  %2637 = vmatprep.subr.mxu0 0.0
  %2638 = vmatpush1.msra.mxu0 0.0
  %2639 = vmatprep.mubr.f32.mxu0 0.0
  %2640 = vmatmul.mubr.f32.gmra.mrb[0].mxu0 %v2573
  %v2641 = vpop.f32.mrb[0].mxu0
  %v2642 = vadd.f32 0.0, %v2641
  %v2643 = vpop.f32.mrb[0].mxu0
  %v2644 = vadd.f32 0.0, %v2643
  %2645 = vdwg.mxu0
  %v2646 = vadd.f32 %v2571, %v2642
  %v2647 = vadd.f32 %v2572, %v2644
  %v2648 = vtanh.pop %v2646
  %v2649 = vtanh.pop %v2647
  %v2650 = vmul.f32 %v2648, 0.5
  %v2651 = vmul.f32 %v2649, 0.5
  %v2652 = vadd.f32 %v2650, 0.5
  %v2653 = vadd.f32 %v2651, 0.5
  %v2654 = vmul.f32 %v2652, %v2556
  %2656 = vrot.lane.b32.xlu0 %v2649, 64
  %v2657 = vpop.permute.xlu0 %2656
  %v2659 = vmul.f32 %v2652, %v2657
  %2661 = vrot.lane.b32.xlu0 %v2659, 64
  %v2662 = vpop.permute.xlu0 %2661
  %v2664 = vadd.f32 %v2654, %v2662
  %v2665 = vtanh.pop %v2664
  %2667 = vrot.lane.b32.xlu0 %v2665, 64
  %v2668 = vpop.permute.xlu0 %2667
  %v2670 = vmul.f32 %v2653, %v2668
  %2671 = vst.msk [vmem:[#allocation2 + $0x10] sm:$0xff] %vm329, %v2670
  %2672 = vst.msk [vmem:[#allocation2 + $0x28] sm:$0xff] %vm331, %v2670
  %2674 = vrot.lane.b32.xlu0 %v2670, 64
  %v2675 = vpop.permute.xlu0 %2674
  %2677 = vst.msk [vmem:[#allocation2 + $0x28] sm:$0xff] %vm337, %v2675
  %2678 = vst.msk [vmem:[#allocation2 + $0x10] sm:$0xff] %vm339, %v2675
  %v2679 = vld [vmem:[#allocation3 + $0x30] sm:$0xff]
  %v2680 = vld [vmem:[#allocation3 + $0x38] sm:$0xff]
  %v2681 = vsel %vm229, %v2670, 0
  %2683 = vmatprep.subr.mxu0 %v2192
  %2684 = vmatpush1.msra.mxu0 %v2191
  %2685 = vmatprep.subr.mxu0 %v2194
  %2686 = vmatpush1.msra.mxu0 %v2193
  %2687 = vmatprep.subr.mxu0 %v2196
  %2688 = vmatpush1.msra.mxu0 %v2195
  %2689 = vmatprep.subr.mxu0 %v2198
  %2690 = vmatpush1.msra.mxu0 %v2197
  %2691 = vmatprep.subr.mxu0 %v2200
  %2692 = vmatpush1.msra.mxu0 %v2199
  %2693 = vmatprep.subr.mxu0 %v2202
  %2694 = vmatpush1.msra.mxu0 %v2201
  %2695 = vmatprep.subr.mxu0 %v2204
  %2696 = vmatpush1.msra.mxu0 %v2203
  %2697 = vmatprep.subr.mxu0 %v2206
  %2698 = vmatpush1.msra.mxu0 %v2205
  %2699 = vmatprep.subr.mxu0 0.0
  %2700 = vmatpush1.msra.mxu0 0.0
  %2701 = vmatprep.subr.mxu0 0.0
  %2702 = vmatpush1.msra.mxu0 0.0
  %2703 = vmatprep.subr.mxu0 0.0
  %2704 = vmatpush1.msra.mxu0 0.0
  %2705 = vmatprep.subr.mxu0 0.0
  %2706 = vmatpush1.msra.mxu0 0.0
  %2707 = vmatprep.subr.mxu0 0.0
  %2708 = vmatpush1.msra.mxu0 0.0
  %2709 = vmatprep.subr.mxu0 0.0
  %2710 = vmatpush1.msra.mxu0 0.0
  %2711 = vmatprep.subr.mxu0 0.0
  %2712 = vmatpush1.msra.mxu0 0.0
  %2713 = vmatprep.subr.mxu0 0.0
  %2714 = vmatpush1.msra.mxu0 0.0
  %2715 = vmatprep.subr.mxu0 0.0
  %2716 = vmatpush1.msra.mxu0 0.0
  %2717 = vmatprep.subr.mxu0 0.0
  %2718 = vmatpush1.msra.mxu0 0.0
  %2719 = vmatprep.subr.mxu0 0.0
  %2720 = vmatpush1.msra.mxu0 0.0
  %2721 = vmatprep.subr.mxu0 0.0
  %2722 = vmatpush1.msra.mxu0 0.0
  %2723 = vmatprep.subr.mxu0 0.0
  %2724 = vmatpush1.msra.mxu0 0.0
  %2725 = vmatprep.subr.mxu0 0.0
  %2726 = vmatpush1.msra.mxu0 0.0
  %2727 = vmatprep.subr.mxu0 0.0
  %2728 = vmatpush1.msra.mxu0 0.0
  %2729 = vmatprep.subr.mxu0 0.0
  %2730 = vmatpush1.msra.mxu0 0.0
  %2731 = vmatprep.subr.mxu0 0.0
  %2732 = vmatpush1.msra.mxu0 0.0
  %2733 = vmatprep.subr.mxu0 0.0
  %2734 = vmatpush1.msra.mxu0 0.0
  %2735 = vmatprep.subr.mxu0 0.0
  %2736 = vmatpush1.msra.mxu0 0.0
  %2737 = vmatprep.subr.mxu0 0.0
  %2738 = vmatpush1.msra.mxu0 0.0
  %2739 = vmatprep.subr.mxu0 0.0
  %2740 = vmatpush1.msra.mxu0 0.0
  %2741 = vmatprep.subr.mxu0 0.0
  %2742 = vmatpush1.msra.mxu0 0.0
  %2743 = vmatprep.subr.mxu0 0.0
  %2744 = vmatpush1.msra.mxu0 0.0
  %2745 = vmatprep.subr.mxu0 0.0
  %2746 = vmatpush1.msra.mxu0 0.0
  %2747 = vmatprep.mubr.f32.mxu0 0.0
  %2748 = vmatmul.mubr.f32.gmra.mrb[0].mxu0 %v2681
  %v2749 = vpop.f32.mrb[0].mxu0
  %v2750 = vadd.f32 0.0, %v2749
  %v2751 = vpop.f32.mrb[0].mxu0
  %v2752 = vadd.f32 0.0, %v2751
  %2753 = vdwg.mxu0
  %v2754 = vadd.f32 %v2679, %v2750
  %v2755 = vadd.f32 %v2680, %v2752
  %v2756 = vtanh.pop %v2754
  %v2757 = vtanh.pop %v2755
  %v2758 = vmul.f32 %v2756, 0.5
  %v2759 = vmul.f32 %v2757, 0.5
  %v2760 = vadd.f32 %v2758, 0.5
  %v2761 = vadd.f32 %v2759, 0.5
  %v2762 = vmul.f32 %v2760, %v2664
  %2764 = vrot.lane.b32.xlu0 %v2757, 64
  %v2765 = vpop.permute.xlu0 %2764
  %v2767 = vmul.f32 %v2760, %v2765
  %2769 = vrot.lane.b32.xlu0 %v2767, 64
  %v2770 = vpop.permute.xlu0 %2769
  %v2772 = vadd.f32 %v2762, %v2770
  %v2773 = vtanh.pop %v2772
  %2775 = vrot.lane.b32.xlu0 %v2773, 64
  %v2776 = vpop.permute.xlu0 %2775
  %v2778 = vmul.f32 %v2761, %v2776
  %2779 = vst.msk [vmem:[#allocation2 + $0x18] sm:$0xff] %vm329, %v2778
  %2780 = vst.msk [vmem:[#allocation2 + $0x20] sm:$0xff] %vm331, %v2778
  %2782 = vrot.lane.b32.xlu0 %v2778, 64
  %v2783 = vpop.permute.xlu0 %2782
  %2785 = vst.msk [vmem:[#allocation2 + $0x20] sm:$0xff] %vm337, %v2783
  %2786 = vst.msk [vmem:[#allocation2 + $0x18] sm:$0xff] %vm339, %v2783
  %v2787 = vld [vmem:[#allocation3 + $0x40] sm:$0xff]
  %v2788 = vld [vmem:[#allocation3 + $0x48] sm:$0xff]
  %v2789 = vsel %vm229, %v2778, 0
  %2791 = vmatprep.subr.mxu0 %v2192
  %2792 = vmatpush1.msra.mxu0 %v2191
  %2793 = vmatprep.subr.mxu0 %v2194
  %2794 = vmatpush1.msra.mxu0 %v2193
  %2795 = vmatprep.subr.mxu0 %v2196
  %2796 = vmatpush1.msra.mxu0 %v2195
  %2797 = vmatprep.subr.mxu0 %v2198
  %2798 = vmatpush1.msra.mxu0 %v2197
  %2799 = vmatprep.subr.mxu0 %v2200
  %2800 = vmatpush1.msra.mxu0 %v2199
  %2801 = vmatprep.subr.mxu0 %v2202
  %2802 = vmatpush1.msra.mxu0 %v2201
  %2803 = vmatprep.subr.mxu0 %v2204
  %2804 = vmatpush1.msra.mxu0 %v2203
  %2805 = vmatprep.subr.mxu0 %v2206
  %2806 = vmatpush1.msra.mxu0 %v2205
  %2807 = vmatprep.subr.mxu0 0.0
  %2808 = vmatpush1.msra.mxu0 0.0
  %2809 = vmatprep.subr.mxu0 0.0
  %2810 = vmatpush1.msra.mxu0 0.0
  %2811 = vmatprep.subr.mxu0 0.0
  %2812 = vmatpush1.msra.mxu0 0.0
  %2813 = vmatprep.subr.mxu0 0.0
  %2814 = vmatpush1.msra.mxu0 0.0
  %2815 = vmatprep.subr.mxu0 0.0
  %2816 = vmatpush1.msra.mxu0 0.0
  %2817 = vmatprep.subr.mxu0 0.0
  %2818 = vmatpush1.msra.mxu0 0.0
  %2819 = vmatprep.subr.mxu0 0.0
  %2820 = vmatpush1.msra.mxu0 0.0
  %2821 = vmatprep.subr.mxu0 0.0
  %2822 = vmatpush1.msra.mxu0 0.0
  %2823 = vmatprep.subr.mxu0 0.0
  %2824 = vmatpush1.msra.mxu0 0.0
  %2825 = vmatprep.subr.mxu0 0.0
  %2826 = vmatpush1.msra.mxu0 0.0
  %2827 = vmatprep.subr.mxu0 0.0
  %2828 = vmatpush1.msra.mxu0 0.0
  %2829 = vmatprep.subr.mxu0 0.0
  %2830 = vmatpush1.msra.mxu0 0.0
  %2831 = vmatprep.subr.mxu0 0.0
  %2832 = vmatpush1.msra.mxu0 0.0
  %2833 = vmatprep.subr.mxu0 0.0
  %2834 = vmatpush1.msra.mxu0 0.0
  %2835 = vmatprep.subr.mxu0 0.0
  %2836 = vmatpush1.msra.mxu0 0.0
  %2837 = vmatprep.subr.mxu0 0.0
  %2838 = vmatpush1.msra.mxu0 0.0
  %2839 = vmatprep.subr.mxu0 0.0
  %2840 = vmatpush1.msra.mxu0 0.0
  %2841 = vmatprep.subr.mxu0 0.0
  %2842 = vmatpush1.msra.mxu0 0.0
  %2843 = vmatprep.subr.mxu0 0.0
  %2844 = vmatpush1.msra.mxu0 0.0
  %2845 = vmatprep.subr.mxu0 0.0
  %2846 = vmatpush1.msra.mxu0 0.0
  %2847 = vmatprep.subr.mxu0 0.0
  %2848 = vmatpush1.msra.mxu0 0.0
  %2849 = vmatprep.subr.mxu0 0.0
  %2850 = vmatpush1.msra.mxu0 0.0
  %2851 = vmatprep.subr.mxu0 0.0
  %2852 = vmatpush1.msra.mxu0 0.0
  %2853 = vmatprep.subr.mxu0 0.0
  %2854 = vmatpush1.msra.mxu0 0.0
  %2855 = vmatprep.mubr.f32.mxu0 0.0
  %2856 = vmatmul.mubr.f32.gmra.mrb[0].mxu0 %v2789
  %v2857 = vpop.f32.mrb[0].mxu0
  %v2858 = vadd.f32 0.0, %v2857
  %v2859 = vpop.f32.mrb[0].mxu0
  %v2860 = vadd.f32 0.0, %v2859
  %2861 = vdwg.mxu0
  %v2862 = vadd.f32 %v2787, %v2858
  %v2863 = vadd.f32 %v2788, %v2860
  %v2864 = vtanh.pop %v2862
  %v2865 = vtanh.pop %v2863
  %v2866 = vmul.f32 %v2864, 0.5
  %v2867 = vmul.f32 %v2865, 0.5
  %v2868 = vadd.f32 %v2866, 0.5
  %v2869 = vadd.f32 %v2867, 0.5
  %v2870 = vmul.f32 %v2868, %v2772
  %2872 = vrot.lane.b32.xlu0 %v2865, 64
  %v2873 = vpop.permute.xlu0 %2872
  %v2875 = vmul.f32 %v2868, %v2873
  %2877 = vrot.lane.b32.xlu0 %v2875, 64
  %v2878 = vpop.permute.xlu0 %2877
  %v2880 = vadd.f32 %v2870, %v2878
  %v2881 = vtanh.pop %v2880
  %2883 = vrot.lane.b32.xlu0 %v2881, 64
  %v2884 = vpop.permute.xlu0 %2883
  %v2886 = vmul.f32 %v2869, %v2884
  %2887 = vst.msk [vmem:[#allocation2 + $0x20] sm:$0xff] %vm329, %v2886
  %2888 = vst.msk [vmem:[#allocation2 + $0x18] sm:$0xff] %vm331, %v2886
  %2890 = vrot.lane.b32.xlu0 %v2886, 64
  %v2891 = vpop.permute.xlu0 %2890
  %2893 = vst.msk [vmem:[#allocation2 + $0x18] sm:$0xff] %vm337, %v2891
  %2894 = vst.msk [vmem:[#allocation2 + $0x20] sm:$0xff] %vm339, %v2891
  %v2895 = vld [vmem:[#allocation3 + $0x50] sm:$0xff]
  %v2896 = vld [vmem:[#allocation3 + $0x58] sm:$0xff]
  %v2897 = vsel %vm229, %v2886, 0
  %2899 = vmatprep.subr.mxu0 %v2192
  %2900 = vmatpush1.msra.mxu0 %v2191
  %2901 = vmatprep.subr.mxu0 %v2194
  %2902 = vmatpush1.msra.mxu0 %v2193
  %2903 = vmatprep.subr.mxu0 %v2196
  %2904 = vmatpush1.msra.mxu0 %v2195
  %2905 = vmatprep.subr.mxu0 %v2198
  %2906 = vmatpush1.msra.mxu0 %v2197
  %2907 = vmatprep.subr.mxu0 %v2200
  %2908 = vmatpush1.msra.mxu0 %v2199
  %2909 = vmatprep.subr.mxu0 %v2202
  %2910 = vmatpush1.msra.mxu0 %v2201
  %2911 = vmatprep.subr.mxu0 %v2204
  %2912 = vmatpush1.msra.mxu0 %v2203
  %2913 = vmatprep.subr.mxu0 %v2206
  %2914 = vmatpush1.msra.mxu0 %v2205
  %2915 = vmatprep.subr.mxu0 0.0
  %2916 = vmatpush1.msra.mxu0 0.0
  %2917 = vmatprep.subr.mxu0 0.0
  %2918 = vmatpush1.msra.mxu0 0.0
  %2919 = vmatprep.subr.mxu0 0.0
  %2920 = vmatpush1.msra.mxu0 0.0
  %2921 = vmatprep.subr.mxu0 0.0
  %2922 = vmatpush1.msra.mxu0 0.0
  %2923 = vmatprep.subr.mxu0 0.0
  %2924 = vmatpush1.msra.mxu0 0.0
  %2925 = vmatprep.subr.mxu0 0.0
  %2926 = vmatpush1.msra.mxu0 0.0
  %2927 = vmatprep.subr.mxu0 0.0
  %2928 = vmatpush1.msra.mxu0 0.0
  %2929 = vmatprep.subr.mxu0 0.0
  %2930 = vmatpush1.msra.mxu0 0.0
  %2931 = vmatprep.subr.mxu0 0.0
  %2932 = vmatpush1.msra.mxu0 0.0
  %2933 = vmatprep.subr.mxu0 0.0
  %2934 = vmatpush1.msra.mxu0 0.0
  %2935 = vmatprep.subr.mxu0 0.0
  %2936 = vmatpush1.msra.mxu0 0.0
  %2937 = vmatprep.subr.mxu0 0.0
  %2938 = vmatpush1.msra.mxu0 0.0
  %2939 = vmatprep.subr.mxu0 0.0
  %2940 = vmatpush1.msra.mxu0 0.0
  %2941 = vmatprep.subr.mxu0 0.0
  %2942 = vmatpush1.msra.mxu0 0.0
  %2943 = vmatprep.subr.mxu0 0.0
  %2944 = vmatpush1.msra.mxu0 0.0
  %2945 = vmatprep.subr.mxu0 0.0
  %2946 = vmatpush1.msra.mxu0 0.0
  %2947 = vmatprep.subr.mxu0 0.0
  %2948 = vmatpush1.msra.mxu0 0.0
  %2949 = vmatprep.subr.mxu0 0.0
  %2950 = vmatpush1.msra.mxu0 0.0
  %2951 = vmatprep.subr.mxu0 0.0
  %2952 = vmatpush1.msra.mxu0 0.0
  %2953 = vmatprep.subr.mxu0 0.0
  %2954 = vmatpush1.msra.mxu0 0.0
  %2955 = vmatprep.subr.mxu0 0.0
  %2956 = vmatpush1.msra.mxu0 0.0
  %2957 = vmatprep.subr.mxu0 0.0
  %2958 = vmatpush1.msra.mxu0 0.0
  %2959 = vmatprep.subr.mxu0 0.0
  %2960 = vmatpush1.msra.mxu0 0.0
  %2961 = vmatprep.subr.mxu0 0.0
  %2962 = vmatpush1.msra.mxu0 0.0
  %2963 = vmatprep.mubr.f32.mxu0 0.0
  %2964 = vmatmul.mubr.f32.gmra.mrb[0].mxu0 %v2897
  %v2965 = vpop.f32.mrb[0].mxu0
  %v2966 = vadd.f32 0.0, %v2965
  %v2967 = vpop.f32.mrb[0].mxu0
  %v2968 = vadd.f32 0.0, %v2967
  %2969 = vdwg.mxu0
  %v2970 = vadd.f32 %v2895, %v2966
  %v2971 = vadd.f32 %v2896, %v2968
  %v2972 = vtanh.pop %v2970
  %v2973 = vtanh.pop %v2971
  %v2974 = vmul.f32 %v2972, 0.5
  %v2975 = vmul.f32 %v2973, 0.5
  %v2976 = vadd.f32 %v2974, 0.5
  %v2977 = vadd.f32 %v2975, 0.5
  %v2978 = vmul.f32 %v2976, %v2880
  %2980 = vrot.lane.b32.xlu0 %v2973, 64
  %v2981 = vpop.permute.xlu0 %2980
  %v2983 = vmul.f32 %v2976, %v2981
  %2985 = vrot.lane.b32.xlu0 %v2983, 64
  %v2986 = vpop.permute.xlu0 %2985
  %v2988 = vadd.f32 %v2978, %v2986
  %v2989 = vtanh.pop %v2988
  %2991 = vrot.lane.b32.xlu0 %v2989, 64
  %v2992 = vpop.permute.xlu0 %2991
  %v2994 = vmul.f32 %v2977, %v2992
  %2995 = vst.msk [vmem:[#allocation2 + $0x28] sm:$0xff] %vm329, %v2994
  %2996 = vst.msk [vmem:[#allocation2 + $0x10] sm:$0xff] %vm331, %v2994
  %2998 = vrot.lane.b32.xlu0 %v2994, 64
  %v2999 = vpop.permute.xlu0 %2998
  %3001 = vst.msk [vmem:[#allocation2 + $0x10] sm:$0xff] %vm337, %v2999
  %3002 = vst.msk [vmem:[#allocation2 + $0x28] sm:$0xff] %vm339, %v2999
  %v3003 = vld [vmem:[#allocation3 + $0x60] sm:$0xff]
  %v3004 = vld [vmem:[#allocation3 + $0x68] sm:$0xff]
  %v3005 = vsel %vm229, %v2994, 0
  %3007 = vmatprep.subr.mxu0 %v2192
  %3008 = vmatpush1.msra.mxu0 %v2191
  %3009 = vmatprep.subr.mxu0 %v2194
  %3010 = vmatpush1.msra.mxu0 %v2193
  %3011 = vmatprep.subr.mxu0 %v2196
  %3012 = vmatpush1.msra.mxu0 %v2195
  %3013 = vmatprep.subr.mxu0 %v2198
  %3014 = vmatpush1.msra.mxu0 %v2197
  %3015 = vmatprep.subr.mxu0 %v2200
  %3016 = vmatpush1.msra.mxu0 %v2199
  %3017 = vmatprep.subr.mxu0 %v2202
  %3018 = vmatpush1.msra.mxu0 %v2201
  %3019 = vmatprep.subr.mxu0 %v2204
  %3020 = vmatpush1.msra.mxu0 %v2203
  %3021 = vmatprep.subr.mxu0 %v2206
  %3022 = vmatpush1.msra.mxu0 %v2205
  %3023 = vmatprep.subr.mxu0 0.0
  %3024 = vmatpush1.msra.mxu0 0.0
  %3025 = vmatprep.subr.mxu0 0.0
  %3026 = vmatpush1.msra.mxu0 0.0
  %3027 = vmatprep.subr.mxu0 0.0
  %3028 = vmatpush1.msra.mxu0 0.0
  %3029 = vmatprep.subr.mxu0 0.0
  %3030 = vmatpush1.msra.mxu0 0.0
  %3031 = vmatprep.subr.mxu0 0.0
  %3032 = vmatpush1.msra.mxu0 0.0
  %3033 = vmatprep.subr.mxu0 0.0
  %3034 = vmatpush1.msra.mxu0 0.0
  %3035 = vmatprep.subr.mxu0 0.0
  %3036 = vmatpush1.msra.mxu0 0.0
  %3037 = vmatprep.subr.mxu0 0.0
  %3038 = vmatpush1.msra.mxu0 0.0
  %3039 = vmatprep.subr.mxu0 0.0
  %3040 = vmatpush1.msra.mxu0 0.0
  %3041 = vmatprep.subr.mxu0 0.0
  %3042 = vmatpush1.msra.mxu0 0.0
  %3043 = vmatprep.subr.mxu0 0.0
  %3044 = vmatpush1.msra.mxu0 0.0
  %3045 = vmatprep.subr.mxu0 0.0
  %3046 = vmatpush1.msra.mxu0 0.0
  %3047 = vmatprep.subr.mxu0 0.0
  %3048 = vmatpush1.msra.mxu0 0.0
  %3049 = vmatprep.subr.mxu0 0.0
  %3050 = vmatpush1.msra.mxu0 0.0
  %3051 = vmatprep.subr.mxu0 0.0
  %3052 = vmatpush1.msra.mxu0 0.0
  %3053 = vmatprep.subr.mxu0 0.0
  %3054 = vmatpush1.msra.mxu0 0.0
  %3055 = vmatprep.subr.mxu0 0.0
  %3056 = vmatpush1.msra.mxu0 0.0
  %3057 = vmatprep.subr.mxu0 0.0
  %3058 = vmatpush1.msra.mxu0 0.0
  %3059 = vmatprep.subr.mxu0 0.0
  %3060 = vmatpush1.msra.mxu0 0.0
  %3061 = vmatprep.subr.mxu0 0.0
  %3062 = vmatpush1.msra.mxu0 0.0
  %3063 = vmatprep.subr.mxu0 0.0
  %3064 = vmatpush1.msra.mxu0 0.0
  %3065 = vmatprep.subr.mxu0 0.0
  %3066 = vmatpush1.msra.mxu0 0.0
  %3067 = vmatprep.subr.mxu0 0.0
  %3068 = vmatpush1.msra.mxu0 0.0
  %3069 = vmatprep.subr.mxu0 0.0
  %3070 = vmatpush1.msra.mxu0 0.0
  %3071 = vmatprep.mubr.f32.mxu0 0.0
  %3072 = vmatmul.mubr.f32.gmra.mrb[0].mxu0 %v3005
  %v3073 = vpop.f32.mrb[0].mxu0
  %v3074 = vadd.f32 0.0, %v3073
  %v3075 = vpop.f32.mrb[0].mxu0
  %v3076 = vadd.f32 0.0, %v3075
  %3077 = vdwg.mxu0
  %v3078 = vadd.f32 %v3003, %v3074
  %v3079 = vadd.f32 %v3004, %v3076
  %v3080 = vtanh.pop %v3078
  %v3081 = vtanh.pop %v3079
  %v3082 = vmul.f32 %v3080, 0.5
  %v3083 = vmul.f32 %v3081, 0.5
  %v3084 = vadd.f32 %v3082, 0.5
  %v3085 = vadd.f32 %v3083, 0.5
  %v3086 = vmul.f32 %v3084, %v2988
  %3088 = vrot.lane.b32.xlu0 %v3081, 64
  %v3089 = vpop.permute.xlu0 %3088
  %v3091 = vmul.f32 %v3084, %v3089
  %3093 = vrot.lane.b32.xlu0 %v3091, 64
  %v3094 = vpop.permute.xlu0 %3093
  %v3096 = vadd.f32 %v3086, %v3094
  %v3097 = vtanh.pop %v3096
  %3099 = vrot.lane.b32.xlu0 %v3097, 64
  %v3100 = vpop.permute.xlu0 %3099
  %v3102 = vmul.f32 %v3085, %v3100
  %3103 = vst.msk [vmem:[#allocation2 + $0x30] sm:$0xff] %vm329, %v3102
  %3104 = vst.msk [vmem:[#allocation2 + $0x8] sm:$0xff] %vm331, %v3102
  %3106 = vrot.lane.b32.xlu0 %v3102, 64
  %v3107 = vpop.permute.xlu0 %3106
  %3109 = vst.msk [vmem:[#allocation2 + $0x8] sm:$0xff] %vm337, %v3107
  %3110 = vst.msk [vmem:[#allocation2 + $0x30] sm:$0xff] %vm339, %v3107
  %v3111 = vld [vmem:[#allocation3 + $0x70] sm:$0xff]
  %v3112 = vld [vmem:[#allocation3 + $0x78] sm:$0xff]
  %v3113 = vsel %vm229, %v3102, 0
  %3115 = vmatprep.subr.mxu0 %v2192
  %3116 = vmatpush1.msra.mxu0 %v2191
  %3117 = vmatprep.subr.mxu0 %v2194
  %3118 = vmatpush1.msra.mxu0 %v2193
  %3119 = vmatprep.subr.mxu0 %v2196
  %3120 = vmatpush1.msra.mxu0 %v2195
  %3121 = vmatprep.subr.mxu0 %v2198
  %3122 = vmatpush1.msra.mxu0 %v2197
  %3123 = vmatprep.subr.mxu0 %v2200
  %3124 = vmatpush1.msra.mxu0 %v2199
  %3125 = vmatprep.subr.mxu0 %v2202
  %3126 = vmatpush1.msra.mxu0 %v2201
  %3127 = vmatprep.subr.mxu0 %v2204
  %3128 = vmatpush1.msra.mxu0 %v2203
  %3129 = vmatprep.subr.mxu0 %v2206
  %3130 = vmatpush1.msra.mxu0 %v2205
  %3131 = vmatprep.subr.mxu0 0.0
  %3132 = vmatpush1.msra.mxu0 0.0
  %3133 = vmatprep.subr.mxu0 0.0
  %3134 = vmatpush1.msra.mxu0 0.0
  %3135 = vmatprep.subr.mxu0 0.0
  %3136 = vmatpush1.msra.mxu0 0.0
  %3137 = vmatprep.subr.mxu0 0.0
  %3138 = vmatpush1.msra.mxu0 0.0
  %3139 = vmatprep.subr.mxu0 0.0
  %3140 = vmatpush1.msra.mxu0 0.0
  %3141 = vmatprep.subr.mxu0 0.0
  %3142 = vmatpush1.msra.mxu0 0.0
  %3143 = vmatprep.subr.mxu0 0.0
  %3144 = vmatpush1.msra.mxu0 0.0
  %3145 = vmatprep.subr.mxu0 0.0
  %3146 = vmatpush1.msra.mxu0 0.0
  %3147 = vmatprep.subr.mxu0 0.0
  %3148 = vmatpush1.msra.mxu0 0.0
  %3149 = vmatprep.subr.mxu0 0.0
  %3150 = vmatpush1.msra.mxu0 0.0
  %3151 = vmatprep.subr.mxu0 0.0
  %3152 = vmatpush1.msra.mxu0 0.0
  %3153 = vmatprep.subr.mxu0 0.0
  %3154 = vmatpush1.msra.mxu0 0.0
  %3155 = vmatprep.subr.mxu0 0.0
  %3156 = vmatpush1.msra.mxu0 0.0
  %3157 = vmatprep.subr.mxu0 0.0
  %3158 = vmatpush1.msra.mxu0 0.0
  %3159 = vmatprep.subr.mxu0 0.0
  %3160 = vmatpush1.msra.mxu0 0.0
  %3161 = vmatprep.subr.mxu0 0.0
  %3162 = vmatpush1.msra.mxu0 0.0
  %3163 = vmatprep.subr.mxu0 0.0
  %3164 = vmatpush1.msra.mxu0 0.0
  %3165 = vmatprep.subr.mxu0 0.0
  %3166 = vmatpush1.msra.mxu0 0.0
  %3167 = vmatprep.subr.mxu0 0.0
  %3168 = vmatpush1.msra.mxu0 0.0
  %3169 = vmatprep.subr.mxu0 0.0
  %3170 = vmatpush1.msra.mxu0 0.0
  %3171 = vmatprep.subr.mxu0 0.0
  %3172 = vmatpush1.msra.mxu0 0.0
  %3173 = vmatprep.subr.mxu0 0.0
  %3174 = vmatpush1.msra.mxu0 0.0
  %3175 = vmatprep.subr.mxu0 0.0
  %3176 = vmatpush1.msra.mxu0 0.0
  %3177 = vmatprep.subr.mxu0 0.0
  %3178 = vmatpush1.msra.mxu0 0.0
  %3179 = vmatprep.mubr.f32.mxu0 0.0
  %3180 = vmatmul.mubr.f32.gmra.mrb[0].mxu0 %v3113
  %v3181 = vpop.f32.mrb[0].mxu0
  %v3182 = vadd.f32 0.0, %v3181
  %v3183 = vpop.f32.mrb[0].mxu0
  %v3184 = vadd.f32 0.0, %v3183
  %3185 = vdwg.mxu0
  %v3186 = vadd.f32 %v3111, %v3182
  %v3187 = vadd.f32 %v3112, %v3184
  %v3188 = vtanh.pop %v3186
  %v3189 = vtanh.pop %v3187
  %v3190 = vmul.f32 %v3188, 0.5
  %v3191 = vmul.f32 %v3189, 0.5
  %v3192 = vadd.f32 %v3190, 0.5
  %v3193 = vadd.f32 %v3191, 0.5
  %v3194 = vmul.f32 %v3192, %v3096
  %3196 = vrot.lane.b32.xlu0 %v3189, 64
  %v3197 = vpop.permute.xlu0 %3196
  %v3199 = vmul.f32 %v3192, %v3197
  %3201 = vrot.lane.b32.xlu0 %v3199, 64
  %v3202 = vpop.permute.xlu0 %3201
  %v3204 = vadd.f32 %v3194, %v3202
  %v3205 = vtanh.pop %v3204
  %3207 = vrot.lane.b32.xlu0 %v3205, 64
  %v3208 = vpop.permute.xlu0 %3207
  %v3210 = vmul.f32 %v3193, %v3208
  %3211 = vst.msk [vmem:[#allocation2 + $0x38] sm:$0xff] %vm329, %v3210
  %3212 = vst.msk [vmem:[#allocation2] sm:$0xff] %vm331, %v3210
  %3214 = vrot.lane.b32.xlu0 %v3210, 64
  %v3215 = vpop.permute.xlu0 %3214
  %3217 = vst.msk [vmem:[#allocation2] sm:$0xff] %vm337, %v3215
  %3218 = vst.msk [vmem:[#allocation2 + $0x38] sm:$0xff] %vm339, %v3215
  %s3219 = scalar_lea.vmem %s2, 1200
  %v3220 = vld [vmem:[%s3219] sm:$0xff]
  %v3221 = vld [vmem:[%s3219 + $0x8] sm:$0xff]
  %v3222 = vld [vmem:[%s3219 + $0x10] sm:$0xff]
  %v3223 = vld [vmem:[%s3219 + $0x18] sm:$0xff]
  %v3224 = vld [vmem:[%s3219 + $0x20] sm:$0xff]
  %v3225 = vld [vmem:[%s3219 + $0x28] sm:$0xff]
  %v3226 = vld [vmem:[%s3219 + $0x30] sm:$0xff]
  %v3227 = vld [vmem:[%s3219 + $0x38] sm:$0xff]
  %v3228 = vld [vmem:[%s3219 + $0x40] sm:$0xff]
  %v3229 = vld [vmem:[%s3219 + $0x48] sm:$0xff]
  %v3230 = vld [vmem:[%s3219 + $0x50] sm:$0xff]
  %v3231 = vld [vmem:[%s3219 + $0x58] sm:$0xff]
  %v3232 = vld [vmem:[%s3219 + $0x60] sm:$0xff]
  %v3233 = vld [vmem:[%s3219 + $0x68] sm:$0xff]
  %v3234 = vld [vmem:[%s3219 + $0x70] sm:$0xff]
  %v3235 = vld [vmem:[%s3219 + $0x78] sm:$0xff]
  %v3236 = vld [vmem:[%s3219 + $0x80] sm:$0xff]
  %v3237 = vld [vmem:[%s3219 + $0x88] sm:$0xff]
  %v3238 = vld [vmem:[%s3219 + $0x90] sm:$0xff]
  %v3239 = vld [vmem:[%s3219 + $0x98] sm:$0xff]
  %v3240 = vld [vmem:[%s3219 + $0xa0] sm:$0xff]
  %v3241 = vld [vmem:[%s3219 + $0xa8] sm:$0xff]
  %v3242 = vld [vmem:[%s3219 + $0xb0] sm:$0xff]
  %v3243 = vld [vmem:[%s3219 + $0xb8] sm:$0xff]
  %v3244 = vld [vmem:[%s3219 + $0xc0] sm:$0xff]
  %v3245 = vld [vmem:[%s3219 + $0xc8] sm:$0xff]
  %v3246 = vld [vmem:[%s3219 + $0xd0] sm:$0xff]
  %v3247 = vld [vmem:[%s3219 + $0xd8] sm:$0xff]
  %v3248 = vld [vmem:[%s3219 + $0xe0] sm:$0xff]
  %v3249 = vld [vmem:[%s3219 + $0xe8] sm:$0xff]
  %v3250 = vld [vmem:[%s3219 + $0xf0] sm:$0xff]
  %v3251 = vld [vmem:[%s3219 + $0xf8] sm:$0xff]
  %v3252 = vld [vmem:[%s3219 + $0x100] sm:$0xff]
  %v3253 = vld [vmem:[%s3219 + $0x108] sm:$0xff]
  %v3254 = vld [vmem:[%s3219 + $0x110] sm:$0xff]
  %v3255 = vld [vmem:[%s3219 + $0x118] sm:$0xff]
  %v3256 = vld [vmem:[%s3219 + $0x120] sm:$0xff]
  %v3257 = vld [vmem:[%s3219 + $0x128] sm:$0xff]
  %v3258 = vld [vmem:[%s3219 + $0x130] sm:$0xff]
  %v3259 = vld [vmem:[%s3219 + $0x138] sm:$0xff]
  %v3260 = vld [vmem:[%s3219 + $0x140] sm:$0xff]
  %v3261 = vld [vmem:[%s3219 + $0x148] sm:$0xff]
  %v3262 = vld [vmem:[%s3219 + $0x150] sm:$0xff]
  %v3263 = vld [vmem:[%s3219 + $0x158] sm:$0xff]
  %v3264 = vld [vmem:[%s3219 + $0x160] sm:$0xff]
  %v3265 = vld [vmem:[%s3219 + $0x168] sm:$0xff]
  %v3266 = vld [vmem:[%s3219 + $0x170] sm:$0xff]
  %v3267 = vld [vmem:[%s3219 + $0x178] sm:$0xff]
  %s3268 = scalar_lea.vmem %s3219, 384
  %v3269 = vld [vmem:[%s3268] ss:$8 sm:$0x3]
  %v3270 = vld [vmem:[#allocation2] sm:$0xff]
  %v3271 = vld [vmem:[#allocation2 + $0x8] sm:$0xff]
  %v3272 = vld [vmem:[#allocation2 + $0x10] sm:$0xff]
  %v3273 = vld [vmem:[#allocation2 + $0x18] sm:$0xff]
  %v3274 = vld [vmem:[#allocation2 + $0x20] sm:$0xff]
  %v3275 = vld [vmem:[#allocation2 + $0x28] sm:$0xff]
  %v3276 = vld [vmem:[#allocation2 + $0x30] sm:$0xff]
  %v3277 = vld [vmem:[#allocation2 + $0x38] sm:$0xff]
  %v3279 = vlaneseq
  %v3280 = vshrl.u32 %v3279, 7
  %v3281 = vsub.s32 0, %v3280
  %v3282 = vrot.slane %v3269, %v3281
  %v3283 = vlaneseq
  %v3284 = vshrl.u32 %v3283, 7
  %v3285 = vsub.s32 1, %v3284
  %v3286 = vrot.slane %v3269, %v3285
  %3289 = vmatprep.subr.mxu0 %v3221
  %3290 = vmatpush1.msra.mxu0 %v3220
  %3291 = vmatprep.subr.mxu0 %v3223
  %3292 = vmatpush1.msra.mxu0 %v3222
  %3293 = vmatprep.subr.mxu0 %v3225
  %3294 = vmatpush1.msra.mxu0 %v3224
  %3295 = vmatprep.subr.mxu0 %v3227
  %3296 = vmatpush1.msra.mxu0 %v3226
  %3297 = vmatprep.subr.mxu0 %v3229
  %3298 = vmatpush1.msra.mxu0 %v3228
  %3299 = vmatprep.subr.mxu0 %v3231
  %3300 = vmatpush1.msra.mxu0 %v3230
  %3301 = vmatprep.subr.mxu0 %v3233
  %3302 = vmatpush1.msra.mxu0 %v3232
  %3303 = vmatprep.subr.mxu0 %v3235
  %3304 = vmatpush1.msra.mxu0 %v3234
  %3305 = vmatprep.subr.mxu0 %v3237
  %3306 = vmatpush1.msra.mxu0 %v3236
  %3307 = vmatprep.subr.mxu0 %v3239
  %3308 = vmatpush1.msra.mxu0 %v3238
  %3309 = vmatprep.subr.mxu0 %v3241
  %3310 = vmatpush1.msra.mxu0 %v3240
  %3311 = vmatprep.subr.mxu0 %v3243
  %3312 = vmatpush1.msra.mxu0 %v3242
  %3313 = vmatprep.subr.mxu0 %v3245
  %3314 = vmatpush1.msra.mxu0 %v3244
  %3315 = vmatprep.subr.mxu0 %v3247
  %3316 = vmatpush1.msra.mxu0 %v3246
  %3317 = vmatprep.subr.mxu0 %v3249
  %3318 = vmatpush1.msra.mxu0 %v3248
  %3319 = vmatprep.subr.mxu0 %v3251
  %3320 = vmatpush1.msra.mxu0 %v3250
  %3321 = vmatprep.subr.mxu0 0.0
  %3322 = vmatpush1.msra.mxu0 0.0
  %3323 = vmatprep.subr.mxu0 0.0
  %3324 = vmatpush1.msra.mxu0 0.0
  %3325 = vmatprep.subr.mxu0 0.0
  %3326 = vmatpush1.msra.mxu0 0.0
  %3327 = vmatprep.subr.mxu0 0.0
  %3328 = vmatpush1.msra.mxu0 0.0
  %3329 = vmatprep.subr.mxu0 0.0
  %3330 = vmatpush1.msra.mxu0 0.0
  %3331 = vmatprep.subr.mxu0 0.0
  %3332 = vmatpush1.msra.mxu0 0.0
  %3333 = vmatprep.subr.mxu0 0.0
  %3334 = vmatpush1.msra.mxu0 0.0
  %3335 = vmatprep.subr.mxu0 0.0
  %3336 = vmatpush1.msra.mxu0 0.0
  %3337 = vmatprep.subr.mxu0 0.0
  %3338 = vmatpush1.msra.mxu0 0.0
  %3339 = vmatprep.subr.mxu0 0.0
  %3340 = vmatpush1.msra.mxu0 0.0
  %3341 = vmatprep.subr.mxu0 0.0
  %3342 = vmatpush1.msra.mxu0 0.0
  %3343 = vmatprep.subr.mxu0 0.0
  %3344 = vmatpush1.msra.mxu0 0.0
  %3345 = vmatprep.subr.mxu0 0.0
  %3346 = vmatpush1.msra.mxu0 0.0
  %3347 = vmatprep.subr.mxu0 0.0
  %3348 = vmatpush1.msra.mxu0 0.0
  %3349 = vmatprep.subr.mxu0 0.0
  %3350 = vmatpush1.msra.mxu0 0.0
  %3351 = vmatprep.subr.mxu0 0.0
  %3352 = vmatpush1.msra.mxu0 0.0
  %3353 = vmatprep.mubr.f32.mxu0 0.0
  %3354 = vmatmul.mubr.f32.gmra.mrb[0].mxu0 %v3270
  %v3355 = vpop.f32.mrb[0].mxu0
  %v3356 = vadd.f32 %v3282, %v3355
  %v3357 = vpop.f32.mrb[0].mxu0
  %v3358 = vadd.f32 %v3286, %v3357
  %3359 = vmatprep.mubr.f32.mxu0 0.0
  %3360 = vmatmul.mubr.f32.gmra.mrb[0].mxu0 %v3271
  %v3361 = vpop.f32.mrb[0].mxu0
  %v3362 = vadd.f32 %v3282, %v3361
  %v3363 = vpop.f32.mrb[0].mxu0
  %v3364 = vadd.f32 %v3286, %v3363
  %3365 = vmatprep.mubr.f32.mxu0 0.0
  %3366 = vmatmul.mubr.f32.gmra.mrb[0].mxu0 %v3272
  %v3367 = vpop.f32.mrb[0].mxu0
  %v3368 = vadd.f32 %v3282, %v3367
  %v3369 = vpop.f32.mrb[0].mxu0
  %v3370 = vadd.f32 %v3286, %v3369
  %3371 = vmatprep.mubr.f32.mxu0 0.0
  %3372 = vmatmul.mubr.f32.gmra.mrb[0].mxu0 %v3273
  %v3373 = vpop.f32.mrb[0].mxu0
  %v3374 = vadd.f32 %v3282, %v3373
  %v3375 = vpop.f32.mrb[0].mxu0
  %v3376 = vadd.f32 %v3286, %v3375
  %3377 = vmatprep.mubr.f32.mxu0 0.0
  %3378 = vmatmul.mubr.f32.gmra.mrb[0].mxu0 %v3274
  %v3379 = vpop.f32.mrb[0].mxu0
  %v3380 = vadd.f32 %v3282, %v3379
  %v3381 = vpop.f32.mrb[0].mxu0
  %v3382 = vadd.f32 %v3286, %v3381
  %3383 = vmatprep.mubr.f32.mxu0 0.0
  %3384 = vmatmul.mubr.f32.gmra.mrb[0].mxu0 %v3275
  %v3385 = vpop.f32.mrb[0].mxu0
  %v3386 = vadd.f32 %v3282, %v3385
  %v3387 = vpop.f32.mrb[0].mxu0
  %v3388 = vadd.f32 %v3286, %v3387
  %3389 = vmatprep.mubr.f32.mxu0 0.0
  %3390 = vmatmul.mubr.f32.gmra.mrb[0].mxu0 %v3276
  %v3391 = vpop.f32.mrb[0].mxu0
  %v3392 = vadd.f32 %v3282, %v3391
  %v3393 = vpop.f32.mrb[0].mxu0
  %v3394 = vadd.f32 %v3286, %v3393
  %3395 = vmatprep.mubr.f32.mxu0 0.0
  %3396 = vmatmul.mubr.f32.gmra.mrb[0].mxu0 %v3277
  %v3397 = vpop.f32.mrb[0].mxu0
  %v3398 = vadd.f32 %v3282, %v3397
  %v3399 = vpop.f32.mrb[0].mxu0
  %v3400 = vadd.f32 %v3286, %v3399
  %3401 = vdwg.mxu0
  %3402 = vst [vmem:[#allocation3] sm:$0xff] %v3356
  %3403 = vst [vmem:[#allocation3 + $0x8] sm:$0xff] %v3358
  %3404 = vst [vmem:[#allocation3 + $0x10] sm:$0xff] %v3362
  %3405 = vst [vmem:[#allocation3 + $0x18] sm:$0xff] %v3364
  %3406 = vst [vmem:[#allocation3 + $0x20] sm:$0xff] %v3368
  %3407 = vst [vmem:[#allocation3 + $0x28] sm:$0xff] %v3370
  %3408 = vst [vmem:[#allocation3 + $0x30] sm:$0xff] %v3374
  %3409 = vst [vmem:[#allocation3 + $0x38] sm:$0xff] %v3376
  %3410 = vst [vmem:[#allocation3 + $0x40] sm:$0xff] %v3380
  %3411 = vst [vmem:[#allocation3 + $0x48] sm:$0xff] %v3382
  %3412 = vst [vmem:[#allocation3 + $0x50] sm:$0xff] %v3386
  %3413 = vst [vmem:[#allocation3 + $0x58] sm:$0xff] %v3388
  %3414 = vst [vmem:[#allocation3 + $0x60] sm:$0xff] %v3392
  %3415 = vst [vmem:[#allocation3 + $0x68] sm:$0xff] %v3394
  %3416 = vst [vmem:[#allocation3 + $0x70] sm:$0xff] %v3398
  %3417 = vst [vmem:[#allocation3 + $0x78] sm:$0xff] %v3400
  %v3418 = vld [vmem:[#allocation3] sm:$0xff]
  %v3419 = vld [vmem:[#allocation3 + $0x8] sm:$0xff]
  %3420 = vmatprep.subr.mxu0 %v3253
  %3421 = vmatpush1.msra.mxu0 %v3252
  %3422 = vmatprep.subr.mxu0 %v3255
  %3423 = vmatpush1.msra.mxu0 %v3254
  %3424 = vmatprep.subr.mxu0 %v3257
  %3425 = vmatpush1.msra.mxu0 %v3256
  %3426 = vmatprep.subr.mxu0 %v3259
  %3427 = vmatpush1.msra.mxu0 %v3258
  %3428 = vmatprep.subr.mxu0 %v3261
  %3429 = vmatpush1.msra.mxu0 %v3260
  %3430 = vmatprep.subr.mxu0 %v3263
  %3431 = vmatpush1.msra.mxu0 %v3262
  %3432 = vmatprep.subr.mxu0 %v3265
  %3433 = vmatpush1.msra.mxu0 %v3264
  %3434 = vmatprep.subr.mxu0 %v3267
  %3435 = vmatpush1.msra.mxu0 %v3266
  %3436 = vmatprep.subr.mxu0 0.0
  %3437 = vmatpush1.msra.mxu0 0.0
  %3438 = vmatprep.subr.mxu0 0.0
  %3439 = vmatpush1.msra.mxu0 0.0
  %3440 = vmatprep.subr.mxu0 0.0
  %3441 = vmatpush1.msra.mxu0 0.0
  %3442 = vmatprep.subr.mxu0 0.0
  %3443 = vmatpush1.msra.mxu0 0.0
  %3444 = vmatprep.subr.mxu0 0.0
  %3445 = vmatpush1.msra.mxu0 0.0
  %3446 = vmatprep.subr.mxu0 0.0
  %3447 = vmatpush1.msra.mxu0 0.0
  %3448 = vmatprep.subr.mxu0 0.0
  %3449 = vmatpush1.msra.mxu0 0.0
  %3450 = vmatprep.subr.mxu0 0.0
  %3451 = vmatpush1.msra.mxu0 0.0
  %3452 = vmatprep.subr.mxu0 0.0
  %3453 = vmatpush1.msra.mxu0 0.0
  %3454 = vmatprep.subr.mxu0 0.0
  %3455 = vmatpush1.msra.mxu0 0.0
  %3456 = vmatprep.subr.mxu0 0.0
  %3457 = vmatpush1.msra.mxu0 0.0
  %3458 = vmatprep.subr.mxu0 0.0
  %3459 = vmatpush1.msra.mxu0 0.0
  %3460 = vmatprep.subr.mxu0 0.0
  %3461 = vmatpush1.msra.mxu0 0.0
  %3462 = vmatprep.subr.mxu0 0.0
  %3463 = vmatpush1.msra.mxu0 0.0
  %3464 = vmatprep.subr.mxu0 0.0
  %3465 = vmatpush1.msra.mxu0 0.0
  %3466 = vmatprep.subr.mxu0 0.0
  %3467 = vmatpush1.msra.mxu0 0.0
  %3468 = vmatprep.subr.mxu0 0.0
  %3469 = vmatpush1.msra.mxu0 0.0
  %3470 = vmatprep.subr.mxu0 0.0
  %3471 = vmatpush1.msra.mxu0 0.0
  %3472 = vmatprep.subr.mxu0 0.0
  %3473 = vmatpush1.msra.mxu0 0.0
  %3474 = vmatprep.subr.mxu0 0.0
  %3475 = vmatpush1.msra.mxu0 0.0
  %3476 = vmatprep.subr.mxu0 0.0
  %3477 = vmatpush1.msra.mxu0 0.0
  %3478 = vmatprep.subr.mxu0 0.0
  %3479 = vmatpush1.msra.mxu0 0.0
  %3480 = vmatprep.subr.mxu0 0.0
  %3481 = vmatpush1.msra.mxu0 0.0
  %3482 = vmatprep.subr.mxu0 0.0
  %3483 = vmatpush1.msra.mxu0 0.0
  %3484 = vmatprep.mubr.f32.mxu0 0.0
  %3485 = vmatmul.mubr.f32.gmra.mrb[0].mxu0 %v231
  %v3486 = vpop.f32.mrb[0].mxu0
  %v3487 = vadd.f32 0.0, %v3486
  %v3488 = vpop.f32.mrb[0].mxu0
  %v3489 = vadd.f32 0.0, %v3488
  %3490 = vdwg.mxu0
  %v3491 = vadd.f32 %v3418, %v3487
  %v3492 = vadd.f32 %v3419, %v3489
  %v3493 = vtanh.pop %v3491
  %v3494 = vtanh.pop %v3492
  %v3495 = vmul.f32 %v3493, 0.5
  %v3496 = vmul.f32 %v3494, 0.5
  %v3497 = vadd.f32 %v3495, 0.5
  %v3498 = vadd.f32 %v3496, 0.5
  %v3499 = vmul.f32 %v3497, 0.0
  %3501 = vrot.lane.b32.xlu0 %v3494, 64
  %v3502 = vpop.permute.xlu0 %3501
  %v3504 = vmul.f32 %v3497, %v3502
  %3506 = vrot.lane.b32.xlu0 %v3504, 64
  %v3507 = vpop.permute.xlu0 %3506
  %v3509 = vadd.f32 %v3499, %v3507
  %v3510 = vtanh.pop %v3509
  %3512 = vrot.lane.b32.xlu0 %v3510, 64
  %v3513 = vpop.permute.xlu0 %3512
  %v3515 = vmul.f32 %v3498, %v3513
  %3516 = vst.msk [vmem:[#allocation2] sm:$0xff] %vm329, %v3515
  %3517 = vst.msk [vmem:[#allocation2 + $0x38] sm:$0xff] %vm331, %v3515
  %3519 = vrot.lane.b32.xlu0 %v3515, 64
  %v3520 = vpop.permute.xlu0 %3519
  %3522 = vst.msk [vmem:[#allocation2 + $0x38] sm:$0xff] %vm337, %v3520
  %3523 = vst.msk [vmem:[#allocation2] sm:$0xff] %vm339, %v3520
  %v3524 = vld [vmem:[#allocation3 + $0x10] sm:$0xff]
  %v3525 = vld [vmem:[#allocation3 + $0x18] sm:$0xff]
  %v3526 = vsel %vm229, %v3515, 0
  %3528 = vmatprep.subr.mxu0 %v3253
  %3529 = vmatpush1.msra.mxu0 %v3252
  %3530 = vmatprep.subr.mxu0 %v3255
  %3531 = vmatpush1.msra.mxu0 %v3254
  %3532 = vmatprep.subr.mxu0 %v3257
  %3533 = vmatpush1.msra.mxu0 %v3256
  %3534 = vmatprep.subr.mxu0 %v3259
  %3535 = vmatpush1.msra.mxu0 %v3258
  %3536 = vmatprep.subr.mxu0 %v3261
  %3537 = vmatpush1.msra.mxu0 %v3260
  %3538 = vmatprep.subr.mxu0 %v3263
  %3539 = vmatpush1.msra.mxu0 %v3262
  %3540 = vmatprep.subr.mxu0 %v3265
  %3541 = vmatpush1.msra.mxu0 %v3264
  %3542 = vmatprep.subr.mxu0 %v3267
  %3543 = vmatpush1.msra.mxu0 %v3266
  %3544 = vmatprep.subr.mxu0 0.0
  %3545 = vmatpush1.msra.mxu0 0.0
  %3546 = vmatprep.subr.mxu0 0.0
  %3547 = vmatpush1.msra.mxu0 0.0
  %3548 = vmatprep.subr.mxu0 0.0
  %3549 = vmatpush1.msra.mxu0 0.0
  %3550 = vmatprep.subr.mxu0 0.0
  %3551 = vmatpush1.msra.mxu0 0.0
  %3552 = vmatprep.subr.mxu0 0.0
  %3553 = vmatpush1.msra.mxu0 0.0
  %3554 = vmatprep.subr.mxu0 0.0
  %3555 = vmatpush1.msra.mxu0 0.0
  %3556 = vmatprep.subr.mxu0 0.0
  %3557 = vmatpush1.msra.mxu0 0.0
  %3558 = vmatprep.subr.mxu0 0.0
  %3559 = vmatpush1.msra.mxu0 0.0
  %3560 = vmatprep.subr.mxu0 0.0
  %3561 = vmatpush1.msra.mxu0 0.0
  %3562 = vmatprep.subr.mxu0 0.0
  %3563 = vmatpush1.msra.mxu0 0.0
  %3564 = vmatprep.subr.mxu0 0.0
  %3565 = vmatpush1.msra.mxu0 0.0
  %3566 = vmatprep.subr.mxu0 0.0
  %3567 = vmatpush1.msra.mxu0 0.0
  %3568 = vmatprep.subr.mxu0 0.0
  %3569 = vmatpush1.msra.mxu0 0.0
  %3570 = vmatprep.subr.mxu0 0.0
  %3571 = vmatpush1.msra.mxu0 0.0
  %3572 = vmatprep.subr.mxu0 0.0
  %3573 = vmatpush1.msra.mxu0 0.0
  %3574 = vmatprep.subr.mxu0 0.0
  %3575 = vmatpush1.msra.mxu0 0.0
  %3576 = vmatprep.subr.mxu0 0.0
  %3577 = vmatpush1.msra.mxu0 0.0
  %3578 = vmatprep.subr.mxu0 0.0
  %3579 = vmatpush1.msra.mxu0 0.0
  %3580 = vmatprep.subr.mxu0 0.0
  %3581 = vmatpush1.msra.mxu0 0.0
  %3582 = vmatprep.subr.mxu0 0.0
  %3583 = vmatpush1.msra.mxu0 0.0
  %3584 = vmatprep.subr.mxu0 0.0
  %3585 = vmatpush1.msra.mxu0 0.0
  %3586 = vmatprep.subr.mxu0 0.0
  %3587 = vmatpush1.msra.mxu0 0.0
  %3588 = vmatprep.subr.mxu0 0.0
  %3589 = vmatpush1.msra.mxu0 0.0
  %3590 = vmatprep.subr.mxu0 0.0
  %3591 = vmatpush1.msra.mxu0 0.0
  %3592 = vmatprep.mubr.f32.mxu0 0.0
  %3593 = vmatmul.mubr.f32.gmra.mrb[0].mxu0 %v3526
  %v3594 = vpop.f32.mrb[0].mxu0
  %v3595 = vadd.f32 0.0, %v3594
  %v3596 = vpop.f32.mrb[0].mxu0
  %v3597 = vadd.f32 0.0, %v3596
  %3598 = vdwg.mxu0
  %v3599 = vadd.f32 %v3524, %v3595
  %v3600 = vadd.f32 %v3525, %v3597
  %v3601 = vtanh.pop %v3599
  %v3602 = vtanh.pop %v3600
  %v3603 = vmul.f32 %v3601, 0.5
  %v3604 = vmul.f32 %v3602, 0.5
  %v3605 = vadd.f32 %v3603, 0.5
  %v3606 = vadd.f32 %v3604, 0.5
  %v3607 = vmul.f32 %v3605, %v3509
  %3609 = vrot.lane.b32.xlu0 %v3602, 64
  %v3610 = vpop.permute.xlu0 %3609
  %v3612 = vmul.f32 %v3605, %v3610
  %3614 = vrot.lane.b32.xlu0 %v3612, 64
  %v3615 = vpop.permute.xlu0 %3614
  %v3617 = vadd.f32 %v3607, %v3615
  %v3618 = vtanh.pop %v3617
  %3620 = vrot.lane.b32.xlu0 %v3618, 64
  %v3621 = vpop.permute.xlu0 %3620
  %v3623 = vmul.f32 %v3606, %v3621
  %3624 = vst.msk [vmem:[#allocation2 + $0x8] sm:$0xff] %vm329, %v3623
  %3625 = vst.msk [vmem:[#allocation2 + $0x30] sm:$0xff] %vm331, %v3623
  %3627 = vrot.lane.b32.xlu0 %v3623, 64
  %v3628 = vpop.permute.xlu0 %3627
  %3630 = vst.msk [vmem:[#allocation2 + $0x30] sm:$0xff] %vm337, %v3628
  %3631 = vst.msk [vmem:[#allocation2 + $0x8] sm:$0xff] %vm339, %v3628
  %v3632 = vld [vmem:[#allocation3 + $0x20] sm:$0xff]
  %v3633 = vld [vmem:[#allocation3 + $0x28] sm:$0xff]
  %v3634 = vsel %vm229, %v3623, 0
  %3636 = vmatprep.subr.mxu0 %v3253
  %3637 = vmatpush1.msra.mxu0 %v3252
  %3638 = vmatprep.subr.mxu0 %v3255
  %3639 = vmatpush1.msra.mxu0 %v3254
  %3640 = vmatprep.subr.mxu0 %v3257
  %3641 = vmatpush1.msra.mxu0 %v3256
  %3642 = vmatprep.subr.mxu0 %v3259
  %3643 = vmatpush1.msra.mxu0 %v3258
  %3644 = vmatprep.subr.mxu0 %v3261
  %3645 = vmatpush1.msra.mxu0 %v3260
  %3646 = vmatprep.subr.mxu0 %v3263
  %3647 = vmatpush1.msra.mxu0 %v3262
  %3648 = vmatprep.subr.mxu0 %v3265
  %3649 = vmatpush1.msra.mxu0 %v3264
  %3650 = vmatprep.subr.mxu0 %v3267
  %3651 = vmatpush1.msra.mxu0 %v3266
  %3652 = vmatprep.subr.mxu0 0.0
  %3653 = vmatpush1.msra.mxu0 0.0
  %3654 = vmatprep.subr.mxu0 0.0
  %3655 = vmatpush1.msra.mxu0 0.0
  %3656 = vmatprep.subr.mxu0 0.0
  %3657 = vmatpush1.msra.mxu0 0.0
  %3658 = vmatprep.subr.mxu0 0.0
  %3659 = vmatpush1.msra.mxu0 0.0
  %3660 = vmatprep.subr.mxu0 0.0
  %3661 = vmatpush1.msra.mxu0 0.0
  %3662 = vmatprep.subr.mxu0 0.0
  %3663 = vmatpush1.msra.mxu0 0.0
  %3664 = vmatprep.subr.mxu0 0.0
  %3665 = vmatpush1.msra.mxu0 0.0
  %3666 = vmatprep.subr.mxu0 0.0
  %3667 = vmatpush1.msra.mxu0 0.0
  %3668 = vmatprep.subr.mxu0 0.0
  %3669 = vmatpush1.msra.mxu0 0.0
  %3670 = vmatprep.subr.mxu0 0.0
  %3671 = vmatpush1.msra.mxu0 0.0
  %3672 = vmatprep.subr.mxu0 0.0
  %3673 = vmatpush1.msra.mxu0 0.0
  %3674 = vmatprep.subr.mxu0 0.0
  %3675 = vmatpush1.msra.mxu0 0.0
  %3676 = vmatprep.subr.mxu0 0.0
  %3677 = vmatpush1.msra.mxu0 0.0
  %3678 = vmatprep.subr.mxu0 0.0
  %3679 = vmatpush1.msra.mxu0 0.0
  %3680 = vmatprep.subr.mxu0 0.0
  %3681 = vmatpush1.msra.mxu0 0.0
  %3682 = vmatprep.subr.mxu0 0.0
  %3683 = vmatpush1.msra.mxu0 0.0
  %3684 = vmatprep.subr.mxu0 0.0
  %3685 = vmatpush1.msra.mxu0 0.0
  %3686 = vmatprep.subr.mxu0 0.0
  %3687 = vmatpush1.msra.mxu0 0.0
  %3688 = vmatprep.subr.mxu0 0.0
  %3689 = vmatpush1.msra.mxu0 0.0
  %3690 = vmatprep.subr.mxu0 0.0
  %3691 = vmatpush1.msra.mxu0 0.0
  %3692 = vmatprep.subr.mxu0 0.0
  %3693 = vmatpush1.msra.mxu0 0.0
  %3694 = vmatprep.subr.mxu0 0.0
  %3695 = vmatpush1.msra.mxu0 0.0
  %3696 = vmatprep.subr.mxu0 0.0
  %3697 = vmatpush1.msra.mxu0 0.0
  %3698 = vmatprep.subr.mxu0 0.0
  %3699 = vmatpush1.msra.mxu0 0.0
  %3700 = vmatprep.mubr.f32.mxu0 0.0
  %3701 = vmatmul.mubr.f32.gmra.mrb[0].mxu0 %v3634
  %v3702 = vpop.f32.mrb[0].mxu0
  %v3703 = vadd.f32 0.0, %v3702
  %v3704 = vpop.f32.mrb[0].mxu0
  %v3705 = vadd.f32 0.0, %v3704
  %3706 = vdwg.mxu0
  %v3707 = vadd.f32 %v3632, %v3703
  %v3708 = vadd.f32 %v3633, %v3705
  %v3709 = vtanh.pop %v3707
  %v3710 = vtanh.pop %v3708
  %v3711 = vmul.f32 %v3709, 0.5
  %v3712 = vmul.f32 %v3710, 0.5
  %v3713 = vadd.f32 %v3711, 0.5
  %v3714 = vadd.f32 %v3712, 0.5
  %v3715 = vmul.f32 %v3713, %v3617
  %3717 = vrot.lane.b32.xlu0 %v3710, 64
  %v3718 = vpop.permute.xlu0 %3717
  %v3720 = vmul.f32 %v3713, %v3718
  %3722 = vrot.lane.b32.xlu0 %v3720, 64
  %v3723 = vpop.permute.xlu0 %3722
  %v3725 = vadd.f32 %v3715, %v3723
  %v3726 = vtanh.pop %v3725
  %3728 = vrot.lane.b32.xlu0 %v3726, 64
  %v3729 = vpop.permute.xlu0 %3728
  %v3731 = vmul.f32 %v3714, %v3729
  %3732 = vst.msk [vmem:[#allocation2 + $0x10] sm:$0xff] %vm329, %v3731
  %3733 = vst.msk [vmem:[#allocation2 + $0x28] sm:$0xff] %vm331, %v3731
  %3735 = vrot.lane.b32.xlu0 %v3731, 64
  %v3736 = vpop.permute.xlu0 %3735
  %3738 = vst.msk [vmem:[#allocation2 + $0x28] sm:$0xff] %vm337, %v3736
  %3739 = vst.msk [vmem:[#allocation2 + $0x10] sm:$0xff] %vm339, %v3736
  %v3740 = vld [vmem:[#allocation3 + $0x30] sm:$0xff]
  %v3741 = vld [vmem:[#allocation3 + $0x38] sm:$0xff]
  %v3742 = vsel %vm229, %v3731, 0
  %3744 = vmatprep.subr.mxu0 %v3253
  %3745 = vmatpush1.msra.mxu0 %v3252
  %3746 = vmatprep.subr.mxu0 %v3255
  %3747 = vmatpush1.msra.mxu0 %v3254
  %3748 = vmatprep.subr.mxu0 %v3257
  %3749 = vmatpush1.msra.mxu0 %v3256
  %3750 = vmatprep.subr.mxu0 %v3259
  %3751 = vmatpush1.msra.mxu0 %v3258
  %3752 = vmatprep.subr.mxu0 %v3261
  %3753 = vmatpush1.msra.mxu0 %v3260
  %3754 = vmatprep.subr.mxu0 %v3263
  %3755 = vmatpush1.msra.mxu0 %v3262
  %3756 = vmatprep.subr.mxu0 %v3265
  %3757 = vmatpush1.msra.mxu0 %v3264
  %3758 = vmatprep.subr.mxu0 %v3267
  %3759 = vmatpush1.msra.mxu0 %v3266
  %3760 = vmatprep.subr.mxu0 0.0
  %3761 = vmatpush1.msra.mxu0 0.0
  %3762 = vmatprep.subr.mxu0 0.0
  %3763 = vmatpush1.msra.mxu0 0.0
  %3764 = vmatprep.subr.mxu0 0.0
  %3765 = vmatpush1.msra.mxu0 0.0
  %3766 = vmatprep.subr.mxu0 0.0
  %3767 = vmatpush1.msra.mxu0 0.0
  %3768 = vmatprep.subr.mxu0 0.0
  %3769 = vmatpush1.msra.mxu0 0.0
  %3770 = vmatprep.subr.mxu0 0.0
  %3771 = vmatpush1.msra.mxu0 0.0
  %3772 = vmatprep.subr.mxu0 0.0
  %3773 = vmatpush1.msra.mxu0 0.0
  %3774 = vmatprep.subr.mxu0 0.0
  %3775 = vmatpush1.msra.mxu0 0.0
  %3776 = vmatprep.subr.mxu0 0.0
  %3777 = vmatpush1.msra.mxu0 0.0
  %3778 = vmatprep.subr.mxu0 0.0
  %3779 = vmatpush1.msra.mxu0 0.0
  %3780 = vmatprep.subr.mxu0 0.0
  %3781 = vmatpush1.msra.mxu0 0.0
  %3782 = vmatprep.subr.mxu0 0.0
  %3783 = vmatpush1.msra.mxu0 0.0
  %3784 = vmatprep.subr.mxu0 0.0
  %3785 = vmatpush1.msra.mxu0 0.0
  %3786 = vmatprep.subr.mxu0 0.0
  %3787 = vmatpush1.msra.mxu0 0.0
  %3788 = vmatprep.subr.mxu0 0.0
  %3789 = vmatpush1.msra.mxu0 0.0
  %3790 = vmatprep.subr.mxu0 0.0
  %3791 = vmatpush1.msra.mxu0 0.0
  %3792 = vmatprep.subr.mxu0 0.0
  %3793 = vmatpush1.msra.mxu0 0.0
  %3794 = vmatprep.subr.mxu0 0.0
  %3795 = vmatpush1.msra.mxu0 0.0
  %3796 = vmatprep.subr.mxu0 0.0
  %3797 = vmatpush1.msra.mxu0 0.0
  %3798 = vmatprep.subr.mxu0 0.0
  %3799 = vmatpush1.msra.mxu0 0.0
  %3800 = vmatprep.subr.mxu0 0.0
  %3801 = vmatpush1.msra.mxu0 0.0
  %3802 = vmatprep.subr.mxu0 0.0
  %3803 = vmatpush1.msra.mxu0 0.0
  %3804 = vmatprep.subr.mxu0 0.0
  %3805 = vmatpush1.msra.mxu0 0.0
  %3806 = vmatprep.subr.mxu0 0.0
  %3807 = vmatpush1.msra.mxu0 0.0
  %3808 = vmatprep.mubr.f32.mxu0 0.0
  %3809 = vmatmul.mubr.f32.gmra.mrb[0].mxu0 %v3742
  %v3810 = vpop.f32.mrb[0].mxu0
  %v3811 = vadd.f32 0.0, %v3810
  %v3812 = vpop.f32.mrb[0].mxu0
  %v3813 = vadd.f32 0.0, %v3812
  %3814 = vdwg.mxu0
  %v3815 = vadd.f32 %v3740, %v3811
  %v3816 = vadd.f32 %v3741, %v3813
  %v3817 = vtanh.pop %v3815
  %v3818 = vtanh.pop %v3816
  %v3819 = vmul.f32 %v3817, 0.5
  %v3820 = vmul.f32 %v3818, 0.5
  %v3821 = vadd.f32 %v3819, 0.5
  %v3822 = vadd.f32 %v3820, 0.5
  %v3823 = vmul.f32 %v3821, %v3725
  %3825 = vrot.lane.b32.xlu0 %v3818, 64
  %v3826 = vpop.permute.xlu0 %3825
  %v3828 = vmul.f32 %v3821, %v3826
  %3830 = vrot.lane.b32.xlu0 %v3828, 64
  %v3831 = vpop.permute.xlu0 %3830
  %v3833 = vadd.f32 %v3823, %v3831
  %v3834 = vtanh.pop %v3833
  %3836 = vrot.lane.b32.xlu0 %v3834, 64
  %v3837 = vpop.permute.xlu0 %3836
  %v3839 = vmul.f32 %v3822, %v3837
  %3840 = vst.msk [vmem:[#allocation2 + $0x18] sm:$0xff] %vm329, %v3839
  %3841 = vst.msk [vmem:[#allocation2 + $0x20] sm:$0xff] %vm331, %v3839
  %3843 = vrot.lane.b32.xlu0 %v3839, 64
  %v3844 = vpop.permute.xlu0 %3843
  %3846 = vst.msk [vmem:[#allocation2 + $0x20] sm:$0xff] %vm337, %v3844
  %3847 = vst.msk [vmem:[#allocation2 + $0x18] sm:$0xff] %vm339, %v3844
  %v3848 = vld [vmem:[#allocation3 + $0x40] sm:$0xff]
  %v3849 = vld [vmem:[#allocation3 + $0x48] sm:$0xff]
  %v3850 = vsel %vm229, %v3839, 0
  %3852 = vmatprep.subr.mxu0 %v3253
  %3853 = vmatpush1.msra.mxu0 %v3252
  %3854 = vmatprep.subr.mxu0 %v3255
  %3855 = vmatpush1.msra.mxu0 %v3254
  %3856 = vmatprep.subr.mxu0 %v3257
  %3857 = vmatpush1.msra.mxu0 %v3256
  %3858 = vmatprep.subr.mxu0 %v3259
  %3859 = vmatpush1.msra.mxu0 %v3258
  %3860 = vmatprep.subr.mxu0 %v3261
  %3861 = vmatpush1.msra.mxu0 %v3260
  %3862 = vmatprep.subr.mxu0 %v3263
  %3863 = vmatpush1.msra.mxu0 %v3262
  %3864 = vmatprep.subr.mxu0 %v3265
  %3865 = vmatpush1.msra.mxu0 %v3264
  %3866 = vmatprep.subr.mxu0 %v3267
  %3867 = vmatpush1.msra.mxu0 %v3266
  %3868 = vmatprep.subr.mxu0 0.0
  %3869 = vmatpush1.msra.mxu0 0.0
  %3870 = vmatprep.subr.mxu0 0.0
  %3871 = vmatpush1.msra.mxu0 0.0
  %3872 = vmatprep.subr.mxu0 0.0
  %3873 = vmatpush1.msra.mxu0 0.0
  %3874 = vmatprep.subr.mxu0 0.0
  %3875 = vmatpush1.msra.mxu0 0.0
  %3876 = vmatprep.subr.mxu0 0.0
  %3877 = vmatpush1.msra.mxu0 0.0
  %3878 = vmatprep.subr.mxu0 0.0
  %3879 = vmatpush1.msra.mxu0 0.0
  %3880 = vmatprep.subr.mxu0 0.0
  %3881 = vmatpush1.msra.mxu0 0.0
  %3882 = vmatprep.subr.mxu0 0.0
  %3883 = vmatpush1.msra.mxu0 0.0
  %3884 = vmatprep.subr.mxu0 0.0
  %3885 = vmatpush1.msra.mxu0 0.0
  %3886 = vmatprep.subr.mxu0 0.0
  %3887 = vmatpush1.msra.mxu0 0.0
  %3888 = vmatprep.subr.mxu0 0.0
  %3889 = vmatpush1.msra.mxu0 0.0
  %3890 = vmatprep.subr.mxu0 0.0
  %3891 = vmatpush1.msra.mxu0 0.0
  %3892 = vmatprep.subr.mxu0 0.0
  %3893 = vmatpush1.msra.mxu0 0.0
  %3894 = vmatprep.subr.mxu0 0.0
  %3895 = vmatpush1.msra.mxu0 0.0
  %3896 = vmatprep.subr.mxu0 0.0
  %3897 = vmatpush1.msra.mxu0 0.0
  %3898 = vmatprep.subr.mxu0 0.0
  %3899 = vmatpush1.msra.mxu0 0.0
  %3900 = vmatprep.subr.mxu0 0.0
  %3901 = vmatpush1.msra.mxu0 0.0
  %3902 = vmatprep.subr.mxu0 0.0
  %3903 = vmatpush1.msra.mxu0 0.0
  %3904 = vmatprep.subr.mxu0 0.0
  %3905 = vmatpush1.msra.mxu0 0.0
  %3906 = vmatprep.subr.mxu0 0.0
  %3907 = vmatpush1.msra.mxu0 0.0
  %3908 = vmatprep.subr.mxu0 0.0
  %3909 = vmatpush1.msra.mxu0 0.0
  %3910 = vmatprep.subr.mxu0 0.0
  %3911 = vmatpush1.msra.mxu0 0.0
  %3912 = vmatprep.subr.mxu0 0.0
  %3913 = vmatpush1.msra.mxu0 0.0
  %3914 = vmatprep.subr.mxu0 0.0
  %3915 = vmatpush1.msra.mxu0 0.0
  %3916 = vmatprep.mubr.f32.mxu0 0.0
  %3917 = vmatmul.mubr.f32.gmra.mrb[0].mxu0 %v3850
  %v3918 = vpop.f32.mrb[0].mxu0
  %v3919 = vadd.f32 0.0, %v3918
  %v3920 = vpop.f32.mrb[0].mxu0
  %v3921 = vadd.f32 0.0, %v3920
  %3922 = vdwg.mxu0
  %v3923 = vadd.f32 %v3848, %v3919
  %v3924 = vadd.f32 %v3849, %v3921
  %v3925 = vtanh.pop %v3923
  %v3926 = vtanh.pop %v3924
  %v3927 = vmul.f32 %v3925, 0.5
  %v3928 = vmul.f32 %v3926, 0.5
  %v3929 = vadd.f32 %v3927, 0.5
  %v3930 = vadd.f32 %v3928, 0.5
  %v3931 = vmul.f32 %v3929, %v3833
  %3933 = vrot.lane.b32.xlu0 %v3926, 64
  %v3934 = vpop.permute.xlu0 %3933
  %v3936 = vmul.f32 %v3929, %v3934
  %3938 = vrot.lane.b32.xlu0 %v3936, 64
  %v3939 = vpop.permute.xlu0 %3938
  %v3941 = vadd.f32 %v3931, %v3939
  %v3942 = vtanh.pop %v3941
  %3944 = vrot.lane.b32.xlu0 %v3942, 64
  %v3945 = vpop.permute.xlu0 %3944
  %v3947 = vmul.f32 %v3930, %v3945
  %3948 = vst.msk [vmem:[#allocation2 + $0x20] sm:$0xff] %vm329, %v3947
  %3949 = vst.msk [vmem:[#allocation2 + $0x18] sm:$0xff] %vm331, %v3947
  %3951 = vrot.lane.b32.xlu0 %v3947, 64
  %v3952 = vpop.permute.xlu0 %3951
  %3954 = vst.msk [vmem:[#allocation2 + $0x18] sm:$0xff] %vm337, %v3952
  %3955 = vst.msk [vmem:[#allocation2 + $0x20] sm:$0xff] %vm339, %v3952
  %v3956 = vld [vmem:[#allocation3 + $0x50] sm:$0xff]
  %v3957 = vld [vmem:[#allocation3 + $0x58] sm:$0xff]
  %v3958 = vsel %vm229, %v3947, 0
  %3960 = vmatprep.subr.mxu0 %v3253
  %3961 = vmatpush1.msra.mxu0 %v3252
  %3962 = vmatprep.subr.mxu0 %v3255
  %3963 = vmatpush1.msra.mxu0 %v3254
  %3964 = vmatprep.subr.mxu0 %v3257
  %3965 = vmatpush1.msra.mxu0 %v3256
  %3966 = vmatprep.subr.mxu0 %v3259
  %3967 = vmatpush1.msra.mxu0 %v3258
  %3968 = vmatprep.subr.mxu0 %v3261
  %3969 = vmatpush1.msra.mxu0 %v3260
  %3970 = vmatprep.subr.mxu0 %v3263
  %3971 = vmatpush1.msra.mxu0 %v3262
  %3972 = vmatprep.subr.mxu0 %v3265
  %3973 = vmatpush1.msra.mxu0 %v3264
  %3974 = vmatprep.subr.mxu0 %v3267
  %3975 = vmatpush1.msra.mxu0 %v3266
  %3976 = vmatprep.subr.mxu0 0.0
  %3977 = vmatpush1.msra.mxu0 0.0
  %3978 = vmatprep.subr.mxu0 0.0
  %3979 = vmatpush1.msra.mxu0 0.0
  %3980 = vmatprep.subr.mxu0 0.0
  %3981 = vmatpush1.msra.mxu0 0.0
  %3982 = vmatprep.subr.mxu0 0.0
  %3983 = vmatpush1.msra.mxu0 0.0
  %3984 = vmatprep.subr.mxu0 0.0
  %3985 = vmatpush1.msra.mxu0 0.0
  %3986 = vmatprep.subr.mxu0 0.0
  %3987 = vmatpush1.msra.mxu0 0.0
  %3988 = vmatprep.subr.mxu0 0.0
  %3989 = vmatpush1.msra.mxu0 0.0
  %3990 = vmatprep.subr.mxu0 0.0
  %3991 = vmatpush1.msra.mxu0 0.0
  %3992 = vmatprep.subr.mxu0 0.0
  %3993 = vmatpush1.msra.mxu0 0.0
  %3994 = vmatprep.subr.mxu0 0.0
  %3995 = vmatpush1.msra.mxu0 0.0
  %3996 = vmatprep.subr.mxu0 0.0
  %3997 = vmatpush1.msra.mxu0 0.0
  %3998 = vmatprep.subr.mxu0 0.0
  %3999 = vmatpush1.msra.mxu0 0.0
  %4000 = vmatprep.subr.mxu0 0.0
  %4001 = vmatpush1.msra.mxu0 0.0
  %4002 = vmatprep.subr.mxu0 0.0
  %4003 = vmatpush1.msra.mxu0 0.0
  %4004 = vmatprep.subr.mxu0 0.0
  %4005 = vmatpush1.msra.mxu0 0.0
  %4006 = vmatprep.subr.mxu0 0.0
  %4007 = vmatpush1.msra.mxu0 0.0
  %4008 = vmatprep.subr.mxu0 0.0
  %4009 = vmatpush1.msra.mxu0 0.0
  %4010 = vmatprep.subr.mxu0 0.0
  %4011 = vmatpush1.msra.mxu0 0.0
  %4012 = vmatprep.subr.mxu0 0.0
  %4013 = vmatpush1.msra.mxu0 0.0
  %4014 = vmatprep.subr.mxu0 0.0
  %4015 = vmatpush1.msra.mxu0 0.0
  %4016 = vmatprep.subr.mxu0 0.0
  %4017 = vmatpush1.msra.mxu0 0.0
  %4018 = vmatprep.subr.mxu0 0.0
  %4019 = vmatpush1.msra.mxu0 0.0
  %4020 = vmatprep.subr.mxu0 0.0
  %4021 = vmatpush1.msra.mxu0 0.0
  %4022 = vmatprep.subr.mxu0 0.0
  %4023 = vmatpush1.msra.mxu0 0.0
  %4024 = vmatprep.mubr.f32.mxu0 0.0
  %4025 = vmatmul.mubr.f32.gmra.mrb[0].mxu0 %v3958
  %v4026 = vpop.f32.mrb[0].mxu0
  %v4027 = vadd.f32 0.0, %v4026
  %v4028 = vpop.f32.mrb[0].mxu0
  %v4029 = vadd.f32 0.0, %v4028
  %4030 = vdwg.mxu0
  %v4031 = vadd.f32 %v3956, %v4027
  %v4032 = vadd.f32 %v3957, %v4029
  %v4033 = vtanh.pop %v4031
  %v4034 = vtanh.pop %v4032
  %v4035 = vmul.f32 %v4033, 0.5
  %v4036 = vmul.f32 %v4034, 0.5
  %v4037 = vadd.f32 %v4035, 0.5
  %v4038 = vadd.f32 %v4036, 0.5
  %v4039 = vmul.f32 %v4037, %v3941
  %4041 = vrot.lane.b32.xlu0 %v4034, 64
  %v4042 = vpop.permute.xlu0 %4041
  %v4044 = vmul.f32 %v4037, %v4042
  %4046 = vrot.lane.b32.xlu0 %v4044, 64
  %v4047 = vpop.permute.xlu0 %4046
  %v4049 = vadd.f32 %v4039, %v4047
  %v4050 = vtanh.pop %v4049
  %4052 = vrot.lane.b32.xlu0 %v4050, 64
  %v4053 = vpop.permute.xlu0 %4052
  %v4055 = vmul.f32 %v4038, %v4053
  %4056 = vst.msk [vmem:[#allocation2 + $0x28] sm:$0xff] %vm329, %v4055
  %4057 = vst.msk [vmem:[#allocation2 + $0x10] sm:$0xff] %vm331, %v4055
  %4059 = vrot.lane.b32.xlu0 %v4055, 64
  %v4060 = vpop.permute.xlu0 %4059
  %4062 = vst.msk [vmem:[#allocation2 + $0x10] sm:$0xff] %vm337, %v4060
  %4063 = vst.msk [vmem:[#allocation2 + $0x28] sm:$0xff] %vm339, %v4060
  %v4064 = vld [vmem:[#allocation3 + $0x60] sm:$0xff]
  %v4065 = vld [vmem:[#allocation3 + $0x68] sm:$0xff]
  %v4066 = vsel %vm229, %v4055, 0
  %4068 = vmatprep.subr.mxu0 %v3253
  %4069 = vmatpush1.msra.mxu0 %v3252
  %4070 = vmatprep.subr.mxu0 %v3255
  %4071 = vmatpush1.msra.mxu0 %v3254
  %4072 = vmatprep.subr.mxu0 %v3257
  %4073 = vmatpush1.msra.mxu0 %v3256
  %4074 = vmatprep.subr.mxu0 %v3259
  %4075 = vmatpush1.msra.mxu0 %v3258
  %4076 = vmatprep.subr.mxu0 %v3261
  %4077 = vmatpush1.msra.mxu0 %v3260
  %4078 = vmatprep.subr.mxu0 %v3263
  %4079 = vmatpush1.msra.mxu0 %v3262
  %4080 = vmatprep.subr.mxu0 %v3265
  %4081 = vmatpush1.msra.mxu0 %v3264
  %4082 = vmatprep.subr.mxu0 %v3267
  %4083 = vmatpush1.msra.mxu0 %v3266
  %4084 = vmatprep.subr.mxu0 0.0
  %4085 = vmatpush1.msra.mxu0 0.0
  %4086 = vmatprep.subr.mxu0 0.0
  %4087 = vmatpush1.msra.mxu0 0.0
  %4088 = vmatprep.subr.mxu0 0.0
  %4089 = vmatpush1.msra.mxu0 0.0
  %4090 = vmatprep.subr.mxu0 0.0
  %4091 = vmatpush1.msra.mxu0 0.0
  %4092 = vmatprep.subr.mxu0 0.0
  %4093 = vmatpush1.msra.mxu0 0.0
  %4094 = vmatprep.subr.mxu0 0.0
  %4095 = vmatpush1.msra.mxu0 0.0
  %4096 = vmatprep.subr.mxu0 0.0
  %4097 = vmatpush1.msra.mxu0 0.0
  %4098 = vmatprep.subr.mxu0 0.0
  %4099 = vmatpush1.msra.mxu0 0.0
  %4100 = vmatprep.subr.mxu0 0.0
  %4101 = vmatpush1.msra.mxu0 0.0
  %4102 = vmatprep.subr.mxu0 0.0
  %4103 = vmatpush1.msra.mxu0 0.0
  %4104 = vmatprep.subr.mxu0 0.0
  %4105 = vmatpush1.msra.mxu0 0.0
  %4106 = vmatprep.subr.mxu0 0.0
  %4107 = vmatpush1.msra.mxu0 0.0
  %4108 = vmatprep.subr.mxu0 0.0
  %4109 = vmatpush1.msra.mxu0 0.0
  %4110 = vmatprep.subr.mxu0 0.0
  %4111 = vmatpush1.msra.mxu0 0.0
  %4112 = vmatprep.subr.mxu0 0.0
  %4113 = vmatpush1.msra.mxu0 0.0
  %4114 = vmatprep.subr.mxu0 0.0
  %4115 = vmatpush1.msra.mxu0 0.0
  %4116 = vmatprep.subr.mxu0 0.0
  %4117 = vmatpush1.msra.mxu0 0.0
  %4118 = vmatprep.subr.mxu0 0.0
  %4119 = vmatpush1.msra.mxu0 0.0
  %4120 = vmatprep.subr.mxu0 0.0
  %4121 = vmatpush1.msra.mxu0 0.0
  %4122 = vmatprep.subr.mxu0 0.0
  %4123 = vmatpush1.msra.mxu0 0.0
  %4124 = vmatprep.subr.mxu0 0.0
  %4125 = vmatpush1.msra.mxu0 0.0
  %4126 = vmatprep.subr.mxu0 0.0
  %4127 = vmatpush1.msra.mxu0 0.0
  %4128 = vmatprep.subr.mxu0 0.0
  %4129 = vmatpush1.msra.mxu0 0.0
  %4130 = vmatprep.subr.mxu0 0.0
  %4131 = vmatpush1.msra.mxu0 0.0
  %4132 = vmatprep.mubr.f32.mxu0 0.0
  %4133 = vmatmul.mubr.f32.gmra.mrb[0].mxu0 %v4066
  %v4134 = vpop.f32.mrb[0].mxu0
  %v4135 = vadd.f32 0.0, %v4134
  %v4136 = vpop.f32.mrb[0].mxu0
  %v4137 = vadd.f32 0.0, %v4136
  %4138 = vdwg.mxu0
  %v4139 = vadd.f32 %v4064, %v4135
  %v4140 = vadd.f32 %v4065, %v4137
  %v4141 = vtanh.pop %v4139
  %v4142 = vtanh.pop %v4140
  %v4143 = vmul.f32 %v4141, 0.5
  %v4144 = vmul.f32 %v4142, 0.5
  %v4145 = vadd.f32 %v4143, 0.5
  %v4146 = vadd.f32 %v4144, 0.5
  %v4147 = vmul.f32 %v4145, %v4049
  %4149 = vrot.lane.b32.xlu0 %v4142, 64
  %v4150 = vpop.permute.xlu0 %4149
  %v4152 = vmul.f32 %v4145, %v4150
  %4154 = vrot.lane.b32.xlu0 %v4152, 64
  %v4155 = vpop.permute.xlu0 %4154
  %v4157 = vadd.f32 %v4147, %v4155
  %v4158 = vtanh.pop %v4157
  %4160 = vrot.lane.b32.xlu0 %v4158, 64
  %v4161 = vpop.permute.xlu0 %4160
  %v4163 = vmul.f32 %v4146, %v4161
  %4164 = vst.msk [vmem:[#allocation2 + $0x30] sm:$0xff] %vm329, %v4163
  %4165 = vst.msk [vmem:[#allocation2 + $0x8] sm:$0xff] %vm331, %v4163
  %4167 = vrot.lane.b32.xlu0 %v4163, 64
  %v4168 = vpop.permute.xlu0 %4167
  %4170 = vst.msk [vmem:[#allocation2 + $0x8] sm:$0xff] %vm337, %v4168
  %4171 = vst.msk [vmem:[#allocation2 + $0x30] sm:$0xff] %vm339, %v4168
  %v4172 = vld [vmem:[#allocation3 + $0x70] sm:$0xff]
  %v4173 = vld [vmem:[#allocation3 + $0x78] sm:$0xff]
  %v4174 = vsel %vm229, %v4163, 0
  %4176 = vmatprep.subr.mxu0 %v3253
  %4177 = vmatpush1.msra.mxu0 %v3252
  %4178 = vmatprep.subr.mxu0 %v3255
  %4179 = vmatpush1.msra.mxu0 %v3254
  %4180 = vmatprep.subr.mxu0 %v3257
  %4181 = vmatpush1.msra.mxu0 %v3256
  %4182 = vmatprep.subr.mxu0 %v3259
  %4183 = vmatpush1.msra.mxu0 %v3258
  %4184 = vmatprep.subr.mxu0 %v3261
  %4185 = vmatpush1.msra.mxu0 %v3260
  %4186 = vmatprep.subr.mxu0 %v3263
  %4187 = vmatpush1.msra.mxu0 %v3262
  %4188 = vmatprep.subr.mxu0 %v3265
  %4189 = vmatpush1.msra.mxu0 %v3264
  %4190 = vmatprep.subr.mxu0 %v3267
  %4191 = vmatpush1.msra.mxu0 %v3266
  %4192 = vmatprep.subr.mxu0 0.0
  %4193 = vmatpush1.msra.mxu0 0.0
  %4194 = vmatprep.subr.mxu0 0.0
  %4195 = vmatpush1.msra.mxu0 0.0
  %4196 = vmatprep.subr.mxu0 0.0
  %4197 = vmatpush1.msra.mxu0 0.0
  %4198 = vmatprep.subr.mxu0 0.0
  %4199 = vmatpush1.msra.mxu0 0.0
  %4200 = vmatprep.subr.mxu0 0.0
  %4201 = vmatpush1.msra.mxu0 0.0
  %4202 = vmatprep.subr.mxu0 0.0
  %4203 = vmatpush1.msra.mxu0 0.0
  %4204 = vmatprep.subr.mxu0 0.0
  %4205 = vmatpush1.msra.mxu0 0.0
  %4206 = vmatprep.subr.mxu0 0.0
  %4207 = vmatpush1.msra.mxu0 0.0
  %4208 = vmatprep.subr.mxu0 0.0
  %4209 = vmatpush1.msra.mxu0 0.0
  %4210 = vmatprep.subr.mxu0 0.0
  %4211 = vmatpush1.msra.mxu0 0.0
  %4212 = vmatprep.subr.mxu0 0.0
  %4213 = vmatpush1.msra.mxu0 0.0
  %4214 = vmatprep.subr.mxu0 0.0
  %4215 = vmatpush1.msra.mxu0 0.0
  %4216 = vmatprep.subr.mxu0 0.0
  %4217 = vmatpush1.msra.mxu0 0.0
  %4218 = vmatprep.subr.mxu0 0.0
  %4219 = vmatpush1.msra.mxu0 0.0
  %4220 = vmatprep.subr.mxu0 0.0
  %4221 = vmatpush1.msra.mxu0 0.0
  %4222 = vmatprep.subr.mxu0 0.0
  %4223 = vmatpush1.msra.mxu0 0.0
  %4224 = vmatprep.subr.mxu0 0.0
  %4225 = vmatpush1.msra.mxu0 0.0
  %4226 = vmatprep.subr.mxu0 0.0
  %4227 = vmatpush1.msra.mxu0 0.0
  %4228 = vmatprep.subr.mxu0 0.0
  %4229 = vmatpush1.msra.mxu0 0.0
  %4230 = vmatprep.subr.mxu0 0.0
  %4231 = vmatpush1.msra.mxu0 0.0
  %4232 = vmatprep.subr.mxu0 0.0
  %4233 = vmatpush1.msra.mxu0 0.0
  %4234 = vmatprep.subr.mxu0 0.0
  %4235 = vmatpush1.msra.mxu0 0.0
  %4236 = vmatprep.subr.mxu0 0.0
  %4237 = vmatpush1.msra.mxu0 0.0
  %4238 = vmatprep.subr.mxu0 0.0
  %4239 = vmatpush1.msra.mxu0 0.0
  %4240 = vmatprep.mubr.f32.mxu0 0.0
  %4241 = vmatmul.mubr.f32.gmra.mrb[0].mxu0 %v4174
  %v4242 = vpop.f32.mrb[0].mxu0
  %v4243 = vadd.f32 0.0, %v4242
  %v4244 = vpop.f32.mrb[0].mxu0
  %v4245 = vadd.f32 0.0, %v4244
  %4246 = vdwg.mxu0
  %v4247 = vadd.f32 %v4172, %v4243
  %v4248 = vadd.f32 %v4173, %v4245
  %v4249 = vtanh.pop %v4247
  %v4250 = vtanh.pop %v4248
  %v4251 = vmul.f32 %v4249, 0.5
  %v4252 = vmul.f32 %v4250, 0.5
  %v4253 = vadd.f32 %v4251, 0.5
  %v4254 = vadd.f32 %v4252, 0.5
  %v4255 = vmul.f32 %v4253, %v4157
  %4257 = vrot.lane.b32.xlu0 %v4250, 64
  %v4258 = vpop.permute.xlu0 %4257
  %v4260 = vmul.f32 %v4253, %v4258
  %4262 = vrot.lane.b32.xlu0 %v4260, 64
  %v4263 = vpop.permute.xlu0 %4262
  %v4265 = vadd.f32 %v4255, %v4263
  %v4266 = vtanh.pop %v4265
  %4268 = vrot.lane.b32.xlu0 %v4266, 64
  %v4269 = vpop.permute.xlu0 %4268
  %v4271 = vmul.f32 %v4254, %v4269
  %4272 = vst.msk [vmem:[#allocation2 + $0x38] sm:$0xff] %vm329, %v4271
  %4273 = vst.msk [vmem:[#allocation2] sm:$0xff] %vm331, %v4271
  %4275 = vrot.lane.b32.xlu0 %v4271, 64
  %v4276 = vpop.permute.xlu0 %4275
  %4278 = vst.msk [vmem:[#allocation2] sm:$0xff] %vm337, %v4276
  %4279 = vst.msk [vmem:[#allocation2 + $0x38] sm:$0xff] %vm339, %v4276
  %s4280 = scalar_lea.vmem %s2, 1600
  %v4281 = vld [vmem:[%s4280] sm:$0xff]
  %v4282 = vld [vmem:[%s4280 + $0x8] sm:$0xff]
  %v4283 = vld [vmem:[%s4280 + $0x10] sm:$0xff]
  %v4284 = vld [vmem:[%s4280 + $0x18] sm:$0xff]
  %v4285 = vld [vmem:[%s4280 + $0x20] sm:$0xff]
  %v4286 = vld [vmem:[%s4280 + $0x28] sm:$0xff]
  %v4287 = vld [vmem:[%s4280 + $0x30] sm:$0xff]
  %v4288 = vld [vmem:[%s4280 + $0x38] sm:$0xff]
  %v4289 = vld [vmem:[%s4280 + $0x40] sm:$0xff]
  %v4290 = vld [vmem:[%s4280 + $0x48] sm:$0xff]
  %v4291 = vld [vmem:[%s4280 + $0x50] sm:$0xff]
  %v4292 = vld [vmem:[%s4280 + $0x58] sm:$0xff]
  %v4293 = vld [vmem:[%s4280 + $0x60] sm:$0xff]
  %v4294 = vld [vmem:[%s4280 + $0x68] sm:$0xff]
  %v4295 = vld [vmem:[%s4280 + $0x70] sm:$0xff]
  %v4296 = vld [vmem:[%s4280 + $0x78] sm:$0xff]
  %v4297 = vld [vmem:[%s4280 + $0x80] sm:$0xff]
  %v4298 = vld [vmem:[%s4280 + $0x88] sm:$0xff]
  %v4299 = vld [vmem:[%s4280 + $0x90] sm:$0xff]
  %v4300 = vld [vmem:[%s4280 + $0x98] sm:$0xff]
  %v4301 = vld [vmem:[%s4280 + $0xa0] sm:$0xff]
  %v4302 = vld [vmem:[%s4280 + $0xa8] sm:$0xff]
  %v4303 = vld [vmem:[%s4280 + $0xb0] sm:$0xff]
  %v4304 = vld [vmem:[%s4280 + $0xb8] sm:$0xff]
  %v4305 = vld [vmem:[%s4280 + $0xc0] sm:$0xff]
  %v4306 = vld [vmem:[%s4280 + $0xc8] sm:$0xff]
  %v4307 = vld [vmem:[%s4280 + $0xd0] sm:$0xff]
  %v4308 = vld [vmem:[%s4280 + $0xd8] sm:$0xff]
  %v4309 = vld [vmem:[%s4280 + $0xe0] sm:$0xff]
  %v4310 = vld [vmem:[%s4280 + $0xe8] sm:$0xff]
  %v4311 = vld [vmem:[%s4280 + $0xf0] sm:$0xff]
  %v4312 = vld [vmem:[%s4280 + $0xf8] sm:$0xff]
  %v4313 = vld [vmem:[%s4280 + $0x100] sm:$0xff]
  %v4314 = vld [vmem:[%s4280 + $0x108] sm:$0xff]
  %v4315 = vld [vmem:[%s4280 + $0x110] sm:$0xff]
  %v4316 = vld [vmem:[%s4280 + $0x118] sm:$0xff]
  %v4317 = vld [vmem:[%s4280 + $0x120] sm:$0xff]
  %v4318 = vld [vmem:[%s4280 + $0x128] sm:$0xff]
  %v4319 = vld [vmem:[%s4280 + $0x130] sm:$0xff]
  %v4320 = vld [vmem:[%s4280 + $0x138] sm:$0xff]
  %v4321 = vld [vmem:[%s4280 + $0x140] sm:$0xff]
  %v4322 = vld [vmem:[%s4280 + $0x148] sm:$0xff]
  %v4323 = vld [vmem:[%s4280 + $0x150] sm:$0xff]
  %v4324 = vld [vmem:[%s4280 + $0x158] sm:$0xff]
  %v4325 = vld [vmem:[%s4280 + $0x160] sm:$0xff]
  %v4326 = vld [vmem:[%s4280 + $0x168] sm:$0xff]
  %v4327 = vld [vmem:[%s4280 + $0x170] sm:$0xff]
  %v4328 = vld [vmem:[%s4280 + $0x178] sm:$0xff]
  %s4329 = scalar_lea.vmem %s4280, 384
  %v4330 = vld [vmem:[%s4329] ss:$8 sm:$0x3]
  %v4331 = vld [vmem:[#allocation2] sm:$0xff]
  %v4332 = vld [vmem:[#allocation2 + $0x8] sm:$0xff]
  %v4333 = vld [vmem:[#allocation2 + $0x10] sm:$0xff]
  %v4334 = vld [vmem:[#allocation2 + $0x18] sm:$0xff]
  %v4335 = vld [vmem:[#allocation2 + $0x20] sm:$0xff]
  %v4336 = vld [vmem:[#allocation2 + $0x28] sm:$0xff]
  %v4337 = vld [vmem:[#allocation2 + $0x30] sm:$0xff]
  %v4338 = vld [vmem:[#allocation2 + $0x38] sm:$0xff]
  %v4340 = vlaneseq
  %v4341 = vshrl.u32 %v4340, 7
  %v4342 = vsub.s32 0, %v4341
  %v4343 = vrot.slane %v4330, %v4342
  %v4344 = vlaneseq
  %v4345 = vshrl.u32 %v4344, 7
  %v4346 = vsub.s32 1, %v4345
  %v4347 = vrot.slane %v4330, %v4346
  %4350 = vmatprep.subr.mxu0 %v4282
  %4351 = vmatpush1.msra.mxu0 %v4281
  %4352 = vmatprep.subr.mxu0 %v4284
  %4353 = vmatpush1.msra.mxu0 %v4283
  %4354 = vmatprep.subr.mxu0 %v4286
  %4355 = vmatpush1.msra.mxu0 %v4285
  %4356 = vmatprep.subr.mxu0 %v4288
  %4357 = vmatpush1.msra.mxu0 %v4287
  %4358 = vmatprep.subr.mxu0 %v4290
  %4359 = vmatpush1.msra.mxu0 %v4289
  %4360 = vmatprep.subr.mxu0 %v4292
  %4361 = vmatpush1.msra.mxu0 %v4291
  %4362 = vmatprep.subr.mxu0 %v4294
  %4363 = vmatpush1.msra.mxu0 %v4293
  %4364 = vmatprep.subr.mxu0 %v4296
  %4365 = vmatpush1.msra.mxu0 %v4295
  %4366 = vmatprep.subr.mxu0 %v4298
  %4367 = vmatpush1.msra.mxu0 %v4297
  %4368 = vmatprep.subr.mxu0 %v4300
  %4369 = vmatpush1.msra.mxu0 %v4299
  %4370 = vmatprep.subr.mxu0 %v4302
  %4371 = vmatpush1.msra.mxu0 %v4301
  %4372 = vmatprep.subr.mxu0 %v4304
  %4373 = vmatpush1.msra.mxu0 %v4303
  %4374 = vmatprep.subr.mxu0 %v4306
  %4375 = vmatpush1.msra.mxu0 %v4305
  %4376 = vmatprep.subr.mxu0 %v4308
  %4377 = vmatpush1.msra.mxu0 %v4307
  %4378 = vmatprep.subr.mxu0 %v4310
  %4379 = vmatpush1.msra.mxu0 %v4309
  %4380 = vmatprep.subr.mxu0 %v4312
  %4381 = vmatpush1.msra.mxu0 %v4311
  %4382 = vmatprep.subr.mxu0 0.0
  %4383 = vmatpush1.msra.mxu0 0.0
  %4384 = vmatprep.subr.mxu0 0.0
  %4385 = vmatpush1.msra.mxu0 0.0
  %4386 = vmatprep.subr.mxu0 0.0
  %4387 = vmatpush1.msra.mxu0 0.0
  %4388 = vmatprep.subr.mxu0 0.0
  %4389 = vmatpush1.msra.mxu0 0.0
  %4390 = vmatprep.subr.mxu0 0.0
  %4391 = vmatpush1.msra.mxu0 0.0
  %4392 = vmatprep.subr.mxu0 0.0
  %4393 = vmatpush1.msra.mxu0 0.0
  %4394 = vmatprep.subr.mxu0 0.0
  %4395 = vmatpush1.msra.mxu0 0.0
  %4396 = vmatprep.subr.mxu0 0.0
  %4397 = vmatpush1.msra.mxu0 0.0
  %4398 = vmatprep.subr.mxu0 0.0
  %4399 = vmatpush1.msra.mxu0 0.0
  %4400 = vmatprep.subr.mxu0 0.0
  %4401 = vmatpush1.msra.mxu0 0.0
  %4402 = vmatprep.subr.mxu0 0.0
  %4403 = vmatpush1.msra.mxu0 0.0
  %4404 = vmatprep.subr.mxu0 0.0
  %4405 = vmatpush1.msra.mxu0 0.0
  %4406 = vmatprep.subr.mxu0 0.0
  %4407 = vmatpush1.msra.mxu0 0.0
  %4408 = vmatprep.subr.mxu0 0.0
  %4409 = vmatpush1.msra.mxu0 0.0
  %4410 = vmatprep.subr.mxu0 0.0
  %4411 = vmatpush1.msra.mxu0 0.0
  %4412 = vmatprep.subr.mxu0 0.0
  %4413 = vmatpush1.msra.mxu0 0.0
  %4414 = vmatprep.mubr.f32.mxu0 0.0
  %4415 = vmatmul.mubr.f32.gmra.mrb[0].mxu0 %v4331
  %v4416 = vpop.f32.mrb[0].mxu0
  %v4417 = vadd.f32 %v4343, %v4416
  %v4418 = vpop.f32.mrb[0].mxu0
  %v4419 = vadd.f32 %v4347, %v4418
  %4420 = vmatprep.mubr.f32.mxu0 0.0
  %4421 = vmatmul.mubr.f32.gmra.mrb[0].mxu0 %v4332
  %v4422 = vpop.f32.mrb[0].mxu0
  %v4423 = vadd.f32 %v4343, %v4422
  %v4424 = vpop.f32.mrb[0].mxu0
  %v4425 = vadd.f32 %v4347, %v4424
  %4426 = vmatprep.mubr.f32.mxu0 0.0
  %4427 = vmatmul.mubr.f32.gmra.mrb[0].mxu0 %v4333
  %v4428 = vpop.f32.mrb[0].mxu0
  %v4429 = vadd.f32 %v4343, %v4428
  %v4430 = vpop.f32.mrb[0].mxu0
  %v4431 = vadd.f32 %v4347, %v4430
  %4432 = vmatprep.mubr.f32.mxu0 0.0
  %4433 = vmatmul.mubr.f32.gmra.mrb[0].mxu0 %v4334
  %v4434 = vpop.f32.mrb[0].mxu0
  %v4435 = vadd.f32 %v4343, %v4434
  %v4436 = vpop.f32.mrb[0].mxu0
  %v4437 = vadd.f32 %v4347, %v4436
  %4438 = vmatprep.mubr.f32.mxu0 0.0
  %4439 = vmatmul.mubr.f32.gmra.mrb[0].mxu0 %v4335
  %v4440 = vpop.f32.mrb[0].mxu0
  %v4441 = vadd.f32 %v4343, %v4440
  %v4442 = vpop.f32.mrb[0].mxu0
  %v4443 = vadd.f32 %v4347, %v4442
  %4444 = vmatprep.mubr.f32.mxu0 0.0
  %4445 = vmatmul.mubr.f32.gmra.mrb[0].mxu0 %v4336
  %v4446 = vpop.f32.mrb[0].mxu0
  %v4447 = vadd.f32 %v4343, %v4446
  %v4448 = vpop.f32.mrb[0].mxu0
  %v4449 = vadd.f32 %v4347, %v4448
  %4450 = vmatprep.mubr.f32.mxu0 0.0
  %4451 = vmatmul.mubr.f32.gmra.mrb[0].mxu0 %v4337
  %v4452 = vpop.f32.mrb[0].mxu0
  %v4453 = vadd.f32 %v4343, %v4452
  %v4454 = vpop.f32.mrb[0].mxu0
  %v4455 = vadd.f32 %v4347, %v4454
  %4456 = vmatprep.mubr.f32.mxu0 0.0
  %4457 = vmatmul.mubr.f32.gmra.mrb[0].mxu0 %v4338
  %v4458 = vpop.f32.mrb[0].mxu0
  %v4459 = vadd.f32 %v4343, %v4458
  %v4460 = vpop.f32.mrb[0].mxu0
  %v4461 = vadd.f32 %v4347, %v4460
  %4462 = vdwg.mxu0
  %4463 = vst [vmem:[#allocation3] sm:$0xff] %v4417
  %4464 = vst [vmem:[#allocation3 + $0x8] sm:$0xff] %v4419
  %4465 = vst [vmem:[#allocation3 + $0x10] sm:$0xff] %v4423
  %4466 = vst [vmem:[#allocation3 + $0x18] sm:$0xff] %v4425
  %4467 = vst [vmem:[#allocation3 + $0x20] sm:$0xff] %v4429
  %4468 = vst [vmem:[#allocation3 + $0x28] sm:$0xff] %v4431
  %4469 = vst [vmem:[#allocation3 + $0x30] sm:$0xff] %v4435
  %4470 = vst [vmem:[#allocation3 + $0x38] sm:$0xff] %v4437
  %4471 = vst [vmem:[#allocation3 + $0x40] sm:$0xff] %v4441
  %4472 = vst [vmem:[#allocation3 + $0x48] sm:$0xff] %v4443
  %4473 = vst [vmem:[#allocation3 + $0x50] sm:$0xff] %v4447
  %4474 = vst [vmem:[#allocation3 + $0x58] sm:$0xff] %v4449
  %4475 = vst [vmem:[#allocation3 + $0x60] sm:$0xff] %v4453
  %4476 = vst [vmem:[#allocation3 + $0x68] sm:$0xff] %v4455
  %4477 = vst [vmem:[#allocation3 + $0x70] sm:$0xff] %v4459
  %4478 = vst [vmem:[#allocation3 + $0x78] sm:$0xff] %v4461
  %v4479 = vld [vmem:[#allocation3] sm:$0xff]
  %v4480 = vld [vmem:[#allocation3 + $0x8] sm:$0xff]
  %4481 = vmatprep.subr.mxu0 %v4314
  %4482 = vmatpush1.msra.mxu0 %v4313
  %4483 = vmatprep.subr.mxu0 %v4316
  %4484 = vmatpush1.msra.mxu0 %v4315
  %4485 = vmatprep.subr.mxu0 %v4318
  %4486 = vmatpush1.msra.mxu0 %v4317
  %4487 = vmatprep.subr.mxu0 %v4320
  %4488 = vmatpush1.msra.mxu0 %v4319
  %4489 = vmatprep.subr.mxu0 %v4322
  %4490 = vmatpush1.msra.mxu0 %v4321
  %4491 = vmatprep.subr.mxu0 %v4324
  %4492 = vmatpush1.msra.mxu0 %v4323
  %4493 = vmatprep.subr.mxu0 %v4326
  %4494 = vmatpush1.msra.mxu0 %v4325
  %4495 = vmatprep.subr.mxu0 %v4328
  %4496 = vmatpush1.msra.mxu0 %v4327
  %4497 = vmatprep.subr.mxu0 0.0
  %4498 = vmatpush1.msra.mxu0 0.0
  %4499 = vmatprep.subr.mxu0 0.0
  %4500 = vmatpush1.msra.mxu0 0.0
  %4501 = vmatprep.subr.mxu0 0.0
  %4502 = vmatpush1.msra.mxu0 0.0
  %4503 = vmatprep.subr.mxu0 0.0
  %4504 = vmatpush1.msra.mxu0 0.0
  %4505 = vmatprep.subr.mxu0 0.0
  %4506 = vmatpush1.msra.mxu0 0.0
  %4507 = vmatprep.subr.mxu0 0.0
  %4508 = vmatpush1.msra.mxu0 0.0
  %4509 = vmatprep.subr.mxu0 0.0
  %4510 = vmatpush1.msra.mxu0 0.0
  %4511 = vmatprep.subr.mxu0 0.0
  %4512 = vmatpush1.msra.mxu0 0.0
  %4513 = vmatprep.subr.mxu0 0.0
  %4514 = vmatpush1.msra.mxu0 0.0
  %4515 = vmatprep.subr.mxu0 0.0
  %4516 = vmatpush1.msra.mxu0 0.0
  %4517 = vmatprep.subr.mxu0 0.0
  %4518 = vmatpush1.msra.mxu0 0.0
  %4519 = vmatprep.subr.mxu0 0.0
  %4520 = vmatpush1.msra.mxu0 0.0
  %4521 = vmatprep.subr.mxu0 0.0
  %4522 = vmatpush1.msra.mxu0 0.0
  %4523 = vmatprep.subr.mxu0 0.0
  %4524 = vmatpush1.msra.mxu0 0.0
  %4525 = vmatprep.subr.mxu0 0.0
  %4526 = vmatpush1.msra.mxu0 0.0
  %4527 = vmatprep.subr.mxu0 0.0
  %4528 = vmatpush1.msra.mxu0 0.0
  %4529 = vmatprep.subr.mxu0 0.0
  %4530 = vmatpush1.msra.mxu0 0.0
  %4531 = vmatprep.subr.mxu0 0.0
  %4532 = vmatpush1.msra.mxu0 0.0
  %4533 = vmatprep.subr.mxu0 0.0
  %4534 = vmatpush1.msra.mxu0 0.0
  %4535 = vmatprep.subr.mxu0 0.0
  %4536 = vmatpush1.msra.mxu0 0.0
  %4537 = vmatprep.subr.mxu0 0.0
  %4538 = vmatpush1.msra.mxu0 0.0
  %4539 = vmatprep.subr.mxu0 0.0
  %4540 = vmatpush1.msra.mxu0 0.0
  %4541 = vmatprep.subr.mxu0 0.0
  %4542 = vmatpush1.msra.mxu0 0.0
  %4543 = vmatprep.subr.mxu0 0.0
  %4544 = vmatpush1.msra.mxu0 0.0
  %4545 = vmatprep.mubr.f32.mxu0 0.0
  %4546 = vmatmul.mubr.f32.gmra.mrb[0].mxu0 %v231
  %v4547 = vpop.f32.mrb[0].mxu0
  %v4548 = vadd.f32 0.0, %v4547
  %v4549 = vpop.f32.mrb[0].mxu0
  %v4550 = vadd.f32 0.0, %v4549
  %4551 = vdwg.mxu0
  %v4552 = vadd.f32 %v4479, %v4548
  %v4553 = vadd.f32 %v4480, %v4550
  %v4554 = vtanh.pop %v4552
  %v4555 = vtanh.pop %v4553
  %v4556 = vmul.f32 %v4554, 0.5
  %v4557 = vmul.f32 %v4555, 0.5
  %v4558 = vadd.f32 %v4556, 0.5
  %v4559 = vadd.f32 %v4557, 0.5
  %v4560 = vmul.f32 %v4558, 0.0
  %4562 = vrot.lane.b32.xlu0 %v4555, 64
  %v4563 = vpop.permute.xlu0 %4562
  %v4565 = vmul.f32 %v4558, %v4563
  %4567 = vrot.lane.b32.xlu0 %v4565, 64
  %v4568 = vpop.permute.xlu0 %4567
  %v4570 = vadd.f32 %v4560, %v4568
  %v4571 = vtanh.pop %v4570
  %4573 = vrot.lane.b32.xlu0 %v4571, 64
  %v4574 = vpop.permute.xlu0 %4573
  %v4576 = vmul.f32 %v4559, %v4574
  %4577 = vst.msk [vmem:[#allocation2] sm:$0xff] %vm329, %v4576
  %4578 = vst.msk [vmem:[#allocation2 + $0x38] sm:$0xff] %vm331, %v4576
  %v4579 = vld [vmem:[#allocation3 + $0x10] sm:$0xff]
  %v4580 = vld [vmem:[#allocation3 + $0x18] sm:$0xff]
  %v4582 = vsel %vm229, %v4576, 0
  %4584 = vmatprep.subr.mxu0 %v4314
  %4585 = vmatpush1.msra.mxu0 %v4313
  %4586 = vmatprep.subr.mxu0 %v4316
  %4587 = vmatpush1.msra.mxu0 %v4315
  %4588 = vmatprep.subr.mxu0 %v4318
  %4589 = vmatpush1.msra.mxu0 %v4317
  %4590 = vmatprep.subr.mxu0 %v4320
  %4591 = vmatpush1.msra.mxu0 %v4319
  %4592 = vmatprep.subr.mxu0 %v4322
  %4593 = vmatpush1.msra.mxu0 %v4321
  %4594 = vmatprep.subr.mxu0 %v4324
  %4595 = vmatpush1.msra.mxu0 %v4323
  %4596 = vmatprep.subr.mxu0 %v4326
  %4597 = vmatpush1.msra.mxu0 %v4325
  %4598 = vmatprep.subr.mxu0 %v4328
  %4599 = vmatpush1.msra.mxu0 %v4327
  %4600 = vmatprep.subr.mxu0 0.0
  %4601 = vmatpush1.msra.mxu0 0.0
  %4602 = vmatprep.subr.mxu0 0.0
  %4603 = vmatpush1.msra.mxu0 0.0
  %4604 = vmatprep.subr.mxu0 0.0
  %4605 = vmatpush1.msra.mxu0 0.0
  %4606 = vmatprep.subr.mxu0 0.0
  %4607 = vmatpush1.msra.mxu0 0.0
  %4608 = vmatprep.subr.mxu0 0.0
  %4609 = vmatpush1.msra.mxu0 0.0
  %4610 = vmatprep.subr.mxu0 0.0
  %4611 = vmatpush1.msra.mxu0 0.0
  %4612 = vmatprep.subr.mxu0 0.0
  %4613 = vmatpush1.msra.mxu0 0.0
  %4614 = vmatprep.subr.mxu0 0.0
  %4615 = vmatpush1.msra.mxu0 0.0
  %4616 = vmatprep.subr.mxu0 0.0
  %4617 = vmatpush1.msra.mxu0 0.0
  %4618 = vmatprep.subr.mxu0 0.0
  %4619 = vmatpush1.msra.mxu0 0.0
  %4620 = vmatprep.subr.mxu0 0.0
  %4621 = vmatpush1.msra.mxu0 0.0
  %4622 = vmatprep.subr.mxu0 0.0
  %4623 = vmatpush1.msra.mxu0 0.0
  %4624 = vmatprep.subr.mxu0 0.0
  %4625 = vmatpush1.msra.mxu0 0.0
  %4626 = vmatprep.subr.mxu0 0.0
  %4627 = vmatpush1.msra.mxu0 0.0
  %4628 = vmatprep.subr.mxu0 0.0
  %4629 = vmatpush1.msra.mxu0 0.0
  %4630 = vmatprep.subr.mxu0 0.0
  %4631 = vmatpush1.msra.mxu0 0.0
  %4632 = vmatprep.subr.mxu0 0.0
  %4633 = vmatpush1.msra.mxu0 0.0
  %4634 = vmatprep.subr.mxu0 0.0
  %4635 = vmatpush1.msra.mxu0 0.0
  %4636 = vmatprep.subr.mxu0 0.0
  %4637 = vmatpush1.msra.mxu0 0.0
  %4638 = vmatprep.subr.mxu0 0.0
  %4639 = vmatpush1.msra.mxu0 0.0
  %4640 = vmatprep.subr.mxu0 0.0
  %4641 = vmatpush1.msra.mxu0 0.0
  %4642 = vmatprep.subr.mxu0 0.0
  %4643 = vmatpush1.msra.mxu0 0.0
  %4644 = vmatprep.subr.mxu0 0.0
  %4645 = vmatpush1.msra.mxu0 0.0
  %4646 = vmatprep.subr.mxu0 0.0
  %4647 = vmatpush1.msra.mxu0 0.0
  %4648 = vmatprep.mubr.f32.mxu0 0.0
  %4649 = vmatmul.mubr.f32.gmra.mrb[0].mxu0 %v4582
  %v4650 = vpop.f32.mrb[0].mxu0
  %v4651 = vadd.f32 0.0, %v4650
  %v4652 = vpop.f32.mrb[0].mxu0
  %v4653 = vadd.f32 0.0, %v4652
  %4654 = vdwg.mxu0
  %v4655 = vadd.f32 %v4579, %v4651
  %v4656 = vadd.f32 %v4580, %v4653
  %v4657 = vtanh.pop %v4655
  %v4658 = vtanh.pop %v4656
  %v4659 = vmul.f32 %v4657, 0.5
  %v4660 = vmul.f32 %v4658, 0.5
  %v4661 = vadd.f32 %v4659, 0.5
  %v4662 = vadd.f32 %v4660, 0.5
  %v4663 = vmul.f32 %v4661, %v4570
  %4665 = vrot.lane.b32.xlu0 %v4658, 64
  %v4666 = vpop.permute.xlu0 %4665
  %v4668 = vmul.f32 %v4661, %v4666
  %4670 = vrot.lane.b32.xlu0 %v4668, 64
  %v4671 = vpop.permute.xlu0 %4670
  %v4673 = vadd.f32 %v4663, %v4671
  %v4674 = vtanh.pop %v4673
  %4676 = vrot.lane.b32.xlu0 %v4674, 64
  %v4677 = vpop.permute.xlu0 %4676
  %v4679 = vmul.f32 %v4662, %v4677
  %4680 = vst.msk [vmem:[#allocation2 + $0x8] sm:$0xff] %vm329, %v4679
  %4681 = vst.msk [vmem:[#allocation2 + $0x30] sm:$0xff] %vm331, %v4679
  %v4682 = vld [vmem:[#allocation3 + $0x20] sm:$0xff]
  %v4683 = vld [vmem:[#allocation3 + $0x28] sm:$0xff]
  %v4685 = vsel %vm229, %v4679, 0
  %4687 = vmatprep.subr.mxu0 %v4314
  %4688 = vmatpush1.msra.mxu0 %v4313
  %4689 = vmatprep.subr.mxu0 %v4316
  %4690 = vmatpush1.msra.mxu0 %v4315
  %4691 = vmatprep.subr.mxu0 %v4318
  %4692 = vmatpush1.msra.mxu0 %v4317
  %4693 = vmatprep.subr.mxu0 %v4320
  %4694 = vmatpush1.msra.mxu0 %v4319
  %4695 = vmatprep.subr.mxu0 %v4322
  %4696 = vmatpush1.msra.mxu0 %v4321
  %4697 = vmatprep.subr.mxu0 %v4324
  %4698 = vmatpush1.msra.mxu0 %v4323
  %4699 = vmatprep.subr.mxu0 %v4326
  %4700 = vmatpush1.msra.mxu0 %v4325
  %4701 = vmatprep.subr.mxu0 %v4328
  %4702 = vmatpush1.msra.mxu0 %v4327
  %4703 = vmatprep.subr.mxu0 0.0
  %4704 = vmatpush1.msra.mxu0 0.0
  %4705 = vmatprep.subr.mxu0 0.0
  %4706 = vmatpush1.msra.mxu0 0.0
  %4707 = vmatprep.subr.mxu0 0.0
  %4708 = vmatpush1.msra.mxu0 0.0
  %4709 = vmatprep.subr.mxu0 0.0
  %4710 = vmatpush1.msra.mxu0 0.0
  %4711 = vmatprep.subr.mxu0 0.0
  %4712 = vmatpush1.msra.mxu0 0.0
  %4713 = vmatprep.subr.mxu0 0.0
  %4714 = vmatpush1.msra.mxu0 0.0
  %4715 = vmatprep.subr.mxu0 0.0
  %4716 = vmatpush1.msra.mxu0 0.0
  %4717 = vmatprep.subr.mxu0 0.0
  %4718 = vmatpush1.msra.mxu0 0.0
  %4719 = vmatprep.subr.mxu0 0.0
  %4720 = vmatpush1.msra.mxu0 0.0
  %4721 = vmatprep.subr.mxu0 0.0
  %4722 = vmatpush1.msra.mxu0 0.0
  %4723 = vmatprep.subr.mxu0 0.0
  %4724 = vmatpush1.msra.mxu0 0.0
  %4725 = vmatprep.subr.mxu0 0.0
  %4726 = vmatpush1.msra.mxu0 0.0
  %4727 = vmatprep.subr.mxu0 0.0
  %4728 = vmatpush1.msra.mxu0 0.0
  %4729 = vmatprep.subr.mxu0 0.0
  %4730 = vmatpush1.msra.mxu0 0.0
  %4731 = vmatprep.subr.mxu0 0.0
  %4732 = vmatpush1.msra.mxu0 0.0
  %4733 = vmatprep.subr.mxu0 0.0
  %4734 = vmatpush1.msra.mxu0 0.0
  %4735 = vmatprep.subr.mxu0 0.0
  %4736 = vmatpush1.msra.mxu0 0.0
  %4737 = vmatprep.subr.mxu0 0.0
  %4738 = vmatpush1.msra.mxu0 0.0
  %4739 = vmatprep.subr.mxu0 0.0
  %4740 = vmatpush1.msra.mxu0 0.0
  %4741 = vmatprep.subr.mxu0 0.0
  %4742 = vmatpush1.msra.mxu0 0.0
  %4743 = vmatprep.subr.mxu0 0.0
  %4744 = vmatpush1.msra.mxu0 0.0
  %4745 = vmatprep.subr.mxu0 0.0
  %4746 = vmatpush1.msra.mxu0 0.0
  %4747 = vmatprep.subr.mxu0 0.0
  %4748 = vmatpush1.msra.mxu0 0.0
  %4749 = vmatprep.subr.mxu0 0.0
  %4750 = vmatpush1.msra.mxu0 0.0
  %4751 = vmatprep.mubr.f32.mxu0 0.0
  %4752 = vmatmul.mubr.f32.gmra.mrb[0].mxu0 %v4685
  %v4753 = vpop.f32.mrb[0].mxu0
  %v4754 = vadd.f32 0.0, %v4753
  %v4755 = vpop.f32.mrb[0].mxu0
  %v4756 = vadd.f32 0.0, %v4755
  %4757 = vdwg.mxu0
  %v4758 = vadd.f32 %v4682, %v4754
  %v4759 = vadd.f32 %v4683, %v4756
  %v4760 = vtanh.pop %v4758
  %v4761 = vtanh.pop %v4759
  %v4762 = vmul.f32 %v4760, 0.5
  %v4763 = vmul.f32 %v4761, 0.5
  %v4764 = vadd.f32 %v4762, 0.5
  %v4765 = vadd.f32 %v4763, 0.5
  %v4766 = vmul.f32 %v4764, %v4673
  %4768 = vrot.lane.b32.xlu0 %v4761, 64
  %v4769 = vpop.permute.xlu0 %4768
  %v4771 = vmul.f32 %v4764, %v4769
  %4773 = vrot.lane.b32.xlu0 %v4771, 64
  %v4774 = vpop.permute.xlu0 %4773
  %v4776 = vadd.f32 %v4766, %v4774
  %v4777 = vtanh.pop %v4776
  %4779 = vrot.lane.b32.xlu0 %v4777, 64
  %v4780 = vpop.permute.xlu0 %4779
  %v4782 = vmul.f32 %v4765, %v4780
  %4783 = vst.msk [vmem:[#allocation2 + $0x10] sm:$0xff] %vm329, %v4782
  %4784 = vst.msk [vmem:[#allocation2 + $0x28] sm:$0xff] %vm331, %v4782
  %v4785 = vld [vmem:[#allocation3 + $0x30] sm:$0xff]
  %v4786 = vld [vmem:[#allocation3 + $0x38] sm:$0xff]
  %v4788 = vsel %vm229, %v4782, 0
  %4790 = vmatprep.subr.mxu0 %v4314
  %4791 = vmatpush1.msra.mxu0 %v4313
  %4792 = vmatprep.subr.mxu0 %v4316
  %4793 = vmatpush1.msra.mxu0 %v4315
  %4794 = vmatprep.subr.mxu0 %v4318
  %4795 = vmatpush1.msra.mxu0 %v4317
  %4796 = vmatprep.subr.mxu0 %v4320
  %4797 = vmatpush1.msra.mxu0 %v4319
  %4798 = vmatprep.subr.mxu0 %v4322
  %4799 = vmatpush1.msra.mxu0 %v4321
  %4800 = vmatprep.subr.mxu0 %v4324
  %4801 = vmatpush1.msra.mxu0 %v4323
  %4802 = vmatprep.subr.mxu0 %v4326
  %4803 = vmatpush1.msra.mxu0 %v4325
  %4804 = vmatprep.subr.mxu0 %v4328
  %4805 = vmatpush1.msra.mxu0 %v4327
  %4806 = vmatprep.subr.mxu0 0.0
  %4807 = vmatpush1.msra.mxu0 0.0
  %4808 = vmatprep.subr.mxu0 0.0
  %4809 = vmatpush1.msra.mxu0 0.0
  %4810 = vmatprep.subr.mxu0 0.0
  %4811 = vmatpush1.msra.mxu0 0.0
  %4812 = vmatprep.subr.mxu0 0.0
  %4813 = vmatpush1.msra.mxu0 0.0
  %4814 = vmatprep.subr.mxu0 0.0
  %4815 = vmatpush1.msra.mxu0 0.0
  %4816 = vmatprep.subr.mxu0 0.0
  %4817 = vmatpush1.msra.mxu0 0.0
  %4818 = vmatprep.subr.mxu0 0.0
  %4819 = vmatpush1.msra.mxu0 0.0
  %4820 = vmatprep.subr.mxu0 0.0
  %4821 = vmatpush1.msra.mxu0 0.0
  %4822 = vmatprep.subr.mxu0 0.0
  %4823 = vmatpush1.msra.mxu0 0.0
  %4824 = vmatprep.subr.mxu0 0.0
  %4825 = vmatpush1.msra.mxu0 0.0
  %4826 = vmatprep.subr.mxu0 0.0
  %4827 = vmatpush1.msra.mxu0 0.0
  %4828 = vmatprep.subr.mxu0 0.0
  %4829 = vmatpush1.msra.mxu0 0.0
  %4830 = vmatprep.subr.mxu0 0.0
  %4831 = vmatpush1.msra.mxu0 0.0
  %4832 = vmatprep.subr.mxu0 0.0
  %4833 = vmatpush1.msra.mxu0 0.0
  %4834 = vmatprep.subr.mxu0 0.0
  %4835 = vmatpush1.msra.mxu0 0.0
  %4836 = vmatprep.subr.mxu0 0.0
  %4837 = vmatpush1.msra.mxu0 0.0
  %4838 = vmatprep.subr.mxu0 0.0
  %4839 = vmatpush1.msra.mxu0 0.0
  %4840 = vmatprep.subr.mxu0 0.0
  %4841 = vmatpush1.msra.mxu0 0.0
  %4842 = vmatprep.subr.mxu0 0.0
  %4843 = vmatpush1.msra.mxu0 0.0
  %4844 = vmatprep.subr.mxu0 0.0
  %4845 = vmatpush1.msra.mxu0 0.0
  %4846 = vmatprep.subr.mxu0 0.0
  %4847 = vmatpush1.msra.mxu0 0.0
  %4848 = vmatprep.subr.mxu0 0.0
  %4849 = vmatpush1.msra.mxu0 0.0
  %4850 = vmatprep.subr.mxu0 0.0
  %4851 = vmatpush1.msra.mxu0 0.0
  %4852 = vmatprep.subr.mxu0 0.0
  %4853 = vmatpush1.msra.mxu0 0.0
  %4854 = vmatprep.mubr.f32.mxu0 0.0
  %4855 = vmatmul.mubr.f32.gmra.mrb[0].mxu0 %v4788
  %v4856 = vpop.f32.mrb[0].mxu0
  %v4857 = vadd.f32 0.0, %v4856
  %v4858 = vpop.f32.mrb[0].mxu0
  %v4859 = vadd.f32 0.0, %v4858
  %4860 = vdwg.mxu0
  %v4861 = vadd.f32 %v4785, %v4857
  %v4862 = vadd.f32 %v4786, %v4859
  %v4863 = vtanh.pop %v4861
  %v4864 = vtanh.pop %v4862
  %v4865 = vmul.f32 %v4863, 0.5
  %v4866 = vmul.f32 %v4864, 0.5
  %v4867 = vadd.f32 %v4865, 0.5
  %v4868 = vadd.f32 %v4866, 0.5
  %v4869 = vmul.f32 %v4867, %v4776
  %4871 = vrot.lane.b32.xlu0 %v4864, 64
  %v4872 = vpop.permute.xlu0 %4871
  %v4874 = vmul.f32 %v4867, %v4872
  %4876 = vrot.lane.b32.xlu0 %v4874, 64
  %v4877 = vpop.permute.xlu0 %4876
  %v4879 = vadd.f32 %v4869, %v4877
  %v4880 = vtanh.pop %v4879
  %4882 = vrot.lane.b32.xlu0 %v4880, 64
  %v4883 = vpop.permute.xlu0 %4882
  %v4885 = vmul.f32 %v4868, %v4883
  %4886 = vst.msk [vmem:[#allocation2 + $0x18] sm:$0xff] %vm329, %v4885
  %4887 = vst.msk [vmem:[#allocation2 + $0x20] sm:$0xff] %vm331, %v4885
  %v4888 = vld [vmem:[#allocation3 + $0x40] sm:$0xff]
  %v4889 = vld [vmem:[#allocation3 + $0x48] sm:$0xff]
  %v4891 = vsel %vm229, %v4885, 0
  %4893 = vmatprep.subr.mxu0 %v4314
  %4894 = vmatpush1.msra.mxu0 %v4313
  %4895 = vmatprep.subr.mxu0 %v4316
  %4896 = vmatpush1.msra.mxu0 %v4315
  %4897 = vmatprep.subr.mxu0 %v4318
  %4898 = vmatpush1.msra.mxu0 %v4317
  %4899 = vmatprep.subr.mxu0 %v4320
  %4900 = vmatpush1.msra.mxu0 %v4319
  %4901 = vmatprep.subr.mxu0 %v4322
  %4902 = vmatpush1.msra.mxu0 %v4321
  %4903 = vmatprep.subr.mxu0 %v4324
  %4904 = vmatpush1.msra.mxu0 %v4323
  %4905 = vmatprep.subr.mxu0 %v4326
  %4906 = vmatpush1.msra.mxu0 %v4325
  %4907 = vmatprep.subr.mxu0 %v4328
  %4908 = vmatpush1.msra.mxu0 %v4327
  %4909 = vmatprep.subr.mxu0 0.0
  %4910 = vmatpush1.msra.mxu0 0.0
  %4911 = vmatprep.subr.mxu0 0.0
  %4912 = vmatpush1.msra.mxu0 0.0
  %4913 = vmatprep.subr.mxu0 0.0
  %4914 = vmatpush1.msra.mxu0 0.0
  %4915 = vmatprep.subr.mxu0 0.0
  %4916 = vmatpush1.msra.mxu0 0.0
  %4917 = vmatprep.subr.mxu0 0.0
  %4918 = vmatpush1.msra.mxu0 0.0
  %4919 = vmatprep.subr.mxu0 0.0
  %4920 = vmatpush1.msra.mxu0 0.0
  %4921 = vmatprep.subr.mxu0 0.0
  %4922 = vmatpush1.msra.mxu0 0.0
  %4923 = vmatprep.subr.mxu0 0.0
  %4924 = vmatpush1.msra.mxu0 0.0
  %4925 = vmatprep.subr.mxu0 0.0
  %4926 = vmatpush1.msra.mxu0 0.0
  %4927 = vmatprep.subr.mxu0 0.0
  %4928 = vmatpush1.msra.mxu0 0.0
  %4929 = vmatprep.subr.mxu0 0.0
  %4930 = vmatpush1.msra.mxu0 0.0
  %4931 = vmatprep.subr.mxu0 0.0
  %4932 = vmatpush1.msra.mxu0 0.0
  %4933 = vmatprep.subr.mxu0 0.0
  %4934 = vmatpush1.msra.mxu0 0.0
  %4935 = vmatprep.subr.mxu0 0.0
  %4936 = vmatpush1.msra.mxu0 0.0
  %4937 = vmatprep.subr.mxu0 0.0
  %4938 = vmatpush1.msra.mxu0 0.0
  %4939 = vmatprep.subr.mxu0 0.0
  %4940 = vmatpush1.msra.mxu0 0.0
  %4941 = vmatprep.subr.mxu0 0.0
  %4942 = vmatpush1.msra.mxu0 0.0
  %4943 = vmatprep.subr.mxu0 0.0
  %4944 = vmatpush1.msra.mxu0 0.0
  %4945 = vmatprep.subr.mxu0 0.0
  %4946 = vmatpush1.msra.mxu0 0.0
  %4947 = vmatprep.subr.mxu0 0.0
  %4948 = vmatpush1.msra.mxu0 0.0
  %4949 = vmatprep.subr.mxu0 0.0
  %4950 = vmatpush1.msra.mxu0 0.0
  %4951 = vmatprep.subr.mxu0 0.0
  %4952 = vmatpush1.msra.mxu0 0.0
  %4953 = vmatprep.subr.mxu0 0.0
  %4954 = vmatpush1.msra.mxu0 0.0
  %4955 = vmatprep.subr.mxu0 0.0
  %4956 = vmatpush1.msra.mxu0 0.0
  %4957 = vmatprep.mubr.f32.mxu0 0.0
  %4958 = vmatmul.mubr.f32.gmra.mrb[0].mxu0 %v4891
  %v4959 = vpop.f32.mrb[0].mxu0
  %v4960 = vadd.f32 0.0, %v4959
  %v4961 = vpop.f32.mrb[0].mxu0
  %v4962 = vadd.f32 0.0, %v4961
  %4963 = vdwg.mxu0
  %v4964 = vadd.f32 %v4888, %v4960
  %v4965 = vadd.f32 %v4889, %v4962
  %v4966 = vtanh.pop %v4964
  %v4967 = vtanh.pop %v4965
  %v4968 = vmul.f32 %v4966, 0.5
  %v4969 = vmul.f32 %v4967, 0.5
  %v4970 = vadd.f32 %v4968, 0.5
  %v4971 = vadd.f32 %v4969, 0.5
  %v4972 = vmul.f32 %v4970, %v4879
  %4974 = vrot.lane.b32.xlu0 %v4967, 64
  %v4975 = vpop.permute.xlu0 %4974
  %v4977 = vmul.f32 %v4970, %v4975
  %4979 = vrot.lane.b32.xlu0 %v4977, 64
  %v4980 = vpop.permute.xlu0 %4979
  %v4982 = vadd.f32 %v4972, %v4980
  %v4983 = vtanh.pop %v4982
  %4985 = vrot.lane.b32.xlu0 %v4983, 64
  %v4986 = vpop.permute.xlu0 %4985
  %v4988 = vmul.f32 %v4971, %v4986
  %4989 = vst.msk [vmem:[#allocation2 + $0x20] sm:$0xff] %vm329, %v4988
  %4990 = vst.msk [vmem:[#allocation2 + $0x18] sm:$0xff] %vm331, %v4988
  %v4991 = vld [vmem:[#allocation3 + $0x50] sm:$0xff]
  %v4992 = vld [vmem:[#allocation3 + $0x58] sm:$0xff]
  %v4994 = vsel %vm229, %v4988, 0
  %4996 = vmatprep.subr.mxu0 %v4314
  %4997 = vmatpush1.msra.mxu0 %v4313
  %4998 = vmatprep.subr.mxu0 %v4316
  %4999 = vmatpush1.msra.mxu0 %v4315
  %5000 = vmatprep.subr.mxu0 %v4318
  %5001 = vmatpush1.msra.mxu0 %v4317
  %5002 = vmatprep.subr.mxu0 %v4320
  %5003 = vmatpush1.msra.mxu0 %v4319
  %5004 = vmatprep.subr.mxu0 %v4322
  %5005 = vmatpush1.msra.mxu0 %v4321
  %5006 = vmatprep.subr.mxu0 %v4324
  %5007 = vmatpush1.msra.mxu0 %v4323
  %5008 = vmatprep.subr.mxu0 %v4326
  %5009 = vmatpush1.msra.mxu0 %v4325
  %5010 = vmatprep.subr.mxu0 %v4328
  %5011 = vmatpush1.msra.mxu0 %v4327
  %5012 = vmatprep.subr.mxu0 0.0
  %5013 = vmatpush1.msra.mxu0 0.0
  %5014 = vmatprep.subr.mxu0 0.0
  %5015 = vmatpush1.msra.mxu0 0.0
  %5016 = vmatprep.subr.mxu0 0.0
  %5017 = vmatpush1.msra.mxu0 0.0
  %5018 = vmatprep.subr.mxu0 0.0
  %5019 = vmatpush1.msra.mxu0 0.0
  %5020 = vmatprep.subr.mxu0 0.0
  %5021 = vmatpush1.msra.mxu0 0.0
  %5022 = vmatprep.subr.mxu0 0.0
  %5023 = vmatpush1.msra.mxu0 0.0
  %5024 = vmatprep.subr.mxu0 0.0
  %5025 = vmatpush1.msra.mxu0 0.0
  %5026 = vmatprep.subr.mxu0 0.0
  %5027 = vmatpush1.msra.mxu0 0.0
  %5028 = vmatprep.subr.mxu0 0.0
  %5029 = vmatpush1.msra.mxu0 0.0
  %5030 = vmatprep.subr.mxu0 0.0
  %5031 = vmatpush1.msra.mxu0 0.0
  %5032 = vmatprep.subr.mxu0 0.0
  %5033 = vmatpush1.msra.mxu0 0.0
  %5034 = vmatprep.subr.mxu0 0.0
  %5035 = vmatpush1.msra.mxu0 0.0
  %5036 = vmatprep.subr.mxu0 0.0
  %5037 = vmatpush1.msra.mxu0 0.0
  %5038 = vmatprep.subr.mxu0 0.0
  %5039 = vmatpush1.msra.mxu0 0.0
  %5040 = vmatprep.subr.mxu0 0.0
  %5041 = vmatpush1.msra.mxu0 0.0
  %5042 = vmatprep.subr.mxu0 0.0
  %5043 = vmatpush1.msra.mxu0 0.0
  %5044 = vmatprep.subr.mxu0 0.0
  %5045 = vmatpush1.msra.mxu0 0.0
  %5046 = vmatprep.subr.mxu0 0.0
  %5047 = vmatpush1.msra.mxu0 0.0
  %5048 = vmatprep.subr.mxu0 0.0
  %5049 = vmatpush1.msra.mxu0 0.0
  %5050 = vmatprep.subr.mxu0 0.0
  %5051 = vmatpush1.msra.mxu0 0.0
  %5052 = vmatprep.subr.mxu0 0.0
  %5053 = vmatpush1.msra.mxu0 0.0
  %5054 = vmatprep.subr.mxu0 0.0
  %5055 = vmatpush1.msra.mxu0 0.0
  %5056 = vmatprep.subr.mxu0 0.0
  %5057 = vmatpush1.msra.mxu0 0.0
  %5058 = vmatprep.subr.mxu0 0.0
  %5059 = vmatpush1.msra.mxu0 0.0
  %5060 = vmatprep.mubr.f32.mxu0 0.0
  %5061 = vmatmul.mubr.f32.gmra.mrb[0].mxu0 %v4994
  %v5062 = vpop.f32.mrb[0].mxu0
  %v5063 = vadd.f32 0.0, %v5062
  %v5064 = vpop.f32.mrb[0].mxu0
  %v5065 = vadd.f32 0.0, %v5064
  %5066 = vdwg.mxu0
  %v5067 = vadd.f32 %v4991, %v5063
  %v5068 = vadd.f32 %v4992, %v5065
  %v5069 = vtanh.pop %v5067
  %v5070 = vtanh.pop %v5068
  %v5071 = vmul.f32 %v5069, 0.5
  %v5072 = vmul.f32 %v5070, 0.5
  %v5073 = vadd.f32 %v5071, 0.5
  %v5074 = vadd.f32 %v5072, 0.5
  %v5075 = vmul.f32 %v5073, %v4982
  %5077 = vrot.lane.b32.xlu0 %v5070, 64
  %v5078 = vpop.permute.xlu0 %5077
  %v5080 = vmul.f32 %v5073, %v5078
  %5082 = vrot.lane.b32.xlu0 %v5080, 64
  %v5083 = vpop.permute.xlu0 %5082
  %v5085 = vadd.f32 %v5075, %v5083
  %v5086 = vtanh.pop %v5085
  %5088 = vrot.lane.b32.xlu0 %v5086, 64
  %v5089 = vpop.permute.xlu0 %5088
  %v5091 = vmul.f32 %v5074, %v5089
  %5092 = vst.msk [vmem:[#allocation2 + $0x28] sm:$0xff] %vm329, %v5091
  %5093 = vst.msk [vmem:[#allocation2 + $0x10] sm:$0xff] %vm331, %v5091
  %v5094 = vld [vmem:[#allocation3 + $0x60] sm:$0xff]
  %v5095 = vld [vmem:[#allocation3 + $0x68] sm:$0xff]
  %v5097 = vsel %vm229, %v5091, 0
  %5099 = vmatprep.subr.mxu0 %v4314
  %5100 = vmatpush1.msra.mxu0 %v4313
  %5101 = vmatprep.subr.mxu0 %v4316
  %5102 = vmatpush1.msra.mxu0 %v4315
  %5103 = vmatprep.subr.mxu0 %v4318
  %5104 = vmatpush1.msra.mxu0 %v4317
  %5105 = vmatprep.subr.mxu0 %v4320
  %5106 = vmatpush1.msra.mxu0 %v4319
  %5107 = vmatprep.subr.mxu0 %v4322
  %5108 = vmatpush1.msra.mxu0 %v4321
  %5109 = vmatprep.subr.mxu0 %v4324
  %5110 = vmatpush1.msra.mxu0 %v4323
  %5111 = vmatprep.subr.mxu0 %v4326
  %5112 = vmatpush1.msra.mxu0 %v4325
  %5113 = vmatprep.subr.mxu0 %v4328
  %5114 = vmatpush1.msra.mxu0 %v4327
  %5115 = vmatprep.subr.mxu0 0.0
  %5116 = vmatpush1.msra.mxu0 0.0
  %5117 = vmatprep.subr.mxu0 0.0
  %5118 = vmatpush1.msra.mxu0 0.0
  %5119 = vmatprep.subr.mxu0 0.0
  %5120 = vmatpush1.msra.mxu0 0.0
  %5121 = vmatprep.subr.mxu0 0.0
  %5122 = vmatpush1.msra.mxu0 0.0
  %5123 = vmatprep.subr.mxu0 0.0
  %5124 = vmatpush1.msra.mxu0 0.0
  %5125 = vmatprep.subr.mxu0 0.0
  %5126 = vmatpush1.msra.mxu0 0.0
  %5127 = vmatprep.subr.mxu0 0.0
  %5128 = vmatpush1.msra.mxu0 0.0
  %5129 = vmatprep.subr.mxu0 0.0
  %5130 = vmatpush1.msra.mxu0 0.0
  %5131 = vmatprep.subr.mxu0 0.0
  %5132 = vmatpush1.msra.mxu0 0.0
  %5133 = vmatprep.subr.mxu0 0.0
  %5134 = vmatpush1.msra.mxu0 0.0
  %5135 = vmatprep.subr.mxu0 0.0
  %5136 = vmatpush1.msra.mxu0 0.0
  %5137 = vmatprep.subr.mxu0 0.0
  %5138 = vmatpush1.msra.mxu0 0.0
  %5139 = vmatprep.subr.mxu0 0.0
  %5140 = vmatpush1.msra.mxu0 0.0
  %5141 = vmatprep.subr.mxu0 0.0
  %5142 = vmatpush1.msra.mxu0 0.0
  %5143 = vmatprep.subr.mxu0 0.0
  %5144 = vmatpush1.msra.mxu0 0.0
  %5145 = vmatprep.subr.mxu0 0.0
  %5146 = vmatpush1.msra.mxu0 0.0
  %5147 = vmatprep.subr.mxu0 0.0
  %5148 = vmatpush1.msra.mxu0 0.0
  %5149 = vmatprep.subr.mxu0 0.0
  %5150 = vmatpush1.msra.mxu0 0.0
  %5151 = vmatprep.subr.mxu0 0.0
  %5152 = vmatpush1.msra.mxu0 0.0
  %5153 = vmatprep.subr.mxu0 0.0
  %5154 = vmatpush1.msra.mxu0 0.0
  %5155 = vmatprep.subr.mxu0 0.0
  %5156 = vmatpush1.msra.mxu0 0.0
  %5157 = vmatprep.subr.mxu0 0.0
  %5158 = vmatpush1.msra.mxu0 0.0
  %5159 = vmatprep.subr.mxu0 0.0
  %5160 = vmatpush1.msra.mxu0 0.0
  %5161 = vmatprep.subr.mxu0 0.0
  %5162 = vmatpush1.msra.mxu0 0.0
  %5163 = vmatprep.mubr.f32.mxu0 0.0
  %5164 = vmatmul.mubr.f32.gmra.mrb[0].mxu0 %v5097
  %v5165 = vpop.f32.mrb[0].mxu0
  %v5166 = vadd.f32 0.0, %v5165
  %v5167 = vpop.f32.mrb[0].mxu0
  %v5168 = vadd.f32 0.0, %v5167
  %5169 = vdwg.mxu0
  %v5170 = vadd.f32 %v5094, %v5166
  %v5171 = vadd.f32 %v5095, %v5168
  %v5172 = vtanh.pop %v5170
  %v5173 = vtanh.pop %v5171
  %v5174 = vmul.f32 %v5172, 0.5
  %v5175 = vmul.f32 %v5173, 0.5
  %v5176 = vadd.f32 %v5174, 0.5
  %v5177 = vadd.f32 %v5175, 0.5
  %v5178 = vmul.f32 %v5176, %v5085
  %5180 = vrot.lane.b32.xlu0 %v5173, 64
  %v5181 = vpop.permute.xlu0 %5180
  %v5183 = vmul.f32 %v5176, %v5181
  %5185 = vrot.lane.b32.xlu0 %v5183, 64
  %v5186 = vpop.permute.xlu0 %5185
  %v5188 = vadd.f32 %v5178, %v5186
  %v5189 = vtanh.pop %v5188
  %5191 = vrot.lane.b32.xlu0 %v5189, 64
  %v5192 = vpop.permute.xlu0 %5191
  %v5194 = vmul.f32 %v5177, %v5192
  %5195 = vst.msk [vmem:[#allocation2 + $0x30] sm:$0xff] %vm329, %v5194
  %5196 = vst.msk [vmem:[#allocation2 + $0x8] sm:$0xff] %vm331, %v5194
  %v5197 = vld [vmem:[#allocation3 + $0x70] sm:$0xff]
  %v5198 = vld [vmem:[#allocation3 + $0x78] sm:$0xff]
  %v5200 = vsel %vm229, %v5194, 0
  %5202 = vmatprep.subr.mxu0 %v4314
  %5203 = vmatpush1.msra.mxu0 %v4313
  %5204 = vmatprep.subr.mxu0 %v4316
  %5205 = vmatpush1.msra.mxu0 %v4315
  %5206 = vmatprep.subr.mxu0 %v4318
  %5207 = vmatpush1.msra.mxu0 %v4317
  %5208 = vmatprep.subr.mxu0 %v4320
  %5209 = vmatpush1.msra.mxu0 %v4319
  %5210 = vmatprep.subr.mxu0 %v4322
  %5211 = vmatpush1.msra.mxu0 %v4321
  %5212 = vmatprep.subr.mxu0 %v4324
  %5213 = vmatpush1.msra.mxu0 %v4323
  %5214 = vmatprep.subr.mxu0 %v4326
  %5215 = vmatpush1.msra.mxu0 %v4325
  %5216 = vmatprep.subr.mxu0 %v4328
  %5217 = vmatpush1.msra.mxu0 %v4327
  %5218 = vmatprep.subr.mxu0 0.0
  %5219 = vmatpush1.msra.mxu0 0.0
  %5220 = vmatprep.subr.mxu0 0.0
  %5221 = vmatpush1.msra.mxu0 0.0
  %5222 = vmatprep.subr.mxu0 0.0
  %5223 = vmatpush1.msra.mxu0 0.0
  %5224 = vmatprep.subr.mxu0 0.0
  %5225 = vmatpush1.msra.mxu0 0.0
  %5226 = vmatprep.subr.mxu0 0.0
  %5227 = vmatpush1.msra.mxu0 0.0
  %5228 = vmatprep.subr.mxu0 0.0
  %5229 = vmatpush1.msra.mxu0 0.0
  %5230 = vmatprep.subr.mxu0 0.0
  %5231 = vmatpush1.msra.mxu0 0.0
  %5232 = vmatprep.subr.mxu0 0.0
  %5233 = vmatpush1.msra.mxu0 0.0
  %5234 = vmatprep.subr.mxu0 0.0
  %5235 = vmatpush1.msra.mxu0 0.0
  %5236 = vmatprep.subr.mxu0 0.0
  %5237 = vmatpush1.msra.mxu0 0.0
  %5238 = vmatprep.subr.mxu0 0.0
  %5239 = vmatpush1.msra.mxu0 0.0
  %5240 = vmatprep.subr.mxu0 0.0
  %5241 = vmatpush1.msra.mxu0 0.0
  %5242 = vmatprep.subr.mxu0 0.0
  %5243 = vmatpush1.msra.mxu0 0.0
  %5244 = vmatprep.subr.mxu0 0.0
  %5245 = vmatpush1.msra.mxu0 0.0
  %5246 = vmatprep.subr.mxu0 0.0
  %5247 = vmatpush1.msra.mxu0 0.0
  %5248 = vmatprep.subr.mxu0 0.0
  %5249 = vmatpush1.msra.mxu0 0.0
  %5250 = vmatprep.subr.mxu0 0.0
  %5251 = vmatpush1.msra.mxu0 0.0
  %5252 = vmatprep.subr.mxu0 0.0
  %5253 = vmatpush1.msra.mxu0 0.0
  %5254 = vmatprep.subr.mxu0 0.0
  %5255 = vmatpush1.msra.mxu0 0.0
  %5256 = vmatprep.subr.mxu0 0.0
  %5257 = vmatpush1.msra.mxu0 0.0
  %5258 = vmatprep.subr.mxu0 0.0
  %5259 = vmatpush1.msra.mxu0 0.0
  %5260 = vmatprep.subr.mxu0 0.0
  %5261 = vmatpush1.msra.mxu0 0.0
  %5262 = vmatprep.subr.mxu0 0.0
  %5263 = vmatpush1.msra.mxu0 0.0
  %5264 = vmatprep.subr.mxu0 0.0
  %5265 = vmatpush1.msra.mxu0 0.0
  %5266 = vmatprep.mubr.f32.mxu0 0.0
  %5267 = vmatmul.mubr.f32.gmra.mrb[0].mxu0 %v5200
  %v5268 = vpop.f32.mrb[0].mxu0
  %v5269 = vadd.f32 0.0, %v5268
  %v5270 = vpop.f32.mrb[0].mxu0
  %v5271 = vadd.f32 0.0, %v5270
  %5272 = vdwg.mxu0
  %v5273 = vadd.f32 %v5197, %v5269
  %v5274 = vadd.f32 %v5198, %v5271
  %v5275 = vtanh.pop %v5273
  %v5276 = vtanh.pop %v5274
  %v5277 = vmul.f32 %v5275, 0.5
  %v5278 = vmul.f32 %v5276, 0.5
  %v5279 = vadd.f32 %v5277, 0.5
  %v5280 = vadd.f32 %v5278, 0.5
  %v5281 = vmul.f32 %v5279, %v5188
  %5283 = vrot.lane.b32.xlu0 %v5276, 64
  %v5284 = vpop.permute.xlu0 %5283
  %v5286 = vmul.f32 %v5279, %v5284
  %5288 = vrot.lane.b32.xlu0 %v5286, 64
  %v5289 = vpop.permute.xlu0 %5288
  %v5291 = vadd.f32 %v5281, %v5289
  %v5292 = vtanh.pop %v5291
  %5294 = vrot.lane.b32.xlu0 %v5292, 64
  %v5295 = vpop.permute.xlu0 %5294
  %v5297 = vmul.f32 %v5280, %v5295
  %5298 = vst.msk [vmem:[#allocation2 + $0x38] sm:$0xff] %vm329, %v5297
  %5299 = vst.msk [vmem:[#allocation2] sm:$0xff] %vm331, %v5297
  %v5300 = vld [vmem:[%s3] sm:$0xff]
  %v5301 = vld [vmem:[%s3 + $0x8] sm:$0xff]
  %v5302 = vld [vmem:[%s3 + $0x10] sm:$0xff]
  %v5303 = vld [vmem:[%s3 + $0x18] sm:$0xff]
  %v5304 = vld [vmem:[%s3 + $0x20] sm:$0xff]
  %v5305 = vld [vmem:[%s3 + $0x28] sm:$0xff]
  %v5306 = vld [vmem:[%s3 + $0x30] sm:$0xff]
  %v5307 = vld [vmem:[%s3 + $0x38] sm:$0xff]
  %v5308 = vld [vmem:[%s3 + $0x40] sm:$0xff]
  %v5309 = vld [vmem:[%s3 + $0x48] sm:$0xff]
  %v5310 = vld [vmem:[%s3 + $0x50] sm:$0xff]
  %v5311 = vld [vmem:[%s3 + $0x58] sm:$0xff]
  %v5312 = vld [vmem:[%s3 + $0x60] sm:$0xff]
  %v5313 = vld [vmem:[%s3 + $0x68] sm:$0xff]
  %v5314 = vld [vmem:[%s3 + $0x70] sm:$0xff]
  %v5315 = vld [vmem:[%s3 + $0x78] sm:$0xff]
  %v5316 = vld [vmem:[%s3 + $0x80] sm:$0xff]
  %v5317 = vld [vmem:[%s3 + $0x88] sm:$0xff]
  %v5318 = vld [vmem:[%s3 + $0x90] sm:$0xff]
  %v5319 = vld [vmem:[%s3 + $0x98] sm:$0xff]
  %v5320 = vld [vmem:[%s3 + $0xa0] sm:$0x1]
  %v5321 = vld [vmem:[#allocation2] sm:$0xff]
  %v5322 = vld [vmem:[#allocation2 + $0x8] sm:$0xff]
  %v5323 = vld [vmem:[#allocation2 + $0x10] sm:$0xff]
  %v5324 = vld [vmem:[#allocation2 + $0x18] sm:$0xff]
  %v5325 = vld [vmem:[#allocation2 + $0x20] sm:$0xff]
  %v5326 = vld [vmem:[#allocation2 + $0x28] sm:$0xff]
  %v5327 = vld [vmem:[#allocation2 + $0x30] sm:$0xff]
  %v5328 = vld [vmem:[#allocation2 + $0x38] sm:$0xff]
  %v5329 = vlaneseq
  %v5330 = vshrl.u32 %v5329, 7
  %v5331 = vsub.s32 0, %v5330
  %v5332 = vrot.slane %v5320, %v5331
  %5333 = vmatprep.subr.mxu0 0.0
  %5334 = vmatpush1.msra.mxu0 %v5300
  %5335 = vmatprep.subr.mxu0 0.0
  %5336 = vmatpush1.msra.mxu0 %v5301
  %5337 = vmatprep.subr.mxu0 0.0
  %5338 = vmatpush1.msra.mxu0 %v5302
  %5339 = vmatprep.subr.mxu0 0.0
  %5340 = vmatpush1.msra.mxu0 %v5303
  %5341 = vmatprep.subr.mxu0 0.0
  %5342 = vmatpush1.msra.mxu0 %v5304
  %5343 = vmatprep.subr.mxu0 0.0
  %5344 = vmatpush1.msra.mxu0 %v5305
  %5345 = vmatprep.subr.mxu0 0.0
  %5346 = vmatpush1.msra.mxu0 %v5306
  %5347 = vmatprep.subr.mxu0 0.0
  %5348 = vmatpush1.msra.mxu0 %v5307
  %5349 = vmatprep.subr.mxu0 0.0
  %5350 = vmatpush1.msra.mxu0 %v5308
  %5351 = vmatprep.subr.mxu0 0.0
  %5352 = vmatpush1.msra.mxu0 %v5309
  %5353 = vmatprep.subr.mxu0 0.0
  %5354 = vmatpush1.msra.mxu0 %v5310
  %5355 = vmatprep.subr.mxu0 0.0
  %5356 = vmatpush1.msra.mxu0 %v5311
  %5357 = vmatprep.subr.mxu0 0.0
  %5358 = vmatpush1.msra.mxu0 %v5312
  %5359 = vmatprep.subr.mxu0 0.0
  %5360 = vmatpush1.msra.mxu0 %v5313
  %5361 = vmatprep.subr.mxu0 0.0
  %5362 = vmatpush1.msra.mxu0 %v5314
  %5363 = vmatprep.subr.mxu0 0.0
  %5364 = vmatpush1.msra.mxu0 %v5315
  %5365 = vmatprep.subr.mxu0 0.0
  %5366 = vmatpush1.msra.mxu0 0.0
  %5367 = vmatprep.subr.mxu0 0.0
  %5368 = vmatpush1.msra.mxu0 0.0
  %5369 = vmatprep.subr.mxu0 0.0
  %5370 = vmatpush1.msra.mxu0 0.0
  %5371 = vmatprep.subr.mxu0 0.0
  %5372 = vmatpush1.msra.mxu0 0.0
  %5373 = vmatprep.subr.mxu0 0.0
  %5374 = vmatpush1.msra.mxu0 0.0
  %5375 = vmatprep.subr.mxu0 0.0
  %5376 = vmatpush1.msra.mxu0 0.0
  %5377 = vmatprep.subr.mxu0 0.0
  %5378 = vmatpush1.msra.mxu0 0.0
  %5379 = vmatprep.subr.mxu0 0.0
  %5380 = vmatpush1.msra.mxu0 0.0
  %5381 = vmatprep.subr.mxu0 0.0
  %5382 = vmatpush1.msra.mxu0 0.0
  %5383 = vmatprep.subr.mxu0 0.0
  %5384 = vmatpush1.msra.mxu0 0.0
  %5385 = vmatprep.subr.mxu0 0.0
  %5386 = vmatpush1.msra.mxu0 0.0
  %5387 = vmatprep.subr.mxu0 0.0
  %5388 = vmatpush1.msra.mxu0 0.0
  %5389 = vmatprep.subr.mxu0 0.0
  %5390 = vmatpush1.msra.mxu0 0.0
  %5391 = vmatprep.subr.mxu0 0.0
  %5392 = vmatpush1.msra.mxu0 0.0
  %5393 = vmatprep.subr.mxu0 0.0
  %5394 = vmatpush1.msra.mxu0 0.0
  %5395 = vmatprep.subr.mxu0 0.0
  %5396 = vmatpush1.msra.mxu0 0.0
  %5397 = vmatprep.mubr.f32.mxu0 0.0
  %5398 = vmatmul.mubr.f32.gmra.mrb[0].mxu0 %v5321
  %v5399 = vpop.f32.mrb[0].mxu0
  %v5400 = vadd.f32 %v5332, %v5399
  %v5401 = vpop.f32.mrb[0].mxu0
  %5402 = vmatprep.mubr.f32.mxu0 0.0
  %5403 = vmatmul.mubr.f32.gmra.mrb[0].mxu0 %v5322
  %v5404 = vpop.f32.mrb[0].mxu0
  %v5405 = vadd.f32 %v5332, %v5404
  %v5406 = vpop.f32.mrb[0].mxu0
  %5407 = vmatprep.mubr.f32.mxu0 0.0
  %5408 = vmatmul.mubr.f32.gmra.mrb[0].mxu0 %v5323
  %v5409 = vpop.f32.mrb[0].mxu0
  %v5410 = vadd.f32 %v5332, %v5409
  %v5411 = vpop.f32.mrb[0].mxu0
  %5412 = vmatprep.mubr.f32.mxu0 0.0
  %5413 = vmatmul.mubr.f32.gmra.mrb[0].mxu0 %v5324
  %v5414 = vpop.f32.mrb[0].mxu0
  %v5415 = vadd.f32 %v5332, %v5414
  %v5416 = vpop.f32.mrb[0].mxu0
  %5417 = vmatprep.mubr.f32.mxu0 0.0
  %5418 = vmatmul.mubr.f32.gmra.mrb[0].mxu0 %v5325
  %v5419 = vpop.f32.mrb[0].mxu0
  %v5420 = vadd.f32 %v5332, %v5419
  %v5421 = vpop.f32.mrb[0].mxu0
  %5422 = vmatprep.mubr.f32.mxu0 0.0
  %5423 = vmatmul.mubr.f32.gmra.mrb[0].mxu0 %v5326
  %v5424 = vpop.f32.mrb[0].mxu0
  %v5425 = vadd.f32 %v5332, %v5424
  %v5426 = vpop.f32.mrb[0].mxu0
  %5427 = vmatprep.mubr.f32.mxu0 0.0
  %5428 = vmatmul.mubr.f32.gmra.mrb[0].mxu0 %v5327
  %v5429 = vpop.f32.mrb[0].mxu0
  %v5430 = vadd.f32 %v5332, %v5429
  %v5431 = vpop.f32.mrb[0].mxu0
  %5432 = vmatprep.mubr.f32.mxu0 0.0
  %5433 = vmatmul.mubr.f32.gmra.mrb[0].mxu0 %v5328
  %v5434 = vpop.f32.mrb[0].mxu0
  %v5435 = vadd.f32 %v5332, %v5434
  %v5436 = vpop.f32.mrb[0].mxu0
  %5437 = vdwg.mxu0
  %v5438 = vsel %vm329, 0.0, 0
  %5440 = vmatprep.subr.mxu0 0.0
  %5441 = vmatpush1.msra.mxu0 %v5316
  %5442 = vmatprep.subr.mxu0 0.0
  %5443 = vmatpush1.msra.mxu0 %v5317
  %5444 = vmatprep.subr.mxu0 0.0
  %5445 = vmatpush1.msra.mxu0 %v5318
  %5446 = vmatprep.subr.mxu0 0.0
  %5447 = vmatpush1.msra.mxu0 %v5319
  %5448 = vmatprep.subr.mxu0 0.0
  %5449 = vmatpush1.msra.mxu0 0.0
  %5450 = vmatprep.subr.mxu0 0.0
  %5451 = vmatpush1.msra.mxu0 0.0
  %5452 = vmatprep.subr.mxu0 0.0
  %5453 = vmatpush1.msra.mxu0 0.0
  %5454 = vmatprep.subr.mxu0 0.0
  %5455 = vmatpush1.msra.mxu0 0.0
  %5456 = vmatprep.subr.mxu0 0.0
  %5457 = vmatpush1.msra.mxu0 0.0
  %5458 = vmatprep.subr.mxu0 0.0
  %5459 = vmatpush1.msra.mxu0 0.0
  %5460 = vmatprep.subr.mxu0 0.0
  %5461 = vmatpush1.msra.mxu0 0.0
  %5462 = vmatprep.subr.mxu0 0.0
  %5463 = vmatpush1.msra.mxu0 0.0
  %5464 = vmatprep.subr.mxu0 0.0
  %5465 = vmatpush1.msra.mxu0 0.0
  %5466 = vmatprep.subr.mxu0 0.0
  %5467 = vmatpush1.msra.mxu0 0.0
  %5468 = vmatprep.subr.mxu0 0.0
  %5469 = vmatpush1.msra.mxu0 0.0
  %5470 = vmatprep.subr.mxu0 0.0
  %5471 = vmatpush1.msra.mxu0 0.0
  %5472 = vmatprep.subr.mxu0 0.0
  %5473 = vmatpush1.msra.mxu0 0.0
  %5474 = vmatprep.subr.mxu0 0.0
  %5475 = vmatpush1.msra.mxu0 0.0
  %5476 = vmatprep.subr.mxu0 0.0
  %5477 = vmatpush1.msra.mxu0 0.0
  %5478 = vmatprep.subr.mxu0 0.0
  %5479 = vmatpush1.msra.mxu0 0.0
  %5480 = vmatprep.subr.mxu0 0.0
  %5481 = vmatpush1.msra.mxu0 0.0
  %5482 = vmatprep.subr.mxu0 0.0
  %5483 = vmatpush1.msra.mxu0 0.0
  %5484 = vmatprep.subr.mxu0 0.0
  %5485 = vmatpush1.msra.mxu0 0.0
  %5486 = vmatprep.subr.mxu0 0.0
  %5487 = vmatpush1.msra.mxu0 0.0
  %5488 = vmatprep.subr.mxu0 0.0
  %5489 = vmatpush1.msra.mxu0 0.0
  %5490 = vmatprep.subr.mxu0 0.0
  %5491 = vmatpush1.msra.mxu0 0.0
  %5492 = vmatprep.subr.mxu0 0.0
  %5493 = vmatpush1.msra.mxu0 0.0
  %5494 = vmatprep.subr.mxu0 0.0
  %5495 = vmatpush1.msra.mxu0 0.0
  %5496 = vmatprep.subr.mxu0 0.0
  %5497 = vmatpush1.msra.mxu0 0.0
  %5498 = vmatprep.subr.mxu0 0.0
  %5499 = vmatpush1.msra.mxu0 0.0
  %5500 = vmatprep.subr.mxu0 0.0
  %5501 = vmatpush1.msra.mxu0 0.0
  %5502 = vmatprep.subr.mxu0 0.0
  %5503 = vmatpush1.msra.mxu0 0.0
  %5504 = vmatprep.mubr.f32.mxu0 0.0
  %5505 = vmatmul.mubr.f32.gmra.mrb[0].mxu0 %v5438
  %v5506 = vpop.f32.mrb[0].mxu0
  %v5507 = vadd.f32 0.0, %v5506
  %v5508 = vpop.f32.mrb[0].mxu0
  %5509 = vdwg.mxu0
  %v5510 = vadd.f32 %v5400, %v5507
  %v5511 = vtanh.pop %v5510
  %v5512 = vmul.f32 %v5511, 0.5
  %v5513 = vadd.f32 %v5512, 0.5
  %v5514 = vmul.f32 %v5513, 0.0
  %5516 = vrot.lane.b32.xlu0 %v5511, 32
  %v5517 = vpop.permute.xlu0 %5516
  %v5519 = vmul.f32 %v5513, %v5517
  %5521 = vrot.lane.b32.xlu0 %v5519, 32
  %v5522 = vpop.permute.xlu0 %5521
  %v5524 = vadd.f32 %v5514, %v5522
  %v5525 = vtanh.pop %v5524
  %5527 = vrot.lane.b32.xlu0 %v5525, 32
  %v5528 = vpop.permute.xlu0 %5527
  %v5530 = vmul.f32 %v5513, %v5528
  %5532 = vrot.lane.b32.xlu0 %v5530, 64
  %v5533 = vpop.permute.xlu0 %5532
  %v5534 = vsel %vm329, %v5533, 0
  %5536 = vmatprep.subr.mxu0 0.0
  %5537 = vmatpush1.msra.mxu0 %v5316
  %5538 = vmatprep.subr.mxu0 0.0
  %5539 = vmatpush1.msra.mxu0 %v5317
  %5540 = vmatprep.subr.mxu0 0.0
  %5541 = vmatpush1.msra.mxu0 %v5318
  %5542 = vmatprep.subr.mxu0 0.0
  %5543 = vmatpush1.msra.mxu0 %v5319
  %5544 = vmatprep.subr.mxu0 0.0
  %5545 = vmatpush1.msra.mxu0 0.0
  %5546 = vmatprep.subr.mxu0 0.0
  %5547 = vmatpush1.msra.mxu0 0.0
  %5548 = vmatprep.subr.mxu0 0.0
  %5549 = vmatpush1.msra.mxu0 0.0
  %5550 = vmatprep.subr.mxu0 0.0
  %5551 = vmatpush1.msra.mxu0 0.0
  %5552 = vmatprep.subr.mxu0 0.0
  %5553 = vmatpush1.msra.mxu0 0.0
  %5554 = vmatprep.subr.mxu0 0.0
  %5555 = vmatpush1.msra.mxu0 0.0
  %5556 = vmatprep.subr.mxu0 0.0
  %5557 = vmatpush1.msra.mxu0 0.0
  %5558 = vmatprep.subr.mxu0 0.0
  %5559 = vmatpush1.msra.mxu0 0.0
  %5560 = vmatprep.subr.mxu0 0.0
  %5561 = vmatpush1.msra.mxu0 0.0
  %5562 = vmatprep.subr.mxu0 0.0
  %5563 = vmatpush1.msra.mxu0 0.0
  %5564 = vmatprep.subr.mxu0 0.0
  %5565 = vmatpush1.msra.mxu0 0.0
  %5566 = vmatprep.subr.mxu0 0.0
  %5567 = vmatpush1.msra.mxu0 0.0
  %5568 = vmatprep.subr.mxu0 0.0
  %5569 = vmatpush1.msra.mxu0 0.0
  %5570 = vmatprep.subr.mxu0 0.0
  %5571 = vmatpush1.msra.mxu0 0.0
  %5572 = vmatprep.subr.mxu0 0.0
  %5573 = vmatpush1.msra.mxu0 0.0
  %5574 = vmatprep.subr.mxu0 0.0
  %5575 = vmatpush1.msra.mxu0 0.0
  %5576 = vmatprep.subr.mxu0 0.0
  %5577 = vmatpush1.msra.mxu0 0.0
  %5578 = vmatprep.subr.mxu0 0.0
  %5579 = vmatpush1.msra.mxu0 0.0
  %5580 = vmatprep.subr.mxu0 0.0
  %5581 = vmatpush1.msra.mxu0 0.0
  %5582 = vmatprep.subr.mxu0 0.0
  %5583 = vmatpush1.msra.mxu0 0.0
  %5584 = vmatprep.subr.mxu0 0.0
  %5585 = vmatpush1.msra.mxu0 0.0
  %5586 = vmatprep.subr.mxu0 0.0
  %5587 = vmatpush1.msra.mxu0 0.0
  %5588 = vmatprep.subr.mxu0 0.0
  %5589 = vmatpush1.msra.mxu0 0.0
  %5590 = vmatprep.subr.mxu0 0.0
  %5591 = vmatpush1.msra.mxu0 0.0
  %5592 = vmatprep.subr.mxu0 0.0
  %5593 = vmatpush1.msra.mxu0 0.0
  %5594 = vmatprep.subr.mxu0 0.0
  %5595 = vmatpush1.msra.mxu0 0.0
  %5596 = vmatprep.subr.mxu0 0.0
  %5597 = vmatpush1.msra.mxu0 0.0
  %5598 = vmatprep.subr.mxu0 0.0
  %5599 = vmatpush1.msra.mxu0 0.0
  %5600 = vmatprep.mubr.f32.mxu0 0.0
  %5601 = vmatmul.mubr.f32.gmra.mrb[0].mxu0 %v5534
  %v5602 = vpop.f32.mrb[0].mxu0
  %v5603 = vadd.f32 0.0, %v5602
  %v5604 = vpop.f32.mrb[0].mxu0
  %5605 = vdwg.mxu0
  %v5606 = vadd.f32 %v5405, %v5603
  %v5607 = vtanh.pop %v5606
  %v5608 = vmul.f32 %v5607, 0.5
  %v5609 = vadd.f32 %v5608, 0.5
  %v5610 = vmul.f32 %v5609, %v5524
  %5612 = vrot.lane.b32.xlu0 %v5607, 32
  %v5613 = vpop.permute.xlu0 %5612
  %v5615 = vmul.f32 %v5609, %v5613
  %5617 = vrot.lane.b32.xlu0 %v5615, 32
  %v5618 = vpop.permute.xlu0 %5617
  %v5620 = vadd.f32 %v5610, %v5618
  %v5621 = vtanh.pop %v5620
  %5623 = vrot.lane.b32.xlu0 %v5621, 32
  %v5624 = vpop.permute.xlu0 %5623
  %v5626 = vmul.f32 %v5609, %v5624
  %5628 = vrot.lane.b32.xlu0 %v5626, 64
  %v5629 = vpop.permute.xlu0 %5628
  %v5630 = vsel %vm329, %v5629, 0
  %5632 = vmatprep.subr.mxu0 0.0
  %5633 = vmatpush1.msra.mxu0 %v5316
  %5634 = vmatprep.subr.mxu0 0.0
  %5635 = vmatpush1.msra.mxu0 %v5317
  %5636 = vmatprep.subr.mxu0 0.0
  %5637 = vmatpush1.msra.mxu0 %v5318
  %5638 = vmatprep.subr.mxu0 0.0
  %5639 = vmatpush1.msra.mxu0 %v5319
  %5640 = vmatprep.subr.mxu0 0.0
  %5641 = vmatpush1.msra.mxu0 0.0
  %5642 = vmatprep.subr.mxu0 0.0
  %5643 = vmatpush1.msra.mxu0 0.0
  %5644 = vmatprep.subr.mxu0 0.0
  %5645 = vmatpush1.msra.mxu0 0.0
  %5646 = vmatprep.subr.mxu0 0.0
  %5647 = vmatpush1.msra.mxu0 0.0
  %5648 = vmatprep.subr.mxu0 0.0
  %5649 = vmatpush1.msra.mxu0 0.0
  %5650 = vmatprep.subr.mxu0 0.0
  %5651 = vmatpush1.msra.mxu0 0.0
  %5652 = vmatprep.subr.mxu0 0.0
  %5653 = vmatpush1.msra.mxu0 0.0
  %5654 = vmatprep.subr.mxu0 0.0
  %5655 = vmatpush1.msra.mxu0 0.0
  %5656 = vmatprep.subr.mxu0 0.0
  %5657 = vmatpush1.msra.mxu0 0.0
  %5658 = vmatprep.subr.mxu0 0.0
  %5659 = vmatpush1.msra.mxu0 0.0
  %5660 = vmatprep.subr.mxu0 0.0
  %5661 = vmatpush1.msra.mxu0 0.0
  %5662 = vmatprep.subr.mxu0 0.0
  %5663 = vmatpush1.msra.mxu0 0.0
  %5664 = vmatprep.subr.mxu0 0.0
  %5665 = vmatpush1.msra.mxu0 0.0
  %5666 = vmatprep.subr.mxu0 0.0
  %5667 = vmatpush1.msra.mxu0 0.0
  %5668 = vmatprep.subr.mxu0 0.0
  %5669 = vmatpush1.msra.mxu0 0.0
  %5670 = vmatprep.subr.mxu0 0.0
  %5671 = vmatpush1.msra.mxu0 0.0
  %5672 = vmatprep.subr.mxu0 0.0
  %5673 = vmatpush1.msra.mxu0 0.0
  %5674 = vmatprep.subr.mxu0 0.0
  %5675 = vmatpush1.msra.mxu0 0.0
  %5676 = vmatprep.subr.mxu0 0.0
  %5677 = vmatpush1.msra.mxu0 0.0
  %5678 = vmatprep.subr.mxu0 0.0
  %5679 = vmatpush1.msra.mxu0 0.0
  %5680 = vmatprep.subr.mxu0 0.0
  %5681 = vmatpush1.msra.mxu0 0.0
  %5682 = vmatprep.subr.mxu0 0.0
  %5683 = vmatpush1.msra.mxu0 0.0
  %5684 = vmatprep.subr.mxu0 0.0
  %5685 = vmatpush1.msra.mxu0 0.0
  %5686 = vmatprep.subr.mxu0 0.0
  %5687 = vmatpush1.msra.mxu0 0.0
  %5688 = vmatprep.subr.mxu0 0.0
  %5689 = vmatpush1.msra.mxu0 0.0
  %5690 = vmatprep.subr.mxu0 0.0
  %5691 = vmatpush1.msra.mxu0 0.0
  %5692 = vmatprep.subr.mxu0 0.0
  %5693 = vmatpush1.msra.mxu0 0.0
  %5694 = vmatprep.subr.mxu0 0.0
  %5695 = vmatpush1.msra.mxu0 0.0
  %5696 = vmatprep.mubr.f32.mxu0 0.0
  %5697 = vmatmul.mubr.f32.gmra.mrb[0].mxu0 %v5630
  %v5698 = vpop.f32.mrb[0].mxu0
  %v5699 = vadd.f32 0.0, %v5698
  %v5700 = vpop.f32.mrb[0].mxu0
  %5701 = vdwg.mxu0
  %v5702 = vadd.f32 %v5410, %v5699
  %v5703 = vtanh.pop %v5702
  %v5704 = vmul.f32 %v5703, 0.5
  %v5705 = vadd.f32 %v5704, 0.5
  %v5706 = vmul.f32 %v5705, %v5620
  %5708 = vrot.lane.b32.xlu0 %v5703, 32
  %v5709 = vpop.permute.xlu0 %5708
  %v5711 = vmul.f32 %v5705, %v5709
  %5713 = vrot.lane.b32.xlu0 %v5711, 32
  %v5714 = vpop.permute.xlu0 %5713
  %v5716 = vadd.f32 %v5706, %v5714
  %v5717 = vtanh.pop %v5716
  %5719 = vrot.lane.b32.xlu0 %v5717, 32
  %v5720 = vpop.permute.xlu0 %5719
  %v5722 = vmul.f32 %v5705, %v5720
  %5724 = vrot.lane.b32.xlu0 %v5722, 64
  %v5725 = vpop.permute.xlu0 %5724
  %v5726 = vsel %vm329, %v5725, 0
  %5728 = vmatprep.subr.mxu0 0.0
  %5729 = vmatpush1.msra.mxu0 %v5316
  %5730 = vmatprep.subr.mxu0 0.0
  %5731 = vmatpush1.msra.mxu0 %v5317
  %5732 = vmatprep.subr.mxu0 0.0
  %5733 = vmatpush1.msra.mxu0 %v5318
  %5734 = vmatprep.subr.mxu0 0.0
  %5735 = vmatpush1.msra.mxu0 %v5319
  %5736 = vmatprep.subr.mxu0 0.0
  %5737 = vmatpush1.msra.mxu0 0.0
  %5738 = vmatprep.subr.mxu0 0.0
  %5739 = vmatpush1.msra.mxu0 0.0
  %5740 = vmatprep.subr.mxu0 0.0
  %5741 = vmatpush1.msra.mxu0 0.0
  %5742 = vmatprep.subr.mxu0 0.0
  %5743 = vmatpush1.msra.mxu0 0.0
  %5744 = vmatprep.subr.mxu0 0.0
  %5745 = vmatpush1.msra.mxu0 0.0
  %5746 = vmatprep.subr.mxu0 0.0
  %5747 = vmatpush1.msra.mxu0 0.0
  %5748 = vmatprep.subr.mxu0 0.0
  %5749 = vmatpush1.msra.mxu0 0.0
  %5750 = vmatprep.subr.mxu0 0.0
  %5751 = vmatpush1.msra.mxu0 0.0
  %5752 = vmatprep.subr.mxu0 0.0
  %5753 = vmatpush1.msra.mxu0 0.0
  %5754 = vmatprep.subr.mxu0 0.0
  %5755 = vmatpush1.msra.mxu0 0.0
  %5756 = vmatprep.subr.mxu0 0.0
  %5757 = vmatpush1.msra.mxu0 0.0
  %5758 = vmatprep.subr.mxu0 0.0
  %5759 = vmatpush1.msra.mxu0 0.0
  %5760 = vmatprep.subr.mxu0 0.0
  %5761 = vmatpush1.msra.mxu0 0.0
  %5762 = vmatprep.subr.mxu0 0.0
  %5763 = vmatpush1.msra.mxu0 0.0
  %5764 = vmatprep.subr.mxu0 0.0
  %5765 = vmatpush1.msra.mxu0 0.0
  %5766 = vmatprep.subr.mxu0 0.0
  %5767 = vmatpush1.msra.mxu0 0.0
  %5768 = vmatprep.subr.mxu0 0.0
  %5769 = vmatpush1.msra.mxu0 0.0
  %5770 = vmatprep.subr.mxu0 0.0
  %5771 = vmatpush1.msra.mxu0 0.0
  %5772 = vmatprep.subr.mxu0 0.0
  %5773 = vmatpush1.msra.mxu0 0.0
  %5774 = vmatprep.subr.mxu0 0.0
  %5775 = vmatpush1.msra.mxu0 0.0
  %5776 = vmatprep.subr.mxu0 0.0
  %5777 = vmatpush1.msra.mxu0 0.0
  %5778 = vmatprep.subr.mxu0 0.0
  %5779 = vmatpush1.msra.mxu0 0.0
  %5780 = vmatprep.subr.mxu0 0.0
  %5781 = vmatpush1.msra.mxu0 0.0
  %5782 = vmatprep.subr.mxu0 0.0
  %5783 = vmatpush1.msra.mxu0 0.0
  %5784 = vmatprep.subr.mxu0 0.0
  %5785 = vmatpush1.msra.mxu0 0.0
  %5786 = vmatprep.subr.mxu0 0.0
  %5787 = vmatpush1.msra.mxu0 0.0
  %5788 = vmatprep.subr.mxu0 0.0
  %5789 = vmatpush1.msra.mxu0 0.0
  %5790 = vmatprep.subr.mxu0 0.0
  %5791 = vmatpush1.msra.mxu0 0.0
  %5792 = vmatprep.mubr.f32.mxu0 0.0
  %5793 = vmatmul.mubr.f32.gmra.mrb[0].mxu0 %v5726
  %v5794 = vpop.f32.mrb[0].mxu0
  %v5795 = vadd.f32 0.0, %v5794
  %v5796 = vpop.f32.mrb[0].mxu0
  %5797 = vdwg.mxu0
  %v5798 = vadd.f32 %v5415, %v5795
  %v5799 = vtanh.pop %v5798
  %v5800 = vmul.f32 %v5799, 0.5
  %v5801 = vadd.f32 %v5800, 0.5
  %v5802 = vmul.f32 %v5801, %v5716
  %5804 = vrot.lane.b32.xlu0 %v5799, 32
  %v5805 = vpop.permute.xlu0 %5804
  %v5807 = vmul.f32 %v5801, %v5805
  %5809 = vrot.lane.b32.xlu0 %v5807, 32
  %v5810 = vpop.permute.xlu0 %5809
  %v5812 = vadd.f32 %v5802, %v5810
  %v5813 = vtanh.pop %v5812
  %5815 = vrot.lane.b32.xlu0 %v5813, 32
  %v5816 = vpop.permute.xlu0 %5815
  %v5818 = vmul.f32 %v5801, %v5816
  %5820 = vrot.lane.b32.xlu0 %v5818, 64
  %v5821 = vpop.permute.xlu0 %5820
  %v5822 = vsel %vm329, %v5821, 0
  %5824 = vmatprep.subr.mxu0 0.0
  %5825 = vmatpush1.msra.mxu0 %v5316
  %5826 = vmatprep.subr.mxu0 0.0
  %5827 = vmatpush1.msra.mxu0 %v5317
  %5828 = vmatprep.subr.mxu0 0.0
  %5829 = vmatpush1.msra.mxu0 %v5318
  %5830 = vmatprep.subr.mxu0 0.0
  %5831 = vmatpush1.msra.mxu0 %v5319
  %5832 = vmatprep.subr.mxu0 0.0
  %5833 = vmatpush1.msra.mxu0 0.0
  %5834 = vmatprep.subr.mxu0 0.0
  %5835 = vmatpush1.msra.mxu0 0.0
  %5836 = vmatprep.subr.mxu0 0.0
  %5837 = vmatpush1.msra.mxu0 0.0
  %5838 = vmatprep.subr.mxu0 0.0
  %5839 = vmatpush1.msra.mxu0 0.0
  %5840 = vmatprep.subr.mxu0 0.0
  %5841 = vmatpush1.msra.mxu0 0.0
  %5842 = vmatprep.subr.mxu0 0.0
  %5843 = vmatpush1.msra.mxu0 0.0
  %5844 = vmatprep.subr.mxu0 0.0
  %5845 = vmatpush1.msra.mxu0 0.0
  %5846 = vmatprep.subr.mxu0 0.0
  %5847 = vmatpush1.msra.mxu0 0.0
  %5848 = vmatprep.subr.mxu0 0.0
  %5849 = vmatpush1.msra.mxu0 0.0
  %5850 = vmatprep.subr.mxu0 0.0
  %5851 = vmatpush1.msra.mxu0 0.0
  %5852 = vmatprep.subr.mxu0 0.0
  %5853 = vmatpush1.msra.mxu0 0.0
  %5854 = vmatprep.subr.mxu0 0.0
  %5855 = vmatpush1.msra.mxu0 0.0
  %5856 = vmatprep.subr.mxu0 0.0
  %5857 = vmatpush1.msra.mxu0 0.0
  %5858 = vmatprep.subr.mxu0 0.0
  %5859 = vmatpush1.msra.mxu0 0.0
  %5860 = vmatprep.subr.mxu0 0.0
  %5861 = vmatpush1.msra.mxu0 0.0
  %5862 = vmatprep.subr.mxu0 0.0
  %5863 = vmatpush1.msra.mxu0 0.0
  %5864 = vmatprep.subr.mxu0 0.0
  %5865 = vmatpush1.msra.mxu0 0.0
  %5866 = vmatprep.subr.mxu0 0.0
  %5867 = vmatpush1.msra.mxu0 0.0
  %5868 = vmatprep.subr.mxu0 0.0
  %5869 = vmatpush1.msra.mxu0 0.0
  %5870 = vmatprep.subr.mxu0 0.0
  %5871 = vmatpush1.msra.mxu0 0.0
  %5872 = vmatprep.subr.mxu0 0.0
  %5873 = vmatpush1.msra.mxu0 0.0
  %5874 = vmatprep.subr.mxu0 0.0
  %5875 = vmatpush1.msra.mxu0 0.0
  %5876 = vmatprep.subr.mxu0 0.0
  %5877 = vmatpush1.msra.mxu0 0.0
  %5878 = vmatprep.subr.mxu0 0.0
  %5879 = vmatpush1.msra.mxu0 0.0
  %5880 = vmatprep.subr.mxu0 0.0
  %5881 = vmatpush1.msra.mxu0 0.0
  %5882 = vmatprep.subr.mxu0 0.0
  %5883 = vmatpush1.msra.mxu0 0.0
  %5884 = vmatprep.subr.mxu0 0.0
  %5885 = vmatpush1.msra.mxu0 0.0
  %5886 = vmatprep.subr.mxu0 0.0
  %5887 = vmatpush1.msra.mxu0 0.0
  %5888 = vmatprep.mubr.f32.mxu0 0.0
  %5889 = vmatmul.mubr.f32.gmra.mrb[0].mxu0 %v5822
  %v5890 = vpop.f32.mrb[0].mxu0
  %v5891 = vadd.f32 0.0, %v5890
  %v5892 = vpop.f32.mrb[0].mxu0
  %5893 = vdwg.mxu0
  %v5894 = vadd.f32 %v5420, %v5891
  %v5895 = vtanh.pop %v5894
  %v5896 = vmul.f32 %v5895, 0.5
  %v5897 = vadd.f32 %v5896, 0.5
  %v5898 = vmul.f32 %v5897, %v5812
  %5900 = vrot.lane.b32.xlu0 %v5895, 32
  %v5901 = vpop.permute.xlu0 %5900
  %v5903 = vmul.f32 %v5897, %v5901
  %5905 = vrot.lane.b32.xlu0 %v5903, 32
  %v5906 = vpop.permute.xlu0 %5905
  %v5908 = vadd.f32 %v5898, %v5906
  %v5909 = vtanh.pop %v5908
  %5911 = vrot.lane.b32.xlu0 %v5909, 32
  %v5912 = vpop.permute.xlu0 %5911
  %v5914 = vmul.f32 %v5897, %v5912
  %5916 = vrot.lane.b32.xlu0 %v5914, 64
  %v5917 = vpop.permute.xlu0 %5916
  %v5918 = vsel %vm329, %v5917, 0
  %5920 = vmatprep.subr.mxu0 0.0
  %5921 = vmatpush1.msra.mxu0 %v5316
  %5922 = vmatprep.subr.mxu0 0.0
  %5923 = vmatpush1.msra.mxu0 %v5317
  %5924 = vmatprep.subr.mxu0 0.0
  %5925 = vmatpush1.msra.mxu0 %v5318
  %5926 = vmatprep.subr.mxu0 0.0
  %5927 = vmatpush1.msra.mxu0 %v5319
  %5928 = vmatprep.subr.mxu0 0.0
  %5929 = vmatpush1.msra.mxu0 0.0
  %5930 = vmatprep.subr.mxu0 0.0
  %5931 = vmatpush1.msra.mxu0 0.0
  %5932 = vmatprep.subr.mxu0 0.0
  %5933 = vmatpush1.msra.mxu0 0.0
  %5934 = vmatprep.subr.mxu0 0.0
  %5935 = vmatpush1.msra.mxu0 0.0
  %5936 = vmatprep.subr.mxu0 0.0
  %5937 = vmatpush1.msra.mxu0 0.0
  %5938 = vmatprep.subr.mxu0 0.0
  %5939 = vmatpush1.msra.mxu0 0.0
  %5940 = vmatprep.subr.mxu0 0.0
  %5941 = vmatpush1.msra.mxu0 0.0
  %5942 = vmatprep.subr.mxu0 0.0
  %5943 = vmatpush1.msra.mxu0 0.0
  %5944 = vmatprep.subr.mxu0 0.0
  %5945 = vmatpush1.msra.mxu0 0.0
  %5946 = vmatprep.subr.mxu0 0.0
  %5947 = vmatpush1.msra.mxu0 0.0
  %5948 = vmatprep.subr.mxu0 0.0
  %5949 = vmatpush1.msra.mxu0 0.0
  %5950 = vmatprep.subr.mxu0 0.0
  %5951 = vmatpush1.msra.mxu0 0.0
  %5952 = vmatprep.subr.mxu0 0.0
  %5953 = vmatpush1.msra.mxu0 0.0
  %5954 = vmatprep.subr.mxu0 0.0
  %5955 = vmatpush1.msra.mxu0 0.0
  %5956 = vmatprep.subr.mxu0 0.0
  %5957 = vmatpush1.msra.mxu0 0.0
  %5958 = vmatprep.subr.mxu0 0.0
  %5959 = vmatpush1.msra.mxu0 0.0
  %5960 = vmatprep.subr.mxu0 0.0
  %5961 = vmatpush1.msra.mxu0 0.0
  %5962 = vmatprep.subr.mxu0 0.0
  %5963 = vmatpush1.msra.mxu0 0.0
  %5964 = vmatprep.subr.mxu0 0.0
  %5965 = vmatpush1.msra.mxu0 0.0
  %5966 = vmatprep.subr.mxu0 0.0
  %5967 = vmatpush1.msra.mxu0 0.0
  %5968 = vmatprep.subr.mxu0 0.0
  %5969 = vmatpush1.msra.mxu0 0.0
  %5970 = vmatprep.subr.mxu0 0.0
  %5971 = vmatpush1.msra.mxu0 0.0
  %5972 = vmatprep.subr.mxu0 0.0
  %5973 = vmatpush1.msra.mxu0 0.0
  %5974 = vmatprep.subr.mxu0 0.0
  %5975 = vmatpush1.msra.mxu0 0.0
  %5976 = vmatprep.subr.mxu0 0.0
  %5977 = vmatpush1.msra.mxu0 0.0
  %5978 = vmatprep.subr.mxu0 0.0
  %5979 = vmatpush1.msra.mxu0 0.0
  %5980 = vmatprep.subr.mxu0 0.0
  %5981 = vmatpush1.msra.mxu0 0.0
  %5982 = vmatprep.subr.mxu0 0.0
  %5983 = vmatpush1.msra.mxu0 0.0
  %5984 = vmatprep.mubr.f32.mxu0 0.0
  %5985 = vmatmul.mubr.f32.gmra.mrb[0].mxu0 %v5918
  %v5986 = vpop.f32.mrb[0].mxu0
  %v5987 = vadd.f32 0.0, %v5986
  %v5988 = vpop.f32.mrb[0].mxu0
  %5989 = vdwg.mxu0
  %v5990 = vadd.f32 %v5425, %v5987
  %v5991 = vtanh.pop %v5990
  %v5992 = vmul.f32 %v5991, 0.5
  %v5993 = vadd.f32 %v5992, 0.5
  %v5994 = vmul.f32 %v5993, %v5908
  %5996 = vrot.lane.b32.xlu0 %v5991, 32
  %v5997 = vpop.permute.xlu0 %5996
  %v5999 = vmul.f32 %v5993, %v5997
  %6001 = vrot.lane.b32.xlu0 %v5999, 32
  %v6002 = vpop.permute.xlu0 %6001
  %v6004 = vadd.f32 %v5994, %v6002
  %v6005 = vtanh.pop %v6004
  %6007 = vrot.lane.b32.xlu0 %v6005, 32
  %v6008 = vpop.permute.xlu0 %6007
  %v6010 = vmul.f32 %v5993, %v6008
  %6012 = vrot.lane.b32.xlu0 %v6010, 64
  %v6013 = vpop.permute.xlu0 %6012
  %v6014 = vsel %vm329, %v6013, 0
  %6016 = vmatprep.subr.mxu0 0.0
  %6017 = vmatpush1.msra.mxu0 %v5316
  %6018 = vmatprep.subr.mxu0 0.0
  %6019 = vmatpush1.msra.mxu0 %v5317
  %6020 = vmatprep.subr.mxu0 0.0
  %6021 = vmatpush1.msra.mxu0 %v5318
  %6022 = vmatprep.subr.mxu0 0.0
  %6023 = vmatpush1.msra.mxu0 %v5319
  %6024 = vmatprep.subr.mxu0 0.0
  %6025 = vmatpush1.msra.mxu0 0.0
  %6026 = vmatprep.subr.mxu0 0.0
  %6027 = vmatpush1.msra.mxu0 0.0
  %6028 = vmatprep.subr.mxu0 0.0
  %6029 = vmatpush1.msra.mxu0 0.0
  %6030 = vmatprep.subr.mxu0 0.0
  %6031 = vmatpush1.msra.mxu0 0.0
  %6032 = vmatprep.subr.mxu0 0.0
  %6033 = vmatpush1.msra.mxu0 0.0
  %6034 = vmatprep.subr.mxu0 0.0
  %6035 = vmatpush1.msra.mxu0 0.0
  %6036 = vmatprep.subr.mxu0 0.0
  %6037 = vmatpush1.msra.mxu0 0.0
  %6038 = vmatprep.subr.mxu0 0.0
  %6039 = vmatpush1.msra.mxu0 0.0
  %6040 = vmatprep.subr.mxu0 0.0
  %6041 = vmatpush1.msra.mxu0 0.0
  %6042 = vmatprep.subr.mxu0 0.0
  %6043 = vmatpush1.msra.mxu0 0.0
  %6044 = vmatprep.subr.mxu0 0.0
  %6045 = vmatpush1.msra.mxu0 0.0
  %6046 = vmatprep.subr.mxu0 0.0
  %6047 = vmatpush1.msra.mxu0 0.0
  %6048 = vmatprep.subr.mxu0 0.0
  %6049 = vmatpush1.msra.mxu0 0.0
  %6050 = vmatprep.subr.mxu0 0.0
  %6051 = vmatpush1.msra.mxu0 0.0
  %6052 = vmatprep.subr.mxu0 0.0
  %6053 = vmatpush1.msra.mxu0 0.0
  %6054 = vmatprep.subr.mxu0 0.0
  %6055 = vmatpush1.msra.mxu0 0.0
  %6056 = vmatprep.subr.mxu0 0.0
  %6057 = vmatpush1.msra.mxu0 0.0
  %6058 = vmatprep.subr.mxu0 0.0
  %6059 = vmatpush1.msra.mxu0 0.0
  %6060 = vmatprep.subr.mxu0 0.0
  %6061 = vmatpush1.msra.mxu0 0.0
  %6062 = vmatprep.subr.mxu0 0.0
  %6063 = vmatpush1.msra.mxu0 0.0
  %6064 = vmatprep.subr.mxu0 0.0
  %6065 = vmatpush1.msra.mxu0 0.0
  %6066 = vmatprep.subr.mxu0 0.0
  %6067 = vmatpush1.msra.mxu0 0.0
  %6068 = vmatprep.subr.mxu0 0.0
  %6069 = vmatpush1.msra.mxu0 0.0
  %6070 = vmatprep.subr.mxu0 0.0
  %6071 = vmatpush1.msra.mxu0 0.0
  %6072 = vmatprep.subr.mxu0 0.0
  %6073 = vmatpush1.msra.mxu0 0.0
  %6074 = vmatprep.subr.mxu0 0.0
  %6075 = vmatpush1.msra.mxu0 0.0
  %6076 = vmatprep.subr.mxu0 0.0
  %6077 = vmatpush1.msra.mxu0 0.0
  %6078 = vmatprep.subr.mxu0 0.0
  %6079 = vmatpush1.msra.mxu0 0.0
  %6080 = vmatprep.mubr.f32.mxu0 0.0
  %6081 = vmatmul.mubr.f32.gmra.mrb[0].mxu0 %v6014
  %v6082 = vpop.f32.mrb[0].mxu0
  %v6083 = vadd.f32 0.0, %v6082
  %v6084 = vpop.f32.mrb[0].mxu0
  %6085 = vdwg.mxu0
  %v6086 = vadd.f32 %v5430, %v6083
  %v6087 = vtanh.pop %v6086
  %v6088 = vmul.f32 %v6087, 0.5
  %v6089 = vadd.f32 %v6088, 0.5
  %v6090 = vmul.f32 %v6089, %v6004
  %6092 = vrot.lane.b32.xlu0 %v6087, 32
  %v6093 = vpop.permute.xlu0 %6092
  %v6095 = vmul.f32 %v6089, %v6093
  %6097 = vrot.lane.b32.xlu0 %v6095, 32
  %v6098 = vpop.permute.xlu0 %6097
  %v6100 = vadd.f32 %v6090, %v6098
  %v6101 = vtanh.pop %v6100
  %6103 = vrot.lane.b32.xlu0 %v6101, 32
  %v6104 = vpop.permute.xlu0 %6103
  %v6106 = vmul.f32 %v6089, %v6104
  %6108 = vrot.lane.b32.xlu0 %v6106, 64
  %v6109 = vpop.permute.xlu0 %6108
  %v6110 = vsel %vm329, %v6109, 0
  %6112 = vmatprep.subr.mxu0 0.0
  %6113 = vmatpush1.msra.mxu0 %v5316
  %6114 = vmatprep.subr.mxu0 0.0
  %6115 = vmatpush1.msra.mxu0 %v5317
  %6116 = vmatprep.subr.mxu0 0.0
  %6117 = vmatpush1.msra.mxu0 %v5318
  %6118 = vmatprep.subr.mxu0 0.0
  %6119 = vmatpush1.msra.mxu0 %v5319
  %6120 = vmatprep.subr.mxu0 0.0
  %6121 = vmatpush1.msra.mxu0 0.0
  %6122 = vmatprep.subr.mxu0 0.0
  %6123 = vmatpush1.msra.mxu0 0.0
  %6124 = vmatprep.subr.mxu0 0.0
  %6125 = vmatpush1.msra.mxu0 0.0
  %6126 = vmatprep.subr.mxu0 0.0
  %6127 = vmatpush1.msra.mxu0 0.0
  %6128 = vmatprep.subr.mxu0 0.0
  %6129 = vmatpush1.msra.mxu0 0.0
  %6130 = vmatprep.subr.mxu0 0.0
  %6131 = vmatpush1.msra.mxu0 0.0
  %6132 = vmatprep.subr.mxu0 0.0
  %6133 = vmatpush1.msra.mxu0 0.0
  %6134 = vmatprep.subr.mxu0 0.0
  %6135 = vmatpush1.msra.mxu0 0.0
  %6136 = vmatprep.subr.mxu0 0.0
  %6137 = vmatpush1.msra.mxu0 0.0
  %6138 = vmatprep.subr.mxu0 0.0
  %6139 = vmatpush1.msra.mxu0 0.0
  %6140 = vmatprep.subr.mxu0 0.0
  %6141 = vmatpush1.msra.mxu0 0.0
  %6142 = vmatprep.subr.mxu0 0.0
  %6143 = vmatpush1.msra.mxu0 0.0
  %6144 = vmatprep.subr.mxu0 0.0
  %6145 = vmatpush1.msra.mxu0 0.0
  %6146 = vmatprep.subr.mxu0 0.0
  %6147 = vmatpush1.msra.mxu0 0.0
  %6148 = vmatprep.subr.mxu0 0.0
  %6149 = vmatpush1.msra.mxu0 0.0
  %6150 = vmatprep.subr.mxu0 0.0
  %6151 = vmatpush1.msra.mxu0 0.0
  %6152 = vmatprep.subr.mxu0 0.0
  %6153 = vmatpush1.msra.mxu0 0.0
  %6154 = vmatprep.subr.mxu0 0.0
  %6155 = vmatpush1.msra.mxu0 0.0
  %6156 = vmatprep.subr.mxu0 0.0
  %6157 = vmatpush1.msra.mxu0 0.0
  %6158 = vmatprep.subr.mxu0 0.0
  %6159 = vmatpush1.msra.mxu0 0.0
  %6160 = vmatprep.subr.mxu0 0.0
  %6161 = vmatpush1.msra.mxu0 0.0
  %6162 = vmatprep.subr.mxu0 0.0
  %6163 = vmatpush1.msra.mxu0 0.0
  %6164 = vmatprep.subr.mxu0 0.0
  %6165 = vmatpush1.msra.mxu0 0.0
  %6166 = vmatprep.subr.mxu0 0.0
  %6167 = vmatpush1.msra.mxu0 0.0
  %6168 = vmatprep.subr.mxu0 0.0
  %6169 = vmatpush1.msra.mxu0 0.0
  %6170 = vmatprep.subr.mxu0 0.0
  %6171 = vmatpush1.msra.mxu0 0.0
  %6172 = vmatprep.subr.mxu0 0.0
  %6173 = vmatpush1.msra.mxu0 0.0
  %6174 = vmatprep.subr.mxu0 0.0
  %6175 = vmatpush1.msra.mxu0 0.0
  %6176 = vmatprep.mubr.f32.mxu0 0.0
  %6177 = vmatmul.mubr.f32.gmra.mrb[0].mxu0 %v6110
  %v6178 = vpop.f32.mrb[0].mxu0
  %v6179 = vadd.f32 0.0, %v6178
  %v6180 = vpop.f32.mrb[0].mxu0
  %6181 = vdwg.mxu0
  %v6182 = vadd.f32 %v5435, %v6179
  %v6183 = vtanh.pop %v6182
  %v6184 = vmul.f32 %v6183, 0.5
  %v6185 = vadd.f32 %v6184, 0.5
  %v6186 = vmul.f32 %v6185, %v6100
  %6188 = vrot.lane.b32.xlu0 %v6183, 32
  %v6189 = vpop.permute.xlu0 %6188
  %v6191 = vmul.f32 %v6185, %v6189
  %6193 = vrot.lane.b32.xlu0 %v6191, 32
  %v6194 = vpop.permute.xlu0 %6193
  %v6196 = vadd.f32 %v6186, %v6194
  %v6197 = vtanh.pop %v6196
  %6199 = vrot.lane.b32.xlu0 %v6197, 32
  %v6200 = vpop.permute.xlu0 %6199
  %v6202 = vmul.f32 %v6185, %v6200
  %v6203 = vld [vmem:[%s1] sm:$0xff]
  %v6204 = vld [vmem:[%s4] sm:$0xff]
  %v6205 = vld [vmem:[%s4 + $0x8] sm:$0xff]
  %v6206 = vld [vmem:[%s4 + $0x10] sm:$0xff]
  %v6207 = vld [vmem:[%s4 + $0x18] sm:$0xff]
  %v6208 = vld [vmem:[%s4 + $0x20] sm:$0xff]
  %6210 = vrot.lane.b32.xlu0 %v6202, 64
  %v6211 = vpop.permute.xlu0 %6210
  %v6212 = vsel %vm329, %v6211, 0
  %6214 = vmatprep.subr.mxu0 0.0
  %6215 = vmatpush1.msra.mxu0 %v6205
  %6216 = vmatprep.subr.mxu0 0.0
  %6217 = vmatpush1.msra.mxu0 %v6206
  %6218 = vmatprep.subr.mxu0 0.0
  %6219 = vmatpush1.msra.mxu0 %v6207
  %6220 = vmatprep.subr.mxu0 0.0
  %6221 = vmatpush1.msra.mxu0 %v6208
  %6222 = vmatprep.subr.mxu0 0.0
  %6223 = vmatpush1.msra.mxu0 0.0
  %6224 = vmatprep.subr.mxu0 0.0
  %6225 = vmatpush1.msra.mxu0 0.0
  %6226 = vmatprep.subr.mxu0 0.0
  %6227 = vmatpush1.msra.mxu0 0.0
  %6228 = vmatprep.subr.mxu0 0.0
  %6229 = vmatpush1.msra.mxu0 0.0
  %6230 = vmatprep.subr.mxu0 0.0
  %6231 = vmatpush1.msra.mxu0 0.0
  %6232 = vmatprep.subr.mxu0 0.0
  %6233 = vmatpush1.msra.mxu0 0.0
  %6234 = vmatprep.subr.mxu0 0.0
  %6235 = vmatpush1.msra.mxu0 0.0
  %6236 = vmatprep.subr.mxu0 0.0
  %6237 = vmatpush1.msra.mxu0 0.0
  %6238 = vmatprep.subr.mxu0 0.0
  %6239 = vmatpush1.msra.mxu0 0.0
  %6240 = vmatprep.subr.mxu0 0.0
  %6241 = vmatpush1.msra.mxu0 0.0
  %6242 = vmatprep.subr.mxu0 0.0
  %6243 = vmatpush1.msra.mxu0 0.0
  %6244 = vmatprep.subr.mxu0 0.0
  %6245 = vmatpush1.msra.mxu0 0.0
  %6246 = vmatprep.subr.mxu0 0.0
  %6247 = vmatpush1.msra.mxu0 0.0
  %6248 = vmatprep.subr.mxu0 0.0
  %6249 = vmatpush1.msra.mxu0 0.0
  %6250 = vmatprep.subr.mxu0 0.0
  %6251 = vmatpush1.msra.mxu0 0.0
  %6252 = vmatprep.subr.mxu0 0.0
  %6253 = vmatpush1.msra.mxu0 0.0
  %6254 = vmatprep.subr.mxu0 0.0
  %6255 = vmatpush1.msra.mxu0 0.0
  %6256 = vmatprep.subr.mxu0 0.0
  %6257 = vmatpush1.msra.mxu0 0.0
  %6258 = vmatprep.subr.mxu0 0.0
  %6259 = vmatpush1.msra.mxu0 0.0
  %6260 = vmatprep.subr.mxu0 0.0
  %6261 = vmatpush1.msra.mxu0 0.0
  %6262 = vmatprep.subr.mxu0 0.0
  %6263 = vmatpush1.msra.mxu0 0.0
  %6264 = vmatprep.subr.mxu0 0.0
  %6265 = vmatpush1.msra.mxu0 0.0
  %6266 = vmatprep.subr.mxu0 0.0
  %6267 = vmatpush1.msra.mxu0 0.0
  %6268 = vmatprep.subr.mxu0 0.0
  %6269 = vmatpush1.msra.mxu0 0.0
  %6270 = vmatprep.subr.mxu0 0.0
  %6271 = vmatpush1.msra.mxu0 0.0
  %6272 = vmatprep.subr.mxu0 0.0
  %6273 = vmatpush1.msra.mxu0 0.0
  %6274 = vmatprep.subr.mxu0 0.0
  %6275 = vmatpush1.msra.mxu0 0.0
  %6276 = vmatprep.subr.mxu0 0.0
  %6277 = vmatpush1.msra.mxu0 0.0
  %6278 = vmatprep.mubr.f32.mxu0 0.0
  %6279 = vmatmul.mubr.f32.gmra.mrb[0].mxu0 %v6212
  %v6280 = vpop.f32.mrb[0].mxu0
  %v6281 = vadd.f32 0.0, %v6280
  %v6282 = vpop.f32.mrb[0].mxu0
  %6283 = vdwg.mxu0
  %vm6284 = vcmask 64512
  %v6286 = vsel %vm6284, %v6203, 0
  %6288 = vmatprep.subr.mxu0 0.0
  %6289 = vmatpush1.msra.mxu0 %v6204
  %6290 = vmatprep.subr.mxu0 0.0
  %6291 = vmatpush1.msra.mxu0 0.0
  %6292 = vmatprep.subr.mxu0 0.0
  %6293 = vmatpush1.msra.mxu0 0.0
  %6294 = vmatprep.subr.mxu0 0.0
  %6295 = vmatpush1.msra.mxu0 0.0
  %6296 = vmatprep.subr.mxu0 0.0
  %6297 = vmatpush1.msra.mxu0 0.0
  %6298 = vmatprep.subr.mxu0 0.0
  %6299 = vmatpush1.msra.mxu0 0.0
  %6300 = vmatprep.subr.mxu0 0.0
  %6301 = vmatpush1.msra.mxu0 0.0
  %6302 = vmatprep.subr.mxu0 0.0
  %6303 = vmatpush1.msra.mxu0 0.0
  %6304 = vmatprep.subr.mxu0 0.0
  %6305 = vmatpush1.msra.mxu0 0.0
  %6306 = vmatprep.subr.mxu0 0.0
  %6307 = vmatpush1.msra.mxu0 0.0
  %6308 = vmatprep.subr.mxu0 0.0
  %6309 = vmatpush1.msra.mxu0 0.0
  %6310 = vmatprep.subr.mxu0 0.0
  %6311 = vmatpush1.msra.mxu0 0.0
  %6312 = vmatprep.subr.mxu0 0.0
  %6313 = vmatpush1.msra.mxu0 0.0
  %6314 = vmatprep.subr.mxu0 0.0
  %6315 = vmatpush1.msra.mxu0 0.0
  %6316 = vmatprep.subr.mxu0 0.0
  %6317 = vmatpush1.msra.mxu0 0.0
  %6318 = vmatprep.subr.mxu0 0.0
  %6319 = vmatpush1.msra.mxu0 0.0
  %6320 = vmatprep.subr.mxu0 0.0
  %6321 = vmatpush1.msra.mxu0 0.0
  %6322 = vmatprep.subr.mxu0 0.0
  %6323 = vmatpush1.msra.mxu0 0.0
  %6324 = vmatprep.subr.mxu0 0.0
  %6325 = vmatpush1.msra.mxu0 0.0
  %6326 = vmatprep.subr.mxu0 0.0
  %6327 = vmatpush1.msra.mxu0 0.0
  %6328 = vmatprep.subr.mxu0 0.0
  %6329 = vmatpush1.msra.mxu0 0.0
  %6330 = vmatprep.subr.mxu0 0.0
  %6331 = vmatpush1.msra.mxu0 0.0
  %6332 = vmatprep.subr.mxu0 0.0
  %6333 = vmatpush1.msra.mxu0 0.0
  %6334 = vmatprep.subr.mxu0 0.0
  %6335 = vmatpush1.msra.mxu0 0.0
  %6336 = vmatprep.subr.mxu0 0.0
  %6337 = vmatpush1.msra.mxu0 0.0
  %6338 = vmatprep.subr.mxu0 0.0
  %6339 = vmatpush1.msra.mxu0 0.0
  %6340 = vmatprep.subr.mxu0 0.0
  %6341 = vmatpush1.msra.mxu0 0.0
  %6342 = vmatprep.subr.mxu0 0.0
  %6343 = vmatpush1.msra.mxu0 0.0
  %6344 = vmatprep.subr.mxu0 0.0
  %6345 = vmatpush1.msra.mxu0 0.0
  %6346 = vmatprep.subr.mxu0 0.0
  %6347 = vmatpush1.msra.mxu0 0.0
  %6348 = vmatprep.subr.mxu0 0.0
  %6349 = vmatpush1.msra.mxu0 0.0
  %6350 = vmatprep.subr.mxu0 0.0
  %6351 = vmatpush1.msra.mxu0 0.0
  %6352 = vmatprep.mubr.f32.mxu0 0.0
  %6353 = vmatmul.mubr.f32.gmra.mrb[0].mxu0 %v6286
  %v6354 = vpop.f32.mrb[0].mxu0
  %v6355 = vadd.f32 %v6281, %v6354
  %v6356 = vpop.f32.mrb[0].mxu0
  %6357 = vdwg.mxu0
  %v6358 = vld [vmem:[%s4 + $0x128] sm:$0x1]
  %v6359 = vlaneseq
  %v6360 = vshrl.u32 %v6359, 7
  %v6361 = vsub.s32 0, %v6360
  %v6362 = vrot.slane %v6358, %v6361
  %v6363 = vadd.f32 %v6355, %v6362
  %v6364 = vmax.f32 %v6363, 0.0
  %v6365 = vld [vmem:[%s4 + $0x28] sm:$0xff]
  %v6366 = vld [vmem:[%s4 + $0x30] sm:$0xff]
  %v6367 = vld [vmem:[%s4 + $0x38] sm:$0xff]
  %v6368 = vld [vmem:[%s4 + $0x40] sm:$0xff]
  %v6369 = vld [vmem:[%s4 + $0x48] sm:$0xff]
  %v6370 = vld [vmem:[%s4 + $0x50] sm:$0xff]
  %v6371 = vld [vmem:[%s4 + $0x58] sm:$0xff]
  %v6372 = vld [vmem:[%s4 + $0x60] sm:$0xff]
  %v6373 = vld [vmem:[%s4 + $0x68] sm:$0xff]
  %v6374 = vld [vmem:[%s4 + $0x70] sm:$0xff]
  %v6375 = vld [vmem:[%s4 + $0x78] sm:$0xff]
  %v6376 = vld [vmem:[%s4 + $0x80] sm:$0xff]
  %v6377 = vld [vmem:[%s4 + $0x88] sm:$0xff]
  %v6378 = vld [vmem:[%s4 + $0x90] sm:$0xff]
  %v6379 = vld [vmem:[%s4 + $0x98] sm:$0xff]
  %v6380 = vld [vmem:[%s4 + $0xa0] sm:$0xff]
  %v6381 = vld [vmem:[%s4 + $0x130] sm:$0x1]
  %v6382 = vlaneseq
  %v6383 = vshrl.u32 %v6382, 7
  %v6384 = vsub.s32 0, %v6383
  %v6385 = vrot.slane %v6381, %v6384
  %6386 = vmatprep.subr.mxu0 0.0
  %6387 = vmatpush1.msra.mxu0 %v6365
  %6388 = vmatprep.subr.mxu0 0.0
  %6389 = vmatpush1.msra.mxu0 %v6366
  %6390 = vmatprep.subr.mxu0 0.0
  %6391 = vmatpush1.msra.mxu0 %v6367
  %6392 = vmatprep.subr.mxu0 0.0
  %6393 = vmatpush1.msra.mxu0 %v6368
  %6394 = vmatprep.subr.mxu0 0.0
  %6395 = vmatpush1.msra.mxu0 %v6369
  %6396 = vmatprep.subr.mxu0 0.0
  %6397 = vmatpush1.msra.mxu0 %v6370
  %6398 = vmatprep.subr.mxu0 0.0
  %6399 = vmatpush1.msra.mxu0 %v6371
  %6400 = vmatprep.subr.mxu0 0.0
  %6401 = vmatpush1.msra.mxu0 %v6372
  %6402 = vmatprep.subr.mxu0 0.0
  %6403 = vmatpush1.msra.mxu0 %v6373
  %6404 = vmatprep.subr.mxu0 0.0
  %6405 = vmatpush1.msra.mxu0 %v6374
  %6406 = vmatprep.subr.mxu0 0.0
  %6407 = vmatpush1.msra.mxu0 %v6375
  %6408 = vmatprep.subr.mxu0 0.0
  %6409 = vmatpush1.msra.mxu0 %v6376
  %6410 = vmatprep.subr.mxu0 0.0
  %6411 = vmatpush1.msra.mxu0 %v6377
  %6412 = vmatprep.subr.mxu0 0.0
  %6413 = vmatpush1.msra.mxu0 %v6378
  %6414 = vmatprep.subr.mxu0 0.0
  %6415 = vmatpush1.msra.mxu0 %v6379
  %6416 = vmatprep.subr.mxu0 0.0
  %6417 = vmatpush1.msra.mxu0 %v6380
  %6418 = vmatprep.subr.mxu0 0.0
  %6419 = vmatpush1.msra.mxu0 0.0
  %6420 = vmatprep.subr.mxu0 0.0
  %6421 = vmatpush1.msra.mxu0 0.0
  %6422 = vmatprep.subr.mxu0 0.0
  %6423 = vmatpush1.msra.mxu0 0.0
  %6424 = vmatprep.subr.mxu0 0.0
  %6425 = vmatpush1.msra.mxu0 0.0
  %6426 = vmatprep.subr.mxu0 0.0
  %6427 = vmatpush1.msra.mxu0 0.0
  %6428 = vmatprep.subr.mxu0 0.0
  %6429 = vmatpush1.msra.mxu0 0.0
  %6430 = vmatprep.subr.mxu0 0.0
  %6431 = vmatpush1.msra.mxu0 0.0
  %6432 = vmatprep.subr.mxu0 0.0
  %6433 = vmatpush1.msra.mxu0 0.0
  %6434 = vmatprep.subr.mxu0 0.0
  %6435 = vmatpush1.msra.mxu0 0.0
  %6436 = vmatprep.subr.mxu0 0.0
  %6437 = vmatpush1.msra.mxu0 0.0
  %6438 = vmatprep.subr.mxu0 0.0
  %6439 = vmatpush1.msra.mxu0 0.0
  %6440 = vmatprep.subr.mxu0 0.0
  %6441 = vmatpush1.msra.mxu0 0.0
  %6442 = vmatprep.subr.mxu0 0.0
  %6443 = vmatpush1.msra.mxu0 0.0
  %6444 = vmatprep.subr.mxu0 0.0
  %6445 = vmatpush1.msra.mxu0 0.0
  %6446 = vmatprep.subr.mxu0 0.0
  %6447 = vmatpush1.msra.mxu0 0.0
  %6448 = vmatprep.subr.mxu0 0.0
  %6449 = vmatpush1.msra.mxu0 0.0
  %6450 = vmatprep.mubr.f32.mxu0 0.0
  %6451 = vmatmul.mubr.f32.gmra.mrb[0].mxu0 %v6364
  %v6452 = vpop.f32.mrb[0].mxu0
  %v6453 = vadd.f32 %v6385, %v6452
  %v6454 = vpop.f32.mrb[0].mxu0
  %6455 = vdwg.mxu0
  %v6456 = vmax.f32 %v6453, 0.0
  %v6457 = vld [vmem:[%s4 + $0xa8] sm:$0xff]
  %v6458 = vld [vmem:[%s4 + $0xb0] sm:$0xff]
  %v6459 = vld [vmem:[%s4 + $0xb8] sm:$0xff]
  %v6460 = vld [vmem:[%s4 + $0xc0] sm:$0xff]
  %v6461 = vld [vmem:[%s4 + $0xc8] sm:$0xff]
  %v6462 = vld [vmem:[%s4 + $0xd0] sm:$0xff]
  %v6463 = vld [vmem:[%s4 + $0xd8] sm:$0xff]
  %v6464 = vld [vmem:[%s4 + $0xe0] sm:$0xff]
  %v6465 = vld [vmem:[%s4 + $0xe8] sm:$0xff]
  %v6466 = vld [vmem:[%s4 + $0xf0] sm:$0xff]
  %v6467 = vld [vmem:[%s4 + $0xf8] sm:$0xff]
  %v6468 = vld [vmem:[%s4 + $0x100] sm:$0xff]
  %v6469 = vld [vmem:[%s4 + $0x108] sm:$0xff]
  %v6470 = vld [vmem:[%s4 + $0x110] sm:$0xff]
  %v6471 = vld [vmem:[%s4 + $0x118] sm:$0xff]
  %v6472 = vld [vmem:[%s4 + $0x120] sm:$0xff]
  %v6473 = vld [vmem:[%s4 + $0x138] sm:$0x1]
  %v6474 = vlaneseq
  %v6475 = vshrl.u32 %v6474, 7
  %v6476 = vsub.s32 0, %v6475
  %v6477 = vrot.slane %v6473, %v6476
  %6478 = vmatprep.subr.mxu0 0.0
  %6479 = vmatpush1.msra.mxu0 %v6457
  %6480 = vmatprep.subr.mxu0 0.0
  %6481 = vmatpush1.msra.mxu0 %v6458
  %6482 = vmatprep.subr.mxu0 0.0
  %6483 = vmatpush1.msra.mxu0 %v6459
  %6484 = vmatprep.subr.mxu0 0.0
  %6485 = vmatpush1.msra.mxu0 %v6460
  %6486 = vmatprep.subr.mxu0 0.0
  %6487 = vmatpush1.msra.mxu0 %v6461
  %6488 = vmatprep.subr.mxu0 0.0
  %6489 = vmatpush1.msra.mxu0 %v6462
  %6490 = vmatprep.subr.mxu0 0.0
  %6491 = vmatpush1.msra.mxu0 %v6463
  %6492 = vmatprep.subr.mxu0 0.0
  %6493 = vmatpush1.msra.mxu0 %v6464
  %6494 = vmatprep.subr.mxu0 0.0
  %6495 = vmatpush1.msra.mxu0 %v6465
  %6496 = vmatprep.subr.mxu0 0.0
  %6497 = vmatpush1.msra.mxu0 %v6466
  %6498 = vmatprep.subr.mxu0 0.0
  %6499 = vmatpush1.msra.mxu0 %v6467
  %6500 = vmatprep.subr.mxu0 0.0
  %6501 = vmatpush1.msra.mxu0 %v6468
  %6502 = vmatprep.subr.mxu0 0.0
  %6503 = vmatpush1.msra.mxu0 %v6469
  %6504 = vmatprep.subr.mxu0 0.0
  %6505 = vmatpush1.msra.mxu0 %v6470
  %6506 = vmatprep.subr.mxu0 0.0
  %6507 = vmatpush1.msra.mxu0 %v6471
  %6508 = vmatprep.subr.mxu0 0.0
  %6509 = vmatpush1.msra.mxu0 %v6472
  %6510 = vmatprep.subr.mxu0 0.0
  %6511 = vmatpush1.msra.mxu0 0.0
  %6512 = vmatprep.subr.mxu0 0.0
  %6513 = vmatpush1.msra.mxu0 0.0
  %6514 = vmatprep.subr.mxu0 0.0
  %6515 = vmatpush1.msra.mxu0 0.0
  %6516 = vmatprep.subr.mxu0 0.0
  %6517 = vmatpush1.msra.mxu0 0.0
  %6518 = vmatprep.subr.mxu0 0.0
  %6519 = vmatpush1.msra.mxu0 0.0
  %6520 = vmatprep.subr.mxu0 0.0
  %6521 = vmatpush1.msra.mxu0 0.0
  %6522 = vmatprep.subr.mxu0 0.0
  %6523 = vmatpush1.msra.mxu0 0.0
  %6524 = vmatprep.subr.mxu0 0.0
  %6525 = vmatpush1.msra.mxu0 0.0
  %6526 = vmatprep.subr.mxu0 0.0
  %6527 = vmatpush1.msra.mxu0 0.0
  %6528 = vmatprep.subr.mxu0 0.0
  %6529 = vmatpush1.msra.mxu0 0.0
  %6530 = vmatprep.subr.mxu0 0.0
  %6531 = vmatpush1.msra.mxu0 0.0
  %6532 = vmatprep.subr.mxu0 0.0
  %6533 = vmatpush1.msra.mxu0 0.0
  %6534 = vmatprep.subr.mxu0 0.0
  %6535 = vmatpush1.msra.mxu0 0.0
  %6536 = vmatprep.subr.mxu0 0.0
  %6537 = vmatpush1.msra.mxu0 0.0
  %6538 = vmatprep.subr.mxu0 0.0
  %6539 = vmatpush1.msra.mxu0 0.0
  %6540 = vmatprep.subr.mxu0 0.0
  %6541 = vmatpush1.msra.mxu0 0.0
  %6542 = vmatprep.mubr.f32.mxu0 0.0
  %6543 = vmatmul.mubr.f32.gmra.mrb[0].mxu0 %v6456
  %v6544 = vpop.f32.mrb[0].mxu0
  %v6545 = vadd.f32 %v6477, %v6544
  %v6546 = vpop.f32.mrb[0].mxu0
  %6547 = vdwg.mxu0
  %v6548 = vmax.f32 %v6545, 0.0
  %v6549 = vld [vmem:[%s5] sm:$0xff]
  %v6550 = vld [vmem:[%s5 + $0x8] sm:$0xff]
  %v6551 = vld [vmem:[%s5 + $0x10] sm:$0xff]
  %v6552 = vld [vmem:[%s5 + $0x18] sm:$0xff]
  %v6553 = vld [vmem:[%s5 + $0x20] sm:$0xff]
  %v6554 = vld [vmem:[%s5 + $0x28] sm:$0xff]
  %v6555 = vld [vmem:[%s5 + $0x30] sm:$0xff]
  %v6556 = vld [vmem:[%s5 + $0x38] sm:$0xff]
  %v6557 = vld [vmem:[%s5 + $0x40] sm:$0xff]
  %v6558 = vld [vmem:[%s5 + $0x48] sm:$0xff]
  %v6559 = vld [vmem:[%s5 + $0x50] sm:$0xff]
  %v6560 = vld [vmem:[%s5 + $0x58] sm:$0xff]
  %v6561 = vld [vmem:[%s5 + $0x60] sm:$0xff]
  %v6562 = vld [vmem:[%s5 + $0x68] sm:$0xff]
  %v6563 = vld [vmem:[%s5 + $0x70] sm:$0xff]
  %v6564 = vld [vmem:[%s5 + $0x78] sm:$0xff]
  %v6565 = vld [vmem:[%s5 + $0x80] sm:$0xff]
  %v6566 = vld [vmem:[%s5 + $0x88] sm:$0xff]
  %v6567 = vld [vmem:[%s5 + $0x90] sm:$0xff]
  %v6568 = vld [vmem:[%s5 + $0x98] sm:$0xff]
  %v6569 = vld [vmem:[%s5 + $0xa0] sm:$0xff]
  %v6570 = vld [vmem:[%s5 + $0xa8] sm:$0xff]
  %v6571 = vld [vmem:[%s5 + $0xb0] sm:$0xff]
  %v6572 = vld [vmem:[%s5 + $0xb8] sm:$0xff]
  %v6573 = vld [vmem:[%s5 + $0xc0] sm:$0xff]
  %v6574 = vld [vmem:[%s5 + $0xc8] sm:$0xff]
  %v6575 = vld [vmem:[%s5 + $0xd0] sm:$0xff]
  %v6576 = vld [vmem:[%s5 + $0xd8] sm:$0xff]
  %v6577 = vld [vmem:[%s5 + $0xe0] sm:$0xff]
  %v6578 = vld [vmem:[%s5 + $0xe8] sm:$0xff]
  %v6579 = vld [vmem:[%s5 + $0xf0] sm:$0xff]
  %v6580 = vld [vmem:[%s5 + $0xf8] sm:$0xff]
  %v6581 = vld [vmem:[%s5 + $0x100] sm:$0xff]
  %v6582 = vld [vmem:[%s5 + $0x108] sm:$0xff]
  %v6583 = vld [vmem:[%s5 + $0x110] sm:$0xff]
  %v6584 = vld [vmem:[%s5 + $0x118] sm:$0xff]
  %v6585 = vld [vmem:[%s5 + $0x120] sm:$0xff]
  %v6586 = vld [vmem:[%s5 + $0x128] sm:$0xff]
  %v6587 = vld [vmem:[%s5 + $0x130] sm:$0xff]
  %v6588 = vld [vmem:[%s5 + $0x138] sm:$0xff]
  %v6589 = vld [vmem:[%s5 + $0x140] sm:$0xff]
  %v6590 = vld [vmem:[%s5 + $0x148] sm:$0xff]
  %v6591 = vld [vmem:[%s5 + $0x150] sm:$0xff]
  %v6592 = vld [vmem:[%s5 + $0x158] sm:$0xff]
  %v6593 = vld [vmem:[%s5 + $0x160] sm:$0xff]
  %v6594 = vld [vmem:[%s5 + $0x168] sm:$0xff]
  %v6595 = vld [vmem:[%s5 + $0x170] sm:$0xff]
  %v6596 = vld [vmem:[%s5 + $0x178] sm:$0xff]
  %v6597 = vld [vmem:[%s5 + $0x180] sm:$0xff]
  %v6598 = vld [vmem:[%s5 + $0x188] sm:$0xff]
  %v6599 = vld [vmem:[%s5 + $0x190] sm:$0xff]
  %v6600 = vld [vmem:[%s5 + $0x198] sm:$0xff]
  %v6601 = vld [vmem:[%s5 + $0x1a0] sm:$0xff]
  %v6602 = vld [vmem:[%s5 + $0x1a8] sm:$0xff]
  %v6603 = vld [vmem:[%s5 + $0x1b0] sm:$0xff]
  %v6604 = vld [vmem:[%s5 + $0x1b8] sm:$0xff]
  %v6605 = vld [vmem:[%s5 + $0x1c0] sm:$0xff]
  %v6606 = vld [vmem:[%s5 + $0x1c8] sm:$0xff]
  %v6607 = vld [vmem:[%s5 + $0x1d0] sm:$0xff]
  %v6608 = vld [vmem:[%s5 + $0x1d8] sm:$0xff]
  %v6609 = vld [vmem:[%s5 + $0x1e0] sm:$0xff]
  %v6610 = vld [vmem:[%s5 + $0x1e8] sm:$0xff]
  %v6611 = vld [vmem:[%s5 + $0x1f0] sm:$0xff]
  %v6612 = vld [vmem:[%s5 + $0x1f8] sm:$0xff]
  %v6613 = vld [vmem:[%s5 + $0x200] sm:$0xff]
  %v6614 = vld [vmem:[%s5 + $0x208] sm:$0xff]
  %v6615 = vld [vmem:[%s5 + $0x210] sm:$0xff]
  %v6616 = vld [vmem:[%s5 + $0x218] sm:$0xff]
  %v6617 = vld [vmem:[%s5 + $0x220] sm:$0xff]
  %v6618 = vld [vmem:[%s5 + $0x228] sm:$0xff]
  %v6619 = vld [vmem:[%s5 + $0x230] sm:$0xff]
  %v6620 = vld [vmem:[%s5 + $0x238] sm:$0xff]
  %v6621 = vld [vmem:[%s5 + $0x240] sm:$0xff]
  %v6622 = vld [vmem:[%s5 + $0x248] sm:$0xff]
  %v6623 = vld [vmem:[%s5 + $0x250] sm:$0xff]
  %v6624 = vld [vmem:[%s5 + $0x258] sm:$0xff]
  %v6625 = vld [vmem:[%s5 + $0x260] sm:$0xff]
  %v6626 = vld [vmem:[%s5 + $0x268] sm:$0xff]
  %v6627 = vld [vmem:[%s5 + $0x270] sm:$0xff]
  %v6628 = vld [vmem:[%s5 + $0x278] sm:$0xff]
  %s6629 = scalar_lea.vmem %s5, 640
  %v6630 = vld [vmem:[%s6629] ss:$8 sm:$0xf]
  %v6631 = vld [vmem:[%s6629] ss:$8 sm:$0x10]
  %v6632 = vor.u32 %v6630, %v6631
  %v6634 = vlaneseq
  %v6635 = vshrl.u32 %v6634, 7
  %v6636 = vsub.s32 0, %v6635
  %v6637 = vrot.slane %v6632, %v6636
  %v6638 = vlaneseq
  %v6639 = vshrl.u32 %v6638, 7
  %v6640 = vsub.s32 1, %v6639
  %v6641 = vrot.slane %v6632, %v6640
  %v6642 = vlaneseq
  %v6643 = vshrl.u32 %v6642, 7
  %v6644 = vsub.s32 2, %v6643
  %v6645 = vrot.slane %v6632, %v6644
  %v6646 = vlaneseq
  %v6647 = vshrl.u32 %v6646, 7
  %v6648 = vsub.s32 3, %v6647
  %v6649 = vrot.slane %v6632, %v6648
  %v6650 = vlaneseq
  %v6651 = vshrl.u32 %v6650, 7
  %v6652 = vsub.s32 4, %v6651
  %v6653 = vrot.slane %v6632, %v6652
  %6659 = vmatprep.subr.mxu0 %v6550
  %6660 = vmatpush1.msra.mxu0 %v6549
  %6661 = vmatprep.subr.mxu0 %v6555
  %6662 = vmatpush1.msra.mxu0 %v6554
  %6663 = vmatprep.subr.mxu0 %v6560
  %6664 = vmatpush1.msra.mxu0 %v6559
  %6665 = vmatprep.subr.mxu0 %v6565
  %6666 = vmatpush1.msra.mxu0 %v6564
  %6667 = vmatprep.subr.mxu0 %v6570
  %6668 = vmatpush1.msra.mxu0 %v6569
  %6669 = vmatprep.subr.mxu0 %v6575
  %6670 = vmatpush1.msra.mxu0 %v6574
  %6671 = vmatprep.subr.mxu0 %v6580
  %6672 = vmatpush1.msra.mxu0 %v6579
  %6673 = vmatprep.subr.mxu0 %v6585
  %6674 = vmatpush1.msra.mxu0 %v6584
  %6675 = vmatprep.subr.mxu0 %v6590
  %6676 = vmatpush1.msra.mxu0 %v6589
  %6677 = vmatprep.subr.mxu0 %v6595
  %6678 = vmatpush1.msra.mxu0 %v6594
  %6679 = vmatprep.subr.mxu0 %v6600
  %6680 = vmatpush1.msra.mxu0 %v6599
  %6681 = vmatprep.subr.mxu0 %v6605
  %6682 = vmatpush1.msra.mxu0 %v6604
  %6683 = vmatprep.subr.mxu0 %v6610
  %6684 = vmatpush1.msra.mxu0 %v6609
  %6685 = vmatprep.subr.mxu0 %v6615
  %6686 = vmatpush1.msra.mxu0 %v6614
  %6687 = vmatprep.subr.mxu0 %v6620
  %6688 = vmatpush1.msra.mxu0 %v6619
  %6689 = vmatprep.subr.mxu0 %v6625
  %6690 = vmatpush1.msra.mxu0 %v6624
  %6691 = vmatprep.subr.mxu0 0.0
  %6692 = vmatpush1.msra.mxu0 0.0
  %6693 = vmatprep.subr.mxu0 0.0
  %6694 = vmatpush1.msra.mxu0 0.0
  %6695 = vmatprep.subr.mxu0 0.0
  %6696 = vmatpush1.msra.mxu0 0.0
  %6697 = vmatprep.subr.mxu0 0.0
  %6698 = vmatpush1.msra.mxu0 0.0
  %6699 = vmatprep.subr.mxu0 0.0
  %6700 = vmatpush1.msra.mxu0 0.0
  %6701 = vmatprep.subr.mxu0 0.0
  %6702 = vmatpush1.msra.mxu0 0.0
  %6703 = vmatprep.subr.mxu0 0.0
  %6704 = vmatpush1.msra.mxu0 0.0
  %6705 = vmatprep.subr.mxu0 0.0
  %6706 = vmatpush1.msra.mxu0 0.0
  %6707 = vmatprep.subr.mxu0 0.0
  %6708 = vmatpush1.msra.mxu0 0.0
  %6709 = vmatprep.subr.mxu0 0.0
  %6710 = vmatpush1.msra.mxu0 0.0
  %6711 = vmatprep.subr.mxu0 0.0
  %6712 = vmatpush1.msra.mxu0 0.0
  %6713 = vmatprep.subr.mxu0 0.0
  %6714 = vmatpush1.msra.mxu0 0.0
  %6715 = vmatprep.subr.mxu0 0.0
  %6716 = vmatpush1.msra.mxu0 0.0
  %6717 = vmatprep.subr.mxu0 0.0
  %6718 = vmatpush1.msra.mxu0 0.0
  %6719 = vmatprep.subr.mxu0 0.0
  %6720 = vmatpush1.msra.mxu0 0.0
  %6721 = vmatprep.subr.mxu0 0.0
  %6722 = vmatpush1.msra.mxu0 0.0
  %6723 = vmatprep.mubr.f32.mxu0 0.0
  %6724 = vmatmul.mubr.f32.gmra.mrb[0].mxu0 %v6548
  %v6725 = vpop.f32.mrb[0].mxu0
  %v6726 = vadd.f32 %v6637, %v6725
  %v6727 = vpop.f32.mrb[0].mxu0
  %v6728 = vadd.f32 %v6641, %v6727
  %6729 = vdwg.mxu0
  %6730 = vmatprep.subr.mxu0 %v6552
  %6731 = vmatpush1.msra.mxu0 %v6551
  %6732 = vmatprep.subr.mxu0 %v6557
  %6733 = vmatpush1.msra.mxu0 %v6556
  %6734 = vmatprep.subr.mxu0 %v6562
  %6735 = vmatpush1.msra.mxu0 %v6561
  %6736 = vmatprep.subr.mxu0 %v6567
  %6737 = vmatpush1.msra.mxu0 %v6566
  %6738 = vmatprep.subr.mxu0 %v6572
  %6739 = vmatpush1.msra.mxu0 %v6571
  %6740 = vmatprep.subr.mxu0 %v6577
  %6741 = vmatpush1.msra.mxu0 %v6576
  %6742 = vmatprep.subr.mxu0 %v6582
  %6743 = vmatpush1.msra.mxu0 %v6581
  %6744 = vmatprep.subr.mxu0 %v6587
  %6745 = vmatpush1.msra.mxu0 %v6586
  %6746 = vmatprep.subr.mxu0 %v6592
  %6747 = vmatpush1.msra.mxu0 %v6591
  %6748 = vmatprep.subr.mxu0 %v6597
  %6749 = vmatpush1.msra.mxu0 %v6596
  %6750 = vmatprep.subr.mxu0 %v6602
  %6751 = vmatpush1.msra.mxu0 %v6601
  %6752 = vmatprep.subr.mxu0 %v6607
  %6753 = vmatpush1.msra.mxu0 %v6606
  %6754 = vmatprep.subr.mxu0 %v6612
  %6755 = vmatpush1.msra.mxu0 %v6611
  %6756 = vmatprep.subr.mxu0 %v6617
  %6757 = vmatpush1.msra.mxu0 %v6616
  %6758 = vmatprep.subr.mxu0 %v6622
  %6759 = vmatpush1.msra.mxu0 %v6621
  %6760 = vmatprep.subr.mxu0 %v6627
  %6761 = vmatpush1.msra.mxu0 %v6626
  %6762 = vmatprep.subr.mxu0 0.0
  %6763 = vmatpush1.msra.mxu0 0.0
  %6764 = vmatprep.subr.mxu0 0.0
  %6765 = vmatpush1.msra.mxu0 0.0
  %6766 = vmatprep.subr.mxu0 0.0
  %6767 = vmatpush1.msra.mxu0 0.0
  %6768 = vmatprep.subr.mxu0 0.0
  %6769 = vmatpush1.msra.mxu0 0.0
  %6770 = vmatprep.subr.mxu0 0.0
  %6771 = vmatpush1.msra.mxu0 0.0
  %6772 = vmatprep.subr.mxu0 0.0
  %6773 = vmatpush1.msra.mxu0 0.0
  %6774 = vmatprep.subr.mxu0 0.0
  %6775 = vmatpush1.msra.mxu0 0.0
  %6776 = vmatprep.subr.mxu0 0.0
  %6777 = vmatpush1.msra.mxu0 0.0
  %6778 = vmatprep.subr.mxu0 0.0
  %6779 = vmatpush1.msra.mxu0 0.0
  %6780 = vmatprep.subr.mxu0 0.0
  %6781 = vmatpush1.msra.mxu0 0.0
  %6782 = vmatprep.subr.mxu0 0.0
  %6783 = vmatpush1.msra.mxu0 0.0
  %6784 = vmatprep.subr.mxu0 0.0
  %6785 = vmatpush1.msra.mxu0 0.0
  %6786 = vmatprep.subr.mxu0 0.0
  %6787 = vmatpush1.msra.mxu0 0.0
  %6788 = vmatprep.subr.mxu0 0.0
  %6789 = vmatpush1.msra.mxu0 0.0
  %6790 = vmatprep.subr.mxu0 0.0
  %6791 = vmatpush1.msra.mxu0 0.0
  %6792 = vmatprep.subr.mxu0 0.0
  %6793 = vmatpush1.msra.mxu0 0.0
  %6794 = vmatprep.mubr.f32.mxu0 0.0
  %6795 = vmatmul.mubr.f32.gmra.mrb[0].mxu0 %v6548
  %v6796 = vpop.f32.mrb[0].mxu0
  %v6797 = vadd.f32 %v6645, %v6796
  %v6798 = vpop.f32.mrb[0].mxu0
  %v6799 = vadd.f32 %v6649, %v6798
  %6800 = vdwg.mxu0
  %6801 = vmatprep.subr.mxu0 0.0
  %6802 = vmatpush1.msra.mxu0 %v6553
  %6803 = vmatprep.subr.mxu0 0.0
  %6804 = vmatpush1.msra.mxu0 %v6558
  %6805 = vmatprep.subr.mxu0 0.0
  %6806 = vmatpush1.msra.mxu0 %v6563
  %6807 = vmatprep.subr.mxu0 0.0
  %6808 = vmatpush1.msra.mxu0 %v6568
  %6809 = vmatprep.subr.mxu0 0.0
  %6810 = vmatpush1.msra.mxu0 %v6573
  %6811 = vmatprep.subr.mxu0 0.0
  %6812 = vmatpush1.msra.mxu0 %v6578
  %6813 = vmatprep.subr.mxu0 0.0
  %6814 = vmatpush1.msra.mxu0 %v6583
  %6815 = vmatprep.subr.mxu0 0.0
  %6816 = vmatpush1.msra.mxu0 %v6588
  %6817 = vmatprep.subr.mxu0 0.0
  %6818 = vmatpush1.msra.mxu0 %v6593
  %6819 = vmatprep.subr.mxu0 0.0
  %6820 = vmatpush1.msra.mxu0 %v6598
  %6821 = vmatprep.subr.mxu0 0.0
  %6822 = vmatpush1.msra.mxu0 %v6603
  %6823 = vmatprep.subr.mxu0 0.0
  %6824 = vmatpush1.msra.mxu0 %v6608
  %6825 = vmatprep.subr.mxu0 0.0
  %6826 = vmatpush1.msra.mxu0 %v6613
  %6827 = vmatprep.subr.mxu0 0.0
  %6828 = vmatpush1.msra.mxu0 %v6618
  %6829 = vmatprep.subr.mxu0 0.0
  %6830 = vmatpush1.msra.mxu0 %v6623
  %6831 = vmatprep.subr.mxu0 0.0
  %6832 = vmatpush1.msra.mxu0 %v6628
  %6833 = vmatprep.subr.mxu0 0.0
  %6834 = vmatpush1.msra.mxu0 0.0
  %6835 = vmatprep.subr.mxu0 0.0
  %6836 = vmatpush1.msra.mxu0 0.0
  %6837 = vmatprep.subr.mxu0 0.0
  %6838 = vmatpush1.msra.mxu0 0.0
  %6839 = vmatprep.subr.mxu0 0.0
  %6840 = vmatpush1.msra.mxu0 0.0
  %6841 = vmatprep.subr.mxu0 0.0
  %6842 = vmatpush1.msra.mxu0 0.0
  %6843 = vmatprep.subr.mxu0 0.0
  %6844 = vmatpush1.msra.mxu0 0.0
  %6845 = vmatprep.subr.mxu0 0.0
  %6846 = vmatpush1.msra.mxu0 0.0
  %6847 = vmatprep.subr.mxu0 0.0
  %6848 = vmatpush1.msra.mxu0 0.0
  %6849 = vmatprep.subr.mxu0 0.0
  %6850 = vmatpush1.msra.mxu0 0.0
  %6851 = vmatprep.subr.mxu0 0.0
  %6852 = vmatpush1.msra.mxu0 0.0
  %6853 = vmatprep.subr.mxu0 0.0
  %6854 = vmatpush1.msra.mxu0 0.0
  %6855 = vmatprep.subr.mxu0 0.0
  %6856 = vmatpush1.msra.mxu0 0.0
  %6857 = vmatprep.subr.mxu0 0.0
  %6858 = vmatpush1.msra.mxu0 0.0
  %6859 = vmatprep.subr.mxu0 0.0
  %6860 = vmatpush1.msra.mxu0 0.0
  %6861 = vmatprep.subr.mxu0 0.0
  %6862 = vmatpush1.msra.mxu0 0.0
  %6863 = vmatprep.subr.mxu0 0.0
  %6864 = vmatpush1.msra.mxu0 0.0
  %6865 = vmatprep.mubr.f32.mxu0 0.0
  %6866 = vmatmul.mubr.f32.gmra.mrb[0].mxu0 %v6548
  %v6867 = vpop.f32.mrb[0].mxu0
  %v6868 = vadd.f32 %v6653, %v6867
  %v6869 = vpop.f32.mrb[0].mxu0
  %6870 = vdwg.mxu0
  %v6871 = vmax.f32 %v6726, 0.0
  %v6872 = vmax.f32 %v6728, 0.0
  %v6873 = vmax.f32 %v6797, 0.0
  %v6874 = vmax.f32 %v6799, 0.0
  %v6875 = vmax.f32 %v6868, 0.0
  %v6876 = vld [vmem:[%s6] sm:$0xff]
  %v6877 = vld [vmem:[%s6 + $0x8] sm:$0xff]
  %v6878 = vld [vmem:[%s6 + $0x10] sm:$0xff]
  %v6879 = vld [vmem:[%s6 + $0x18] sm:$0xff]
  %v6880 = vld [vmem:[%s6 + $0x20] sm:$0xff]
  %v6881 = vld [vmem:[%s6 + $0x28] sm:$0xff]
  %v6882 = vld [vmem:[%s6 + $0x30] sm:$0xff]
  %v6883 = vld [vmem:[%s6 + $0x38] sm:$0xff]
  %v6884 = vld [vmem:[%s6 + $0x40] sm:$0xff]
  %v6885 = vld [vmem:[%s6 + $0x48] sm:$0xff]
  %v6886 = vld [vmem:[%s6 + $0x50] sm:$0xff]
  %v6887 = vld [vmem:[%s6 + $0x58] sm:$0xff]
  %v6888 = vld [vmem:[%s6 + $0x60] sm:$0xff]
  %v6889 = vld [vmem:[%s6 + $0x68] sm:$0xff]
  %v6890 = vld [vmem:[%s6 + $0x70] sm:$0xff]
  %v6891 = vld [vmem:[%s6 + $0x78] sm:$0xff]
  %v6892 = vld [vmem:[%s6 + $0x80] sm:$0xff]
  %v6893 = vld [vmem:[%s6 + $0x88] sm:$0xff]
  %v6894 = vld [vmem:[%s6 + $0x90] sm:$0xff]
  %v6895 = vld [vmem:[%s6 + $0x98] sm:$0xff]
  %v6896 = vld [vmem:[%s6 + $0xa0] sm:$0xff]
  %v6897 = vld [vmem:[%s6 + $0xa8] sm:$0xff]
  %v6898 = vld [vmem:[%s6 + $0xb0] sm:$0xff]
  %v6899 = vld [vmem:[%s6 + $0xb8] sm:$0xff]
  %v6900 = vld [vmem:[%s6 + $0xc0] sm:$0xff]
  %v6901 = vld [vmem:[%s6 + $0xc8] sm:$0xff]
  %v6902 = vld [vmem:[%s6 + $0xd0] sm:$0xff]
  %v6903 = vld [vmem:[%s6 + $0xd8] sm:$0xff]
  %v6904 = vld [vmem:[%s6 + $0xe0] sm:$0xff]
  %v6905 = vld [vmem:[%s6 + $0xe8] sm:$0xff]
  %v6906 = vld [vmem:[%s6 + $0xf0] sm:$0xff]
  %v6907 = vld [vmem:[%s6 + $0xf8] sm:$0xff]
  %v6908 = vld [vmem:[%s6 + $0x100] sm:$0xff]
  %v6909 = vld [vmem:[%s6 + $0x108] sm:$0xff]
  %v6910 = vld [vmem:[%s6 + $0x110] sm:$0xff]
  %v6911 = vld [vmem:[%s6 + $0x118] sm:$0xff]
  %v6912 = vld [vmem:[%s6 + $0x120] sm:$0xff]
  %v6913 = vld [vmem:[%s6 + $0x128] sm:$0xff]
  %v6914 = vld [vmem:[%s6 + $0x130] sm:$0xff]
  %v6915 = vld [vmem:[%s6 + $0x138] sm:$0xff]
  %v6916 = vld [vmem:[%s6 + $0x140] sm:$0xff]
  %v6917 = vld [vmem:[%s6 + $0x148] sm:$0xff]
  %v6918 = vld [vmem:[%s6 + $0x150] sm:$0xff]
  %v6919 = vld [vmem:[%s6 + $0x158] sm:$0xff]
  %v6920 = vld [vmem:[%s6 + $0x160] sm:$0xff]
  %v6921 = vld [vmem:[%s6 + $0x168] sm:$0xff]
  %v6922 = vld [vmem:[%s6 + $0x170] sm:$0xff]
  %v6923 = vld [vmem:[%s6 + $0x178] sm:$0xff]
  %v6924 = vld [vmem:[%s6 + $0x180] sm:$0xff]
  %v6925 = vld [vmem:[%s6 + $0x188] sm:$0xff]
  %v6926 = vld [vmem:[%s6 + $0x190] sm:$0xff]
  %v6927 = vld [vmem:[%s6 + $0x198] sm:$0xff]
  %v6928 = vld [vmem:[%s6 + $0x1a0] sm:$0xff]
  %v6929 = vld [vmem:[%s6 + $0x1a8] sm:$0xff]
  %v6930 = vld [vmem:[%s6 + $0x1b0] sm:$0xff]
  %v6931 = vld [vmem:[%s6 + $0x1b8] sm:$0xff]
  %v6932 = vld [vmem:[%s6 + $0x1c0] sm:$0xff]
  %v6933 = vld [vmem:[%s6 + $0x1c8] sm:$0xff]
  %v6934 = vld [vmem:[%s6 + $0x1d0] sm:$0xff]
  %v6935 = vld [vmem:[%s6 + $0x1d8] sm:$0xff]
  %v6936 = vld [vmem:[%s6 + $0x1e0] sm:$0xff]
  %v6937 = vld [vmem:[%s6 + $0x1e8] sm:$0xff]
  %v6938 = vld [vmem:[%s6 + $0x1f0] sm:$0xff]
  %v6939 = vld [vmem:[%s6 + $0x1f8] sm:$0xff]
  %v6940 = vld [vmem:[%s6 + $0x200] sm:$0xff]
  %v6941 = vld [vmem:[%s6 + $0x208] sm:$0xff]
  %v6942 = vld [vmem:[%s6 + $0x210] sm:$0xff]
  %v6943 = vld [vmem:[%s6 + $0x218] sm:$0xff]
  %v6944 = vld [vmem:[%s6 + $0x220] sm:$0xff]
  %v6945 = vld [vmem:[%s6 + $0x228] sm:$0xff]
  %v6946 = vld [vmem:[%s6 + $0x230] sm:$0xff]
  %v6947 = vld [vmem:[%s6 + $0x238] sm:$0xff]
  %v6948 = vld [vmem:[%s6 + $0x240] sm:$0xff]
  %v6949 = vld [vmem:[%s6 + $0x248] sm:$0xff]
  %v6950 = vld [vmem:[%s6 + $0x250] sm:$0xff]
  %v6951 = vld [vmem:[%s6 + $0x258] sm:$0xff]
  %v6952 = vld [vmem:[%s6 + $0x260] sm:$0xff]
  %v6953 = vld [vmem:[%s6 + $0x268] sm:$0xff]
  %v6954 = vld [vmem:[%s6 + $0x270] sm:$0xff]
  %v6955 = vld [vmem:[%s6 + $0x278] sm:$0xff]
  %v6956 = vld [vmem:[%s6 + $0x280] sm:$0xff]
  %v6957 = vld [vmem:[%s6 + $0x288] sm:$0xff]
  %v6958 = vld [vmem:[%s6 + $0x290] sm:$0xff]
  %v6959 = vld [vmem:[%s6 + $0x298] sm:$0xff]
  %v6960 = vld [vmem:[%s6 + $0x2a0] sm:$0xff]
  %v6961 = vld [vmem:[%s6 + $0x2a8] sm:$0xff]
  %v6962 = vld [vmem:[%s6 + $0x2b0] sm:$0xff]
  %v6963 = vld [vmem:[%s6 + $0x2b8] sm:$0xff]
  %v6964 = vld [vmem:[%s6 + $0x2c0] sm:$0xff]
  %v6965 = vld [vmem:[%s6 + $0x2c8] sm:$0xff]
  %v6966 = vld [vmem:[%s6 + $0x2d0] sm:$0xff]
  %v6967 = vld [vmem:[%s6 + $0x2d8] sm:$0xff]
  %v6968 = vld [vmem:[%s6 + $0x2e0] sm:$0xff]
  %v6969 = vld [vmem:[%s6 + $0x2e8] sm:$0xff]
  %v6970 = vld [vmem:[%s6 + $0x2f0] sm:$0xff]
  %v6971 = vld [vmem:[%s6 + $0x2f8] sm:$0xff]
  %v6972 = vld [vmem:[%s6 + $0x300] sm:$0xff]
  %v6973 = vld [vmem:[%s6 + $0x308] sm:$0xff]
  %v6974 = vld [vmem:[%s6 + $0x310] sm:$0xff]
  %v6975 = vld [vmem:[%s6 + $0x318] sm:$0xff]
  %v6976 = vld [vmem:[%s6 + $0x320] sm:$0xff]
  %v6977 = vld [vmem:[%s6 + $0x328] sm:$0xff]
  %v6978 = vld [vmem:[%s6 + $0x330] sm:$0xff]
  %v6979 = vld [vmem:[%s6 + $0x338] sm:$0xff]
  %v6980 = vld [vmem:[%s6 + $0x340] sm:$0xff]
  %v6981 = vld [vmem:[%s6 + $0x348] sm:$0xff]
  %v6982 = vld [vmem:[%s6 + $0x350] sm:$0xff]
  %v6983 = vld [vmem:[%s6 + $0x358] sm:$0xff]
  %v6984 = vld [vmem:[%s6 + $0x360] sm:$0xff]
  %v6985 = vld [vmem:[%s6 + $0x368] sm:$0xff]
  %v6986 = vld [vmem:[%s6 + $0x370] sm:$0xff]
  %v6987 = vld [vmem:[%s6 + $0x378] sm:$0xff]
  %v6988 = vld [vmem:[%s6 + $0x380] sm:$0xff]
  %v6989 = vld [vmem:[%s6 + $0x388] sm:$0xff]
  %v6990 = vld [vmem:[%s6 + $0x390] sm:$0xff]
  %v6991 = vld [vmem:[%s6 + $0x398] sm:$0xff]
  %v6992 = vld [vmem:[%s6 + $0x3a0] sm:$0xff]
  %v6993 = vld [vmem:[%s6 + $0x3a8] sm:$0xff]
  %v6994 = vld [vmem:[%s6 + $0x3b0] sm:$0xff]
  %v6995 = vld [vmem:[%s6 + $0x3b8] sm:$0xff]
  %v6996 = vld [vmem:[%s6 + $0x3c0] sm:$0xff]
  %v6997 = vld [vmem:[%s6 + $0x3c8] sm:$0xff]
  %v6998 = vld [vmem:[%s6 + $0x3d0] sm:$0xff]
  %v6999 = vld [vmem:[%s6 + $0x3d8] sm:$0xff]
  %v7000 = vld [vmem:[%s6 + $0x3e0] sm:$0xff]
  %v7001 = vld [vmem:[%s6 + $0x3e8] sm:$0xff]
  %v7002 = vld [vmem:[%s6 + $0x3f0] sm:$0xff]
  %v7003 = vld [vmem:[%s6 + $0x3f8] sm:$0xff]
  %v7004 = vld [vmem:[%s6 + $0x400] sm:$0xff]
  %v7005 = vld [vmem:[%s6 + $0x408] sm:$0xff]
  %v7006 = vld [vmem:[%s6 + $0x410] sm:$0xff]
  %v7007 = vld [vmem:[%s6 + $0x418] sm:$0xff]
  %v7008 = vld [vmem:[%s6 + $0x420] sm:$0xff]
  %v7009 = vld [vmem:[%s6 + $0x428] sm:$0xff]
  %v7010 = vld [vmem:[%s6 + $0x430] sm:$0xff]
  %v7011 = vld [vmem:[%s6 + $0x438] sm:$0xff]
  %v7012 = vld [vmem:[%s6 + $0x440] sm:$0xff]
  %v7013 = vld [vmem:[%s6 + $0x448] sm:$0xff]
  %v7014 = vld [vmem:[%s6 + $0x450] sm:$0xff]
  %v7015 = vld [vmem:[%s6 + $0x458] sm:$0xff]
  %v7016 = vld [vmem:[%s6 + $0x460] sm:$0xff]
  %v7017 = vld [vmem:[%s6 + $0x468] sm:$0xff]
  %v7018 = vld [vmem:[%s6 + $0x470] sm:$0xff]
  %v7019 = vld [vmem:[%s6 + $0x478] sm:$0xff]
  %v7020 = vld [vmem:[%s6 + $0x480] sm:$0xff]
  %v7021 = vld [vmem:[%s6 + $0x488] sm:$0xff]
  %v7022 = vld [vmem:[%s6 + $0x490] sm:$0xff]
  %v7023 = vld [vmem:[%s6 + $0x498] sm:$0xff]
  %v7024 = vld [vmem:[%s6 + $0x4a0] sm:$0xff]
  %v7025 = vld [vmem:[%s6 + $0x4a8] sm:$0xff]
  %v7026 = vld [vmem:[%s6 + $0x4b0] sm:$0xff]
  %v7027 = vld [vmem:[%s6 + $0x4b8] sm:$0xff]
  %v7028 = vld [vmem:[%s6 + $0x4c0] sm:$0xff]
  %v7029 = vld [vmem:[%s6 + $0x4c8] sm:$0xff]
  %v7030 = vld [vmem:[%s6 + $0x4d0] sm:$0xff]
  %v7031 = vld [vmem:[%s6 + $0x4d8] sm:$0xff]
  %v7032 = vld [vmem:[%s6 + $0x4e0] sm:$0xff]
  %v7033 = vld [vmem:[%s6 + $0x4e8] sm:$0xff]
  %v7034 = vld [vmem:[%s6 + $0x4f0] sm:$0xff]
  %v7035 = vld [vmem:[%s6 + $0x4f8] sm:$0xff]
  %v7036 = vld [vmem:[%s6 + $0x500] sm:$0xff]
  %v7037 = vld [vmem:[%s6 + $0x508] sm:$0xff]
  %v7038 = vld [vmem:[%s6 + $0x510] sm:$0xff]
  %v7039 = vld [vmem:[%s6 + $0x518] sm:$0xff]
  %v7040 = vld [vmem:[%s6 + $0x520] sm:$0xff]
  %v7041 = vld [vmem:[%s6 + $0x528] sm:$0xff]
  %v7042 = vld [vmem:[%s6 + $0x530] sm:$0xff]
  %v7043 = vld [vmem:[%s6 + $0x538] sm:$0xff]
  %v7044 = vld [vmem:[%s6 + $0x540] sm:$0xff]
  %v7045 = vld [vmem:[%s6 + $0x548] sm:$0xff]
  %v7046 = vld [vmem:[%s6 + $0x550] sm:$0xff]
  %v7047 = vld [vmem:[%s6 + $0x558] sm:$0xff]
  %v7048 = vld [vmem:[%s6 + $0x560] sm:$0xff]
  %v7049 = vld [vmem:[%s6 + $0x568] sm:$0xff]
  %v7050 = vld [vmem:[%s6 + $0x570] sm:$0xff]
  %v7051 = vld [vmem:[%s6 + $0x578] sm:$0xff]
  %v7052 = vld [vmem:[%s6 + $0x580] sm:$0xff]
  %v7053 = vld [vmem:[%s6 + $0x588] sm:$0xff]
  %v7054 = vld [vmem:[%s6 + $0x590] sm:$0xff]
  %v7055 = vld [vmem:[%s6 + $0x598] sm:$0xff]
  %v7056 = vld [vmem:[%s6 + $0x5a0] sm:$0xff]
  %v7057 = vld [vmem:[%s6 + $0x5a8] sm:$0xff]
  %v7058 = vld [vmem:[%s6 + $0x5b0] sm:$0xff]
  %v7059 = vld [vmem:[%s6 + $0x5b8] sm:$0xff]
  %v7060 = vld [vmem:[%s6 + $0x5c0] sm:$0xff]
  %v7061 = vld [vmem:[%s6 + $0x5c8] sm:$0xff]
  %v7062 = vld [vmem:[%s6 + $0x5d0] sm:$0xff]
  %v7063 = vld [vmem:[%s6 + $0x5d8] sm:$0xff]
  %v7064 = vld [vmem:[%s6 + $0x5e0] sm:$0xff]
  %v7065 = vld [vmem:[%s6 + $0x5e8] sm:$0xff]
  %v7066 = vld [vmem:[%s6 + $0x5f0] sm:$0xff]
  %v7067 = vld [vmem:[%s6 + $0x5f8] sm:$0xff]
  %v7068 = vld [vmem:[%s6 + $0x600] sm:$0xff]
  %v7069 = vld [vmem:[%s6 + $0x608] sm:$0xff]
  %v7070 = vld [vmem:[%s6 + $0x610] sm:$0xff]
  %v7071 = vld [vmem:[%s6 + $0x618] sm:$0xff]
  %v7072 = vld [vmem:[%s6 + $0x620] sm:$0xff]
  %v7073 = vld [vmem:[%s6 + $0x628] sm:$0xff]
  %v7074 = vld [vmem:[%s6 + $0x630] sm:$0xff]
  %v7075 = vld [vmem:[%s6 + $0x638] sm:$0xff]
  %v7076 = vld [vmem:[%s6 + $0x640] sm:$0xff]
  %v7077 = vld [vmem:[%s6 + $0x648] sm:$0xff]
  %v7078 = vld [vmem:[%s6 + $0x650] sm:$0xff]
  %v7079 = vld [vmem:[%s6 + $0x658] sm:$0xff]
  %v7080 = vld [vmem:[%s6 + $0x660] sm:$0xff]
  %v7081 = vld [vmem:[%s6 + $0x668] sm:$0xff]
  %v7082 = vld [vmem:[%s6 + $0x670] sm:$0xff]
  %v7083 = vld [vmem:[%s6 + $0x678] sm:$0xff]
  %v7084 = vld [vmem:[%s6 + $0x680] sm:$0xff]
  %v7085 = vld [vmem:[%s6 + $0x688] sm:$0xff]
  %v7086 = vld [vmem:[%s6 + $0x690] sm:$0xff]
  %v7087 = vld [vmem:[%s6 + $0x698] sm:$0xff]
  %v7088 = vld [vmem:[%s6 + $0x6a0] sm:$0xff]
  %v7089 = vld [vmem:[%s6 + $0x6a8] sm:$0xff]
  %v7090 = vld [vmem:[%s6 + $0x6b0] sm:$0xff]
  %v7091 = vld [vmem:[%s6 + $0x6b8] sm:$0xff]
  %v7092 = vld [vmem:[%s6 + $0x6c0] sm:$0xff]
  %v7093 = vld [vmem:[%s6 + $0x6c8] sm:$0xff]
  %v7094 = vld [vmem:[%s6 + $0x6d0] sm:$0xff]
  %v7095 = vld [vmem:[%s6 + $0x6d8] sm:$0xff]
  %v7096 = vld [vmem:[%s6 + $0x6e0] sm:$0xff]
  %v7097 = vld [vmem:[%s6 + $0x6e8] sm:$0xff]
  %v7098 = vld [vmem:[%s6 + $0x6f0] sm:$0xff]
  %v7099 = vld [vmem:[%s6 + $0x6f8] sm:$0xff]
  %v7100 = vld [vmem:[%s6 + $0x700] sm:$0xff]
  %v7101 = vld [vmem:[%s6 + $0x708] sm:$0xff]
  %v7102 = vld [vmem:[%s6 + $0x710] sm:$0xff]
  %v7103 = vld [vmem:[%s6 + $0x718] sm:$0xff]
  %v7104 = vld [vmem:[%s6 + $0x720] sm:$0xff]
  %v7105 = vld [vmem:[%s6 + $0x728] sm:$0xff]
  %v7106 = vld [vmem:[%s6 + $0x730] sm:$0xff]
  %v7107 = vld [vmem:[%s6 + $0x738] sm:$0xff]
  %v7108 = vld [vmem:[%s6 + $0x740] sm:$0xff]
  %v7109 = vld [vmem:[%s6 + $0x748] sm:$0xff]
  %v7110 = vld [vmem:[%s6 + $0x750] sm:$0xff]
  %v7111 = vld [vmem:[%s6 + $0x758] sm:$0xff]
  %v7112 = vld [vmem:[%s6 + $0x760] sm:$0xff]
  %v7113 = vld [vmem:[%s6 + $0x768] sm:$0xff]
  %v7114 = vld [vmem:[%s6 + $0x770] sm:$0xff]
  %v7115 = vld [vmem:[%s6 + $0x778] sm:$0xff]
  %s7116 = scalar_lea.vmem %s6, 1920
  %v7117 = vld [vmem:[%s7116] ss:$8 sm:$0x7]
  %v7119 = vlaneseq
  %v7120 = vshrl.u32 %v7119, 7
  %v7121 = vsub.s32 0, %v7120
  %v7122 = vrot.slane %v7117, %v7121
  %v7123 = vlaneseq
  %v7124 = vshrl.u32 %v7123, 7
  %v7125 = vsub.s32 1, %v7124
  %v7126 = vrot.slane %v7117, %v7125
  %v7127 = vlaneseq
  %v7128 = vshrl.u32 %v7127, 7
  %v7129 = vsub.s32 2, %v7128
  %v7130 = vrot.slane %v7117, %v7129
  %7134 = vmatprep.subr.mxu0 %v6877
  %7135 = vmatpush1.msra.mxu0 %v6876
  %7136 = vmatprep.subr.mxu0 %v6880
  %7137 = vmatpush1.msra.mxu0 %v6879
  %7138 = vmatprep.subr.mxu0 %v6883
  %7139 = vmatpush1.msra.mxu0 %v6882
  %7140 = vmatprep.subr.mxu0 %v6886
  %7141 = vmatpush1.msra.mxu0 %v6885
  %7142 = vmatprep.subr.mxu0 %v6889
  %7143 = vmatpush1.msra.mxu0 %v6888
  %7144 = vmatprep.subr.mxu0 %v6892
  %7145 = vmatpush1.msra.mxu0 %v6891
  %7146 = vmatprep.subr.mxu0 %v6895
  %7147 = vmatpush1.msra.mxu0 %v6894
  %7148 = vmatprep.subr.mxu0 %v6898
  %7149 = vmatpush1.msra.mxu0 %v6897
  %7150 = vmatprep.subr.mxu0 %v6901
  %7151 = vmatpush1.msra.mxu0 %v6900
  %7152 = vmatprep.subr.mxu0 %v6904
  %7153 = vmatpush1.msra.mxu0 %v6903
  %7154 = vmatprep.subr.mxu0 %v6907
  %7155 = vmatpush1.msra.mxu0 %v6906
  %7156 = vmatprep.subr.mxu0 %v6910
  %7157 = vmatpush1.msra.mxu0 %v6909
  %7158 = vmatprep.subr.mxu0 %v6913
  %7159 = vmatpush1.msra.mxu0 %v6912
  %7160 = vmatprep.subr.mxu0 %v6916
  %7161 = vmatpush1.msra.mxu0 %v6915
  %7162 = vmatprep.subr.mxu0 %v6919
  %7163 = vmatpush1.msra.mxu0 %v6918
  %7164 = vmatprep.subr.mxu0 %v6922
  %7165 = vmatpush1.msra.mxu0 %v6921
  %7166 = vmatprep.subr.mxu0 %v6925
  %7167 = vmatpush1.msra.mxu0 %v6924
  %7168 = vmatprep.subr.mxu0 %v6928
  %7169 = vmatpush1.msra.mxu0 %v6927
  %7170 = vmatprep.subr.mxu0 %v6931
  %7171 = vmatpush1.msra.mxu0 %v6930
  %7172 = vmatprep.subr.mxu0 %v6934
  %7173 = vmatpush1.msra.mxu0 %v6933
  %7174 = vmatprep.subr.mxu0 %v6937
  %7175 = vmatpush1.msra.mxu0 %v6936
  %7176 = vmatprep.subr.mxu0 %v6940
  %7177 = vmatpush1.msra.mxu0 %v6939
  %7178 = vmatprep.subr.mxu0 %v6943
  %7179 = vmatpush1.msra.mxu0 %v6942
  %7180 = vmatprep.subr.mxu0 %v6946
  %7181 = vmatpush1.msra.mxu0 %v6945
  %7182 = vmatprep.subr.mxu0 %v6949
  %7183 = vmatpush1.msra.mxu0 %v6948
  %7184 = vmatprep.subr.mxu0 %v6952
  %7185 = vmatpush1.msra.mxu0 %v6951
  %7186 = vmatprep.subr.mxu0 %v6955
  %7187 = vmatpush1.msra.mxu0 %v6954
  %7188 = vmatprep.subr.mxu0 %v6958
  %7189 = vmatpush1.msra.mxu0 %v6957
  %7190 = vmatprep.subr.mxu0 %v6961
  %7191 = vmatpush1.msra.mxu0 %v6960
  %7192 = vmatprep.subr.mxu0 %v6964
  %7193 = vmatpush1.msra.mxu0 %v6963
  %7194 = vmatprep.subr.mxu0 %v6967
  %7195 = vmatpush1.msra.mxu0 %v6966
  %7196 = vmatprep.subr.mxu0 %v6970
  %7197 = vmatpush1.msra.mxu0 %v6969
  %7198 = vmatprep.mubr.f32.mxu0 %v6872
  %7199 = vmatmul.mubr.f32.gmra.mrb[0].mxu0 %v6871
  %v7200 = vpop.f32.mrb[0].mxu0
  %v7201 = vadd.f32 %v7122, %v7200
  %v7202 = vpop.f32.mrb[0].mxu0
  %v7203 = vadd.f32 %v7126, %v7202
  %7204 = vdwg.mxu0
  %7205 = vmatprep.subr.mxu0 %v6973
  %7206 = vmatpush1.msra.mxu0 %v6972
  %7207 = vmatprep.subr.mxu0 %v6976
  %7208 = vmatpush1.msra.mxu0 %v6975
  %7209 = vmatprep.subr.mxu0 %v6979
  %7210 = vmatpush1.msra.mxu0 %v6978
  %7211 = vmatprep.subr.mxu0 %v6982
  %7212 = vmatpush1.msra.mxu0 %v6981
  %7213 = vmatprep.subr.mxu0 %v6985
  %7214 = vmatpush1.msra.mxu0 %v6984
  %7215 = vmatprep.subr.mxu0 %v6988
  %7216 = vmatpush1.msra.mxu0 %v6987
  %7217 = vmatprep.subr.mxu0 %v6991
  %7218 = vmatpush1.msra.mxu0 %v6990
  %7219 = vmatprep.subr.mxu0 %v6994
  %7220 = vmatpush1.msra.mxu0 %v6993
  %7221 = vmatprep.subr.mxu0 %v6997
  %7222 = vmatpush1.msra.mxu0 %v6996
  %7223 = vmatprep.subr.mxu0 %v7000
  %7224 = vmatpush1.msra.mxu0 %v6999
  %7225 = vmatprep.subr.mxu0 %v7003
  %7226 = vmatpush1.msra.mxu0 %v7002
  %7227 = vmatprep.subr.mxu0 %v7006
  %7228 = vmatpush1.msra.mxu0 %v7005
  %7229 = vmatprep.subr.mxu0 %v7009
  %7230 = vmatpush1.msra.mxu0 %v7008
  %7231 = vmatprep.subr.mxu0 %v7012
  %7232 = vmatpush1.msra.mxu0 %v7011
  %7233 = vmatprep.subr.mxu0 %v7015
  %7234 = vmatpush1.msra.mxu0 %v7014
  %7235 = vmatprep.subr.mxu0 %v7018
  %7236 = vmatpush1.msra.mxu0 %v7017
  %7237 = vmatprep.subr.mxu0 %v7021
  %7238 = vmatpush1.msra.mxu0 %v7020
  %7239 = vmatprep.subr.mxu0 %v7024
  %7240 = vmatpush1.msra.mxu0 %v7023
  %7241 = vmatprep.subr.mxu0 %v7027
  %7242 = vmatpush1.msra.mxu0 %v7026
  %7243 = vmatprep.subr.mxu0 %v7030
  %7244 = vmatpush1.msra.mxu0 %v7029
  %7245 = vmatprep.subr.mxu0 %v7033
  %7246 = vmatpush1.msra.mxu0 %v7032
  %7247 = vmatprep.subr.mxu0 %v7036
  %7248 = vmatpush1.msra.mxu0 %v7035
  %7249 = vmatprep.subr.mxu0 %v7039
  %7250 = vmatpush1.msra.mxu0 %v7038
  %7251 = vmatprep.subr.mxu0 %v7042
  %7252 = vmatpush1.msra.mxu0 %v7041
  %7253 = vmatprep.subr.mxu0 %v7045
  %7254 = vmatpush1.msra.mxu0 %v7044
  %7255 = vmatprep.subr.mxu0 %v7048
  %7256 = vmatpush1.msra.mxu0 %v7047
  %7257 = vmatprep.subr.mxu0 %v7051
  %7258 = vmatpush1.msra.mxu0 %v7050
  %7259 = vmatprep.subr.mxu0 %v7054
  %7260 = vmatpush1.msra.mxu0 %v7053
  %7261 = vmatprep.subr.mxu0 %v7057
  %7262 = vmatpush1.msra.mxu0 %v7056
  %7263 = vmatprep.subr.mxu0 %v7060
  %7264 = vmatpush1.msra.mxu0 %v7059
  %7265 = vmatprep.subr.mxu0 %v7063
  %7266 = vmatpush1.msra.mxu0 %v7062
  %7267 = vmatprep.subr.mxu0 %v7066
  %7268 = vmatpush1.msra.mxu0 %v7065
  %7269 = vmatprep.mubr.f32.mxu0 %v6874
  %7270 = vmatmul.mubr.f32.gmra.mrb[0].mxu0 %v6873
  %v7271 = vpop.f32.mrb[0].mxu0
  %v7272 = vadd.f32 %v7201, %v7271
  %v7273 = vpop.f32.mrb[0].mxu0
  %v7274 = vadd.f32 %v7203, %v7273
  %7275 = vdwg.mxu0
  %7276 = vmatprep.subr.mxu0 %v7069
  %7277 = vmatpush1.msra.mxu0 %v7068
  %7278 = vmatprep.subr.mxu0 %v7072
  %7279 = vmatpush1.msra.mxu0 %v7071
  %7280 = vmatprep.subr.mxu0 %v7075
  %7281 = vmatpush1.msra.mxu0 %v7074
  %7282 = vmatprep.subr.mxu0 %v7078
  %7283 = vmatpush1.msra.mxu0 %v7077
  %7284 = vmatprep.subr.mxu0 %v7081
  %7285 = vmatpush1.msra.mxu0 %v7080
  %7286 = vmatprep.subr.mxu0 %v7084
  %7287 = vmatpush1.msra.mxu0 %v7083
  %7288 = vmatprep.subr.mxu0 %v7087
  %7289 = vmatpush1.msra.mxu0 %v7086
  %7290 = vmatprep.subr.mxu0 %v7090
  %7291 = vmatpush1.msra.mxu0 %v7089
  %7292 = vmatprep.subr.mxu0 %v7093
  %7293 = vmatpush1.msra.mxu0 %v7092
  %7294 = vmatprep.subr.mxu0 %v7096
  %7295 = vmatpush1.msra.mxu0 %v7095
  %7296 = vmatprep.subr.mxu0 %v7099
  %7297 = vmatpush1.msra.mxu0 %v7098
  %7298 = vmatprep.subr.mxu0 %v7102
  %7299 = vmatpush1.msra.mxu0 %v7101
  %7300 = vmatprep.subr.mxu0 %v7105
  %7301 = vmatpush1.msra.mxu0 %v7104
  %7302 = vmatprep.subr.mxu0 %v7108
  %7303 = vmatpush1.msra.mxu0 %v7107
  %7304 = vmatprep.subr.mxu0 %v7111
  %7305 = vmatpush1.msra.mxu0 %v7110
  %7306 = vmatprep.subr.mxu0 %v7114
  %7307 = vmatpush1.msra.mxu0 %v7113
  %7308 = vmatprep.subr.mxu0 0.0
  %7309 = vmatpush1.msra.mxu0 0.0
  %7310 = vmatprep.subr.mxu0 0.0
  %7311 = vmatpush1.msra.mxu0 0.0
  %7312 = vmatprep.subr.mxu0 0.0
  %7313 = vmatpush1.msra.mxu0 0.0
  %7314 = vmatprep.subr.mxu0 0.0
  %7315 = vmatpush1.msra.mxu0 0.0
  %7316 = vmatprep.subr.mxu0 0.0
  %7317 = vmatpush1.msra.mxu0 0.0
  %7318 = vmatprep.subr.mxu0 0.0
  %7319 = vmatpush1.msra.mxu0 0.0
  %7320 = vmatprep.subr.mxu0 0.0
  %7321 = vmatpush1.msra.mxu0 0.0
  %7322 = vmatprep.subr.mxu0 0.0
  %7323 = vmatpush1.msra.mxu0 0.0
  %7324 = vmatprep.subr.mxu0 0.0
  %7325 = vmatpush1.msra.mxu0 0.0
  %7326 = vmatprep.subr.mxu0 0.0
  %7327 = vmatpush1.msra.mxu0 0.0
  %7328 = vmatprep.subr.mxu0 0.0
  %7329 = vmatpush1.msra.mxu0 0.0
  %7330 = vmatprep.subr.mxu0 0.0
  %7331 = vmatpush1.msra.mxu0 0.0
  %7332 = vmatprep.subr.mxu0 0.0
  %7333 = vmatpush1.msra.mxu0 0.0
  %7334 = vmatprep.subr.mxu0 0.0
  %7335 = vmatpush1.msra.mxu0 0.0
  %7336 = vmatprep.subr.mxu0 0.0
  %7337 = vmatpush1.msra.mxu0 0.0
  %7338 = vmatprep.subr.mxu0 0.0
  %7339 = vmatpush1.msra.mxu0 0.0
  %7340 = vmatprep.mubr.f32.mxu0 0.0
  %7341 = vmatmul.mubr.f32.gmra.mrb[0].mxu0 %v6875
  %v7342 = vpop.f32.mrb[0].mxu0
  %v7343 = vadd.f32 %v7272, %v7342
  %v7344 = vpop.f32.mrb[0].mxu0
  %v7345 = vadd.f32 %v7274, %v7344
  %7346 = vdwg.mxu0
  %7347 = vmatprep.subr.mxu0 0.0
  %7348 = vmatpush1.msra.mxu0 %v6878
  %7349 = vmatprep.subr.mxu0 0.0
  %7350 = vmatpush1.msra.mxu0 %v6881
  %7351 = vmatprep.subr.mxu0 0.0
  %7352 = vmatpush1.msra.mxu0 %v6884
  %7353 = vmatprep.subr.mxu0 0.0
  %7354 = vmatpush1.msra.mxu0 %v6887
  %7355 = vmatprep.subr.mxu0 0.0
  %7356 = vmatpush1.msra.mxu0 %v6890
  %7357 = vmatprep.subr.mxu0 0.0
  %7358 = vmatpush1.msra.mxu0 %v6893
  %7359 = vmatprep.subr.mxu0 0.0
  %7360 = vmatpush1.msra.mxu0 %v6896
  %7361 = vmatprep.subr.mxu0 0.0
  %7362 = vmatpush1.msra.mxu0 %v6899
  %7363 = vmatprep.subr.mxu0 0.0
  %7364 = vmatpush1.msra.mxu0 %v6902
  %7365 = vmatprep.subr.mxu0 0.0
  %7366 = vmatpush1.msra.mxu0 %v6905
  %7367 = vmatprep.subr.mxu0 0.0
  %7368 = vmatpush1.msra.mxu0 %v6908
  %7369 = vmatprep.subr.mxu0 0.0
  %7370 = vmatpush1.msra.mxu0 %v6911
  %7371 = vmatprep.subr.mxu0 0.0
  %7372 = vmatpush1.msra.mxu0 %v6914
  %7373 = vmatprep.subr.mxu0 0.0
  %7374 = vmatpush1.msra.mxu0 %v6917
  %7375 = vmatprep.subr.mxu0 0.0
  %7376 = vmatpush1.msra.mxu0 %v6920
  %7377 = vmatprep.subr.mxu0 0.0
  %7378 = vmatpush1.msra.mxu0 %v6923
  %7379 = vmatprep.subr.mxu0 0.0
  %7380 = vmatpush1.msra.mxu0 %v6926
  %7381 = vmatprep.subr.mxu0 0.0
  %7382 = vmatpush1.msra.mxu0 %v6929
  %7383 = vmatprep.subr.mxu0 0.0
  %7384 = vmatpush1.msra.mxu0 %v6932
  %7385 = vmatprep.subr.mxu0 0.0
  %7386 = vmatpush1.msra.mxu0 %v6935
  %7387 = vmatprep.subr.mxu0 0.0
  %7388 = vmatpush1.msra.mxu0 %v6938
  %7389 = vmatprep.subr.mxu0 0.0
  %7390 = vmatpush1.msra.mxu0 %v6941
  %7391 = vmatprep.subr.mxu0 0.0
  %7392 = vmatpush1.msra.mxu0 %v6944
  %7393 = vmatprep.subr.mxu0 0.0
  %7394 = vmatpush1.msra.mxu0 %v6947
  %7395 = vmatprep.subr.mxu0 0.0
  %7396 = vmatpush1.msra.mxu0 %v6950
  %7397 = vmatprep.subr.mxu0 0.0
  %7398 = vmatpush1.msra.mxu0 %v6953
  %7399 = vmatprep.subr.mxu0 0.0
  %7400 = vmatpush1.msra.mxu0 %v6956
  %7401 = vmatprep.subr.mxu0 0.0
  %7402 = vmatpush1.msra.mxu0 %v6959
  %7403 = vmatprep.subr.mxu0 0.0
  %7404 = vmatpush1.msra.mxu0 %v6962
  %7405 = vmatprep.subr.mxu0 0.0
  %7406 = vmatpush1.msra.mxu0 %v6965
  %7407 = vmatprep.subr.mxu0 0.0
  %7408 = vmatpush1.msra.mxu0 %v6968
  %7409 = vmatprep.subr.mxu0 0.0
  %7410 = vmatpush1.msra.mxu0 %v6971
  %7411 = vmatprep.mubr.f32.mxu0 %v6872
  %7412 = vmatmul.mubr.f32.gmra.mrb[0].mxu0 %v6871
  %v7413 = vpop.f32.mrb[0].mxu0
  %v7414 = vadd.f32 %v7130, %v7413
  %v7415 = vpop.f32.mrb[0].mxu0
  %7416 = vdwg.mxu0
  %7417 = vmatprep.subr.mxu0 0.0
  %7418 = vmatpush1.msra.mxu0 %v6974
  %7419 = vmatprep.subr.mxu0 0.0
  %7420 = vmatpush1.msra.mxu0 %v6977
  %7421 = vmatprep.subr.mxu0 0.0
  %7422 = vmatpush1.msra.mxu0 %v6980
  %7423 = vmatprep.subr.mxu0 0.0
  %7424 = vmatpush1.msra.mxu0 %v6983
  %7425 = vmatprep.subr.mxu0 0.0
  %7426 = vmatpush1.msra.mxu0 %v6986
  %7427 = vmatprep.subr.mxu0 0.0
  %7428 = vmatpush1.msra.mxu0 %v6989
  %7429 = vmatprep.subr.mxu0 0.0
  %7430 = vmatpush1.msra.mxu0 %v6992
  %7431 = vmatprep.subr.mxu0 0.0
  %7432 = vmatpush1.msra.mxu0 %v6995
  %7433 = vmatprep.subr.mxu0 0.0
  %7434 = vmatpush1.msra.mxu0 %v6998
  %7435 = vmatprep.subr.mxu0 0.0
  %7436 = vmatpush1.msra.mxu0 %v7001
  %7437 = vmatprep.subr.mxu0 0.0
  %7438 = vmatpush1.msra.mxu0 %v7004
  %7439 = vmatprep.subr.mxu0 0.0
  %7440 = vmatpush1.msra.mxu0 %v7007
  %7441 = vmatprep.subr.mxu0 0.0
  %7442 = vmatpush1.msra.mxu0 %v7010
  %7443 = vmatprep.subr.mxu0 0.0
  %7444 = vmatpush1.msra.mxu0 %v7013
  %7445 = vmatprep.subr.mxu0 0.0
  %7446 = vmatpush1.msra.mxu0 %v7016
  %7447 = vmatprep.subr.mxu0 0.0
  %7448 = vmatpush1.msra.mxu0 %v7019
  %7449 = vmatprep.subr.mxu0 0.0
  %7450 = vmatpush1.msra.mxu0 %v7022
  %7451 = vmatprep.subr.mxu0 0.0
  %7452 = vmatpush1.msra.mxu0 %v7025
  %7453 = vmatprep.subr.mxu0 0.0
  %7454 = vmatpush1.msra.mxu0 %v7028
  %7455 = vmatprep.subr.mxu0 0.0
  %7456 = vmatpush1.msra.mxu0 %v7031
  %7457 = vmatprep.subr.mxu0 0.0
  %7458 = vmatpush1.msra.mxu0 %v7034
  %7459 = vmatprep.subr.mxu0 0.0
  %7460 = vmatpush1.msra.mxu0 %v7037
  %7461 = vmatprep.subr.mxu0 0.0
  %7462 = vmatpush1.msra.mxu0 %v7040
  %7463 = vmatprep.subr.mxu0 0.0
  %7464 = vmatpush1.msra.mxu0 %v7043
  %7465 = vmatprep.subr.mxu0 0.0
  %7466 = vmatpush1.msra.mxu0 %v7046
  %7467 = vmatprep.subr.mxu0 0.0
  %7468 = vmatpush1.msra.mxu0 %v7049
  %7469 = vmatprep.subr.mxu0 0.0
  %7470 = vmatpush1.msra.mxu0 %v7052
  %7471 = vmatprep.subr.mxu0 0.0
  %7472 = vmatpush1.msra.mxu0 %v7055
  %7473 = vmatprep.subr.mxu0 0.0
  %7474 = vmatpush1.msra.mxu0 %v7058
  %7475 = vmatprep.subr.mxu0 0.0
  %7476 = vmatpush1.msra.mxu0 %v7061
  %7477 = vmatprep.subr.mxu0 0.0
  %7478 = vmatpush1.msra.mxu0 %v7064
  %7479 = vmatprep.subr.mxu0 0.0
  %7480 = vmatpush1.msra.mxu0 %v7067
  %7481 = vmatprep.mubr.f32.mxu0 %v6874
  %7482 = vmatmul.mubr.f32.gmra.mrb[0].mxu0 %v6873
  %v7483 = vpop.f32.mrb[0].mxu0
  %v7484 = vadd.f32 %v7414, %v7483
  %v7485 = vpop.f32.mrb[0].mxu0
  %7486 = vdwg.mxu0
  %7487 = vmatprep.subr.mxu0 0.0
  %7488 = vmatpush1.msra.mxu0 %v7070
  %7489 = vmatprep.subr.mxu0 0.0
  %7490 = vmatpush1.msra.mxu0 %v7073
  %7491 = vmatprep.subr.mxu0 0.0
  %7492 = vmatpush1.msra.mxu0 %v7076
  %7493 = vmatprep.subr.mxu0 0.0
  %7494 = vmatpush1.msra.mxu0 %v7079
  %7495 = vmatprep.subr.mxu0 0.0
  %7496 = vmatpush1.msra.mxu0 %v7082
  %7497 = vmatprep.subr.mxu0 0.0
  %7498 = vmatpush1.msra.mxu0 %v7085
  %7499 = vmatprep.subr.mxu0 0.0
  %7500 = vmatpush1.msra.mxu0 %v7088
  %7501 = vmatprep.subr.mxu0 0.0
  %7502 = vmatpush1.msra.mxu0 %v7091
  %7503 = vmatprep.subr.mxu0 0.0
  %7504 = vmatpush1.msra.mxu0 %v7094
  %7505 = vmatprep.subr.mxu0 0.0
  %7506 = vmatpush1.msra.mxu0 %v7097
  %7507 = vmatprep.subr.mxu0 0.0
  %7508 = vmatpush1.msra.mxu0 %v7100
  %7509 = vmatprep.subr.mxu0 0.0
  %7510 = vmatpush1.msra.mxu0 %v7103
  %7511 = vmatprep.subr.mxu0 0.0
  %7512 = vmatpush1.msra.mxu0 %v7106
  %7513 = vmatprep.subr.mxu0 0.0
  %7514 = vmatpush1.msra.mxu0 %v7109
  %7515 = vmatprep.subr.mxu0 0.0
  %7516 = vmatpush1.msra.mxu0 %v7112
  %7517 = vmatprep.subr.mxu0 0.0
  %7518 = vmatpush1.msra.mxu0 %v7115
  %7519 = vmatprep.subr.mxu0 0.0
  %7520 = vmatpush1.msra.mxu0 0.0
  %7521 = vmatprep.subr.mxu0 0.0
  %7522 = vmatpush1.msra.mxu0 0.0
  %7523 = vmatprep.subr.mxu0 0.0
  %7524 = vmatpush1.msra.mxu0 0.0
  %7525 = vmatprep.subr.mxu0 0.0
  %7526 = vmatpush1.msra.mxu0 0.0
  %7527 = vmatprep.subr.mxu0 0.0
  %7528 = vmatpush1.msra.mxu0 0.0
  %7529 = vmatprep.subr.mxu0 0.0
  %7530 = vmatpush1.msra.mxu0 0.0
  %7531 = vmatprep.subr.mxu0 0.0
  %7532 = vmatpush1.msra.mxu0 0.0
  %7533 = vmatprep.subr.mxu0 0.0
  %7534 = vmatpush1.msra.mxu0 0.0
  %7535 = vmatprep.subr.mxu0 0.0
  %7536 = vmatpush1.msra.mxu0 0.0
  %7537 = vmatprep.subr.mxu0 0.0
  %7538 = vmatpush1.msra.mxu0 0.0
  %7539 = vmatprep.subr.mxu0 0.0
  %7540 = vmatpush1.msra.mxu0 0.0
  %7541 = vmatprep.subr.mxu0 0.0
  %7542 = vmatpush1.msra.mxu0 0.0
  %7543 = vmatprep.subr.mxu0 0.0
  %7544 = vmatpush1.msra.mxu0 0.0
  %7545 = vmatprep.subr.mxu0 0.0
  %7546 = vmatpush1.msra.mxu0 0.0
  %7547 = vmatprep.subr.mxu0 0.0
  %7548 = vmatpush1.msra.mxu0 0.0
  %7549 = vmatprep.subr.mxu0 0.0
  %7550 = vmatpush1.msra.mxu0 0.0
  %7551 = vmatprep.mubr.f32.mxu0 0.0
  %7552 = vmatmul.mubr.f32.gmra.mrb[0].mxu0 %v6875
  %v7553 = vpop.f32.mrb[0].mxu0
  %v7554 = vadd.f32 %v7484, %v7553
  %v7555 = vpop.f32.mrb[0].mxu0
  %7556 = vdwg.mxu0
  %v7557 = vmax.f32 %v7343, 0.0
  %v7558 = vmax.f32 %v7345, 0.0
  %v7559 = vmax.f32 %v7554, 0.0
  %v7560 = vld [vmem:[%s7] sm:$0xff]
  %v7561 = vld [vmem:[%s7 + $0x8] sm:$0xff]
  %v7562 = vld [vmem:[%s7 + $0x10] sm:$0xff]
  %v7563 = vld [vmem:[%s7 + $0x18] sm:$0xff]
  %v7564 = vld [vmem:[%s7 + $0x20] sm:$0xff]
  %v7565 = vld [vmem:[%s7 + $0x28] sm:$0xff]
  %v7566 = vld [vmem:[%s7 + $0x30] sm:$0xff]
  %v7567 = vld [vmem:[%s7 + $0x38] sm:$0xff]
  %v7568 = vld [vmem:[%s7 + $0x40] sm:$0xff]
  %v7569 = vld [vmem:[%s7 + $0x48] sm:$0xff]
  %v7570 = vld [vmem:[%s7 + $0x50] sm:$0xff]
  %v7571 = vld [vmem:[%s7 + $0x58] sm:$0xff]
  %v7572 = vld [vmem:[%s7 + $0x60] sm:$0xff]
  %v7573 = vld [vmem:[%s7 + $0x68] sm:$0xff]
  %v7574 = vld [vmem:[%s7 + $0x70] sm:$0xff]
  %v7575 = vld [vmem:[%s7 + $0x78] sm:$0xff]
  %v7576 = vld [vmem:[%s7 + $0x80] sm:$0xff]
  %v7577 = vld [vmem:[%s7 + $0x88] sm:$0xff]
  %v7578 = vld [vmem:[%s7 + $0x90] sm:$0xff]
  %v7579 = vld [vmem:[%s7 + $0x98] sm:$0xff]
  %v7580 = vld [vmem:[%s7 + $0xa0] sm:$0xff]
  %v7581 = vld [vmem:[%s7 + $0xa8] sm:$0xff]
  %v7582 = vld [vmem:[%s7 + $0xb0] sm:$0xff]
  %v7583 = vld [vmem:[%s7 + $0xb8] sm:$0xff]
  %v7584 = vld [vmem:[%s7 + $0xc0] sm:$0xff]
  %v7585 = vld [vmem:[%s7 + $0xc8] sm:$0xff]
  %v7586 = vld [vmem:[%s7 + $0xd0] sm:$0xff]
  %v7587 = vld [vmem:[%s7 + $0xd8] sm:$0xff]
  %v7588 = vld [vmem:[%s7 + $0xe0] sm:$0xff]
  %v7589 = vld [vmem:[%s7 + $0xe8] sm:$0xff]
  %v7590 = vld [vmem:[%s7 + $0xf0] sm:$0xff]
  %v7591 = vld [vmem:[%s7 + $0xf8] sm:$0xff]
  %v7592 = vld [vmem:[%s7 + $0x100] sm:$0xff]
  %v7593 = vld [vmem:[%s7 + $0x108] sm:$0xff]
  %v7594 = vld [vmem:[%s7 + $0x110] sm:$0xff]
  %v7595 = vld [vmem:[%s7 + $0x118] sm:$0xff]
  %v7596 = vld [vmem:[%s7 + $0x120] sm:$0xff]
  %v7597 = vld [vmem:[%s7 + $0x128] sm:$0xff]
  %v7598 = vld [vmem:[%s7 + $0x130] sm:$0xff]
  %v7599 = vld [vmem:[%s7 + $0x138] sm:$0xff]
  %v7600 = vld [vmem:[%s7 + $0x140] sm:$0x1]
  %v7601 = vlaneseq
  %v7602 = vshrl.u32 %v7601, 7
  %v7603 = vsub.s32 0, %v7602
  %v7604 = vrot.slane %v7600, %v7603
  %v7606 = vsel %vm229, %v7559, 0
  %7608 = vmatprep.subr.mxu0 0.0
  %7609 = vmatpush1.msra.mxu0 %v7560
  %7610 = vmatprep.subr.mxu0 0.0
  %7611 = vmatpush1.msra.mxu0 %v7561
  %7612 = vmatprep.subr.mxu0 0.0
  %7613 = vmatpush1.msra.mxu0 %v7562
  %7614 = vmatprep.subr.mxu0 0.0
  %7615 = vmatpush1.msra.mxu0 %v7563
  %7616 = vmatprep.subr.mxu0 0.0
  %7617 = vmatpush1.msra.mxu0 %v7564
  %7618 = vmatprep.subr.mxu0 0.0
  %7619 = vmatpush1.msra.mxu0 %v7565
  %7620 = vmatprep.subr.mxu0 0.0
  %7621 = vmatpush1.msra.mxu0 %v7566
  %7622 = vmatprep.subr.mxu0 0.0
  %7623 = vmatpush1.msra.mxu0 %v7567
  %7624 = vmatprep.subr.mxu0 0.0
  %7625 = vmatpush1.msra.mxu0 %v7568
  %7626 = vmatprep.subr.mxu0 0.0
  %7627 = vmatpush1.msra.mxu0 %v7569
  %7628 = vmatprep.subr.mxu0 0.0
  %7629 = vmatpush1.msra.mxu0 %v7570
  %7630 = vmatprep.subr.mxu0 0.0
  %7631 = vmatpush1.msra.mxu0 %v7571
  %7632 = vmatprep.subr.mxu0 0.0
  %7633 = vmatpush1.msra.mxu0 %v7572
  %7634 = vmatprep.subr.mxu0 0.0
  %7635 = vmatpush1.msra.mxu0 %v7573
  %7636 = vmatprep.subr.mxu0 0.0
  %7637 = vmatpush1.msra.mxu0 %v7574
  %7638 = vmatprep.subr.mxu0 0.0
  %7639 = vmatpush1.msra.mxu0 %v7575
  %7640 = vmatprep.subr.mxu0 0.0
  %7641 = vmatpush1.msra.mxu0 %v7576
  %7642 = vmatprep.subr.mxu0 0.0
  %7643 = vmatpush1.msra.mxu0 %v7577
  %7644 = vmatprep.subr.mxu0 0.0
  %7645 = vmatpush1.msra.mxu0 %v7578
  %7646 = vmatprep.subr.mxu0 0.0
  %7647 = vmatpush1.msra.mxu0 %v7579
  %7648 = vmatprep.subr.mxu0 0.0
  %7649 = vmatpush1.msra.mxu0 %v7580
  %7650 = vmatprep.subr.mxu0 0.0
  %7651 = vmatpush1.msra.mxu0 %v7581
  %7652 = vmatprep.subr.mxu0 0.0
  %7653 = vmatpush1.msra.mxu0 %v7582
  %7654 = vmatprep.subr.mxu0 0.0
  %7655 = vmatpush1.msra.mxu0 %v7583
  %7656 = vmatprep.subr.mxu0 0.0
  %7657 = vmatpush1.msra.mxu0 %v7584
  %7658 = vmatprep.subr.mxu0 0.0
  %7659 = vmatpush1.msra.mxu0 %v7585
  %7660 = vmatprep.subr.mxu0 0.0
  %7661 = vmatpush1.msra.mxu0 %v7586
  %7662 = vmatprep.subr.mxu0 0.0
  %7663 = vmatpush1.msra.mxu0 %v7587
  %7664 = vmatprep.subr.mxu0 0.0
  %7665 = vmatpush1.msra.mxu0 %v7588
  %7666 = vmatprep.subr.mxu0 0.0
  %7667 = vmatpush1.msra.mxu0 %v7589
  %7668 = vmatprep.subr.mxu0 0.0
  %7669 = vmatpush1.msra.mxu0 %v7590
  %7670 = vmatprep.subr.mxu0 0.0
  %7671 = vmatpush1.msra.mxu0 %v7591
  %7672 = vmatprep.mubr.f32.mxu0 %v7558
  %7673 = vmatmul.mubr.f32.gmra.mrb[0].mxu0 %v7557
  %v7674 = vpop.f32.mrb[0].mxu0
  %v7675 = vadd.f32 %v7604, %v7674
  %v7676 = vpop.f32.mrb[0].mxu0
  %7677 = vdwg.mxu0
  %7678 = vmatprep.subr.mxu0 0.0
  %7679 = vmatpush1.msra.mxu0 %v7592
  %7680 = vmatprep.subr.mxu0 0.0
  %7681 = vmatpush1.msra.mxu0 %v7593
  %7682 = vmatprep.subr.mxu0 0.0
  %7683 = vmatpush1.msra.mxu0 %v7594
  %7684 = vmatprep.subr.mxu0 0.0
  %7685 = vmatpush1.msra.mxu0 %v7595
  %7686 = vmatprep.subr.mxu0 0.0
  %7687 = vmatpush1.msra.mxu0 %v7596
  %7688 = vmatprep.subr.mxu0 0.0
  %7689 = vmatpush1.msra.mxu0 %v7597
  %7690 = vmatprep.subr.mxu0 0.0
  %7691 = vmatpush1.msra.mxu0 %v7598
  %7692 = vmatprep.subr.mxu0 0.0
  %7693 = vmatpush1.msra.mxu0 %v7599
  %7694 = vmatprep.subr.mxu0 0.0
  %7695 = vmatpush1.msra.mxu0 0.0
  %7696 = vmatprep.subr.mxu0 0.0
  %7697 = vmatpush1.msra.mxu0 0.0
  %7698 = vmatprep.subr.mxu0 0.0
  %7699 = vmatpush1.msra.mxu0 0.0
  %7700 = vmatprep.subr.mxu0 0.0
  %7701 = vmatpush1.msra.mxu0 0.0
  %7702 = vmatprep.subr.mxu0 0.0
  %7703 = vmatpush1.msra.mxu0 0.0
  %7704 = vmatprep.subr.mxu0 0.0
  %7705 = vmatpush1.msra.mxu0 0.0
  %7706 = vmatprep.subr.mxu0 0.0
  %7707 = vmatpush1.msra.mxu0 0.0
  %7708 = vmatprep.subr.mxu0 0.0
  %7709 = vmatpush1.msra.mxu0 0.0
  %7710 = vmatprep.subr.mxu0 0.0
  %7711 = vmatpush1.msra.mxu0 0.0
  %7712 = vmatprep.subr.mxu0 0.0
  %7713 = vmatpush1.msra.mxu0 0.0
  %7714 = vmatprep.subr.mxu0 0.0
  %7715 = vmatpush1.msra.mxu0 0.0
  %7716 = vmatprep.subr.mxu0 0.0
  %7717 = vmatpush1.msra.mxu0 0.0
  %7718 = vmatprep.subr.mxu0 0.0
  %7719 = vmatpush1.msra.mxu0 0.0
  %7720 = vmatprep.subr.mxu0 0.0
  %7721 = vmatpush1.msra.mxu0 0.0
  %7722 = vmatprep.subr.mxu0 0.0
  %7723 = vmatpush1.msra.mxu0 0.0
  %7724 = vmatprep.subr.mxu0 0.0
  %7725 = vmatpush1.msra.mxu0 0.0
  %7726 = vmatprep.subr.mxu0 0.0
  %7727 = vmatpush1.msra.mxu0 0.0
  %7728 = vmatprep.subr.mxu0 0.0
  %7729 = vmatpush1.msra.mxu0 0.0
  %7730 = vmatprep.subr.mxu0 0.0
  %7731 = vmatpush1.msra.mxu0 0.0
  %7732 = vmatprep.subr.mxu0 0.0
  %7733 = vmatpush1.msra.mxu0 0.0
  %7734 = vmatprep.subr.mxu0 0.0
  %7735 = vmatpush1.msra.mxu0 0.0
  %7736 = vmatprep.subr.mxu0 0.0
  %7737 = vmatpush1.msra.mxu0 0.0
  %7738 = vmatprep.subr.mxu0 0.0
  %7739 = vmatpush1.msra.mxu0 0.0
  %7740 = vmatprep.subr.mxu0 0.0
  %7741 = vmatpush1.msra.mxu0 0.0
  %7742 = vmatprep.mubr.f32.mxu0 0.0
  %7743 = vmatmul.mubr.f32.gmra.mrb[0].mxu0 %v7606
  %v7744 = vpop.f32.mrb[0].mxu0
  %v7745 = vadd.f32 %v7675, %v7744
  %v7746 = vpop.f32.mrb[0].mxu0
  %7747 = vdwg.mxu0
  %v7748 = vlaneseq
  %v7749 = vand.u32 %v7748, 127
  %vm7750 = vcmp.eq.s32.totalorder %v7749, 3
  %v7751 = vtanh.pop %v7745
  %v7752 = vsel %vm7750, %v7751, %v7745
  %vm7753 = vcmask 39936
  %7754 = vst.msk [vmem:[%s8] sm:$0xff] %vm7753, %v7752
  // Predicated region
  $region34: #{model_forward.1} parent=0 // pred_check
    _
  $region35: #{model_forward.1} parent=0 // pred_check_branch
    %7756 = sbr.rel (0) target = $region37
  $region36: #{model_forward.1} parent=0 // pred_region
    _
  $region37: #{model_forward.1} parent=0 // pred_fallthru
    _
  // Predicated region
  $region38: #{model_forward.1} parent=0 // pred_check
    _
  $region39: #{model_forward.1} parent=0 // pred_check_branch
    %7758 = sbr.rel (0) target = $region41
  $region40: #{model_forward.1} parent=0 // pred_region
    _
  $region41: #{model_forward.1} parent=0 // pred_fallthru
    _

</llo_original>
